<compile_context>
chip_gen: v7x
topology: tpu7x:2x2x1
jax: 0.10.0
libtpu: 0.0.40
codegen_flags: <defaults>
</compile_context>

<pallas_src>
import jax
import jax.numpy as jnp
from jax.experimental import pallas as pl
from jax.experimental.pallas import tpu as pltpu

# ----------------------------- configuration --------------------------------
ENC_DIM = 768          # fixed by nn.Linear(768, 768) in self.filter
B = 2                  # batch
T = 8                  # seq_length == number of weeks per batch element
N_ENCS = 8             # rows per week (b.loc[week].shape[0])
F0 = 16                # feature dim of input_[0]
F1 = 16                # feature dim of input_[1]
INPUT_SIZE = F0 + F1 + ENC_DIM          # 800
HIDDEN = 32
NUM_LAYERS = 2         # kernel body is specialized for 2 stacked LSTM layers
OUTPUT_SIZE = 8
HORIZON = 4
H4 = 4 * HIDDEN


# --------------------------- fused forward kernel ----------------------------
def _fused_forward_kernel(
        encs_ref, x0_ref, x1_ref,                       # per-batch inputs
        fw_ref, fb_ref,                                 # folded filter Linear
        wih0_x0_ref, wih0_x1_ref, wih0_enc_ref,         # layer-0 W_ih split by input block
        whh0_ref, b0_ref,                               # layer-0 W_hh, (b_ih + b_hh)
        wih1_ref, whh1_ref, b1_ref,                     # layer-1 weights
        lin_w_ref, lin_b_ref,                           # output Linear
        h0_ref, c0_ref,                                 # initial (h, c), batch-major
        preds_ref, enc_out_ref, hT_ref, cT_ref):        # outputs
    H = HIDDEN

    # ---- self.filter + mean over the week's encodings.  The filter stack is linear,
    #      so the mean commutes with it: mean first, then one folded 768x768 matmul.
    enc_mean = jnp.mean(encs_ref[0], axis=1)            # (T, 768)
    encoded = (jnp.dot(enc_mean, fw_ref[...], preferred_element_type=jnp.float32)
               + fb_ref[...])                           # (T, 768)
    enc_out_ref[0] = encoded

    # ---- layer-0 input projection hoisted out of the recurrence:
    #      cat(x0, x1, encoded) @ W_ih0 + b0 for the whole sequence, via split weights.
    xproj = (jnp.dot(x0_ref[0], wih0_x0_ref[...], preferred_element_type=jnp.float32)
             + jnp.dot(x1_ref[0], wih0_x1_ref[...], preferred_element_type=jnp.float32)
             + jnp.dot(encoded, wih0_enc_ref[...], preferred_element_type=jnp.float32)
             + b0_ref[...])                             # (T, 4H)

    # ---- initial states for this batch element (PyTorch gate order: i, f, g, o).
    h_init = h0_ref[0]                                  # (NUM_LAYERS, H)
    c_init = c0_ref[0]
    h_l0, h_l1 = h_init[0:1, :], h_init[1:2, :]         # (1, H) each
    c_l0, c_l1 = c_init[0:1, :], c_init[1:2, :]

    whh0 = whh0_ref[...]
    wih1 = wih1_ref[...]
    whh1 = whh1_ref[...]
    b1 = b1_ref[...]

    def lstm_cell(gates, c):
        # whole-vreg nonlinearities (two EUP pushes for all 4 gates), then lane slices.
        sig = jax.nn.sigmoid(gates)                     # (1, 4H)
        tnh = jnp.tanh(gates)
        i_g = sig[:, 0 * H:1 * H]
        f_g = sig[:, 1 * H:2 * H]
        g_g = tnh[:, 2 * H:3 * H]
        o_g = sig[:, 3 * H:4 * H]
        c_new = f_g * c + i_g * g_g
        h_new = o_g * jnp.tanh(c_new)
        return h_new, c_new

    # ---- fully-unrolled recurrence over T timesteps, both layers per step.
    h1_rows = []
    for t in range(T):
        g0 = xproj[t:t + 1, :] + jnp.dot(h_l0, whh0, preferred_element_type=jnp.float32)
        h_l0, c_l0 = lstm_cell(g0, c_l0)

        g1 = (jnp.dot(h_l0, wih1, preferred_element_type=jnp.float32)
              + jnp.dot(h_l1, whh1, preferred_element_type=jnp.float32)
              + b1)
        h_l1, c_l1 = lstm_cell(g1, c_l1)

        if t < HORIZON:                                 # only the first `horizon` steps
            h1_rows.append(h_l1)                        # are ever returned as predictions

    # ---- output Linear applied only to the returned horizon.
    h_hor = jnp.concatenate(h1_rows, axis=0)            # (HORIZON, H)
    preds_ref[0] = (jnp.dot(h_hor, lin_w_ref[...], preferred_element_type=jnp.float32)
                    + lin_b_ref[...])                   # (HORIZON, OUTPUT_SIZE)

    # ---- new hidden_cell after the FULL sequence (like nn.LSTM's (h_n, c_n)).
    hT_ref[0] = jnp.concatenate([h_l0, h_l1], axis=0)   # (NUM_LAYERS, H)
    cT_ref[0] = jnp.concatenate([c_l0, c_l1], axis=0)


def _fused_forward(params, x0, x1, encs, h0_bm, c0_bm):
    const2 = lambda i: (0, 0)
    batch3 = lambda i: (i, 0, 0)

    in_specs = [
        pl.BlockSpec((1, T, N_ENCS, ENC_DIM), lambda i: (i, 0, 0, 0)),  # encs
        pl.BlockSpec((1, T, F0), batch3),                               # x0
        pl.BlockSpec((1, T, F1), batch3),                               # x1
        pl.BlockSpec((ENC_DIM, ENC_DIM), const2),                       # folded filter W
        pl.BlockSpec((1, ENC_DIM), const2),                             # folded filter b
        pl.BlockSpec((F0, H4), const2),                                 # W_ih0[x0 rows]
        pl.BlockSpec((F1, H4), const2),                                 # W_ih0[x1 rows]
        pl.BlockSpec((ENC_DIM, H4), const2),                            # W_ih0[enc rows]
        pl.BlockSpec((HIDDEN, H4), const2),                             # W_hh0
        pl.BlockSpec((1, H4), const2),                                  # b0
        pl.BlockSpec((HIDDEN, H4), const2),                             # W_ih1
        pl.BlockSpec((HIDDEN, H4), const2),                             # W_hh1
        pl.BlockSpec((1, H4), const2),                                  # b1
        pl.BlockSpec((HIDDEN, OUTPUT_SIZE), const2),                    # lin W
        pl.BlockSpec((1, OUTPUT_SIZE), const2),                         # lin b
        pl.BlockSpec((1, NUM_LAYERS, HIDDEN), batch3),                  # h0 (batch-major)
        pl.BlockSpec((1, NUM_LAYERS, HIDDEN), batch3),                  # c0 (batch-major)
    ]
    out_specs = (
        pl.BlockSpec((1, HORIZON, OUTPUT_SIZE), batch3),                # preds
        pl.BlockSpec((1, T, ENC_DIM), batch3),                          # encoded
        pl.BlockSpec((1, NUM_LAYERS, HIDDEN), batch3),                  # h_n
        pl.BlockSpec((1, NUM_LAYERS, HIDDEN), batch3),                  # c_n
    )
    out_shape = (
        jax.ShapeDtypeStruct((B, HORIZON, OUTPUT_SIZE), jnp.float32),
        jax.ShapeDtypeStruct((B, T, ENC_DIM), jnp.float32),
        jax.ShapeDtypeStruct((B, NUM_LAYERS, HIDDEN), jnp.float32),
        jax.ShapeDtypeStruct((B, NUM_LAYERS, HIDDEN), jnp.float32),
    )
    return pl.pallas_call(
        _fused_forward_kernel,
        out_shape=out_shape,
        grid=(B,),
        in_specs=in_specs,
        out_specs=out_specs,
        compiler_params=pltpu.CompilerParams(dimension_semantics=("parallel",)),
    )(encs, x0, x1,
      params["filt_w"], params["filt_b"],
      params["wih0_x0"], params["wih0_x1"], params["wih0_enc"],
      params["whh0"], params["b0"],
      params["wih1"], params["whh1"], params["b1"],
      params["lin_w"], params["lin_b"],
      h0_bm, c0_bm)


# ------------------------------ parameters -----------------------------------
def init_params(key):
    ks = jax.random.split(key, 8)

    def unif(k, shape, fan_in):
        bound = 1.0 / (fan_in ** 0.5)
        return jax.random.uniform(k, shape, jnp.float32, -bound, bound)

    # self.filter = Sequential(Linear(768,768), Linear(768,768)); weights stored (in, out).
    # No activation between them -> fold offline: y = x@(W1@W2) + (b1@W2 + b2).
    kf = jax.random.split(ks[0], 4)
    fw1 = unif(kf[0], (ENC_DIM, ENC_DIM), ENC_DIM)
    fb1 = unif(kf[1], (1, ENC_DIM), ENC_DIM)
    fw2 = unif(kf[2], (ENC_DIM, ENC_DIM), ENC_DIM)
    fb2 = unif(kf[3], (1, ENC_DIM), ENC_DIM)
    params = {"filt_w": fw1 @ fw2, "filt_b": fb1 @ fw2 + fb2}

    # LSTM layer 0: input = cat(x0, x1, encoded); W_ih stored (in, 4H) and pre-split by
    # input block so the kernel never builds the ragged 800-wide concatenation.
    kl0 = jax.random.split(ks[1], 4)
    wih0 = unif(kl0[0], (INPUT_SIZE, H4), HIDDEN)
    params["wih0_x0"] = wih0[:F0]
    params["wih0_x1"] = wih0[F0:F0 + F1]
    params["wih0_enc"] = wih0[F0 + F1:]
    params["whh0"] = unif(kl0[1], (HIDDEN, H4), HIDDEN)
    params["b0"] = unif(kl0[2], (1, H4), HIDDEN) + unif(kl0[3], (1, H4), HIDDEN)  # b_ih + b_hh

    # LSTM layer 1: input = HIDDEN.
    kl1 = jax.random.split(ks[2], 4)
    params["wih1"] = unif(kl1[0], (HIDDEN, H4), HIDDEN)
    params["whh1"] = unif(kl1[1], (HIDDEN, H4), HIDDEN)
    params["b1"] = unif(kl1[2], (1, H4), HIDDEN) + unif(kl1[3], (1, H4), HIDDEN)

    params["lin_w"] = unif(ks[3], (HIDDEN, OUTPUT_SIZE), HIDDEN)
    params["lin_b"] = unif(ks[4], (1, OUTPUT_SIZE), HIDDEN)
    return params


# ------------------------------ forward pass ----------------------------------
def lstm_generator_forward(params, x0, x1, encs, hidden_cell):
    """Functional LSTMGenerator.forward; also returns the updated hidden_cell."""
    h_all, c_all = hidden_cell                             # (NUM_LAYERS, B, H) PyTorch layout
    h0_bm = jnp.transpose(h_all, (1, 0, 2))                # batch-major for per-batch blocks
    c0_bm = jnp.transpose(c_all, (1, 0, 2))
    preds, encoded, hT_bm, cT_bm = _fused_forward(params, x0, x1, encs, h0_bm, c0_bm)
    new_hidden = (jnp.transpose(hT_bm, (1, 0, 2)),
                  jnp.transpose(cT_bm, (1, 0, 2)))
    return preds, encoded, new_hidden


# ---------------------------------- main ---------------------------------------
if __name__ == "__main__":
    key = jax.random.PRNGKey(0)
    kp, k0, k1, k2 = jax.random.split(key, 4)
    params = init_params(kp)

    # input_[0], input_[1], and a dense stand-in for the per-week DataFrame encodings.
    x0 = jax.random.normal(k0, (B, T, F0), jnp.float32)
    x1 = jax.random.normal(k1, (B, T, F1), jnp.float32)
    encs = jax.random.normal(k2, (B, T, N_ENCS, ENC_DIM), jnp.float32)

    # hidden_cell initialized to zeros, as in __init__ / clear_hidden.
    hidden_cell = (jnp.zeros((NUM_LAYERS, B, HIDDEN), jnp.float32),
                   jnp.zeros((NUM_LAYERS, B, HIDDEN), jnp.float32))

    fwd = jax.jit(lstm_generator_forward)
    preds, encoded, new_hidden = fwd(params, x0, x1, encs, hidden_cell)
    jax.block_until_ready((preds, encoded, new_hidden))

    assert preds.shape == (B, HORIZON, OUTPUT_SIZE)
    assert encoded.shape == (B, T, ENC_DIM)
    assert new_hidden[0].shape == (NUM_LAYERS, B, HIDDEN)
    assert new_hidden[1].shape == (NUM_LAYERS, B, HIDDEN)
    print("KERNEL_OK")
</pallas_src>

<mosaic_0001>
module attributes {stable_mosaic.version = 11 : i64} {
  func.func @_fused_forward_kernel(%arg0: i32, %arg1: memref<1x8x8x768xf32, #tpu.memory_space<vmem>>, %arg2: memref<1x8x16xf32, #tpu.memory_space<vmem>>, %arg3: memref<1x8x16xf32, #tpu.memory_space<vmem>>, %arg4: memref<768x768xf32, #tpu.memory_space<vmem>>, %arg5: memref<1x768xf32, #tpu.memory_space<vmem>>, %arg6: memref<16x128xf32, #tpu.memory_space<vmem>>, %arg7: memref<16x128xf32, #tpu.memory_space<vmem>>, %arg8: memref<768x128xf32, #tpu.memory_space<vmem>>, %arg9: memref<32x128xf32, #tpu.memory_space<vmem>>, %arg10: memref<1x128xf32, #tpu.memory_space<vmem>>, %arg11: memref<32x128xf32, #tpu.memory_space<vmem>>, %arg12: memref<32x128xf32, #tpu.memory_space<vmem>>, %arg13: memref<1x128xf32, #tpu.memory_space<vmem>>, %arg14: memref<32x8xf32, #tpu.memory_space<vmem>>, %arg15: memref<1x8xf32, #tpu.memory_space<vmem>>, %arg16: memref<1x2x32xf32, #tpu.memory_space<vmem>>, %arg17: memref<1x2x32xf32, #tpu.memory_space<vmem>>, %arg18: memref<1x4x8xf32, #tpu.memory_space<vmem>>, %arg19: memref<1x8x768xf32, #tpu.memory_space<vmem>>, %arg20: memref<1x2x32xf32, #tpu.memory_space<vmem>>, %arg21: memref<1x2x32xf32, #tpu.memory_space<vmem>>) attributes {dimension_semantics = [#tpu.dimension_semantics<parallel>], iteration_bounds = array<i64: 2>, scalar_prefetch = 0 : i64, scratch_operands = 0 : i64, tpu.core_type = #tpu.core_type<tc>, window_params = [{transform_indices = @transform_0, window_bounds = array<i64: 1, 8, 8, 768>}, {transform_indices = @transform_1, window_bounds = array<i64: 1, 8, 16>}, {transform_indices = @transform_2, window_bounds = array<i64: 1, 8, 16>}, {pipeline_mode = #tpu.pipeline_mode<synchronous>, transform_indices = @transform_3, window_bounds = array<i64: 768, 768>}, {pipeline_mode = #tpu.pipeline_mode<synchronous>, transform_indices = @transform_4, window_bounds = array<i64: 1, 768>}, {pipeline_mode = #tpu.pipeline_mode<synchronous>, transform_indices = @transform_5, window_bounds = array<i64: 16, 128>}, {pipeline_mode = #tpu.pipeline_mode<synchronous>, transform_indices = @transform_6, window_bounds = array<i64: 16, 128>}, {pipeline_mode = #tpu.pipeline_mode<synchronous>, transform_indices = @transform_7, window_bounds = array<i64: 768, 128>}, {pipeline_mode = #tpu.pipeline_mode<synchronous>, transform_indices = @transform_8, window_bounds = array<i64: 32, 128>}, {pipeline_mode = #tpu.pipeline_mode<synchronous>, transform_indices = @transform_9, window_bounds = array<i64: 1, 128>}, {pipeline_mode = #tpu.pipeline_mode<synchronous>, transform_indices = @transform_10, window_bounds = array<i64: 32, 128>}, {pipeline_mode = #tpu.pipeline_mode<synchronous>, transform_indices = @transform_11, window_bounds = array<i64: 32, 128>}, {pipeline_mode = #tpu.pipeline_mode<synchronous>, transform_indices = @transform_12, window_bounds = array<i64: 1, 128>}, {pipeline_mode = #tpu.pipeline_mode<synchronous>, transform_indices = @transform_13, window_bounds = array<i64: 32, 8>}, {pipeline_mode = #tpu.pipeline_mode<synchronous>, transform_indices = @transform_14, window_bounds = array<i64: 1, 8>}, {transform_indices = @transform_15, window_bounds = array<i64: 1, 2, 32>}, {transform_indices = @transform_16, window_bounds = array<i64: 1, 2, 32>}, {transform_indices = @transform_17, window_bounds = array<i64: 1, 4, 8>}, {transform_indices = @transform_18, window_bounds = array<i64: 1, 8, 768>}, {transform_indices = @transform_19, window_bounds = array<i64: 1, 2, 32>}, {transform_indices = @transform_20, window_bounds = array<i64: 1, 2, 32>}]} {
    %c0 = arith.constant 0 : index
    %c0_0 = arith.constant 0 : index
    %c0_1 = arith.constant 0 : index
    %c0_2 = arith.constant 0 : index
    %0 = vector.load %arg1[%c0, %c0_0, %c0_1, %c0_2] : memref<1x8x8x768xf32, #tpu.memory_space<vmem>>, vector<1x8x8x768xf32>
    %1 = vector.shape_cast %0 : vector<1x8x8x768xf32> to vector<8x8x768xf32>
    %cst = arith.constant dense<0.000000e+00> : vector<8x768xf32>
    %2 = vector.multi_reduction <add>, %1, %cst [1] : vector<8x8x768xf32> to vector<8x768xf32>
    %cst_3 = arith.constant 8.000000e+00 : f32
    %3 = vector.broadcast %cst_3 : f32 to vector<8x768xf32>
    %4 = arith.divf %2, %3 : vector<8x768xf32>
    %c0_4 = arith.constant 0 : index
    %c0_5 = arith.constant 0 : index
    %5 = vector.load %arg4[%c0_4, %c0_5] : memref<768x768xf32, #tpu.memory_space<vmem>>, vector<768x768xf32>
    %cst_6 = arith.constant dense<0.000000e+00> : vector<8x768xf32>
    %6 = tpu.matmul %4, %5, %cst_6 {dimension_numbers = #tpu.dot_dimension_numbers<[1], [0], [0], [1], [0, 0, 1, 1], [], []>} : vector<8x768xf32>, vector<768x768xf32>, vector<8x768xf32> -> vector<8x768xf32>
    %c0_7 = arith.constant 0 : index
    %c0_8 = arith.constant 0 : index
    %7 = vector.load %arg5[%c0_7, %c0_8] : memref<1x768xf32, #tpu.memory_space<vmem>>, vector<1x768xf32>
    %8 = vector.broadcast %7 : vector<1x768xf32> to vector<8x768xf32>
    %9 = arith.addf %6, %8 : vector<8x768xf32>
    %c0_9 = arith.constant 0 : index
    %c0_10 = arith.constant 0 : index
    %c0_11 = arith.constant 0 : index
    %10 = vector.load %arg19[%c0_9, %c0_10, %c0_11] : memref<1x8x768xf32, #tpu.memory_space<vmem>>, vector<1x8x768xf32>
    %11 = vector.shape_cast %10 : vector<1x8x768xf32> to vector<8x768xf32>
    %12 = vector.shape_cast %9 : vector<8x768xf32> to vector<1x8x768xf32>
    tpu.vector_store %arg19[%c0_9, %c0_10, %c0_11], %12 {strides = array<i32>} : memref<1x8x768xf32, #tpu.memory_space<vmem>>, vector<1x8x768xf32>,
    %c0_12 = arith.constant 0 : index
    %c0_13 = arith.constant 0 : index
    %c0_14 = arith.constant 0 : index
    %13 = vector.load %arg2[%c0_12, %c0_13, %c0_14] : memref<1x8x16xf32, #tpu.memory_space<vmem>>, vector<1x8x16xf32>
    %14 = vector.shape_cast %13 : vector<1x8x16xf32> to vector<8x16xf32>
    %c0_15 = arith.constant 0 : index
    %c0_16 = arith.constant 0 : index
    %15 = vector.load %arg6[%c0_15, %c0_16] : memref<16x128xf32, #tpu.memory_space<vmem>>, vector<16x128xf32>
    %cst_17 = arith.constant dense<0.000000e+00> : vector<8x128xf32>
    %16 = tpu.matmul %14, %15, %cst_17 {dimension_numbers = #tpu.dot_dimension_numbers<[1], [0], [0], [1], [0, 0, 1, 1], [], []>} : vector<8x16xf32>, vector<16x128xf32>, vector<8x128xf32> -> vector<8x128xf32>
    %c0_18 = arith.constant 0 : index
    %c0_19 = arith.constant 0 : index
    %c0_20 = arith.constant 0 : index
    %17 = vector.load %arg3[%c0_18, %c0_19, %c0_20] : memref<1x8x16xf32, #tpu.memory_space<vmem>>, vector<1x8x16xf32>
    %18 = vector.shape_cast %17 : vector<1x8x16xf32> to vector<8x16xf32>
    %c0_21 = arith.constant 0 : index
    %c0_22 = arith.constant 0 : index
    %19 = vector.load %arg7[%c0_21, %c0_22] : memref<16x128xf32, #tpu.memory_space<vmem>>, vector<16x128xf32>
    %cst_23 = arith.constant dense<0.000000e+00> : vector<8x128xf32>
    %20 = tpu.matmul %18, %19, %cst_23 {dimension_numbers = #tpu.dot_dimension_numbers<[1], [0], [0], [1], [0, 0, 1, 1], [], []>} : vector<8x16xf32>, vector<16x128xf32>, vector<8x128xf32> -> vector<8x128xf32>
    %21 = arith.addf %16, %20 : vector<8x128xf32>
    %c0_24 = arith.constant 0 : index
    %c0_25 = arith.constant 0 : index
    %22 = vector.load %arg8[%c0_24, %c0_25] : memref<768x128xf32, #tpu.memory_space<vmem>>, vector<768x128xf32>
    %cst_26 = arith.constant dense<0.000000e+00> : vector<8x128xf32>
    %23 = tpu.matmul %9, %22, %cst_26 {dimension_numbers = #tpu.dot_dimension_numbers<[1], [0], [0], [1], [0, 0, 1, 1], [], []>} : vector<8x768xf32>, vector<768x128xf32>, vector<8x128xf32> -> vector<8x128xf32>
    %24 = arith.addf %21, %23 : vector<8x128xf32>
    %c0_27 = arith.constant 0 : index
    %c0_28 = arith.constant 0 : index
    %25 = vector.load %arg10[%c0_27, %c0_28] : memref<1x128xf32, #tpu.memory_space<vmem>>, vector<1x128xf32>
    %26 = vector.broadcast %25 : vector<1x128xf32> to vector<8x128xf32>
    %27 = arith.addf %24, %26 : vector<8x128xf32>
    %c0_29 = arith.constant 0 : index
    %c0_30 = arith.constant 0 : index
    %c0_31 = arith.constant 0 : index
    %28 = vector.load %arg16[%c0_29, %c0_30, %c0_31] : memref<1x2x32xf32, #tpu.memory_space<vmem>>, vector<1x2x32xf32>
    %29 = vector.shape_cast %28 : vector<1x2x32xf32> to vector<2x32xf32>
    %c0_32 = arith.constant 0 : index
    %c0_33 = arith.constant 0 : index
    %c0_34 = arith.constant 0 : index
    %30 = vector.load %arg17[%c0_32, %c0_33, %c0_34] : memref<1x2x32xf32, #tpu.memory_space<vmem>>, vector<1x2x32xf32>
    %31 = vector.shape_cast %30 : vector<1x2x32xf32> to vector<2x32xf32>
    %32 = vector.extract_strided_slice %29 {offsets = [0, 0], sizes = [1, 32], strides = [1, 1]} : vector<2x32xf32> to vector<1x32xf32>
    %33 = vector.extract_strided_slice %29 {offsets = [1, 0], sizes = [1, 32], strides = [1, 1]} : vector<2x32xf32> to vector<1x32xf32>
    %34 = vector.extract_strided_slice %31 {offsets = [0, 0], sizes = [1, 32], strides = [1, 1]} : vector<2x32xf32> to vector<1x32xf32>
    %35 = vector.extract_strided_slice %31 {offsets = [1, 0], sizes = [1, 32], strides = [1, 1]} : vector<2x32xf32> to vector<1x32xf32>
    %c0_35 = arith.constant 0 : index
    %c0_36 = arith.constant 0 : index
    %36 = vector.load %arg9[%c0_35, %c0_36] : memref<32x128xf32, #tpu.memory_space<vmem>>, vector<32x128xf32>
    %c0_37 = arith.constant 0 : index
    %c0_38 = arith.constant 0 : index
    %37 = vector.load %arg11[%c0_37, %c0_38] : memref<32x128xf32, #tpu.memory_space<vmem>>, vector<32x128xf32>
    %c0_39 = arith.constant 0 : index
    %c0_40 = arith.constant 0 : index
    %38 = vector.load %arg12[%c0_39, %c0_40] : memref<32x128xf32, #tpu.memory_space<vmem>>, vector<32x128xf32>
    %c0_41 = arith.constant 0 : index
    %c0_42 = arith.constant 0 : index
    %39 = vector.load %arg13[%c0_41, %c0_42] : memref<1x128xf32, #tpu.memory_space<vmem>>, vector<1x128xf32>
    %40 = vector.extract_strided_slice %27 {offsets = [0, 0], sizes = [1, 128], strides = [1, 1]} : vector<8x128xf32> to vector<1x128xf32>
    %cst_43 = arith.constant dense<0.000000e+00> : vector<1x128xf32>
    %41 = tpu.matmul %32, %36, %cst_43 {dimension_numbers = #tpu.dot_dimension_numbers<[1], [0], [0], [1], [0, 0, 1, 1], [], []>} : vector<1x32xf32>, vector<32x128xf32>, vector<1x128xf32> -> vector<1x128xf32>
    %42 = arith.addf %40, %41 : vector<1x128xf32>
    %43 = arith.negf %42 : vector<1x128xf32>
    %44 = math.exp %43 : vector<1x128xf32>
    %cst_44 = arith.constant 1.000000e+00 : f32
    %45 = vector.broadcast %cst_44 : f32 to vector<1x128xf32>
    %46 = arith.addf %45, %44 : vector<1x128xf32>
    %47 = arith.divf %45, %46 : vector<1x128xf32>
    %48 = math.tanh %42 : vector<1x128xf32>
    %49 = vector.extract_strided_slice %47 {offsets = [0, 0], sizes = [1, 32], strides = [1, 1]} : vector<1x128xf32> to vector<1x32xf32>
    %50 = vector.extract_strided_slice %47 {offsets = [0, 32], sizes = [1, 32], strides = [1, 1]} : vector<1x128xf32> to vector<1x32xf32>
    %51 = vector.extract_strided_slice %48 {offsets = [0, 64], sizes = [1, 32], strides = [1, 1]} : vector<1x128xf32> to vector<1x32xf32>
    %52 = vector.extract_strided_slice %47 {offsets = [0, 96], sizes = [1, 32], strides = [1, 1]} : vector<1x128xf32> to vector<1x32xf32>
    %53 = arith.mulf %50, %34 : vector<1x32xf32>
    %54 = arith.mulf %49, %51 : vector<1x32xf32>
    %55 = arith.addf %53, %54 : vector<1x32xf32>
    %56 = math.tanh %55 : vector<1x32xf32>
    %57 = arith.mulf %52, %56 : vector<1x32xf32>
    %cst_45 = arith.constant dense<0.000000e+00> : vector<1x128xf32>
    %58 = tpu.matmul %57, %37, %cst_45 {dimension_numbers = #tpu.dot_dimension_numbers<[1], [0], [0], [1], [0, 0, 1, 1], [], []>} : vector<1x32xf32>, vector<32x128xf32>, vector<1x128xf32> -> vector<1x128xf32>
    %cst_46 = arith.constant dense<0.000000e+00> : vector<1x128xf32>
    %59 = tpu.matmul %33, %38, %cst_46 {dimension_numbers = #tpu.dot_dimension_numbers<[1], [0], [0], [1], [0, 0, 1, 1], [], []>} : vector<1x32xf32>, vector<32x128xf32>, vector<1x128xf32> -> vector<1x128xf32>
    %60 = arith.addf %58, %59 : vector<1x128xf32>
    %61 = arith.addf %60, %39 : vector<1x128xf32>
    %62 = arith.negf %61 : vector<1x128xf32>
    %63 = math.exp %62 : vector<1x128xf32>
    %cst_47 = arith.constant 1.000000e+00 : f32
    %64 = vector.broadcast %cst_47 : f32 to vector<1x128xf32>
    %65 = arith.addf %64, %63 : vector<1x128xf32>
    %66 = arith.divf %64, %65 : vector<1x128xf32>
    %67 = math.tanh %61 : vector<1x128xf32>
    %68 = vector.extract_strided_slice %66 {offsets = [0, 0], sizes = [1, 32], strides = [1, 1]} : vector<1x128xf32> to vector<1x32xf32>
    %69 = vector.extract_strided_slice %66 {offsets = [0, 32], sizes = [1, 32], strides = [1, 1]} : vector<1x128xf32> to vector<1x32xf32>
    %70 = vector.extract_strided_slice %67 {offsets = [0, 64], sizes = [1, 32], strides = [1, 1]} : vector<1x128xf32> to vector<1x32xf32>
    %71 = vector.extract_strided_slice %66 {offsets = [0, 96], sizes = [1, 32], strides = [1, 1]} : vector<1x128xf32> to vector<1x32xf32>
    %72 = arith.mulf %69, %35 : vector<1x32xf32>
    %73 = arith.mulf %68, %70 : vector<1x32xf32>
    %74 = arith.addf %72, %73 : vector<1x32xf32>
    %75 = math.tanh %74 : vector<1x32xf32>
    %76 = arith.mulf %71, %75 : vector<1x32xf32>
    %77 = vector.extract_strided_slice %27 {offsets = [1, 0], sizes = [1, 128], strides = [1, 1]} : vector<8x128xf32> to vector<1x128xf32>
    %cst_48 = arith.constant dense<0.000000e+00> : vector<1x128xf32>
    %78 = tpu.matmul %57, %36, %cst_48 {dimension_numbers = #tpu.dot_dimension_numbers<[1], [0], [0], [1], [0, 0, 1, 1], [], []>} : vector<1x32xf32>, vector<32x128xf32>, vector<1x128xf32> -> vector<1x128xf32>
    %79 = arith.addf %77, %78 : vector<1x128xf32>
    %80 = arith.negf %79 : vector<1x128xf32>
    %81 = math.exp %80 : vector<1x128xf32>
    %cst_49 = arith.constant 1.000000e+00 : f32
    %82 = vector.broadcast %cst_49 : f32 to vector<1x128xf32>
    %83 = arith.addf %82, %81 : vector<1x128xf32>
    %84 = arith.divf %82, %83 : vector<1x128xf32>
    %85 = math.tanh %79 : vector<1x128xf32>
    %86 = vector.extract_strided_slice %84 {offsets = [0, 0], sizes = [1, 32], strides = [1, 1]} : vector<1x128xf32> to vector<1x32xf32>
    %87 = vector.extract_strided_slice %84 {offsets = [0, 32], sizes = [1, 32], strides = [1, 1]} : vector<1x128xf32> to vector<1x32xf32>
    %88 = vector.extract_strided_slice %85 {offsets = [0, 64], sizes = [1, 32], strides = [1, 1]} : vector<1x128xf32> to vector<1x32xf32>
    %89 = vector.extract_strided_slice %84 {offsets = [0, 96], sizes = [1, 32], strides = [1, 1]} : vector<1x128xf32> to vector<1x32xf32>
    %90 = arith.mulf %87, %55 : vector<1x32xf32>
    %91 = arith.mulf %86, %88 : vector<1x32xf32>
    %92 = arith.addf %90, %91 : vector<1x32xf32>
    %93 = math.tanh %92 : vector<1x32xf32>
    %94 = arith.mulf %89, %93 : vector<1x32xf32>
    %cst_50 = arith.constant dense<0.000000e+00> : vector<1x128xf32>
    %95 = tpu.matmul %94, %37, %cst_50 {dimension_numbers = #tpu.dot_dimension_numbers<[1], [0], [0], [1], [0, 0, 1, 1], [], []>} : vector<1x32xf32>, vector<32x128xf32>, vector<1x128xf32> -> vector<1x128xf32>
    %cst_51 = arith.constant dense<0.000000e+00> : vector<1x128xf32>
    %96 = tpu.matmul %76, %38, %cst_51 {dimension_numbers = #tpu.dot_dimension_numbers<[1], [0], [0], [1], [0, 0, 1, 1], [], []>} : vector<1x32xf32>, vector<32x128xf32>, vector<1x128xf32> -> vector<1x128xf32>
    %97 = arith.addf %95, %96 : vector<1x128xf32>
    %98 = arith.addf %97, %39 : vector<1x128xf32>
    %99 = arith.negf %98 : vector<1x128xf32>
    %100 = math.exp %99 : vector<1x128xf32>
    %cst_52 = arith.constant 1.000000e+00 : f32
    %101 = vector.broadcast %cst_52 : f32 to vector<1x128xf32>
    %102 = arith.addf %101, %100 : vector<1x128xf32>
    %103 = arith.divf %101, %102 : vector<1x128xf32>
    %104 = math.tanh %98 : vector<1x128xf32>
    %105 = vector.extract_strided_slice %103 {offsets = [0, 0], sizes = [1, 32], strides = [1, 1]} : vector<1x128xf32> to vector<1x32xf32>
    %106 = vector.extract_strided_slice %103 {offsets = [0, 32], sizes = [1, 32], strides = [1, 1]} : vector<1x128xf32> to vector<1x32xf32>
    %107 = vector.extract_strided_slice %104 {offsets = [0, 64], sizes = [1, 32], strides = [1, 1]} : vector<1x128xf32> to vector<1x32xf32>
    %108 = vector.extract_strided_slice %103 {offsets = [0, 96], sizes = [1, 32], strides = [1, 1]} : vector<1x128xf32> to vector<1x32xf32>
    %109 = arith.mulf %106, %74 : vector<1x32xf32>
    %110 = arith.mulf %105, %107 : vector<1x32xf32>
    %111 = arith.addf %109, %110 : vector<1x32xf32>
    %112 = math.tanh %111 : vector<1x32xf32>
    %113 = arith.mulf %108, %112 : vector<1x32xf32>
    %114 = vector.extract_strided_slice %27 {offsets = [2, 0], sizes = [1, 128], strides = [1, 1]} : vector<8x128xf32> to vector<1x128xf32>
    %cst_53 = arith.constant dense<0.000000e+00> : vector<1x128xf32>
    %115 = tpu.matmul %94, %36, %cst_53 {dimension_numbers = #tpu.dot_dimension_numbers<[1], [0], [0], [1], [0, 0, 1, 1], [], []>} : vector<1x32xf32>, vector<32x128xf32>, vector<1x128xf32> -> vector<1x128xf32>
    %116 = arith.addf %114, %115 : vector<1x128xf32>
    %117 = arith.negf %116 : vector<1x128xf32>
    %118 = math.exp %117 : vector<1x128xf32>
    %cst_54 = arith.constant 1.000000e+00 : f32
    %119 = vector.broadcast %cst_54 : f32 to vector<1x128xf32>
    %120 = arith.addf %119, %118 : vector<1x128xf32>
    %121 = arith.divf %119, %120 : vector<1x128xf32>
    %122 = math.tanh %116 : vector<1x128xf32>
    %123 = vector.extract_strided_slice %121 {offsets = [0, 0], sizes = [1, 32], strides = [1, 1]} : vector<1x128xf32> to vector<1x32xf32>
    %124 = vector.extract_strided_slice %121 {offsets = [0, 32], sizes = [1, 32], strides = [1, 1]} : vector<1x128xf32> to vector<1x32xf32>
    %125 = vector.extract_strided_slice %122 {offsets = [0, 64], sizes = [1, 32], strides = [1, 1]} : vector<1x128xf32> to vector<1x32xf32>
    %126 = vector.extract_strided_slice %121 {offsets = [0, 96], sizes = [1, 32], strides = [1, 1]} : vector<1x128xf32> to vector<1x32xf32>
    %127 = arith.mulf %124, %92 : vector<1x32xf32>
    %128 = arith.mulf %123, %125 : vector<1x32xf32>
    %129 = arith.addf %127, %128 : vector<1x32xf32>
    %130 = math.tanh %129 : vector<1x32xf32>
    %131 = arith.mulf %126, %130 : vector<1x32xf32>
    %cst_55 = arith.constant dense<0.000000e+00> : vector<1x128xf32>
    %132 = tpu.matmul %131, %37, %cst_55 {dimension_numbers = #tpu.dot_dimension_numbers<[1], [0], [0], [1], [0, 0, 1, 1], [], []>} : vector<1x32xf32>, vector<32x128xf32>, vector<1x128xf32> -> vector<1x128xf32>
    %cst_56 = arith.constant dense<0.000000e+00> : vector<1x128xf32>
    %133 = tpu.matmul %113, %38, %cst_56 {dimension_numbers = #tpu.dot_dimension_numbers<[1], [0], [0], [1], [0, 0, 1, 1], [], []>} : vector<1x32xf32>, vector<32x128xf32>, vector<1x128xf32> -> vector<1x128xf32>
    %134 = arith.addf %132, %133 : vector<1x128xf32>
    %135 = arith.addf %134, %39 : vector<1x128xf32>
    %136 = arith.negf %135 : vector<1x128xf32>
    %137 = math.exp %136 : vector<1x128xf32>
    %cst_57 = arith.constant 1.000000e+00 : f32
    %138 = vector.broadcast %cst_57 : f32 to vector<1x128xf32>
    %139 = arith.addf %138, %137 : vector<1x128xf32>
    %140 = arith.divf %138, %139 : vector<1x128xf32>
    %141 = math.tanh %135 : vector<1x128xf32>
    %142 = vector.extract_strided_slice %140 {offsets = [0, 0], sizes = [1, 32], strides = [1, 1]} : vector<1x128xf32> to vector<1x32xf32>
    %143 = vector.extract_strided_slice %140 {offsets = [0, 32], sizes = [1, 32], strides = [1, 1]} : vector<1x128xf32> to vector<1x32xf32>
    %144 = vector.extract_strided_slice %141 {offsets = [0, 64], sizes = [1, 32], strides = [1, 1]} : vector<1x128xf32> to vector<1x32xf32>
    %145 = vector.extract_strided_slice %140 {offsets = [0, 96], sizes = [1, 32], strides = [1, 1]} : vector<1x128xf32> to vector<1x32xf32>
    %146 = arith.mulf %143, %111 : vector<1x32xf32>
    %147 = arith.mulf %142, %144 : vector<1x32xf32>
    %148 = arith.addf %146, %147 : vector<1x32xf32>
    %149 = math.tanh %148 : vector<1x32xf32>
    %150 = arith.mulf %145, %149 : vector<1x32xf32>
    %151 = vector.extract_strided_slice %27 {offsets = [3, 0], sizes = [1, 128], strides = [1, 1]} : vector<8x128xf32> to vector<1x128xf32>
    %cst_58 = arith.constant dense<0.000000e+00> : vector<1x128xf32>
    %152 = tpu.matmul %131, %36, %cst_58 {dimension_numbers = #tpu.dot_dimension_numbers<[1], [0], [0], [1], [0, 0, 1, 1], [], []>} : vector<1x32xf32>, vector<32x128xf32>, vector<1x128xf32> -> vector<1x128xf32>
    %153 = arith.addf %151, %152 : vector<1x128xf32>
    %154 = arith.negf %153 : vector<1x128xf32>
    %155 = math.exp %154 : vector<1x128xf32>
    %cst_59 = arith.constant 1.000000e+00 : f32
    %156 = vector.broadcast %cst_59 : f32 to vector<1x128xf32>
    %157 = arith.addf %156, %155 : vector<1x128xf32>
    %158 = arith.divf %156, %157 : vector<1x128xf32>
    %159 = math.tanh %153 : vector<1x128xf32>
    %160 = vector.extract_strided_slice %158 {offsets = [0, 0], sizes = [1, 32], strides = [1, 1]} : vector<1x128xf32> to vector<1x32xf32>
    %161 = vector.extract_strided_slice %158 {offsets = [0, 32], sizes = [1, 32], strides = [1, 1]} : vector<1x128xf32> to vector<1x32xf32>
    %162 = vector.extract_strided_slice %159 {offsets = [0, 64], sizes = [1, 32], strides = [1, 1]} : vector<1x128xf32> to vector<1x32xf32>
    %163 = vector.extract_strided_slice %158 {offsets = [0, 96], sizes = [1, 32], strides = [1, 1]} : vector<1x128xf32> to vector<1x32xf32>
    %164 = arith.mulf %161, %129 : vector<1x32xf32>
    %165 = arith.mulf %160, %162 : vector<1x32xf32>
    %166 = arith.addf %164, %165 : vector<1x32xf32>
    %167 = math.tanh %166 : vector<1x32xf32>
    %168 = arith.mulf %163, %167 : vector<1x32xf32>
    %cst_60 = arith.constant dense<0.000000e+00> : vector<1x128xf32>
    %169 = tpu.matmul %168, %37, %cst_60 {dimension_numbers = #tpu.dot_dimension_numbers<[1], [0], [0], [1], [0, 0, 1, 1], [], []>} : vector<1x32xf32>, vector<32x128xf32>, vector<1x128xf32> -> vector<1x128xf32>
    %cst_61 = arith.constant dense<0.000000e+00> : vector<1x128xf32>
    %170 = tpu.matmul %150, %38, %cst_61 {dimension_numbers = #tpu.dot_dimension_numbers<[1], [0], [0], [1], [0, 0, 1, 1], [], []>} : vector<1x32xf32>, vector<32x128xf32>, vector<1x128xf32> -> vector<1x128xf32>
    %171 = arith.addf %169, %170 : vector<1x128xf32>
    %172 = arith.addf %171, %39 : vector<1x128xf32>
    %173 = arith.negf %172 : vector<1x128xf32>
    %174 = math.exp %173 : vector<1x128xf32>
    %cst_62 = arith.constant 1.000000e+00 : f32
    %175 = vector.broadcast %cst_62 : f32 to vector<1x128xf32>
    %176 = arith.addf %175, %174 : vector<1x128xf32>
    %177 = arith.divf %175, %176 : vector<1x128xf32>
    %178 = math.tanh %172 : vector<1x128xf32>
    %179 = vector.extract_strided_slice %177 {offsets = [0, 0], sizes = [1, 32], strides = [1, 1]} : vector<1x128xf32> to vector<1x32xf32>
    %180 = vector.extract_strided_slice %177 {offsets = [0, 32], sizes = [1, 32], strides = [1, 1]} : vector<1x128xf32> to vector<1x32xf32>
    %181 = vector.extract_strided_slice %178 {offsets = [0, 64], sizes = [1, 32], strides = [1, 1]} : vector<1x128xf32> to vector<1x32xf32>
    %182 = vector.extract_strided_slice %177 {offsets = [0, 96], sizes = [1, 32], strides = [1, 1]} : vector<1x128xf32> to vector<1x32xf32>
    %183 = arith.mulf %180, %148 : vector<1x32xf32>
    %184 = arith.mulf %179, %181 : vector<1x32xf32>
    %185 = arith.addf %183, %184 : vector<1x32xf32>
    %186 = math.tanh %185 : vector<1x32xf32>
    %187 = arith.mulf %182, %186 : vector<1x32xf32>
    %188 = vector.extract_strided_slice %27 {offsets = [4, 0], sizes = [1, 128], strides = [1, 1]} : vector<8x128xf32> to vector<1x128xf32>
    %cst_63 = arith.constant dense<0.000000e+00> : vector<1x128xf32>
    %189 = tpu.matmul %168, %36, %cst_63 {dimension_numbers = #tpu.dot_dimension_numbers<[1], [0], [0], [1], [0, 0, 1, 1], [], []>} : vector<1x32xf32>, vector<32x128xf32>, vector<1x128xf32> -> vector<1x128xf32>
    %190 = arith.addf %188, %189 : vector<1x128xf32>
    %191 = arith.negf %190 : vector<1x128xf32>
    %192 = math.exp %191 : vector<1x128xf32>
    %cst_64 = arith.constant 1.000000e+00 : f32
    %193 = vector.broadcast %cst_64 : f32 to vector<1x128xf32>
    %194 = arith.addf %193, %192 : vector<1x128xf32>
    %195 = arith.divf %193, %194 : vector<1x128xf32>
    %196 = math.tanh %190 : vector<1x128xf32>
    %197 = vector.extract_strided_slice %195 {offsets = [0, 0], sizes = [1, 32], strides = [1, 1]} : vector<1x128xf32> to vector<1x32xf32>
    %198 = vector.extract_strided_slice %195 {offsets = [0, 32], sizes = [1, 32], strides = [1, 1]} : vector<1x128xf32> to vector<1x32xf32>
    %199 = vector.extract_strided_slice %196 {offsets = [0, 64], sizes = [1, 32], strides = [1, 1]} : vector<1x128xf32> to vector<1x32xf32>
    %200 = vector.extract_strided_slice %195 {offsets = [0, 96], sizes = [1, 32], strides = [1, 1]} : vector<1x128xf32> to vector<1x32xf32>
    %201 = arith.mulf %198, %166 : vector<1x32xf32>
    %202 = arith.mulf %197, %199 : vector<1x32xf32>
    %203 = arith.addf %201, %202 : vector<1x32xf32>
    %204 = math.tanh %203 : vector<1x32xf32>
    %205 = arith.mulf %200, %204 : vector<1x32xf32>
    %cst_65 = arith.constant dense<0.000000e+00> : vector<1x128xf32>
    %206 = tpu.matmul %205, %37, %cst_65 {dimension_numbers = #tpu.dot_dimension_numbers<[1], [0], [0], [1], [0, 0, 1, 1], [], []>} : vector<1x32xf32>, vector<32x128xf32>, vector<1x128xf32> -> vector<1x128xf32>
    %cst_66 = arith.constant dense<0.000000e+00> : vector<1x128xf32>
    %207 = tpu.matmul %187, %38, %cst_66 {dimension_numbers = #tpu.dot_dimension_numbers<[1], [0], [0], [1], [0, 0, 1, 1], [], []>} : vector<1x32xf32>, vector<32x128xf32>, vector<1x128xf32> -> vector<1x128xf32>
    %208 = arith.addf %206, %207 : vector<1x128xf32>
    %209 = arith.addf %208, %39 : vector<1x128xf32>
    %210 = arith.negf %209 : vector<1x128xf32>
    %211 = math.exp %210 : vector<1x128xf32>
    %cst_67 = arith.constant 1.000000e+00 : f32
    %212 = vector.broadcast %cst_67 : f32 to vector<1x128xf32>
    %213 = arith.addf %212, %211 : vector<1x128xf32>
    %214 = arith.divf %212, %213 : vector<1x128xf32>
    %215 = math.tanh %209 : vector<1x128xf32>
    %216 = vector.extract_strided_slice %214 {offsets = [0, 0], sizes = [1, 32], strides = [1, 1]} : vector<1x128xf32> to vector<1x32xf32>
    %217 = vector.extract_strided_slice %214 {offsets = [0, 32], sizes = [1, 32], strides = [1, 1]} : vector<1x128xf32> to vector<1x32xf32>
    %218 = vector.extract_strided_slice %215 {offsets = [0, 64], sizes = [1, 32], strides = [1, 1]} : vector<1x128xf32> to vector<1x32xf32>
    %219 = vector.extract_strided_slice %214 {offsets = [0, 96], sizes = [1, 32], strides = [1, 1]} : vector<1x128xf32> to vector<1x32xf32>
    %220 = arith.mulf %217, %185 : vector<1x32xf32>
    %221 = arith.mulf %216, %218 : vector<1x32xf32>
    %222 = arith.addf %220, %221 : vector<1x32xf32>
    %223 = math.tanh %222 : vector<1x32xf32>
    %224 = arith.mulf %219, %223 : vector<1x32xf32>
    %225 = vector.extract_strided_slice %27 {offsets = [5, 0], sizes = [1, 128], strides = [1, 1]} : vector<8x128xf32> to vector<1x128xf32>
    %cst_68 = arith.constant dense<0.000000e+00> : vector<1x128xf32>
    %226 = tpu.matmul %205, %36, %cst_68 {dimension_numbers = #tpu.dot_dimension_numbers<[1], [0], [0], [1], [0, 0, 1, 1], [], []>} : vector<1x32xf32>, vector<32x128xf32>, vector<1x128xf32> -> vector<1x128xf32>
    %227 = arith.addf %225, %226 : vector<1x128xf32>
    %228 = arith.negf %227 : vector<1x128xf32>
    %229 = math.exp %228 : vector<1x128xf32>
    %cst_69 = arith.constant 1.000000e+00 : f32
    %230 = vector.broadcast %cst_69 : f32 to vector<1x128xf32>
    %231 = arith.addf %230, %229 : vector<1x128xf32>
    %232 = arith.divf %230, %231 : vector<1x128xf32>
    %233 = math.tanh %227 : vector<1x128xf32>
    %234 = vector.extract_strided_slice %232 {offsets = [0, 0], sizes = [1, 32], strides = [1, 1]} : vector<1x128xf32> to vector<1x32xf32>
    %235 = vector.extract_strided_slice %232 {offsets = [0, 32], sizes = [1, 32], strides = [1, 1]} : vector<1x128xf32> to vector<1x32xf32>
    %236 = vector.extract_strided_slice %233 {offsets = [0, 64], sizes = [1, 32], strides = [1, 1]} : vector<1x128xf32> to vector<1x32xf32>
    %237 = vector.extract_strided_slice %232 {offsets = [0, 96], sizes = [1, 32], strides = [1, 1]} : vector<1x128xf32> to vector<1x32xf32>
    %238 = arith.mulf %235, %203 : vector<1x32xf32>
    %239 = arith.mulf %234, %236 : vector<1x32xf32>
    %240 = arith.addf %238, %239 : vector<1x32xf32>
    %241 = math.tanh %240 : vector<1x32xf32>
    %242 = arith.mulf %237, %241 : vector<1x32xf32>
    %cst_70 = arith.constant dense<0.000000e+00> : vector<1x128xf32>
    %243 = tpu.matmul %242, %37, %cst_70 {dimension_numbers = #tpu.dot_dimension_numbers<[1], [0], [0], [1], [0, 0, 1, 1], [], []>} : vector<1x32xf32>, vector<32x128xf32>, vector<1x128xf32> -> vector<1x128xf32>
    %cst_71 = arith.constant dense<0.000000e+00> : vector<1x128xf32>
    %244 = tpu.matmul %224, %38, %cst_71 {dimension_numbers = #tpu.dot_dimension_numbers<[1], [0], [0], [1], [0, 0, 1, 1], [], []>} : vector<1x32xf32>, vector<32x128xf32>, vector<1x128xf32> -> vector<1x128xf32>
    %245 = arith.addf %243, %244 : vector<1x128xf32>
    %246 = arith.addf %245, %39 : vector<1x128xf32>
    %247 = arith.negf %246 : vector<1x128xf32>
    %248 = math.exp %247 : vector<1x128xf32>
    %cst_72 = arith.constant 1.000000e+00 : f32
    %249 = vector.broadcast %cst_72 : f32 to vector<1x128xf32>
    %250 = arith.addf %249, %248 : vector<1x128xf32>
    %251 = arith.divf %249, %250 : vector<1x128xf32>
    %252 = math.tanh %246 : vector<1x128xf32>
    %253 = vector.extract_strided_slice %251 {offsets = [0, 0], sizes = [1, 32], strides = [1, 1]} : vector<1x128xf32> to vector<1x32xf32>
    %254 = vector.extract_strided_slice %251 {offsets = [0, 32], sizes = [1, 32], strides = [1, 1]} : vector<1x128xf32> to vector<1x32xf32>
    %255 = vector.extract_strided_slice %252 {offsets = [0, 64], sizes = [1, 32], strides = [1, 1]} : vector<1x128xf32> to vector<1x32xf32>
    %256 = vector.extract_strided_slice %251 {offsets = [0, 96], sizes = [1, 32], strides = [1, 1]} : vector<1x128xf32> to vector<1x32xf32>
    %257 = arith.mulf %254, %222 : vector<1x32xf32>
    %258 = arith.mulf %253, %255 : vector<1x32xf32>
    %259 = arith.addf %257, %258 : vector<1x32xf32>
    %260 = math.tanh %259 : vector<1x32xf32>
    %261 = arith.mulf %256, %260 : vector<1x32xf32>
    %262 = vector.extract_strided_slice %27 {offsets = [6, 0], sizes = [1, 128], strides = [1, 1]} : vector<8x128xf32> to vector<1x128xf32>
    %cst_73 = arith.constant dense<0.000000e+00> : vector<1x128xf32>
    %263 = tpu.matmul %242, %36, %cst_73 {dimension_numbers = #tpu.dot_dimension_numbers<[1], [0], [0], [1], [0, 0, 1, 1], [], []>} : vector<1x32xf32>, vector<32x128xf32>, vector<1x128xf32> -> vector<1x128xf32>
    %264 = arith.addf %262, %263 : vector<1x128xf32>
    %265 = arith.negf %264 : vector<1x128xf32>
    %266 = math.exp %265 : vector<1x128xf32>
    %cst_74 = arith.constant 1.000000e+00 : f32
    %267 = vector.broadcast %cst_74 : f32 to vector<1x128xf32>
    %268 = arith.addf %267, %266 : vector<1x128xf32>
    %269 = arith.divf %267, %268 : vector<1x128xf32>
    %270 = math.tanh %264 : vector<1x128xf32>
    %271 = vector.extract_strided_slice %269 {offsets = [0, 0], sizes = [1, 32], strides = [1, 1]} : vector<1x128xf32> to vector<1x32xf32>
    %272 = vector.extract_strided_slice %269 {offsets = [0, 32], sizes = [1, 32], strides = [1, 1]} : vector<1x128xf32> to vector<1x32xf32>
    %273 = vector.extract_strided_slice %270 {offsets = [0, 64], sizes = [1, 32], strides = [1, 1]} : vector<1x128xf32> to vector<1x32xf32>
    %274 = vector.extract_strided_slice %269 {offsets = [0, 96], sizes = [1, 32], strides = [1, 1]} : vector<1x128xf32> to vector<1x32xf32>
    %275 = arith.mulf %272, %240 : vector<1x32xf32>
    %276 = arith.mulf %271, %273 : vector<1x32xf32>
    %277 = arith.addf %275, %276 : vector<1x32xf32>
    %278 = math.tanh %277 : vector<1x32xf32>
    %279 = arith.mulf %274, %278 : vector<1x32xf32>
    %cst_75 = arith.constant dense<0.000000e+00> : vector<1x128xf32>
    %280 = tpu.matmul %279, %37, %cst_75 {dimension_numbers = #tpu.dot_dimension_numbers<[1], [0], [0], [1], [0, 0, 1, 1], [], []>} : vector<1x32xf32>, vector<32x128xf32>, vector<1x128xf32> -> vector<1x128xf32>
    %cst_76 = arith.constant dense<0.000000e+00> : vector<1x128xf32>
    %281 = tpu.matmul %261, %38, %cst_76 {dimension_numbers = #tpu.dot_dimension_numbers<[1], [0], [0], [1], [0, 0, 1, 1], [], []>} : vector<1x32xf32>, vector<32x128xf32>, vector<1x128xf32> -> vector<1x128xf32>
    %282 = arith.addf %280, %281 : vector<1x128xf32>
    %283 = arith.addf %282, %39 : vector<1x128xf32>
    %284 = arith.negf %283 : vector<1x128xf32>
    %285 = math.exp %284 : vector<1x128xf32>
    %cst_77 = arith.constant 1.000000e+00 : f32
    %286 = vector.broadcast %cst_77 : f32 to vector<1x128xf32>
    %287 = arith.addf %286, %285 : vector<1x128xf32>
    %288 = arith.divf %286, %287 : vector<1x128xf32>
    %289 = math.tanh %283 : vector<1x128xf32>
    %290 = vector.extract_strided_slice %288 {offsets = [0, 0], sizes = [1, 32], strides = [1, 1]} : vector<1x128xf32> to vector<1x32xf32>
    %291 = vector.extract_strided_slice %288 {offsets = [0, 32], sizes = [1, 32], strides = [1, 1]} : vector<1x128xf32> to vector<1x32xf32>
    %292 = vector.extract_strided_slice %289 {offsets = [0, 64], sizes = [1, 32], strides = [1, 1]} : vector<1x128xf32> to vector<1x32xf32>
    %293 = vector.extract_strided_slice %288 {offsets = [0, 96], sizes = [1, 32], strides = [1, 1]} : vector<1x128xf32> to vector<1x32xf32>
    %294 = arith.mulf %291, %259 : vector<1x32xf32>
    %295 = arith.mulf %290, %292 : vector<1x32xf32>
    %296 = arith.addf %294, %295 : vector<1x32xf32>
    %297 = math.tanh %296 : vector<1x32xf32>
    %298 = arith.mulf %293, %297 : vector<1x32xf32>
    %299 = vector.extract_strided_slice %27 {offsets = [7, 0], sizes = [1, 128], strides = [1, 1]} : vector<8x128xf32> to vector<1x128xf32>
    %cst_78 = arith.constant dense<0.000000e+00> : vector<1x128xf32>
    %300 = tpu.matmul %279, %36, %cst_78 {dimension_numbers = #tpu.dot_dimension_numbers<[1], [0], [0], [1], [0, 0, 1, 1], [], []>} : vector<1x32xf32>, vector<32x128xf32>, vector<1x128xf32> -> vector<1x128xf32>
    %301 = arith.addf %299, %300 : vector<1x128xf32>
    %302 = arith.negf %301 : vector<1x128xf32>
    %303 = math.exp %302 : vector<1x128xf32>
    %cst_79 = arith.constant 1.000000e+00 : f32
    %304 = vector.broadcast %cst_79 : f32 to vector<1x128xf32>
    %305 = arith.addf %304, %303 : vector<1x128xf32>
    %306 = arith.divf %304, %305 : vector<1x128xf32>
    %307 = math.tanh %301 : vector<1x128xf32>
    %308 = vector.extract_strided_slice %306 {offsets = [0, 0], sizes = [1, 32], strides = [1, 1]} : vector<1x128xf32> to vector<1x32xf32>
    %309 = vector.extract_strided_slice %306 {offsets = [0, 32], sizes = [1, 32], strides = [1, 1]} : vector<1x128xf32> to vector<1x32xf32>
    %310 = vector.extract_strided_slice %307 {offsets = [0, 64], sizes = [1, 32], strides = [1, 1]} : vector<1x128xf32> to vector<1x32xf32>
    %311 = vector.extract_strided_slice %306 {offsets = [0, 96], sizes = [1, 32], strides = [1, 1]} : vector<1x128xf32> to vector<1x32xf32>
    %312 = arith.mulf %309, %277 : vector<1x32xf32>
    %313 = arith.mulf %308, %310 : vector<1x32xf32>
    %314 = arith.addf %312, %313 : vector<1x32xf32>
    %315 = math.tanh %314 : vector<1x32xf32>
    %316 = arith.mulf %311, %315 : vector<1x32xf32>
    %cst_80 = arith.constant dense<0.000000e+00> : vector<1x128xf32>
    %317 = tpu.matmul %316, %37, %cst_80 {dimension_numbers = #tpu.dot_dimension_numbers<[1], [0], [0], [1], [0, 0, 1, 1], [], []>} : vector<1x32xf32>, vector<32x128xf32>, vector<1x128xf32> -> vector<1x128xf32>
    %cst_81 = arith.constant dense<0.000000e+00> : vector<1x128xf32>
    %318 = tpu.matmul %298, %38, %cst_81 {dimension_numbers = #tpu.dot_dimension_numbers<[1], [0], [0], [1], [0, 0, 1, 1], [], []>} : vector<1x32xf32>, vector<32x128xf32>, vector<1x128xf32> -> vector<1x128xf32>
    %319 = arith.addf %317, %318 : vector<1x128xf32>
    %320 = arith.addf %319, %39 : vector<1x128xf32>
    %321 = arith.negf %320 : vector<1x128xf32>
    %322 = math.exp %321 : vector<1x128xf32>
    %cst_82 = arith.constant 1.000000e+00 : f32
    %323 = vector.broadcast %cst_82 : f32 to vector<1x128xf32>
    %324 = arith.addf %323, %322 : vector<1x128xf32>
    %325 = arith.divf %323, %324 : vector<1x128xf32>
    %326 = math.tanh %320 : vector<1x128xf32>
    %327 = vector.extract_strided_slice %325 {offsets = [0, 0], sizes = [1, 32], strides = [1, 1]} : vector<1x128xf32> to vector<1x32xf32>
    %328 = vector.extract_strided_slice %325 {offsets = [0, 32], sizes = [1, 32], strides = [1, 1]} : vector<1x128xf32> to vector<1x32xf32>
    %329 = vector.extract_strided_slice %326 {offsets = [0, 64], sizes = [1, 32], strides = [1, 1]} : vector<1x128xf32> to vector<1x32xf32>
    %330 = vector.extract_strided_slice %325 {offsets = [0, 96], sizes = [1, 32], strides = [1, 1]} : vector<1x128xf32> to vector<1x32xf32>
    %331 = arith.mulf %328, %296 : vector<1x32xf32>
    %332 = arith.mulf %327, %329 : vector<1x32xf32>
    %333 = arith.addf %331, %332 : vector<1x32xf32>
    %334 = math.tanh %333 : vector<1x32xf32>
    %335 = arith.mulf %330, %334 : vector<1x32xf32>
    %336 = tpu.concatenate %76, %113, %150, %187 in 0 : vector<1x32xf32>, vector<1x32xf32>, vector<1x32xf32>, vector<1x32xf32> -> vector<4x32xf32>
    %c0_83 = arith.constant 0 : index
    %c0_84 = arith.constant 0 : index
    %337 = vector.load %arg14[%c0_83, %c0_84] : memref<32x8xf32, #tpu.memory_space<vmem>>, vector<32x8xf32>
    %cst_85 = arith.constant dense<0.000000e+00> : vector<4x8xf32>
    %338 = tpu.matmul %336, %337, %cst_85 {dimension_numbers = #tpu.dot_dimension_numbers<[1], [0], [0], [1], [0, 0, 1, 1], [], []>} : vector<4x32xf32>, vector<32x8xf32>, vector<4x8xf32> -> vector<4x8xf32>
    %c0_86 = arith.constant 0 : index
    %c0_87 = arith.constant 0 : index
    %339 = vector.load %arg15[%c0_86, %c0_87] : memref<1x8xf32, #tpu.memory_space<vmem>>, vector<1x8xf32>
    %340 = vector.broadcast %339 : vector<1x8xf32> to vector<4x8xf32>
    %341 = arith.addf %338, %340 : vector<4x8xf32>
    %c0_88 = arith.constant 0 : index
    %c0_89 = arith.constant 0 : index
    %c0_90 = arith.constant 0 : index
    %342 = vector.load %arg18[%c0_88, %c0_89, %c0_90] : memref<1x4x8xf32, #tpu.memory_space<vmem>>, vector<1x4x8xf32>
    %343 = vector.shape_cast %342 : vector<1x4x8xf32> to vector<4x8xf32>
    %344 = vector.shape_cast %341 : vector<4x8xf32> to vector<1x4x8xf32>
    tpu.vector_store %arg18[%c0_88, %c0_89, %c0_90], %344 {strides = array<i32>} : memref<1x4x8xf32, #tpu.memory_space<vmem>>, vector<1x4x8xf32>,
    %345 = tpu.concatenate %316, %335 in 0 : vector<1x32xf32>, vector<1x32xf32> -> vector<2x32xf32>
    %c0_91 = arith.constant 0 : index
    %c0_92 = arith.constant 0 : index
    %c0_93 = arith.constant 0 : index
    %346 = vector.load %arg20[%c0_91, %c0_92, %c0_93] : memref<1x2x32xf32, #tpu.memory_space<vmem>>, vector<1x2x32xf32>
    %347 = vector.shape_cast %346 : vector<1x2x32xf32> to vector<2x32xf32>
    %348 = vector.shape_cast %345 : vector<2x32xf32> to vector<1x2x32xf32>
    tpu.vector_store %arg20[%c0_91, %c0_92, %c0_93], %348 {strides = array<i32>} : memref<1x2x32xf32, #tpu.memory_space<vmem>>, vector<1x2x32xf32>,
    %349 = tpu.concatenate %314, %333 in 0 : vector<1x32xf32>, vector<1x32xf32> -> vector<2x32xf32>
    %c0_94 = arith.constant 0 : index
    %c0_95 = arith.constant 0 : index
    %c0_96 = arith.constant 0 : index
    %350 = vector.load %arg21[%c0_94, %c0_95, %c0_96] : memref<1x2x32xf32, #tpu.memory_space<vmem>>, vector<1x2x32xf32>
    %351 = vector.shape_cast %350 : vector<1x2x32xf32> to vector<2x32xf32>
    %352 = vector.shape_cast %349 : vector<2x32xf32> to vector<1x2x32xf32>
    tpu.vector_store %arg21[%c0_94, %c0_95, %c0_96], %352 {strides = array<i32>} : memref<1x2x32xf32, #tpu.memory_space<vmem>>, vector<1x2x32xf32>,
    return
  }
  func.func @transform_0(%arg0: i32) -> (i32, i32, i32, i32) {
    %c0_i32 = arith.constant 0 : i32
    %c0_i32_0 = arith.constant 0 : i32
    %c0_i32_1 = arith.constant 0 : i32
    %c0_i32_2 = arith.constant 0 : i32
    return %arg0, %c0_i32, %c0_i32_0, %c0_i32_1 : i32, i32, i32, i32
  }
  func.func @transform_1(%arg0: i32) -> (i32, i32, i32) {
    %c0_i32 = arith.constant 0 : i32
    %c0_i32_0 = arith.constant 0 : i32
    %c0_i32_1 = arith.constant 0 : i32
    return %arg0, %c0_i32, %c0_i32_0 : i32, i32, i32
  }
  func.func @transform_2(%arg0: i32) -> (i32, i32, i32) {
    %c0_i32 = arith.constant 0 : i32
    %c0_i32_0 = arith.constant 0 : i32
    %c0_i32_1 = arith.constant 0 : i32
    return %arg0, %c0_i32, %c0_i32_0 : i32, i32, i32
  }
  func.func @transform_3(%arg0: i32) -> (i32, i32) {
    %c0_i32 = arith.constant 0 : i32
    %c0_i32_0 = arith.constant 0 : i32
    %c0_i32_1 = arith.constant 0 : i32
    return %c0_i32, %c0_i32_0 : i32, i32
  }
  func.func @transform_4(%arg0: i32) -> (i32, i32) {
    %c0_i32 = arith.constant 0 : i32
    %c0_i32_0 = arith.constant 0 : i32
    %c0_i32_1 = arith.constant 0 : i32
    return %c0_i32, %c0_i32_0 : i32, i32
  }
  func.func @transform_5(%arg0: i32) -> (i32, i32) {
    %c0_i32 = arith.constant 0 : i32
    %c0_i32_0 = arith.constant 0 : i32
    %c0_i32_1 = arith.constant 0 : i32
    return %c0_i32, %c0_i32_0 : i32, i32
  }
  func.func @transform_6(%arg0: i32) -> (i32, i32) {
    %c0_i32 = arith.constant 0 : i32
    %c0_i32_0 = arith.constant 0 : i32
    %c0_i32_1 = arith.constant 0 : i32
    return %c0_i32, %c0_i32_0 : i32, i32
  }
  func.func @transform_7(%arg0: i32) -> (i32, i32) {
    %c0_i32 = arith.constant 0 : i32
    %c0_i32_0 = arith.constant 0 : i32
    %c0_i32_1 = arith.constant 0 : i32
    return %c0_i32, %c0_i32_0 : i32, i32
  }
  func.func @transform_8(%arg0: i32) -> (i32, i32) {
    %c0_i32 = arith.constant 0 : i32
    %c0_i32_0 = arith.constant 0 : i32
    %c0_i32_1 = arith.constant 0 : i32
    return %c0_i32, %c0_i32_0 : i32, i32
  }
  func.func @transform_9(%arg0: i32) -> (i32, i32) {
    %c0_i32 = arith.constant 0 : i32
    %c0_i32_0 = arith.constant 0 : i32
    %c0_i32_1 = arith.constant 0 : i32
    return %c0_i32, %c0_i32_0 : i32, i32
  }
  func.func @transform_10(%arg0: i32) -> (i32, i32) {
    %c0_i32 = arith.constant 0 : i32
    %c0_i32_0 = arith.constant 0 : i32
    %c0_i32_1 = arith.constant 0 : i32
    return %c0_i32, %c0_i32_0 : i32, i32
  }
  func.func @transform_11(%arg0: i32) -> (i32, i32) {
    %c0_i32 = arith.constant 0 : i32
    %c0_i32_0 = arith.constant 0 : i32
    %c0_i32_1 = arith.constant 0 : i32
    return %c0_i32, %c0_i32_0 : i32, i32
  }
  func.func @transform_12(%arg0: i32) -> (i32, i32) {
    %c0_i32 = arith.constant 0 : i32
    %c0_i32_0 = arith.constant 0 : i32
    %c0_i32_1 = arith.constant 0 : i32
    return %c0_i32, %c0_i32_0 : i32, i32
  }
  func.func @transform_13(%arg0: i32) -> (i32, i32) {
    %c0_i32 = arith.constant 0 : i32
    %c0_i32_0 = arith.constant 0 : i32
    %c0_i32_1 = arith.constant 0 : i32
    return %c0_i32, %c0_i32_0 : i32, i32
  }
  func.func @transform_14(%arg0: i32) -> (i32, i32) {
    %c0_i32 = arith.constant 0 : i32
    %c0_i32_0 = arith.constant 0 : i32
    %c0_i32_1 = arith.constant 0 : i32
    return %c0_i32, %c0_i32_0 : i32, i32
  }
  func.func @transform_15(%arg0: i32) -> (i32, i32, i32) {
    %c0_i32 = arith.constant 0 : i32
    %c0_i32_0 = arith.constant 0 : i32
    %c0_i32_1 = arith.constant 0 : i32
    return %arg0, %c0_i32, %c0_i32_0 : i32, i32, i32
  }
  func.func @transform_16(%arg0: i32) -> (i32, i32, i32) {
    %c0_i32 = arith.constant 0 : i32
    %c0_i32_0 = arith.constant 0 : i32
    %c0_i32_1 = arith.constant 0 : i32
    return %arg0, %c0_i32, %c0_i32_0 : i32, i32, i32
  }
  func.func @transform_17(%arg0: i32) -> (i32, i32, i32) {
    %c0_i32 = arith.constant 0 : i32
    %c0_i32_0 = arith.constant 0 : i32
    %c0_i32_1 = arith.constant 0 : i32
    return %arg0, %c0_i32, %c0_i32_0 : i32, i32, i32
  }
  func.func @transform_18(%arg0: i32) -> (i32, i32, i32) {
    %c0_i32 = arith.constant 0 : i32
    %c0_i32_0 = arith.constant 0 : i32
    %c0_i32_1 = arith.constant 0 : i32
    return %arg0, %c0_i32, %c0_i32_0 : i32, i32, i32
  }
  func.func @transform_19(%arg0: i32) -> (i32, i32, i32) {
    %c0_i32 = arith.constant 0 : i32
    %c0_i32_0 = arith.constant 0 : i32
    %c0_i32_1 = arith.constant 0 : i32
    return %arg0, %c0_i32, %c0_i32_0 : i32, i32, i32
  }
  func.func @transform_20(%arg0: i32) -> (i32, i32, i32) {
    %c0_i32 = arith.constant 0 : i32
    %c0_i32_0 = arith.constant 0 : i32
    %c0_i32_1 = arith.constant 0 : i32
    return %arg0, %c0_i32, %c0_i32_0 : i32, i32, i32
  }
}

</mosaic_0001>

<llo_original>
// kernel: lstm_generator_forward.1
$region0: #{lstm_generator_forward.1}
  #allocation0 [shape = 'u32[]', space=smem, size = 0x4, offset = 0x4, fixed_abs, tag = 'smem constant byte address 0x4 - core index']
  #allocation1 [shape = 'u32[144,128]{1,0:T(1,128)}', space=vmem, size = 0x12000, scoped, tag = 'internal scratch']
  %s0 = inlined_call_operand.hbm [shape: f32[2,8,8,768], index: 0, kind: input, shape index: {}]
  %s1 = inlined_call_operand.hbm [shape: f32[2,8,16], index: 1, kind: input, shape index: {}]
  %s2 = inlined_call_operand.hbm [shape: f32[2,8,16], index: 2, kind: input, shape index: {}]
  %s3 = inlined_call_operand.hbm [shape: f32[768,768], index: 3, kind: input, shape index: {}]
  %s4 = inlined_call_operand.hbm [shape: f32[1,768], index: 4, kind: input, shape index: {}]
  %s5 = inlined_call_operand.hbm [shape: f32[16,128], index: 5, kind: input, shape index: {}]
  %s6 = inlined_call_operand.hbm [shape: f32[16,128], index: 6, kind: input, shape index: {}]
  %s7 = inlined_call_operand.hbm [shape: f32[768,128], index: 7, kind: input, shape index: {}]
  %s8 = inlined_call_operand.hbm [shape: f32[32,128], index: 8, kind: input, shape index: {}]
  %s9 = inlined_call_operand.hbm [shape: f32[1,128], index: 9, kind: input, shape index: {}]
  %s10 = inlined_call_operand.hbm [shape: f32[32,128], index: 10, kind: input, shape index: {}]
  %s11 = inlined_call_operand.hbm [shape: f32[32,128], index: 11, kind: input, shape index: {}]
  %s12 = inlined_call_operand.hbm [shape: f32[1,128], index: 12, kind: input, shape index: {}]
  %s13 = inlined_call_operand.vmem [shape: f32[32,8], index: 13, kind: input, shape index: {}]
  %s14 = inlined_call_operand.hbm [shape: f32[1,8], index: 14, kind: input, shape index: {}]
  %s15 = inlined_call_operand.vmem [shape: f32[2,2,32], index: 15, kind: input, shape index: {}]
  %s16 = inlined_call_operand.vmem [shape: f32[2,2,32], index: 16, kind: input, shape index: {}]
  %s17 = inlined_call_operand.hbm [shape: f32[2,4,8], index: 17, kind: output, shape index: {0}]
  %s18 = inlined_call_operand.hbm [shape: f32[2,8,768], index: 18, kind: output, shape index: {1}]
  %s19 = inlined_call_operand.vmem [shape: f32[2,2,32], index: 19, kind: output, shape index: {2}]
  %s20 = inlined_call_operand.vmem [shape: f32[2,2,32], index: 20, kind: output, shape index: {3}]
  %21 = xla_tuple %s17, %s18, %s19, %s20
  %s22 = sld [smem:[#allocation0]]
  $region181: #{lstm_generator_forward.1} parent=0
    _
  %s24 = ssub.s32 1, %s22
  %s25 = scalar_select 0, %s24, %s22
  $region1: #{lstm_generator_forward.1} parent=0
    #allocation2 [shape = 'u8[393216]{0}', space=vmem, size = 0x60000, scoped, tag = 'input window, operand 0']
    #allocation3 [shape = 's32[2]{0}', space=sflag, size = 0x8, scoped, tag = 'scoped memory for lstm_generator_forward.1']
    #allocation4 [shape = 's32[2]{0}', space=sflag, size = 0x8, scoped, tag = 'scoped memory for lstm_generator_forward.1']
    #allocation5 [shape = 'u8[8192]{0}', space=vmem, size = 0x2000, scoped, tag = 'input window, operand 1']
    #allocation6 [shape = 's32[2]{0}', space=sflag, size = 0x8, scoped, tag = 'scoped memory for lstm_generator_forward.1']
    #allocation7 [shape = 'u8[8192]{0}', space=vmem, size = 0x2000, scoped, tag = 'input window, operand 2']
    #allocation8 [shape = 'u8[2359296]{0}', space=vmem, size = 0x240000, scoped, tag = 'input window, operand 3, single buffered']
    #allocation9 [shape = 's32[1]{0}', space=sflag, size = 0x4, scoped, tag = 'scoped memory for lstm_generator_forward.1']
    #allocation10 [shape = 'u8[3072]{0}', space=vmem, size = 0xc00, scoped, tag = 'input window, operand 4, single buffered']
    #allocation11 [shape = 'u8[8192]{0}', space=vmem, size = 0x2000, scoped, tag = 'input window, operand 5, single buffered']
    #allocation12 [shape = 's32[1]{0}', space=sflag, size = 0x4, scoped, tag = 'scoped memory for lstm_generator_forward.1']
    #allocation13 [shape = 'u8[8192]{0}', space=vmem, size = 0x2000, scoped, tag = 'input window, operand 6, single buffered']
    #allocation14 [shape = 'u8[393216]{0}', space=vmem, size = 0x60000, scoped, tag = 'input window, operand 7, single buffered']
    #allocation15 [shape = 's32[1]{0}', space=sflag, size = 0x4, scoped, tag = 'scoped memory for lstm_generator_forward.1']
    #allocation16 [shape = 'u8[16384]{0}', space=vmem, size = 0x4000, scoped, tag = 'input window, operand 8, single buffered']
    #allocation17 [shape = 'u8[512]{0}', space=vmem, size = 0x400, scoped, tag = 'input window, operand 9, single buffered']
    #allocation18 [shape = 's32[1]{0}', space=sflag, size = 0x4, scoped, tag = 'scoped memory for lstm_generator_forward.1']
    #allocation19 [shape = 'u8[16384]{0}', space=vmem, size = 0x4000, scoped, tag = 'input window, operand 10, single buffered']
    #allocation20 [shape = 'u8[16384]{0}', space=vmem, size = 0x4000, scoped, tag = 'input window, operand 11, single buffered']
    #allocation21 [shape = 's32[1]{0}', space=sflag, size = 0x4, scoped, tag = 'scoped memory for lstm_generator_forward.1']
    #allocation22 [shape = 'u8[512]{0}', space=vmem, size = 0x400, scoped, tag = 'input window, operand 12, single buffered']
    #allocation23 [shape = 'u8[512]{0}', space=vmem, size = 0x400, scoped, tag = 'input window, operand 14, single buffered']
    #allocation24 [shape = 's32[1]{0}', space=sflag, size = 0x4, scoped, tag = 'scoped memory for lstm_generator_forward.1']
    #allocation25 [shape = 'u8[4096]{0}', space=vmem, size = 0x1000, scoped, tag = 'output window, operand 0']
    #allocation26 [shape = 'u8[49152]{0}', space=vmem, size = 0xc000, scoped, tag = 'output window, operand 1']
    #allocation27 [shape = 's32[2]{0}', space=sflag, size = 0x8, scoped, tag = 'scoped memory for lstm_generator_forward.1']
    %26 = vsyncpa [#allocation3], 0
    %s27 = scalar_lea.sflag [#allocation3], 1
    %28 = vsyncpa %s27, 0
    %29 = vsyncpa [#allocation6], 0
    %s30 = scalar_lea.sflag [#allocation6], 1
    %31 = vsyncpa %s30, 0
    %32 = vsyncpa [#allocation9], 0
    %33 = vsyncpa [#allocation12], 0
    %34 = vsyncpa [#allocation15], 0
    %35 = vsyncpa [#allocation18], 0
    %36 = vsyncpa [#allocation21], 0
    %37 = vsyncpa [#allocation24], 0
    %38 = vsyncpa [#allocation4], 0
    %s39 = scalar_lea.sflag [#allocation4], 1
    %40 = vsyncpa %s39, 0
    %41 = vsyncpa [#allocation27], 0
    %s42 = scalar_lea.sflag [#allocation27], 1
    %43 = vsyncpa %s42, 0
    loop: start=0, step=1, limit=4
    $region2: #{lstm_generator_forward.1} parent=1 // loop_pre_header
      _
    $region3: #{lstm_generator_forward.1} parent=1 // loop_header
      %s45 = sphi 0, %s49
      %p46 = scmp.ge.s32.totalorder %s45, 4
      %s55 = sphi 0, %s57
      %s58 = sphi 0, %s55
      %s59 = sphi 0, %s58
      %s75 = sphi 0, %s59
      %s81 = sphi 0, %s83
      %s84 = sphi 0, %s81
      %s85 = sphi 0, %s84
      %s101 = sphi 0, %s85
      %s107 = sphi 0, %s109
      %s110 = sphi 0, %s107
      %s111 = sphi 0, %s110
      %s127 = sphi 0, %s111
      %s131 = sphi 0, %s131
      %s133 = sphi 0, %s131
      %s134 = sphi 0, %s133
      %s148 = sphi 0, %s134
      %s152 = sphi 0, %s152
      %s154 = sphi 0, %s152
      %s155 = sphi 0, %s154
      %s169 = sphi 0, %s155
      %s173 = sphi 0, %s173
      %s175 = sphi 0, %s173
      %s176 = sphi 0, %s175
      %s190 = sphi 0, %s176
      %s194 = sphi 0, %s194
      %s196 = sphi 0, %s194
      %s197 = sphi 0, %s196
      %s211 = sphi 0, %s197
      %s215 = sphi 0, %s215
      %s217 = sphi 0, %s215
      %s218 = sphi 0, %s217
      %s232 = sphi 0, %s218
      %s236 = sphi 0, %s236
      %s238 = sphi 0, %s236
      %s239 = sphi 0, %s238
      %s253 = sphi 0, %s239
      %s257 = sphi 0, %s257
      %s259 = sphi 0, %s257
      %s260 = sphi 0, %s259
      %s274 = sphi 0, %s260
      %s278 = sphi 0, %s278
      %s280 = sphi 0, %s278
      %s281 = sphi 0, %s280
      %s295 = sphi 0, %s281
      %s299 = sphi 0, %s299
      %s301 = sphi 0, %s299
      %s302 = sphi 0, %s301
      %s316 = sphi 0, %s302
      %s320 = sphi 0, %s320
      %s322 = sphi 0, %s320
      %s323 = sphi 0, %s322
      %s337 = sphi 0, %s323
      %s341 = sphi 0, %s341
      %s343 = sphi 0, %s341
      %s344 = sphi 0, %s343
      %s358 = sphi 0, %s344
      %s362 = sphi 0, %s362
      %s364 = sphi 0, %s362
      %s365 = sphi 0, %s364
      %s379 = sphi 0, %s365
      %s385 = sphi 0, %s387
      %s388 = sphi 0, %s385
      %s389 = sphi 0, %s388
      %s405 = sphi 0, %s389
      %s411 = sphi 0, %s413
      %s414 = sphi 0, %s411
      %s415 = sphi 0, %s414
      %s431 = sphi 0, %s415
      %s437 = sphi 0, %s439
      %s440 = sphi 0, %s437
      %s441 = sphi 0, %s440
      %s457 = sphi 0, %s441
      %s463 = sphi 0, %s465
      %s466 = sphi 0, %s463
      %s467 = sphi 0, %s466
      %s483 = sphi 0, %s467
      %s489 = sphi 0, %s491
      %s492 = sphi 0, %s489
      %s493 = sphi 0, %s492
      %s509 = sphi 0, %s493
      %s515 = sphi 0, %s517
      %s518 = sphi 0, %s515
      %s519 = sphi 0, %s518
      %s535 = sphi 0, %s519
    $region4: #{lstm_generator_forward.1} parent=1 // loop_header_branch
      %48 = sbr.rel (%p46) target = $region8
    $region5: #{lstm_generator_forward.1} parent=1 // loop_body
      %s50 = ssub.s32 %s45, 1
      %s51 = ssub.s32 %s45, 2
      %s52 = sadd.s32 %s45, 1
      %s53 = ssub.s32 %s45, %s52
      %p54 = scmp.eq.s32.totalorder %s53, 0
      %s56 = sadd.s32 %s55, 1
      %s57 = scalar_select %p54, %s55, %s56
      %p60 = pneg %p54
      %p61 = scmp.eq.s32.totalorder %s45, 1
      %p62 = por %p60, %p61
      %p63 = scmp.ne.s32.totalorder %s55, %s58
      %p64 = scmp.eq.s32.totalorder %s45, 0
      %p65 = por %p63, %p64
      %p66 = scmp.ne.s32.totalorder %s55, %s58
      %p67 = scmp.eq.s32.totalorder %s50, 1
      %p68 = por %p66, %p67
      %p69 = scmp.ne.s32.totalorder %s58, %s59
      %p70 = scmp.eq.s32.totalorder %s50, 0
      %p71 = por %p69, %p70
      %p72 = scmp.ne.s32.totalorder %s58, %s59
      %p73 = scmp.eq.s32.totalorder %s51, 1
      %p74 = por %p72, %p73
      %p76 = scmp.ne.s32.totalorder %s59, %s75
      %p77 = scmp.eq.s32.totalorder %s51, 0
      %p78 = por %p76, %p77
      %s79 = ssub.s32 %s45, %s52
      %p80 = scmp.eq.s32.totalorder %s79, 0
      %s82 = sadd.s32 %s81, 1
      %s83 = scalar_select %p80, %s81, %s82
      %p86 = pneg %p80
      %p87 = scmp.eq.s32.totalorder %s45, 1
      %p88 = por %p86, %p87
      %p89 = scmp.ne.s32.totalorder %s81, %s84
      %p90 = scmp.eq.s32.totalorder %s45, 0
      %p91 = por %p89, %p90
      %p92 = scmp.ne.s32.totalorder %s81, %s84
      %p93 = scmp.eq.s32.totalorder %s50, 1
      %p94 = por %p92, %p93
      %p95 = scmp.ne.s32.totalorder %s84, %s85
      %p96 = scmp.eq.s32.totalorder %s50, 0
      %p97 = por %p95, %p96
      %p98 = scmp.ne.s32.totalorder %s84, %s85
      %p99 = scmp.eq.s32.totalorder %s51, 1
      %p100 = por %p98, %p99
      %p102 = scmp.ne.s32.totalorder %s85, %s101
      %p103 = scmp.eq.s32.totalorder %s51, 0
      %p104 = por %p102, %p103
      %s105 = ssub.s32 %s45, %s52
      %p106 = scmp.eq.s32.totalorder %s105, 0
      %s108 = sadd.s32 %s107, 1
      %s109 = scalar_select %p106, %s107, %s108
      %p112 = pneg %p106
      %p113 = scmp.eq.s32.totalorder %s45, 1
      %p114 = por %p112, %p113
      %p115 = scmp.ne.s32.totalorder %s107, %s110
      %p116 = scmp.eq.s32.totalorder %s45, 0
      %p117 = por %p115, %p116
      %p118 = scmp.ne.s32.totalorder %s107, %s110
      %p119 = scmp.eq.s32.totalorder %s50, 1
      %p120 = por %p118, %p119
      %p121 = scmp.ne.s32.totalorder %s110, %s111
      %p122 = scmp.eq.s32.totalorder %s50, 0
      %p123 = por %p121, %p122
      %p124 = scmp.ne.s32.totalorder %s110, %s111
      %p125 = scmp.eq.s32.totalorder %s51, 1
      %p126 = por %p124, %p125
      %p128 = scmp.ne.s32.totalorder %s111, %s127
      %p129 = scmp.eq.s32.totalorder %s51, 0
      %p130 = por %p128, %p129
      %s132 = sadd.s32 %s131, 1
      %p135 = scmp.eq.s32.totalorder %s45, 1
      %p136 = scmp.ne.s32.totalorder %s131, %s133
      %p137 = scmp.eq.s32.totalorder %s45, 0
      %p138 = por %p136, %p137
      %p139 = scmp.ne.s32.totalorder %s131, %s133
      %p140 = scmp.eq.s32.totalorder %s50, 1
      %p141 = por %p139, %p140
      %p142 = scmp.ne.s32.totalorder %s133, %s134
      %p143 = scmp.eq.s32.totalorder %s50, 0
      %p144 = por %p142, %p143
      %p145 = scmp.ne.s32.totalorder %s133, %s134
      %p146 = scmp.eq.s32.totalorder %s51, 1
      %p147 = por %p145, %p146
      %p149 = scmp.ne.s32.totalorder %s134, %s148
      %p150 = scmp.eq.s32.totalorder %s51, 0
      %p151 = por %p149, %p150
      %s153 = sadd.s32 %s152, 1
      %p156 = scmp.eq.s32.totalorder %s45, 1
      %p157 = scmp.ne.s32.totalorder %s152, %s154
      %p158 = scmp.eq.s32.totalorder %s45, 0
      %p159 = por %p157, %p158
      %p160 = scmp.ne.s32.totalorder %s152, %s154
      %p161 = scmp.eq.s32.totalorder %s50, 1
      %p162 = por %p160, %p161
      %p163 = scmp.ne.s32.totalorder %s154, %s155
      %p164 = scmp.eq.s32.totalorder %s50, 0
      %p165 = por %p163, %p164
      %p166 = scmp.ne.s32.totalorder %s154, %s155
      %p167 = scmp.eq.s32.totalorder %s51, 1
      %p168 = por %p166, %p167
      %p170 = scmp.ne.s32.totalorder %s155, %s169
      %p171 = scmp.eq.s32.totalorder %s51, 0
      %p172 = por %p170, %p171
      %s174 = sadd.s32 %s173, 1
      %p177 = scmp.eq.s32.totalorder %s45, 1
      %p178 = scmp.ne.s32.totalorder %s173, %s175
      %p179 = scmp.eq.s32.totalorder %s45, 0
      %p180 = por %p178, %p179
      %p181 = scmp.ne.s32.totalorder %s173, %s175
      %p182 = scmp.eq.s32.totalorder %s50, 1
      %p183 = por %p181, %p182
      %p184 = scmp.ne.s32.totalorder %s175, %s176
      %p185 = scmp.eq.s32.totalorder %s50, 0
      %p186 = por %p184, %p185
      %p187 = scmp.ne.s32.totalorder %s175, %s176
      %p188 = scmp.eq.s32.totalorder %s51, 1
      %p189 = por %p187, %p188
      %p191 = scmp.ne.s32.totalorder %s176, %s190
      %p192 = scmp.eq.s32.totalorder %s51, 0
      %p193 = por %p191, %p192
      %s195 = sadd.s32 %s194, 1
      %p198 = scmp.eq.s32.totalorder %s45, 1
      %p199 = scmp.ne.s32.totalorder %s194, %s196
      %p200 = scmp.eq.s32.totalorder %s45, 0
      %p201 = por %p199, %p200
      %p202 = scmp.ne.s32.totalorder %s194, %s196
      %p203 = scmp.eq.s32.totalorder %s50, 1
      %p204 = por %p202, %p203
      %p205 = scmp.ne.s32.totalorder %s196, %s197
      %p206 = scmp.eq.s32.totalorder %s50, 0
      %p207 = por %p205, %p206
      %p208 = scmp.ne.s32.totalorder %s196, %s197
      %p209 = scmp.eq.s32.totalorder %s51, 1
      %p210 = por %p208, %p209
      %p212 = scmp.ne.s32.totalorder %s197, %s211
      %p213 = scmp.eq.s32.totalorder %s51, 0
      %p214 = por %p212, %p213
      %s216 = sadd.s32 %s215, 1
      %p219 = scmp.eq.s32.totalorder %s45, 1
      %p220 = scmp.ne.s32.totalorder %s215, %s217
      %p221 = scmp.eq.s32.totalorder %s45, 0
      %p222 = por %p220, %p221
      %p223 = scmp.ne.s32.totalorder %s215, %s217
      %p224 = scmp.eq.s32.totalorder %s50, 1
      %p225 = por %p223, %p224
      %p226 = scmp.ne.s32.totalorder %s217, %s218
      %p227 = scmp.eq.s32.totalorder %s50, 0
      %p228 = por %p226, %p227
      %p229 = scmp.ne.s32.totalorder %s217, %s218
      %p230 = scmp.eq.s32.totalorder %s51, 1
      %p231 = por %p229, %p230
      %p233 = scmp.ne.s32.totalorder %s218, %s232
      %p234 = scmp.eq.s32.totalorder %s51, 0
      %p235 = por %p233, %p234
      %s237 = sadd.s32 %s236, 1
      %p240 = scmp.eq.s32.totalorder %s45, 1
      %p241 = scmp.ne.s32.totalorder %s236, %s238
      %p242 = scmp.eq.s32.totalorder %s45, 0
      %p243 = por %p241, %p242
      %p244 = scmp.ne.s32.totalorder %s236, %s238
      %p245 = scmp.eq.s32.totalorder %s50, 1
      %p246 = por %p244, %p245
      %p247 = scmp.ne.s32.totalorder %s238, %s239
      %p248 = scmp.eq.s32.totalorder %s50, 0
      %p249 = por %p247, %p248
      %p250 = scmp.ne.s32.totalorder %s238, %s239
      %p251 = scmp.eq.s32.totalorder %s51, 1
      %p252 = por %p250, %p251
      %p254 = scmp.ne.s32.totalorder %s239, %s253
      %p255 = scmp.eq.s32.totalorder %s51, 0
      %p256 = por %p254, %p255
      %s258 = sadd.s32 %s257, 1
      %p261 = scmp.eq.s32.totalorder %s45, 1
      %p262 = scmp.ne.s32.totalorder %s257, %s259
      %p263 = scmp.eq.s32.totalorder %s45, 0
      %p264 = por %p262, %p263
      %p265 = scmp.ne.s32.totalorder %s257, %s259
      %p266 = scmp.eq.s32.totalorder %s50, 1
      %p267 = por %p265, %p266
      %p268 = scmp.ne.s32.totalorder %s259, %s260
      %p269 = scmp.eq.s32.totalorder %s50, 0
      %p270 = por %p268, %p269
      %p271 = scmp.ne.s32.totalorder %s259, %s260
      %p272 = scmp.eq.s32.totalorder %s51, 1
      %p273 = por %p271, %p272
      %p275 = scmp.ne.s32.totalorder %s260, %s274
      %p276 = scmp.eq.s32.totalorder %s51, 0
      %p277 = por %p275, %p276
      %s279 = sadd.s32 %s278, 1
      %p282 = scmp.eq.s32.totalorder %s45, 1
      %p283 = scmp.ne.s32.totalorder %s278, %s280
      %p284 = scmp.eq.s32.totalorder %s45, 0
      %p285 = por %p283, %p284
      %p286 = scmp.ne.s32.totalorder %s278, %s280
      %p287 = scmp.eq.s32.totalorder %s50, 1
      %p288 = por %p286, %p287
      %p289 = scmp.ne.s32.totalorder %s280, %s281
      %p290 = scmp.eq.s32.totalorder %s50, 0
      %p291 = por %p289, %p290
      %p292 = scmp.ne.s32.totalorder %s280, %s281
      %p293 = scmp.eq.s32.totalorder %s51, 1
      %p294 = por %p292, %p293
      %p296 = scmp.ne.s32.totalorder %s281, %s295
      %p297 = scmp.eq.s32.totalorder %s51, 0
      %p298 = por %p296, %p297
      %s300 = sadd.s32 %s299, 1
      %p303 = scmp.eq.s32.totalorder %s45, 1
      %p304 = scmp.ne.s32.totalorder %s299, %s301
      %p305 = scmp.eq.s32.totalorder %s45, 0
      %p306 = por %p304, %p305
      %p307 = scmp.ne.s32.totalorder %s299, %s301
      %p308 = scmp.eq.s32.totalorder %s50, 1
      %p309 = por %p307, %p308
      %p310 = scmp.ne.s32.totalorder %s301, %s302
      %p311 = scmp.eq.s32.totalorder %s50, 0
      %p312 = por %p310, %p311
      %p313 = scmp.ne.s32.totalorder %s301, %s302
      %p314 = scmp.eq.s32.totalorder %s51, 1
      %p315 = por %p313, %p314
      %p317 = scmp.ne.s32.totalorder %s302, %s316
      %p318 = scmp.eq.s32.totalorder %s51, 0
      %p319 = por %p317, %p318
      %s321 = sadd.s32 %s320, 1
      %p324 = scmp.eq.s32.totalorder %s45, 1
      %p325 = scmp.ne.s32.totalorder %s320, %s322
      %p326 = scmp.eq.s32.totalorder %s45, 0
      %p327 = por %p325, %p326
      %p328 = scmp.ne.s32.totalorder %s320, %s322
      %p329 = scmp.eq.s32.totalorder %s50, 1
      %p330 = por %p328, %p329
      %p331 = scmp.ne.s32.totalorder %s322, %s323
      %p332 = scmp.eq.s32.totalorder %s50, 0
      %p333 = por %p331, %p332
      %p334 = scmp.ne.s32.totalorder %s322, %s323
      %p335 = scmp.eq.s32.totalorder %s51, 1
      %p336 = por %p334, %p335
      %p338 = scmp.ne.s32.totalorder %s323, %s337
      %p339 = scmp.eq.s32.totalorder %s51, 0
      %p340 = por %p338, %p339
      %s342 = sadd.s32 %s341, 1
      %p345 = scmp.eq.s32.totalorder %s45, 1
      %p346 = scmp.ne.s32.totalorder %s341, %s343
      %p347 = scmp.eq.s32.totalorder %s45, 0
      %p348 = por %p346, %p347
      %p349 = scmp.ne.s32.totalorder %s341, %s343
      %p350 = scmp.eq.s32.totalorder %s50, 1
      %p351 = por %p349, %p350
      %p352 = scmp.ne.s32.totalorder %s343, %s344
      %p353 = scmp.eq.s32.totalorder %s50, 0
      %p354 = por %p352, %p353
      %p355 = scmp.ne.s32.totalorder %s343, %s344
      %p356 = scmp.eq.s32.totalorder %s51, 1
      %p357 = por %p355, %p356
      %p359 = scmp.ne.s32.totalorder %s344, %s358
      %p360 = scmp.eq.s32.totalorder %s51, 0
      %p361 = por %p359, %p360
      %s363 = sadd.s32 %s362, 1
      %p366 = scmp.eq.s32.totalorder %s45, 1
      %p367 = scmp.ne.s32.totalorder %s362, %s364
      %p368 = scmp.eq.s32.totalorder %s45, 0
      %p369 = por %p367, %p368
      %p370 = scmp.ne.s32.totalorder %s362, %s364
      %p371 = scmp.eq.s32.totalorder %s50, 1
      %p372 = por %p370, %p371
      %p373 = scmp.ne.s32.totalorder %s364, %s365
      %p374 = scmp.eq.s32.totalorder %s50, 0
      %p375 = por %p373, %p374
      %p376 = scmp.ne.s32.totalorder %s364, %s365
      %p377 = scmp.eq.s32.totalorder %s51, 1
      %p378 = por %p376, %p377
      %p380 = scmp.ne.s32.totalorder %s365, %s379
      %p381 = scmp.eq.s32.totalorder %s51, 0
      %p382 = por %p380, %p381
      %s383 = ssub.s32 %s45, %s52
      %p384 = scmp.eq.s32.totalorder %s383, 0
      %s386 = sadd.s32 %s385, 1
      %s387 = scalar_select %p384, %s385, %s386
      %p390 = pneg %p384
      %p391 = scmp.eq.s32.totalorder %s45, 1
      %p392 = por %p390, %p391
      %p393 = scmp.ne.s32.totalorder %s385, %s388
      %p394 = scmp.eq.s32.totalorder %s45, 0
      %p395 = por %p393, %p394
      %p396 = scmp.ne.s32.totalorder %s385, %s388
      %p397 = scmp.eq.s32.totalorder %s50, 1
      %p398 = por %p396, %p397
      %p399 = scmp.ne.s32.totalorder %s388, %s389
      %p400 = scmp.eq.s32.totalorder %s50, 0
      %p401 = por %p399, %p400
      %p402 = scmp.ne.s32.totalorder %s388, %s389
      %p403 = scmp.eq.s32.totalorder %s51, 1
      %p404 = por %p402, %p403
      %p406 = scmp.ne.s32.totalorder %s389, %s405
      %p407 = scmp.eq.s32.totalorder %s51, 0
      %p408 = por %p406, %p407
      %s409 = ssub.s32 %s45, %s52
      %p410 = scmp.eq.s32.totalorder %s409, 0
      %s412 = sadd.s32 %s411, 1
      %s413 = scalar_select %p410, %s411, %s412
      %p416 = pneg %p410
      %p417 = scmp.eq.s32.totalorder %s45, 1
      %p418 = por %p416, %p417
      %p419 = scmp.ne.s32.totalorder %s411, %s414
      %p420 = scmp.eq.s32.totalorder %s45, 0
      %p421 = por %p419, %p420
      %p422 = scmp.ne.s32.totalorder %s411, %s414
      %p423 = scmp.eq.s32.totalorder %s50, 1
      %p424 = por %p422, %p423
      %p425 = scmp.ne.s32.totalorder %s414, %s415
      %p426 = scmp.eq.s32.totalorder %s50, 0
      %p427 = por %p425, %p426
      %p428 = scmp.ne.s32.totalorder %s414, %s415
      %p429 = scmp.eq.s32.totalorder %s51, 1
      %p430 = por %p428, %p429
      %p432 = scmp.ne.s32.totalorder %s415, %s431
      %p433 = scmp.eq.s32.totalorder %s51, 0
      %p434 = por %p432, %p433
      %s435 = ssub.s32 %s45, %s52
      %p436 = scmp.eq.s32.totalorder %s435, 0
      %s438 = sadd.s32 %s437, 1
      %s439 = scalar_select %p436, %s437, %s438
      %p442 = pneg %p436
      %p443 = scmp.eq.s32.totalorder %s45, 1
      %p444 = por %p442, %p443
      %p445 = scmp.ne.s32.totalorder %s437, %s440
      %p446 = scmp.eq.s32.totalorder %s45, 0
      %p447 = por %p445, %p446
      %p448 = scmp.ne.s32.totalorder %s437, %s440
      %p449 = scmp.eq.s32.totalorder %s50, 1
      %p450 = por %p448, %p449
      %p451 = scmp.ne.s32.totalorder %s440, %s441
      %p452 = scmp.eq.s32.totalorder %s50, 0
      %p453 = por %p451, %p452
      %p454 = scmp.ne.s32.totalorder %s440, %s441
      %p455 = scmp.eq.s32.totalorder %s51, 1
      %p456 = por %p454, %p455
      %p458 = scmp.ne.s32.totalorder %s441, %s457
      %p459 = scmp.eq.s32.totalorder %s51, 0
      %p460 = por %p458, %p459
      %s461 = ssub.s32 %s45, %s52
      %p462 = scmp.eq.s32.totalorder %s461, 0
      %s464 = sadd.s32 %s463, 1
      %s465 = scalar_select %p462, %s463, %s464
      %p468 = pneg %p462
      %p469 = scmp.eq.s32.totalorder %s45, 1
      %p470 = por %p468, %p469
      %p471 = scmp.ne.s32.totalorder %s463, %s466
      %p472 = scmp.eq.s32.totalorder %s45, 0
      %p473 = por %p471, %p472
      %p474 = scmp.ne.s32.totalorder %s463, %s466
      %p475 = scmp.eq.s32.totalorder %s50, 1
      %p476 = por %p474, %p475
      %p477 = scmp.ne.s32.totalorder %s466, %s467
      %p478 = scmp.eq.s32.totalorder %s50, 0
      %p479 = por %p477, %p478
      %p480 = scmp.ne.s32.totalorder %s466, %s467
      %p481 = scmp.eq.s32.totalorder %s51, 1
      %p482 = por %p480, %p481
      %p484 = scmp.ne.s32.totalorder %s467, %s483
      %p485 = scmp.eq.s32.totalorder %s51, 0
      %p486 = por %p484, %p485
      %s487 = ssub.s32 %s45, %s52
      %p488 = scmp.eq.s32.totalorder %s487, 0
      %s490 = sadd.s32 %s489, 1
      %s491 = scalar_select %p488, %s489, %s490
      %p494 = pneg %p488
      %p495 = scmp.eq.s32.totalorder %s45, 1
      %p496 = por %p494, %p495
      %p497 = scmp.ne.s32.totalorder %s489, %s492
      %p498 = scmp.eq.s32.totalorder %s45, 0
      %p499 = por %p497, %p498
      %p500 = scmp.ne.s32.totalorder %s489, %s492
      %p501 = scmp.eq.s32.totalorder %s50, 1
      %p502 = por %p500, %p501
      %p503 = scmp.ne.s32.totalorder %s492, %s493
      %p504 = scmp.eq.s32.totalorder %s50, 0
      %p505 = por %p503, %p504
      %p506 = scmp.ne.s32.totalorder %s492, %s493
      %p507 = scmp.eq.s32.totalorder %s51, 1
      %p508 = por %p506, %p507
      %p510 = scmp.ne.s32.totalorder %s493, %s509
      %p511 = scmp.eq.s32.totalorder %s51, 0
      %p512 = por %p510, %p511
      %s513 = ssub.s32 %s45, %s52
      %p514 = scmp.eq.s32.totalorder %s513, 0
      %s516 = sadd.s32 %s515, 1
      %s517 = scalar_select %p514, %s515, %s516
      %p520 = pneg %p514
      %p521 = scmp.eq.s32.totalorder %s45, 1
      %p522 = por %p520, %p521
      %p523 = scmp.ne.s32.totalorder %s515, %s518
      %p524 = scmp.eq.s32.totalorder %s45, 0
      %p525 = por %p523, %p524
      %p526 = scmp.ne.s32.totalorder %s515, %s518
      %p527 = scmp.eq.s32.totalorder %s50, 1
      %p528 = por %p526, %p527
      %p529 = scmp.ne.s32.totalorder %s518, %s519
      %p530 = scmp.eq.s32.totalorder %s50, 0
      %p531 = por %p529, %p530
      %p532 = scmp.ne.s32.totalorder %s518, %s519
      %p533 = scmp.eq.s32.totalorder %s51, 1
      %p534 = por %p532, %p533
      %p536 = scmp.ne.s32.totalorder %s519, %s535
      %p537 = scmp.eq.s32.totalorder %s51, 0
      %p538 = por %p536, %p537
      %p539 = scmp.le.s32.totalorder 1, %s45
      %p540 = scmp.lt.s32.totalorder %s45, 3
      %p541 = pnand %p539, %p540
      %p542 = pneg %p541
      // Predicated region
      $region9: #{lstm_generator_forward.1} parent=5 // pred_check
        _
      $region10: #{lstm_generator_forward.1} parent=5 // pred_check_branch
        %544 = sbr.rel (%p541) target = $region12
      $region11: #{lstm_generator_forward.1} parent=5 // pred_region
        %s545 = ssub.s32 %s45, 1
        // Predicated region
        $region13: #{lstm_generator_forward.1} parent=11 // pred_check
          %p546 = pneg %p144
        $region14: #{lstm_generator_forward.1} parent=11 // pred_check_branch
          %548 = sbr.rel (%p546) target = $region16
        $region15: #{lstm_generator_forward.1} parent=11 // pred_region
          %s550 = ssub.s32 73728, 73728
          %551 = vsyncadd [#allocation9], %s550
          %s552 = sshll.u32 [#allocation8], 4
          %s553 = int_to_ptr.vmem [resolvable:$true] %s552
          %558 = dma.hbm_to_vmem [thread:$0]  %s3, 73728, %s553, [#allocation9], 768, 768, 48
        $region16: #{lstm_generator_forward.1} parent=11 // pred_fallthru
          _
        // Predicated region
        $region17: #{lstm_generator_forward.1} parent=11 // pred_check
          %p559 = pneg %p165
        $region18: #{lstm_generator_forward.1} parent=11 // pred_check_branch
          %561 = sbr.rel (%p559) target = $region20
        $region19: #{lstm_generator_forward.1} parent=11 // pred_region
          %s563 = ssub.s32 96, 96
          %564 = vsyncadd [#allocation9], %s563
          %s566 = sshll.u32 [#allocation10], 4
          %s567 = int_to_ptr.vmem [resolvable:$true] %s566
          %569 = dma.hbm_to_vmem [thread:$0]  %s4, 96, %s567, [#allocation9]
        $region20: #{lstm_generator_forward.1} parent=11 // pred_fallthru
          _
        // Predicated region
        $region21: #{lstm_generator_forward.1} parent=11 // pred_check
          %p570 = pneg %p186
        $region22: #{lstm_generator_forward.1} parent=11 // pred_check_branch
          %572 = sbr.rel (%p570) target = $region24
        $region23: #{lstm_generator_forward.1} parent=11 // pred_region
          %s574 = ssub.s32 256, 256
          %575 = vsyncadd [#allocation12], %s574
          %s576 = sshll.u32 [#allocation11], 4
          %s577 = int_to_ptr.vmem [resolvable:$true] %s576
          %582 = dma.hbm_to_vmem [thread:$0]  %s5, 256, %s577, [#allocation12], 128, 128, 8
        $region24: #{lstm_generator_forward.1} parent=11 // pred_fallthru
          _
        // Predicated region
        $region25: #{lstm_generator_forward.1} parent=11 // pred_check
          %p583 = pneg %p207
        $region26: #{lstm_generator_forward.1} parent=11 // pred_check_branch
          %585 = sbr.rel (%p583) target = $region28
        $region27: #{lstm_generator_forward.1} parent=11 // pred_region
          %s587 = ssub.s32 256, 256
          %588 = vsyncadd [#allocation12], %s587
          %s589 = sshll.u32 [#allocation13], 4
          %s590 = int_to_ptr.vmem [resolvable:$true] %s589
          %595 = dma.hbm_to_vmem [thread:$0]  %s6, 256, %s590, [#allocation12], 128, 128, 8
        $region28: #{lstm_generator_forward.1} parent=11 // pred_fallthru
          _
        // Predicated region
        $region29: #{lstm_generator_forward.1} parent=11 // pred_check
          %p596 = pneg %p228
        $region30: #{lstm_generator_forward.1} parent=11 // pred_check_branch
          %598 = sbr.rel (%p596) target = $region32
        $region31: #{lstm_generator_forward.1} parent=11 // pred_region
          %s600 = ssub.s32 12288, 12288
          %601 = vsyncadd [#allocation15], %s600
          %s602 = sshll.u32 [#allocation14], 4
          %s603 = int_to_ptr.vmem [resolvable:$true] %s602
          %608 = dma.hbm_to_vmem [thread:$0]  %s7, 12288, %s603, [#allocation15], 128, 128, 8
        $region32: #{lstm_generator_forward.1} parent=11 // pred_fallthru
          _
        // Predicated region
        $region33: #{lstm_generator_forward.1} parent=11 // pred_check
          %p609 = pneg %p249
        $region34: #{lstm_generator_forward.1} parent=11 // pred_check_branch
          %611 = sbr.rel (%p609) target = $region36
        $region35: #{lstm_generator_forward.1} parent=11 // pred_region
          %s613 = ssub.s32 512, 512
          %614 = vsyncadd [#allocation15], %s613
          %s615 = sshll.u32 [#allocation16], 4
          %s616 = int_to_ptr.vmem [resolvable:$true] %s615
          %621 = dma.hbm_to_vmem [thread:$0]  %s8, 512, %s616, [#allocation15], 128, 128, 8
        $region36: #{lstm_generator_forward.1} parent=11 // pred_fallthru
          _
        // Predicated region
        $region37: #{lstm_generator_forward.1} parent=11 // pred_check
          %p622 = pneg %p270
        $region38: #{lstm_generator_forward.1} parent=11 // pred_check_branch
          %624 = sbr.rel (%p622) target = $region40
        $region39: #{lstm_generator_forward.1} parent=11 // pred_region
          %s626 = ssub.s32 16, 16
          %627 = vsyncadd [#allocation18], %s626
          %s629 = sshll.u32 [#allocation17], 4
          %s630 = int_to_ptr.vmem [resolvable:$true] %s629
          %632 = dma.hbm_to_vmem [thread:$0]  %s9, 16, %s630, [#allocation18]
        $region40: #{lstm_generator_forward.1} parent=11 // pred_fallthru
          _
        // Predicated region
        $region41: #{lstm_generator_forward.1} parent=11 // pred_check
          %p633 = pneg %p291
        $region42: #{lstm_generator_forward.1} parent=11 // pred_check_branch
          %635 = sbr.rel (%p633) target = $region44
        $region43: #{lstm_generator_forward.1} parent=11 // pred_region
          %s637 = ssub.s32 512, 512
          %638 = vsyncadd [#allocation18], %s637
          %s639 = sshll.u32 [#allocation19], 4
          %s640 = int_to_ptr.vmem [resolvable:$true] %s639
          %645 = dma.hbm_to_vmem [thread:$0]  %s10, 512, %s640, [#allocation18], 128, 128, 8
        $region44: #{lstm_generator_forward.1} parent=11 // pred_fallthru
          _
        // Predicated region
        $region45: #{lstm_generator_forward.1} parent=11 // pred_check
          %p646 = pneg %p312
        $region46: #{lstm_generator_forward.1} parent=11 // pred_check_branch
          %648 = sbr.rel (%p646) target = $region48
        $region47: #{lstm_generator_forward.1} parent=11 // pred_region
          %s650 = ssub.s32 512, 512
          %651 = vsyncadd [#allocation21], %s650
          %s652 = sshll.u32 [#allocation20], 4
          %s653 = int_to_ptr.vmem [resolvable:$true] %s652
          %658 = dma.hbm_to_vmem [thread:$0]  %s11, 512, %s653, [#allocation21], 128, 128, 8
        $region48: #{lstm_generator_forward.1} parent=11 // pred_fallthru
          _
        // Predicated region
        $region49: #{lstm_generator_forward.1} parent=11 // pred_check
          %p659 = pneg %p333
        $region50: #{lstm_generator_forward.1} parent=11 // pred_check_branch
          %661 = sbr.rel (%p659) target = $region52
        $region51: #{lstm_generator_forward.1} parent=11 // pred_region
          %s663 = ssub.s32 16, 16
          %664 = vsyncadd [#allocation21], %s663
          %s666 = sshll.u32 [#allocation22], 4
          %s667 = int_to_ptr.vmem [resolvable:$true] %s666
          %669 = dma.hbm_to_vmem [thread:$0]  %s12, 16, %s667, [#allocation21]
        $region52: #{lstm_generator_forward.1} parent=11 // pred_fallthru
          _
        // Predicated region
        $region53: #{lstm_generator_forward.1} parent=11 // pred_check
          %p670 = pneg %p354
        $region54: #{lstm_generator_forward.1} parent=11 // pred_check_branch
          %672 = sbr.rel (%p670) target = $region56
        $region55: #{lstm_generator_forward.1} parent=11 // pred_region
          _
        $region56: #{lstm_generator_forward.1} parent=11 // pred_fallthru
          _
        // Predicated region
        $region57: #{lstm_generator_forward.1} parent=11 // pred_check
          %p673 = pneg %p375
        $region58: #{lstm_generator_forward.1} parent=11 // pred_check_branch
          %675 = sbr.rel (%p673) target = $region60
        $region59: #{lstm_generator_forward.1} parent=11 // pred_region
          %s677 = ssub.s32 16, 16
          %678 = vsyncadd [#allocation24], %s677
          %s680 = sshll.u32 [#allocation23], 4
          %s681 = int_to_ptr.vmem [resolvable:$true] %s680
          %683 = dma.hbm_to_vmem [thread:$0]  %s14, 16, %s681, [#allocation24]
        $region60: #{lstm_generator_forward.1} parent=11 // pred_fallthru
          _
      $region12: #{lstm_generator_forward.1} parent=5 // pred_fallthru
        _
      %p684 = scmp.lt.s32.totalorder %s45, 2
      // Predicated region
      $region61: #{lstm_generator_forward.1} parent=5 // pred_check
        %p685 = pneg %p684
      $region62: #{lstm_generator_forward.1} parent=5 // pred_check_branch
        %687 = sbr.rel (%p685) target = $region64
      $region63: #{lstm_generator_forward.1} parent=5 // pred_region
        // Predicated region
        $region65: #{lstm_generator_forward.1} parent=63 // pred_check
          %p688 = pneg %p65
        $region66: #{lstm_generator_forward.1} parent=63 // pred_check_branch
          %690 = sbr.rel (%p688) target = $region68
        $region67: #{lstm_generator_forward.1} parent=63 // pred_region
          %s691 = sand.u32 %s55, 1
          %s692 = scalar_lea.sflag [#allocation3], %s691
          %s693 = sand.u32 %s55, 1
          %s694 = smul.addr %s693, 384
          %s695 = scalar_lea.vmem [#allocation2], %s694
          %s697 = ssub.s32 6144, 6144
          %698 = vsyncadd %s692, %s697
          %s699 = smul.addr %s45, 48
          %s700 = smul.addr %s699, 128
          %s701 = scalar_lea.hbm %s0, %s700
          %s702 = sshll.u32 %s695, 4
          %s703 = int_to_ptr.vmem [resolvable:$true] %s702
          %708 = dma.hbm_to_vmem [thread:$0]  %s701, 6144, %s703, %s692, 768, 768, 48
        $region68: #{lstm_generator_forward.1} parent=63 // pred_fallthru
          _
        // Predicated region
        $region69: #{lstm_generator_forward.1} parent=63 // pred_check
          %p709 = pneg %p91
        $region70: #{lstm_generator_forward.1} parent=63 // pred_check_branch
          %711 = sbr.rel (%p709) target = $region72
        $region71: #{lstm_generator_forward.1} parent=63 // pred_region
          %s712 = sand.u32 %s45, 1
          %s713 = scalar_lea.sflag [#allocation6], %s712
          %s714 = sand.u32 %s81, 1
          %s715 = smul.addr %s714, 8
          %s716 = scalar_lea.vmem [#allocation5], %s715
          %s718 = ssub.s32 128, 128
          %719 = vsyncadd %s713, %s718
          %s720 = smul.addr %s45, 128
          %s721 = scalar_lea.hbm %s1, %s720
          %s723 = sshll.u32 %s716, 4
          %s724 = int_to_ptr.vmem [resolvable:$true] %s723
          %726 = dma.hbm_to_vmem [thread:$0]  %s721, 128, %s724, %s713
        $region72: #{lstm_generator_forward.1} parent=63 // pred_fallthru
          _
        // Predicated region
        $region73: #{lstm_generator_forward.1} parent=63 // pred_check
          %p727 = pneg %p117
        $region74: #{lstm_generator_forward.1} parent=63 // pred_check_branch
          %729 = sbr.rel (%p727) target = $region76
        $region75: #{lstm_generator_forward.1} parent=63 // pred_region
          %s730 = sand.u32 %s45, 1
          %s731 = scalar_lea.sflag [#allocation6], %s730
          %s732 = sand.u32 %s107, 1
          %s733 = smul.addr %s732, 8
          %s734 = scalar_lea.vmem [#allocation7], %s733
          %s736 = ssub.s32 128, 128
          %737 = vsyncadd %s731, %s736
          %s738 = smul.addr %s45, 128
          %s739 = scalar_lea.hbm %s2, %s738
          %s741 = sshll.u32 %s734, 4
          %s742 = int_to_ptr.vmem [resolvable:$true] %s741
          %744 = dma.hbm_to_vmem [thread:$0]  %s739, 128, %s742, %s731
        $region76: #{lstm_generator_forward.1} parent=63 // pred_fallthru
          _
        // Predicated region
        $region77: #{lstm_generator_forward.1} parent=63 // pred_check
          %p745 = pneg %p395
        $region78: #{lstm_generator_forward.1} parent=63 // pred_check_branch
          %747 = sbr.rel (%p745) target = $region80
        $region79: #{lstm_generator_forward.1} parent=63 // pred_region
          %p748 = scmp.lt.s32.totalorder %s45, 1
          %s749 = scalar_select %p748, %s45, 1
          %s750 = smul.addr %s749, 2
          %s751 = scalar_lea.vmem %s15, %s750
        $region80: #{lstm_generator_forward.1} parent=63 // pred_fallthru
          _
        // Predicated region
        $region81: #{lstm_generator_forward.1} parent=63 // pred_check
          %p752 = pneg %p421
        $region82: #{lstm_generator_forward.1} parent=63 // pred_check_branch
          %754 = sbr.rel (%p752) target = $region84
        $region83: #{lstm_generator_forward.1} parent=63 // pred_region
          %p755 = scmp.lt.s32.totalorder %s45, 1
          %s756 = scalar_select %p755, %s45, 1
          %s757 = smul.addr %s756, 2
          %s758 = scalar_lea.vmem %s16, %s757
        $region84: #{lstm_generator_forward.1} parent=63 // pred_fallthru
          _
      $region64: #{lstm_generator_forward.1} parent=5 // pred_fallthru
        _
      %p759 = scmp.le.s32.totalorder 1, %s45
      %p760 = scmp.lt.s32.totalorder %s45, 3
      %p761 = pnand %p759, %p760
      %p762 = pneg %p761
      // Predicated region
      $region85: #{lstm_generator_forward.1} parent=5 // pred_check
        _
      $region86: #{lstm_generator_forward.1} parent=5 // pred_check_branch
        %764 = sbr.rel (%p761) target = $region88
      $region87: #{lstm_generator_forward.1} parent=5 // pred_region
        %s765 = ssub.s32 %s45, 1
        %s766 = sand.u32 %s58, 1
        %s767 = scalar_lea.sflag [#allocation3], %s766
        %s768 = sand.u32 %s58, 1
        %s769 = smul.addr %s768, 384
        %s770 = scalar_lea.vmem [#allocation2], %s769
        // Predicated region
        $region89: #{lstm_generator_forward.1} parent=87 // pred_check
          %p771 = pneg %p71
        $region90: #{lstm_generator_forward.1} parent=87 // pred_check_branch
          %773 = sbr.rel (%p771) target = $region92
        $region91: #{lstm_generator_forward.1} parent=87 // pred_region
          %774 = dma.done %s767, 6144
        $region92: #{lstm_generator_forward.1} parent=87 // pred_fallthru
          _
        %s775 = sand.u32 %s50, 1
        %s776 = scalar_lea.sflag [#allocation6], %s775
        %s777 = sand.u32 %s84, 1
        %s778 = smul.addr %s777, 8
        %s779 = scalar_lea.vmem [#allocation5], %s778
        // Predicated region
        $region93: #{lstm_generator_forward.1} parent=87 // pred_check
          %p780 = pneg %p97
        $region94: #{lstm_generator_forward.1} parent=87 // pred_check_branch
          %782 = sbr.rel (%p780) target = $region96
        $region95: #{lstm_generator_forward.1} parent=87 // pred_region
          %783 = dma.done %s776, 128
        $region96: #{lstm_generator_forward.1} parent=87 // pred_fallthru
          _
        %s784 = sand.u32 %s50, 1
        %s785 = scalar_lea.sflag [#allocation6], %s784
        %s786 = sand.u32 %s110, 1
        %s787 = smul.addr %s786, 8
        %s788 = scalar_lea.vmem [#allocation7], %s787
        // Predicated region
        $region97: #{lstm_generator_forward.1} parent=87 // pred_check
          %p789 = pneg %p123
        $region98: #{lstm_generator_forward.1} parent=87 // pred_check_branch
          %791 = sbr.rel (%p789) target = $region100
        $region99: #{lstm_generator_forward.1} parent=87 // pred_region
          %792 = dma.done %s785, 128
        $region100: #{lstm_generator_forward.1} parent=87 // pred_fallthru
          _
        // Predicated region
        $region101: #{lstm_generator_forward.1} parent=87 // pred_check
          %p793 = pneg %p144
        $region102: #{lstm_generator_forward.1} parent=87 // pred_check_branch
          %795 = sbr.rel (%p793) target = $region104
        $region103: #{lstm_generator_forward.1} parent=87 // pred_region
          %796 = dma.done [#allocation9], 73728
        $region104: #{lstm_generator_forward.1} parent=87 // pred_fallthru
          _
        // Predicated region
        $region105: #{lstm_generator_forward.1} parent=87 // pred_check
          %p797 = pneg %p165
        $region106: #{lstm_generator_forward.1} parent=87 // pred_check_branch
          %799 = sbr.rel (%p797) target = $region108
        $region107: #{lstm_generator_forward.1} parent=87 // pred_region
          %800 = dma.done [#allocation9], 96
        $region108: #{lstm_generator_forward.1} parent=87 // pred_fallthru
          _
        // Predicated region
        $region109: #{lstm_generator_forward.1} parent=87 // pred_check
          %p801 = pneg %p186
        $region110: #{lstm_generator_forward.1} parent=87 // pred_check_branch
          %803 = sbr.rel (%p801) target = $region112
        $region111: #{lstm_generator_forward.1} parent=87 // pred_region
          %804 = dma.done [#allocation12], 256
        $region112: #{lstm_generator_forward.1} parent=87 // pred_fallthru
          _
        // Predicated region
        $region113: #{lstm_generator_forward.1} parent=87 // pred_check
          %p805 = pneg %p207
        $region114: #{lstm_generator_forward.1} parent=87 // pred_check_branch
          %807 = sbr.rel (%p805) target = $region116
        $region115: #{lstm_generator_forward.1} parent=87 // pred_region
          %808 = dma.done [#allocation12], 256
        $region116: #{lstm_generator_forward.1} parent=87 // pred_fallthru
          _
        // Predicated region
        $region117: #{lstm_generator_forward.1} parent=87 // pred_check
          %p809 = pneg %p228
        $region118: #{lstm_generator_forward.1} parent=87 // pred_check_branch
          %811 = sbr.rel (%p809) target = $region120
        $region119: #{lstm_generator_forward.1} parent=87 // pred_region
          %812 = dma.done [#allocation15], 12288
        $region120: #{lstm_generator_forward.1} parent=87 // pred_fallthru
          _
        // Predicated region
        $region121: #{lstm_generator_forward.1} parent=87 // pred_check
          %p813 = pneg %p249
        $region122: #{lstm_generator_forward.1} parent=87 // pred_check_branch
          %815 = sbr.rel (%p813) target = $region124
        $region123: #{lstm_generator_forward.1} parent=87 // pred_region
          %816 = dma.done [#allocation15], 512
        $region124: #{lstm_generator_forward.1} parent=87 // pred_fallthru
          _
        // Predicated region
        $region125: #{lstm_generator_forward.1} parent=87 // pred_check
          %p817 = pneg %p270
        $region126: #{lstm_generator_forward.1} parent=87 // pred_check_branch
          %819 = sbr.rel (%p817) target = $region128
        $region127: #{lstm_generator_forward.1} parent=87 // pred_region
          %820 = dma.done [#allocation18], 16
        $region128: #{lstm_generator_forward.1} parent=87 // pred_fallthru
          _
        // Predicated region
        $region129: #{lstm_generator_forward.1} parent=87 // pred_check
          %p821 = pneg %p291
        $region130: #{lstm_generator_forward.1} parent=87 // pred_check_branch
          %823 = sbr.rel (%p821) target = $region132
        $region131: #{lstm_generator_forward.1} parent=87 // pred_region
          %824 = dma.done [#allocation18], 512
        $region132: #{lstm_generator_forward.1} parent=87 // pred_fallthru
          _
        // Predicated region
        $region133: #{lstm_generator_forward.1} parent=87 // pred_check
          %p825 = pneg %p312
        $region134: #{lstm_generator_forward.1} parent=87 // pred_check_branch
          %827 = sbr.rel (%p825) target = $region136
        $region135: #{lstm_generator_forward.1} parent=87 // pred_region
          %828 = dma.done [#allocation21], 512
        $region136: #{lstm_generator_forward.1} parent=87 // pred_fallthru
          _
        // Predicated region
        $region137: #{lstm_generator_forward.1} parent=87 // pred_check
          %p829 = pneg %p333
        $region138: #{lstm_generator_forward.1} parent=87 // pred_check_branch
          %831 = sbr.rel (%p829) target = $region140
        $region139: #{lstm_generator_forward.1} parent=87 // pred_region
          %832 = dma.done [#allocation21], 16
        $region140: #{lstm_generator_forward.1} parent=87 // pred_fallthru
          _
        // Predicated region
        $region141: #{lstm_generator_forward.1} parent=87 // pred_check
          %p833 = pneg %p375
        $region142: #{lstm_generator_forward.1} parent=87 // pred_check_branch
          %835 = sbr.rel (%p833) target = $region144
        $region143: #{lstm_generator_forward.1} parent=87 // pred_region
          %836 = dma.done [#allocation24], 16
        $region144: #{lstm_generator_forward.1} parent=87 // pred_fallthru
          _
        %s837 = sand.u32 %s58, 1
        %s838 = scalar_lea.sflag [#allocation3], %s837
        %s839 = sand.u32 %s58, 1
        %s840 = smul.addr %s839, 384
        %s841 = scalar_lea.vmem [#allocation2], %s840
        %p842 = pneg %p71
        %p843 = pneg %p68
        %s844 = sand.u32 %s50, 1
        %s845 = scalar_lea.sflag [#allocation6], %s844
        %s846 = sand.u32 %s84, 1
        %s847 = smul.addr %s846, 8
        %s848 = scalar_lea.vmem [#allocation5], %s847
        %p849 = pneg %p97
        %p850 = pneg %p94
        %s851 = sand.u32 %s50, 1
        %s852 = scalar_lea.sflag [#allocation6], %s851
        %s853 = sand.u32 %s110, 1
        %s854 = smul.addr %s853, 8
        %s855 = scalar_lea.vmem [#allocation7], %s854
        %p856 = pneg %p123
        %p857 = pneg %p120
        %p858 = pneg %p144
        %p859 = pneg %p141
        %p860 = pneg %p165
        %p861 = pneg %p162
        %p862 = pneg %p186
        %p863 = pneg %p183
        %p864 = pneg %p207
        %p865 = pneg %p204
        %p866 = pneg %p228
        %p867 = pneg %p225
        %p868 = pneg %p249
        %p869 = pneg %p246
        %p870 = pneg %p270
        %p871 = pneg %p267
        %p872 = pneg %p291
        %p873 = pneg %p288
        %p874 = pneg %p312
        %p875 = pneg %p309
        %p876 = pneg %p333
        %p877 = pneg %p330
        %p878 = pneg %p354
        %p879 = pneg %p351
        %p880 = pneg %p375
        %p881 = pneg %p372
        %p882 = scmp.lt.s32.totalorder %s50, 1
        %s883 = scalar_select %p882, %s50, 1
        %s884 = smul.addr %s883, 2
        %s885 = scalar_lea.vmem %s15, %s884
        %p886 = pneg %p401
        %p887 = pneg %p398
        %p888 = scmp.lt.s32.totalorder %s50, 1
        %s889 = scalar_select %p888, %s50, 1
        %s890 = smul.addr %s889, 2
        %s891 = scalar_lea.vmem %s16, %s890
        %p892 = pneg %p427
        %p893 = pneg %p424
        %p894 = pneg %p453
        %p895 = pneg %p450
        %s896 = sand.u32 %s440, 1
        %s897 = scalar_lea.sflag [#allocation4], %s896
        %s898 = sand.u32 %s440, 1
        %s899 = smul.addr %s898, 4
        %s900 = scalar_lea.vmem [#allocation25], %s899
        %p901 = pneg %p479
        %p902 = pneg %p476
        %s903 = sand.u32 %s466, 1
        %s904 = scalar_lea.sflag [#allocation27], %s903
        %s905 = sand.u32 %s466, 1
        %s906 = smul.addr %s905, 48
        %s907 = scalar_lea.vmem [#allocation26], %s906
        %p908 = pneg %p505
        %p909 = pneg %p502
        %p910 = scmp.lt.s32.totalorder %s50, 1
        %s911 = scalar_select %p910, %s50, 1
        %s912 = smul.addr %s911, 2
        %s913 = scalar_lea.vmem %s19, %s912
        %p914 = pneg %p531
        %p915 = pneg %p528
        %p916 = scmp.lt.s32.totalorder %s50, 1
        %s917 = scalar_select %p916, %s50, 1
        %s918 = smul.addr %s917, 2
        %s919 = scalar_lea.vmem %s20, %s918
        %p920 = scmp.lt.s32.totalorder %s50, 1
        %s921 = scalar_select %p920, %s50, 1
        %s922 = smul.addr %s921, 2
        %s923 = scalar_lea.vmem %s15, %s922
        %p924 = scmp.lt.s32.totalorder %s50, 1
        %s925 = scalar_select %p924, %s50, 1
        %s926 = smul.addr %s925, 2
        %s927 = scalar_lea.vmem %s16, %s926
        %p928 = scmp.lt.s32.totalorder %s50, 1
        %s929 = scalar_select %p928, %s50, 1
        %s930 = smul.addr %s929, 2
        %s931 = scalar_lea.vmem %s19, %s930
        %p932 = scmp.lt.s32.totalorder %s50, 1
        %s933 = scalar_select %p932, %s50, 1
        %s934 = smul.addr %s933, 2
        %s935 = scalar_lea.vmem %s20, %s934
        %v936 = vld [vmem:[%s770] sm:$0xff]
        %v937 = vld [vmem:[%s770 + $0x8] sm:$0xff]
        %v938 = vld [vmem:[%s770 + $0x10] sm:$0xff]
        %v939 = vld [vmem:[%s770 + $0x18] sm:$0xff]
        %v940 = vld [vmem:[%s770 + $0x20] sm:$0xff]
        %v941 = vld [vmem:[%s770 + $0x28] sm:$0xff]
        %v942 = vld [vmem:[%s770 + $0x30] sm:$0xff]
        %v943 = vld [vmem:[%s770 + $0x38] sm:$0xff]
        %v944 = vld [vmem:[%s770 + $0x40] sm:$0xff]
        %v945 = vld [vmem:[%s770 + $0x48] sm:$0xff]
        %v946 = vld [vmem:[%s770 + $0x50] sm:$0xff]
        %v947 = vld [vmem:[%s770 + $0x58] sm:$0xff]
        %v948 = vld [vmem:[%s770 + $0x60] sm:$0xff]
        %v949 = vld [vmem:[%s770 + $0x68] sm:$0xff]
        %v950 = vld [vmem:[%s770 + $0x70] sm:$0xff]
        %v951 = vld [vmem:[%s770 + $0x78] sm:$0xff]
        %v952 = vld [vmem:[%s770 + $0x80] sm:$0xff]
        %v953 = vld [vmem:[%s770 + $0x88] sm:$0xff]
        %v954 = vld [vmem:[%s770 + $0x90] sm:$0xff]
        %v955 = vld [vmem:[%s770 + $0x98] sm:$0xff]
        %v956 = vld [vmem:[%s770 + $0xa0] sm:$0xff]
        %v957 = vld [vmem:[%s770 + $0xa8] sm:$0xff]
        %v958 = vld [vmem:[%s770 + $0xb0] sm:$0xff]
        %v959 = vld [vmem:[%s770 + $0xb8] sm:$0xff]
        %v960 = vld [vmem:[%s770 + $0xc0] sm:$0xff]
        %v961 = vld [vmem:[%s770 + $0xc8] sm:$0xff]
        %v962 = vld [vmem:[%s770 + $0xd0] sm:$0xff]
        %v963 = vld [vmem:[%s770 + $0xd8] sm:$0xff]
        %v964 = vld [vmem:[%s770 + $0xe0] sm:$0xff]
        %v965 = vld [vmem:[%s770 + $0xe8] sm:$0xff]
        %v966 = vld [vmem:[%s770 + $0xf0] sm:$0xff]
        %v967 = vld [vmem:[%s770 + $0xf8] sm:$0xff]
        %v968 = vld [vmem:[%s770 + $0x100] sm:$0xff]
        %v969 = vld [vmem:[%s770 + $0x108] sm:$0xff]
        %v970 = vld [vmem:[%s770 + $0x110] sm:$0xff]
        %v971 = vld [vmem:[%s770 + $0x118] sm:$0xff]
        %v972 = vld [vmem:[%s770 + $0x120] sm:$0xff]
        %v973 = vld [vmem:[%s770 + $0x128] sm:$0xff]
        %v974 = vld [vmem:[%s770 + $0x130] sm:$0xff]
        %v975 = vld [vmem:[%s770 + $0x138] sm:$0xff]
        %v976 = vld [vmem:[%s770 + $0x140] sm:$0xff]
        %v977 = vld [vmem:[%s770 + $0x148] sm:$0xff]
        %v978 = vld [vmem:[%s770 + $0x150] sm:$0xff]
        %v979 = vld [vmem:[%s770 + $0x158] sm:$0xff]
        %v980 = vld [vmem:[%s770 + $0x160] sm:$0xff]
        %v981 = vld [vmem:[%s770 + $0x168] sm:$0xff]
        %v982 = vld [vmem:[%s770 + $0x170] sm:$0xff]
        %v983 = vld [vmem:[%s770 + $0x178] sm:$0xff]
        %v984 = vrot.slane %v936, 4
        %v985 = vadd.f32 %v936, %v984
        %v986 = vrot.slane %v985, 2
        %v987 = vadd.f32 %v985, %v986
        %v988 = vrot.slane %v987, 1
        %v989 = vadd.f32 %v987, %v988
        %v990 = vrot.slane %v937, 4
        %v991 = vadd.f32 %v937, %v990
        %v992 = vrot.slane %v991, 2
        %v993 = vadd.f32 %v991, %v992
        %v994 = vrot.slane %v993, 1
        %v995 = vadd.f32 %v993, %v994
        %v996 = vrot.slane %v938, 4
        %v997 = vadd.f32 %v938, %v996
        %v998 = vrot.slane %v997, 2
        %v999 = vadd.f32 %v997, %v998
        %v1000 = vrot.slane %v999, 1
        %v1001 = vadd.f32 %v999, %v1000
        %v1002 = vrot.slane %v939, 4
        %v1003 = vadd.f32 %v939, %v1002
        %v1004 = vrot.slane %v1003, 2
        %v1005 = vadd.f32 %v1003, %v1004
        %v1006 = vrot.slane %v1005, 1
        %v1007 = vadd.f32 %v1005, %v1006
        %v1008 = vrot.slane %v940, 4
        %v1009 = vadd.f32 %v940, %v1008
        %v1010 = vrot.slane %v1009, 2
        %v1011 = vadd.f32 %v1009, %v1010
        %v1012 = vrot.slane %v1011, 1
        %v1013 = vadd.f32 %v1011, %v1012
        %v1014 = vrot.slane %v941, 4
        %v1015 = vadd.f32 %v941, %v1014
        %v1016 = vrot.slane %v1015, 2
        %v1017 = vadd.f32 %v1015, %v1016
        %v1018 = vrot.slane %v1017, 1
        %v1019 = vadd.f32 %v1017, %v1018
        %v1020 = vrot.slane %v942, 4
        %v1021 = vadd.f32 %v942, %v1020
        %v1022 = vrot.slane %v1021, 2
        %v1023 = vadd.f32 %v1021, %v1022
        %v1024 = vrot.slane %v1023, 1
        %v1025 = vadd.f32 %v1023, %v1024
        %v1026 = vrot.slane %v943, 4
        %v1027 = vadd.f32 %v943, %v1026
        %v1028 = vrot.slane %v1027, 2
        %v1029 = vadd.f32 %v1027, %v1028
        %v1030 = vrot.slane %v1029, 1
        %v1031 = vadd.f32 %v1029, %v1030
        %v1032 = vrot.slane %v944, 4
        %v1033 = vadd.f32 %v944, %v1032
        %v1034 = vrot.slane %v1033, 2
        %v1035 = vadd.f32 %v1033, %v1034
        %v1036 = vrot.slane %v1035, 1
        %v1037 = vadd.f32 %v1035, %v1036
        %v1038 = vrot.slane %v945, 4
        %v1039 = vadd.f32 %v945, %v1038
        %v1040 = vrot.slane %v1039, 2
        %v1041 = vadd.f32 %v1039, %v1040
        %v1042 = vrot.slane %v1041, 1
        %v1043 = vadd.f32 %v1041, %v1042
        %v1044 = vrot.slane %v946, 4
        %v1045 = vadd.f32 %v946, %v1044
        %v1046 = vrot.slane %v1045, 2
        %v1047 = vadd.f32 %v1045, %v1046
        %v1048 = vrot.slane %v1047, 1
        %v1049 = vadd.f32 %v1047, %v1048
        %v1050 = vrot.slane %v947, 4
        %v1051 = vadd.f32 %v947, %v1050
        %v1052 = vrot.slane %v1051, 2
        %v1053 = vadd.f32 %v1051, %v1052
        %v1054 = vrot.slane %v1053, 1
        %v1055 = vadd.f32 %v1053, %v1054
        %v1056 = vrot.slane %v948, 4
        %v1057 = vadd.f32 %v948, %v1056
        %v1058 = vrot.slane %v1057, 2
        %v1059 = vadd.f32 %v1057, %v1058
        %v1060 = vrot.slane %v1059, 1
        %v1061 = vadd.f32 %v1059, %v1060
        %v1062 = vrot.slane %v949, 4
        %v1063 = vadd.f32 %v949, %v1062
        %v1064 = vrot.slane %v1063, 2
        %v1065 = vadd.f32 %v1063, %v1064
        %v1066 = vrot.slane %v1065, 1
        %v1067 = vadd.f32 %v1065, %v1066
        %v1068 = vrot.slane %v950, 4
        %v1069 = vadd.f32 %v950, %v1068
        %v1070 = vrot.slane %v1069, 2
        %v1071 = vadd.f32 %v1069, %v1070
        %v1072 = vrot.slane %v1071, 1
        %v1073 = vadd.f32 %v1071, %v1072
        %v1074 = vrot.slane %v951, 4
        %v1075 = vadd.f32 %v951, %v1074
        %v1076 = vrot.slane %v1075, 2
        %v1077 = vadd.f32 %v1075, %v1076
        %v1078 = vrot.slane %v1077, 1
        %v1079 = vadd.f32 %v1077, %v1078
        %v1080 = vrot.slane %v952, 4
        %v1081 = vadd.f32 %v952, %v1080
        %v1082 = vrot.slane %v1081, 2
        %v1083 = vadd.f32 %v1081, %v1082
        %v1084 = vrot.slane %v1083, 1
        %v1085 = vadd.f32 %v1083, %v1084
        %v1086 = vrot.slane %v953, 4
        %v1087 = vadd.f32 %v953, %v1086
        %v1088 = vrot.slane %v1087, 2
        %v1089 = vadd.f32 %v1087, %v1088
        %v1090 = vrot.slane %v1089, 1
        %v1091 = vadd.f32 %v1089, %v1090
        %v1092 = vrot.slane %v954, 4
        %v1093 = vadd.f32 %v954, %v1092
        %v1094 = vrot.slane %v1093, 2
        %v1095 = vadd.f32 %v1093, %v1094
        %v1096 = vrot.slane %v1095, 1
        %v1097 = vadd.f32 %v1095, %v1096
        %v1098 = vrot.slane %v955, 4
        %v1099 = vadd.f32 %v955, %v1098
        %v1100 = vrot.slane %v1099, 2
        %v1101 = vadd.f32 %v1099, %v1100
        %v1102 = vrot.slane %v1101, 1
        %v1103 = vadd.f32 %v1101, %v1102
        %v1104 = vrot.slane %v956, 4
        %v1105 = vadd.f32 %v956, %v1104
        %v1106 = vrot.slane %v1105, 2
        %v1107 = vadd.f32 %v1105, %v1106
        %v1108 = vrot.slane %v1107, 1
        %v1109 = vadd.f32 %v1107, %v1108
        %v1110 = vrot.slane %v957, 4
        %v1111 = vadd.f32 %v957, %v1110
        %v1112 = vrot.slane %v1111, 2
        %v1113 = vadd.f32 %v1111, %v1112
        %v1114 = vrot.slane %v1113, 1
        %v1115 = vadd.f32 %v1113, %v1114
        %v1116 = vrot.slane %v958, 4
        %v1117 = vadd.f32 %v958, %v1116
        %v1118 = vrot.slane %v1117, 2
        %v1119 = vadd.f32 %v1117, %v1118
        %v1120 = vrot.slane %v1119, 1
        %v1121 = vadd.f32 %v1119, %v1120
        %v1122 = vrot.slane %v959, 4
        %v1123 = vadd.f32 %v959, %v1122
        %v1124 = vrot.slane %v1123, 2
        %v1125 = vadd.f32 %v1123, %v1124
        %v1126 = vrot.slane %v1125, 1
        %v1127 = vadd.f32 %v1125, %v1126
        %v1128 = vrot.slane %v960, 4
        %v1129 = vadd.f32 %v960, %v1128
        %v1130 = vrot.slane %v1129, 2
        %v1131 = vadd.f32 %v1129, %v1130
        %v1132 = vrot.slane %v1131, 1
        %v1133 = vadd.f32 %v1131, %v1132
        %v1134 = vrot.slane %v961, 4
        %v1135 = vadd.f32 %v961, %v1134
        %v1136 = vrot.slane %v1135, 2
        %v1137 = vadd.f32 %v1135, %v1136
        %v1138 = vrot.slane %v1137, 1
        %v1139 = vadd.f32 %v1137, %v1138
        %v1140 = vrot.slane %v962, 4
        %v1141 = vadd.f32 %v962, %v1140
        %v1142 = vrot.slane %v1141, 2
        %v1143 = vadd.f32 %v1141, %v1142
        %v1144 = vrot.slane %v1143, 1
        %v1145 = vadd.f32 %v1143, %v1144
        %v1146 = vrot.slane %v963, 4
        %v1147 = vadd.f32 %v963, %v1146
        %v1148 = vrot.slane %v1147, 2
        %v1149 = vadd.f32 %v1147, %v1148
        %v1150 = vrot.slane %v1149, 1
        %v1151 = vadd.f32 %v1149, %v1150
        %v1152 = vrot.slane %v964, 4
        %v1153 = vadd.f32 %v964, %v1152
        %v1154 = vrot.slane %v1153, 2
        %v1155 = vadd.f32 %v1153, %v1154
        %v1156 = vrot.slane %v1155, 1
        %v1157 = vadd.f32 %v1155, %v1156
        %v1158 = vrot.slane %v965, 4
        %v1159 = vadd.f32 %v965, %v1158
        %v1160 = vrot.slane %v1159, 2
        %v1161 = vadd.f32 %v1159, %v1160
        %v1162 = vrot.slane %v1161, 1
        %v1163 = vadd.f32 %v1161, %v1162
        %v1164 = vrot.slane %v966, 4
        %v1165 = vadd.f32 %v966, %v1164
        %v1166 = vrot.slane %v1165, 2
        %v1167 = vadd.f32 %v1165, %v1166
        %v1168 = vrot.slane %v1167, 1
        %v1169 = vadd.f32 %v1167, %v1168
        %v1170 = vrot.slane %v967, 4
        %v1171 = vadd.f32 %v967, %v1170
        %v1172 = vrot.slane %v1171, 2
        %v1173 = vadd.f32 %v1171, %v1172
        %v1174 = vrot.slane %v1173, 1
        %v1175 = vadd.f32 %v1173, %v1174
        %v1176 = vrot.slane %v968, 4
        %v1177 = vadd.f32 %v968, %v1176
        %v1178 = vrot.slane %v1177, 2
        %v1179 = vadd.f32 %v1177, %v1178
        %v1180 = vrot.slane %v1179, 1
        %v1181 = vadd.f32 %v1179, %v1180
        %v1182 = vrot.slane %v969, 4
        %v1183 = vadd.f32 %v969, %v1182
        %v1184 = vrot.slane %v1183, 2
        %v1185 = vadd.f32 %v1183, %v1184
        %v1186 = vrot.slane %v1185, 1
        %v1187 = vadd.f32 %v1185, %v1186
        %v1188 = vrot.slane %v970, 4
        %v1189 = vadd.f32 %v970, %v1188
        %v1190 = vrot.slane %v1189, 2
        %v1191 = vadd.f32 %v1189, %v1190
        %v1192 = vrot.slane %v1191, 1
        %v1193 = vadd.f32 %v1191, %v1192
        %v1194 = vrot.slane %v971, 4
        %v1195 = vadd.f32 %v971, %v1194
        %v1196 = vrot.slane %v1195, 2
        %v1197 = vadd.f32 %v1195, %v1196
        %v1198 = vrot.slane %v1197, 1
        %v1199 = vadd.f32 %v1197, %v1198
        %v1200 = vrot.slane %v972, 4
        %v1201 = vadd.f32 %v972, %v1200
        %v1202 = vrot.slane %v1201, 2
        %v1203 = vadd.f32 %v1201, %v1202
        %v1204 = vrot.slane %v1203, 1
        %v1205 = vadd.f32 %v1203, %v1204
        %v1206 = vrot.slane %v973, 4
        %v1207 = vadd.f32 %v973, %v1206
        %v1208 = vrot.slane %v1207, 2
        %v1209 = vadd.f32 %v1207, %v1208
        %v1210 = vrot.slane %v1209, 1
        %v1211 = vadd.f32 %v1209, %v1210
        %v1212 = vrot.slane %v974, 4
        %v1213 = vadd.f32 %v974, %v1212
        %v1214 = vrot.slane %v1213, 2
        %v1215 = vadd.f32 %v1213, %v1214
        %v1216 = vrot.slane %v1215, 1
        %v1217 = vadd.f32 %v1215, %v1216
        %v1218 = vrot.slane %v975, 4
        %v1219 = vadd.f32 %v975, %v1218
        %v1220 = vrot.slane %v1219, 2
        %v1221 = vadd.f32 %v1219, %v1220
        %v1222 = vrot.slane %v1221, 1
        %v1223 = vadd.f32 %v1221, %v1222
        %v1224 = vrot.slane %v976, 4
        %v1225 = vadd.f32 %v976, %v1224
        %v1226 = vrot.slane %v1225, 2
        %v1227 = vadd.f32 %v1225, %v1226
        %v1228 = vrot.slane %v1227, 1
        %v1229 = vadd.f32 %v1227, %v1228
        %v1230 = vrot.slane %v977, 4
        %v1231 = vadd.f32 %v977, %v1230
        %v1232 = vrot.slane %v1231, 2
        %v1233 = vadd.f32 %v1231, %v1232
        %v1234 = vrot.slane %v1233, 1
        %v1235 = vadd.f32 %v1233, %v1234
        %v1236 = vrot.slane %v978, 4
        %v1237 = vadd.f32 %v978, %v1236
        %v1238 = vrot.slane %v1237, 2
        %v1239 = vadd.f32 %v1237, %v1238
        %v1240 = vrot.slane %v1239, 1
        %v1241 = vadd.f32 %v1239, %v1240
        %v1242 = vrot.slane %v979, 4
        %v1243 = vadd.f32 %v979, %v1242
        %v1244 = vrot.slane %v1243, 2
        %v1245 = vadd.f32 %v1243, %v1244
        %v1246 = vrot.slane %v1245, 1
        %v1247 = vadd.f32 %v1245, %v1246
        %v1248 = vrot.slane %v980, 4
        %v1249 = vadd.f32 %v980, %v1248
        %v1250 = vrot.slane %v1249, 2
        %v1251 = vadd.f32 %v1249, %v1250
        %v1252 = vrot.slane %v1251, 1
        %v1253 = vadd.f32 %v1251, %v1252
        %v1254 = vrot.slane %v981, 4
        %v1255 = vadd.f32 %v981, %v1254
        %v1256 = vrot.slane %v1255, 2
        %v1257 = vadd.f32 %v1255, %v1256
        %v1258 = vrot.slane %v1257, 1
        %v1259 = vadd.f32 %v1257, %v1258
        %v1260 = vrot.slane %v982, 4
        %v1261 = vadd.f32 %v982, %v1260
        %v1262 = vrot.slane %v1261, 2
        %v1263 = vadd.f32 %v1261, %v1262
        %v1264 = vrot.slane %v1263, 1
        %v1265 = vadd.f32 %v1263, %v1264
        %v1266 = vrot.slane %v983, 4
        %v1267 = vadd.f32 %v983, %v1266
        %v1268 = vrot.slane %v1267, 2
        %v1269 = vadd.f32 %v1267, %v1268
        %v1270 = vrot.slane %v1269, 1
        %v1271 = vadd.f32 %v1269, %v1270
        %v1272 = vrcp.pop 8.0
        %v1273 = vmul.f32 %v989, %v1272
        %v1274 = vmul.f32 %v995, %v1272
        %v1275 = vmul.f32 %v1001, %v1272
        %v1276 = vmul.f32 %v1007, %v1272
        %v1277 = vmul.f32 %v1013, %v1272
        %v1278 = vmul.f32 %v1019, %v1272
        %v1279 = vmul.f32 %v1025, %v1272
        %v1280 = vmul.f32 %v1031, %v1272
        %v1281 = vmul.f32 %v1037, %v1272
        %v1282 = vmul.f32 %v1043, %v1272
        %v1283 = vmul.f32 %v1049, %v1272
        %v1284 = vmul.f32 %v1055, %v1272
        %v1285 = vmul.f32 %v1061, %v1272
        %v1286 = vmul.f32 %v1067, %v1272
        %v1287 = vmul.f32 %v1073, %v1272
        %v1288 = vmul.f32 %v1079, %v1272
        %v1289 = vmul.f32 %v1085, %v1272
        %v1290 = vmul.f32 %v1091, %v1272
        %v1291 = vmul.f32 %v1097, %v1272
        %v1292 = vmul.f32 %v1103, %v1272
        %v1293 = vmul.f32 %v1109, %v1272
        %v1294 = vmul.f32 %v1115, %v1272
        %v1295 = vmul.f32 %v1121, %v1272
        %v1296 = vmul.f32 %v1127, %v1272
        %v1297 = vmul.f32 %v1133, %v1272
        %v1298 = vmul.f32 %v1139, %v1272
        %v1299 = vmul.f32 %v1145, %v1272
        %v1300 = vmul.f32 %v1151, %v1272
        %v1301 = vmul.f32 %v1157, %v1272
        %v1302 = vmul.f32 %v1163, %v1272
        %v1303 = vmul.f32 %v1169, %v1272
        %v1304 = vmul.f32 %v1175, %v1272
        %v1305 = vmul.f32 %v1181, %v1272
        %v1306 = vmul.f32 %v1187, %v1272
        %v1307 = vmul.f32 %v1193, %v1272
        %v1308 = vmul.f32 %v1199, %v1272
        %v1309 = vmul.f32 %v1205, %v1272
        %v1310 = vmul.f32 %v1211, %v1272
        %v1311 = vmul.f32 %v1217, %v1272
        %v1312 = vmul.f32 %v1223, %v1272
        %v1313 = vmul.f32 %v1229, %v1272
        %v1314 = vmul.f32 %v1235, %v1272
        %v1315 = vmul.f32 %v1241, %v1272
        %v1316 = vmul.f32 %v1247, %v1272
        %v1317 = vmul.f32 %v1253, %v1272
        %v1318 = vmul.f32 %v1259, %v1272
        %v1319 = vmul.f32 %v1265, %v1272
        %v1320 = vmul.f32 %v1271, %v1272
        %v1321 = vld [vmem:[#allocation8] sm:$0xff]
        %v1322 = vld [vmem:[#allocation8 + $0x8] sm:$0xff]
        %v1323 = vld [vmem:[#allocation8 + $0x10] sm:$0xff]
        %v1324 = vld [vmem:[#allocation8 + $0x18] sm:$0xff]
        %v1325 = vld [vmem:[#allocation8 + $0x20] sm:$0xff]
        %v1326 = vld [vmem:[#allocation8 + $0x28] sm:$0xff]
        %v1327 = vld [vmem:[#allocation8 + $0x30] sm:$0xff]
        %v1328 = vld [vmem:[#allocation8 + $0x38] sm:$0xff]
        %v1329 = vld [vmem:[#allocation8 + $0x40] sm:$0xff]
        %v1330 = vld [vmem:[#allocation8 + $0x48] sm:$0xff]
        %v1331 = vld [vmem:[#allocation8 + $0x50] sm:$0xff]
        %v1332 = vld [vmem:[#allocation8 + $0x58] sm:$0xff]
        %v1333 = vld [vmem:[#allocation8 + $0x60] sm:$0xff]
        %v1334 = vld [vmem:[#allocation8 + $0x68] sm:$0xff]
        %v1335 = vld [vmem:[#allocation8 + $0x70] sm:$0xff]
        %v1336 = vld [vmem:[#allocation8 + $0x78] sm:$0xff]
        %v1337 = vld [vmem:[#allocation8 + $0x80] sm:$0xff]
        %v1338 = vld [vmem:[#allocation8 + $0x88] sm:$0xff]
        %v1339 = vld [vmem:[#allocation8 + $0x90] sm:$0xff]
        %v1340 = vld [vmem:[#allocation8 + $0x98] sm:$0xff]
        %v1341 = vld [vmem:[#allocation8 + $0xa0] sm:$0xff]
        %v1342 = vld [vmem:[#allocation8 + $0xa8] sm:$0xff]
        %v1343 = vld [vmem:[#allocation8 + $0xb0] sm:$0xff]
        %v1344 = vld [vmem:[#allocation8 + $0xb8] sm:$0xff]
        %v1345 = vld [vmem:[#allocation8 + $0xc0] sm:$0xff]
        %v1346 = vld [vmem:[#allocation8 + $0xc8] sm:$0xff]
        %v1347 = vld [vmem:[#allocation8 + $0xd0] sm:$0xff]
        %v1348 = vld [vmem:[#allocation8 + $0xd8] sm:$0xff]
        %v1349 = vld [vmem:[#allocation8 + $0xe0] sm:$0xff]
        %v1350 = vld [vmem:[#allocation8 + $0xe8] sm:$0xff]
        %v1351 = vld [vmem:[#allocation8 + $0xf0] sm:$0xff]
        %v1352 = vld [vmem:[#allocation8 + $0xf8] sm:$0xff]
        %v1353 = vld [vmem:[#allocation8 + $0x100] sm:$0xff]
        %v1354 = vld [vmem:[#allocation8 + $0x108] sm:$0xff]
        %v1355 = vld [vmem:[#allocation8 + $0x110] sm:$0xff]
        %v1356 = vld [vmem:[#allocation8 + $0x118] sm:$0xff]
        %v1357 = vld [vmem:[#allocation8 + $0x120] sm:$0xff]
        %v1358 = vld [vmem:[#allocation8 + $0x128] sm:$0xff]
        %v1359 = vld [vmem:[#allocation8 + $0x130] sm:$0xff]
        %v1360 = vld [vmem:[#allocation8 + $0x138] sm:$0xff]
        %v1361 = vld [vmem:[#allocation8 + $0x140] sm:$0xff]
        %v1362 = vld [vmem:[#allocation8 + $0x148] sm:$0xff]
        %v1363 = vld [vmem:[#allocation8 + $0x150] sm:$0xff]
        %v1364 = vld [vmem:[#allocation8 + $0x158] sm:$0xff]
        %v1365 = vld [vmem:[#allocation8 + $0x160] sm:$0xff]
        %v1366 = vld [vmem:[#allocation8 + $0x168] sm:$0xff]
        %v1367 = vld [vmem:[#allocation8 + $0x170] sm:$0xff]
        %v1368 = vld [vmem:[#allocation8 + $0x178] sm:$0xff]
        %v1369 = vld [vmem:[#allocation8 + $0x180] sm:$0xff]
        %v1370 = vld [vmem:[#allocation8 + $0x188] sm:$0xff]
        %v1371 = vld [vmem:[#allocation8 + $0x190] sm:$0xff]
        %v1372 = vld [vmem:[#allocation8 + $0x198] sm:$0xff]
        %v1373 = vld [vmem:[#allocation8 + $0x1a0] sm:$0xff]
        %v1374 = vld [vmem:[#allocation8 + $0x1a8] sm:$0xff]
        %v1375 = vld [vmem:[#allocation8 + $0x1b0] sm:$0xff]
        %v1376 = vld [vmem:[#allocation8 + $0x1b8] sm:$0xff]
        %v1377 = vld [vmem:[#allocation8 + $0x1c0] sm:$0xff]
        %v1378 = vld [vmem:[#allocation8 + $0x1c8] sm:$0xff]
        %v1379 = vld [vmem:[#allocation8 + $0x1d0] sm:$0xff]
        %v1380 = vld [vmem:[#allocation8 + $0x1d8] sm:$0xff]
        %v1381 = vld [vmem:[#allocation8 + $0x1e0] sm:$0xff]
        %v1382 = vld [vmem:[#allocation8 + $0x1e8] sm:$0xff]
        %v1383 = vld [vmem:[#allocation8 + $0x1f0] sm:$0xff]
        %v1384 = vld [vmem:[#allocation8 + $0x1f8] sm:$0xff]
        %v1385 = vld [vmem:[#allocation8 + $0x200] sm:$0xff]
        %v1386 = vld [vmem:[#allocation8 + $0x208] sm:$0xff]
        %v1387 = vld [vmem:[#allocation8 + $0x210] sm:$0xff]
        %v1388 = vld [vmem:[#allocation8 + $0x218] sm:$0xff]
        %v1389 = vld [vmem:[#allocation8 + $0x220] sm:$0xff]
        %v1390 = vld [vmem:[#allocation8 + $0x228] sm:$0xff]
        %v1391 = vld [vmem:[#allocation8 + $0x230] sm:$0xff]
        %v1392 = vld [vmem:[#allocation8 + $0x238] sm:$0xff]
        %v1393 = vld [vmem:[#allocation8 + $0x240] sm:$0xff]
        %v1394 = vld [vmem:[#allocation8 + $0x248] sm:$0xff]
        %v1395 = vld [vmem:[#allocation8 + $0x250] sm:$0xff]
        %v1396 = vld [vmem:[#allocation8 + $0x258] sm:$0xff]
        %v1397 = vld [vmem:[#allocation8 + $0x260] sm:$0xff]
        %v1398 = vld [vmem:[#allocation8 + $0x268] sm:$0xff]
        %v1399 = vld [vmem:[#allocation8 + $0x270] sm:$0xff]
        %v1400 = vld [vmem:[#allocation8 + $0x278] sm:$0xff]
        %v1401 = vld [vmem:[#allocation8 + $0x280] sm:$0xff]
        %v1402 = vld [vmem:[#allocation8 + $0x288] sm:$0xff]
        %v1403 = vld [vmem:[#allocation8 + $0x290] sm:$0xff]
        %v1404 = vld [vmem:[#allocation8 + $0x298] sm:$0xff]
        %v1405 = vld [vmem:[#allocation8 + $0x2a0] sm:$0xff]
        %v1406 = vld [vmem:[#allocation8 + $0x2a8] sm:$0xff]
        %v1407 = vld [vmem:[#allocation8 + $0x2b0] sm:$0xff]
        %v1408 = vld [vmem:[#allocation8 + $0x2b8] sm:$0xff]
        %v1409 = vld [vmem:[#allocation8 + $0x2c0] sm:$0xff]
        %v1410 = vld [vmem:[#allocation8 + $0x2c8] sm:$0xff]
        %v1411 = vld [vmem:[#allocation8 + $0x2d0] sm:$0xff]
        %v1412 = vld [vmem:[#allocation8 + $0x2d8] sm:$0xff]
        %v1413 = vld [vmem:[#allocation8 + $0x2e0] sm:$0xff]
        %v1414 = vld [vmem:[#allocation8 + $0x2e8] sm:$0xff]
        %v1415 = vld [vmem:[#allocation8 + $0x2f0] sm:$0xff]
        %v1416 = vld [vmem:[#allocation8 + $0x2f8] sm:$0xff]
        %v1417 = vld [vmem:[#allocation8 + $0x300] sm:$0xff]
        %v1418 = vld [vmem:[#allocation8 + $0x308] sm:$0xff]
        %v1419 = vld [vmem:[#allocation8 + $0x310] sm:$0xff]
        %v1420 = vld [vmem:[#allocation8 + $0x318] sm:$0xff]
        %v1421 = vld [vmem:[#allocation8 + $0x320] sm:$0xff]
        %v1422 = vld [vmem:[#allocation8 + $0x328] sm:$0xff]
        %v1423 = vld [vmem:[#allocation8 + $0x330] sm:$0xff]
        %v1424 = vld [vmem:[#allocation8 + $0x338] sm:$0xff]
        %v1425 = vld [vmem:[#allocation8 + $0x340] sm:$0xff]
        %v1426 = vld [vmem:[#allocation8 + $0x348] sm:$0xff]
        %v1427 = vld [vmem:[#allocation8 + $0x350] sm:$0xff]
        %v1428 = vld [vmem:[#allocation8 + $0x358] sm:$0xff]
        %v1429 = vld [vmem:[#allocation8 + $0x360] sm:$0xff]
        %v1430 = vld [vmem:[#allocation8 + $0x368] sm:$0xff]
        %v1431 = vld [vmem:[#allocation8 + $0x370] sm:$0xff]
        %v1432 = vld [vmem:[#allocation8 + $0x378] sm:$0xff]
        %v1433 = vld [vmem:[#allocation8 + $0x380] sm:$0xff]
        %v1434 = vld [vmem:[#allocation8 + $0x388] sm:$0xff]
        %v1435 = vld [vmem:[#allocation8 + $0x390] sm:$0xff]
        %v1436 = vld [vmem:[#allocation8 + $0x398] sm:$0xff]
        %v1437 = vld [vmem:[#allocation8 + $0x3a0] sm:$0xff]
        %v1438 = vld [vmem:[#allocation8 + $0x3a8] sm:$0xff]
        %v1439 = vld [vmem:[#allocation8 + $0x3b0] sm:$0xff]
        %v1440 = vld [vmem:[#allocation8 + $0x3b8] sm:$0xff]
        %v1441 = vld [vmem:[#allocation8 + $0x3c0] sm:$0xff]
        %v1442 = vld [vmem:[#allocation8 + $0x3c8] sm:$0xff]
        %v1443 = vld [vmem:[#allocation8 + $0x3d0] sm:$0xff]
        %v1444 = vld [vmem:[#allocation8 + $0x3d8] sm:$0xff]
        %v1445 = vld [vmem:[#allocation8 + $0x3e0] sm:$0xff]
        %v1446 = vld [vmem:[#allocation8 + $0x3e8] sm:$0xff]
        %v1447 = vld [vmem:[#allocation8 + $0x3f0] sm:$0xff]
        %v1448 = vld [vmem:[#allocation8 + $0x3f8] sm:$0xff]
        %v1449 = vld [vmem:[#allocation8 + $0x400] sm:$0xff]
        %v1450 = vld [vmem:[#allocation8 + $0x408] sm:$0xff]
        %v1451 = vld [vmem:[#allocation8 + $0x410] sm:$0xff]
        %v1452 = vld [vmem:[#allocation8 + $0x418] sm:$0xff]
        %v1453 = vld [vmem:[#allocation8 + $0x420] sm:$0xff]
        %v1454 = vld [vmem:[#allocation8 + $0x428] sm:$0xff]
        %v1455 = vld [vmem:[#allocation8 + $0x430] sm:$0xff]
        %v1456 = vld [vmem:[#allocation8 + $0x438] sm:$0xff]
        %v1457 = vld [vmem:[#allocation8 + $0x440] sm:$0xff]
        %v1458 = vld [vmem:[#allocation8 + $0x448] sm:$0xff]
        %v1459 = vld [vmem:[#allocation8 + $0x450] sm:$0xff]
        %v1460 = vld [vmem:[#allocation8 + $0x458] sm:$0xff]
        %v1461 = vld [vmem:[#allocation8 + $0x460] sm:$0xff]
        %v1462 = vld [vmem:[#allocation8 + $0x468] sm:$0xff]
        %v1463 = vld [vmem:[#allocation8 + $0x470] sm:$0xff]
        %v1464 = vld [vmem:[#allocation8 + $0x478] sm:$0xff]
        %v1465 = vld [vmem:[#allocation8 + $0x480] sm:$0xff]
        %v1466 = vld [vmem:[#allocation8 + $0x488] sm:$0xff]
        %v1467 = vld [vmem:[#allocation8 + $0x490] sm:$0xff]
        %v1468 = vld [vmem:[#allocation8 + $0x498] sm:$0xff]
        %v1469 = vld [vmem:[#allocation8 + $0x4a0] sm:$0xff]
        %v1470 = vld [vmem:[#allocation8 + $0x4a8] sm:$0xff]
        %v1471 = vld [vmem:[#allocation8 + $0x4b0] sm:$0xff]
        %v1472 = vld [vmem:[#allocation8 + $0x4b8] sm:$0xff]
        %v1473 = vld [vmem:[#allocation8 + $0x4c0] sm:$0xff]
        %v1474 = vld [vmem:[#allocation8 + $0x4c8] sm:$0xff]
        %v1475 = vld [vmem:[#allocation8 + $0x4d0] sm:$0xff]
        %v1476 = vld [vmem:[#allocation8 + $0x4d8] sm:$0xff]
        %v1477 = vld [vmem:[#allocation8 + $0x4e0] sm:$0xff]
        %v1478 = vld [vmem:[#allocation8 + $0x4e8] sm:$0xff]
        %v1479 = vld [vmem:[#allocation8 + $0x4f0] sm:$0xff]
        %v1480 = vld [vmem:[#allocation8 + $0x4f8] sm:$0xff]
        %v1481 = vld [vmem:[#allocation8 + $0x500] sm:$0xff]
        %v1482 = vld [vmem:[#allocation8 + $0x508] sm:$0xff]
        %v1483 = vld [vmem:[#allocation8 + $0x510] sm:$0xff]
        %v1484 = vld [vmem:[#allocation8 + $0x518] sm:$0xff]
        %v1485 = vld [vmem:[#allocation8 + $0x520] sm:$0xff]
        %v1486 = vld [vmem:[#allocation8 + $0x528] sm:$0xff]
        %v1487 = vld [vmem:[#allocation8 + $0x530] sm:$0xff]
        %v1488 = vld [vmem:[#allocation8 + $0x538] sm:$0xff]
        %v1489 = vld [vmem:[#allocation8 + $0x540] sm:$0xff]
        %v1490 = vld [vmem:[#allocation8 + $0x548] sm:$0xff]
        %v1491 = vld [vmem:[#allocation8 + $0x550] sm:$0xff]
        %v1492 = vld [vmem:[#allocation8 + $0x558] sm:$0xff]
        %v1493 = vld [vmem:[#allocation8 + $0x560] sm:$0xff]
        %v1494 = vld [vmem:[#allocation8 + $0x568] sm:$0xff]
        %v1495 = vld [vmem:[#allocation8 + $0x570] sm:$0xff]
        %v1496 = vld [vmem:[#allocation8 + $0x578] sm:$0xff]
        %v1497 = vld [vmem:[#allocation8 + $0x580] sm:$0xff]
        %v1498 = vld [vmem:[#allocation8 + $0x588] sm:$0xff]
        %v1499 = vld [vmem:[#allocation8 + $0x590] sm:$0xff]
        %v1500 = vld [vmem:[#allocation8 + $0x598] sm:$0xff]
        %v1501 = vld [vmem:[#allocation8 + $0x5a0] sm:$0xff]
        %v1502 = vld [vmem:[#allocation8 + $0x5a8] sm:$0xff]
        %v1503 = vld [vmem:[#allocation8 + $0x5b0] sm:$0xff]
        %v1504 = vld [vmem:[#allocation8 + $0x5b8] sm:$0xff]
        %v1505 = vld [vmem:[#allocation8 + $0x5c0] sm:$0xff]
        %v1506 = vld [vmem:[#allocation8 + $0x5c8] sm:$0xff]
        %v1507 = vld [vmem:[#allocation8 + $0x5d0] sm:$0xff]
        %v1508 = vld [vmem:[#allocation8 + $0x5d8] sm:$0xff]
        %v1509 = vld [vmem:[#allocation8 + $0x5e0] sm:$0xff]
        %v1510 = vld [vmem:[#allocation8 + $0x5e8] sm:$0xff]
        %v1511 = vld [vmem:[#allocation8 + $0x5f0] sm:$0xff]
        %v1512 = vld [vmem:[#allocation8 + $0x5f8] sm:$0xff]
        %v1513 = vld [vmem:[#allocation8 + $0x600] sm:$0xff]
        %v1514 = vld [vmem:[#allocation8 + $0x608] sm:$0xff]
        %v1515 = vld [vmem:[#allocation8 + $0x610] sm:$0xff]
        %v1516 = vld [vmem:[#allocation8 + $0x618] sm:$0xff]
        %v1517 = vld [vmem:[#allocation8 + $0x620] sm:$0xff]
        %v1518 = vld [vmem:[#allocation8 + $0x628] sm:$0xff]
        %v1519 = vld [vmem:[#allocation8 + $0x630] sm:$0xff]
        %v1520 = vld [vmem:[#allocation8 + $0x638] sm:$0xff]
        %v1521 = vld [vmem:[#allocation8 + $0x640] sm:$0xff]
        %v1522 = vld [vmem:[#allocation8 + $0x648] sm:$0xff]
        %v1523 = vld [vmem:[#allocation8 + $0x650] sm:$0xff]
        %v1524 = vld [vmem:[#allocation8 + $0x658] sm:$0xff]
        %v1525 = vld [vmem:[#allocation8 + $0x660] sm:$0xff]
        %v1526 = vld [vmem:[#allocation8 + $0x668] sm:$0xff]
        %v1527 = vld [vmem:[#allocation8 + $0x670] sm:$0xff]
        %v1528 = vld [vmem:[#allocation8 + $0x678] sm:$0xff]
        %v1529 = vld [vmem:[#allocation8 + $0x680] sm:$0xff]
        %v1530 = vld [vmem:[#allocation8 + $0x688] sm:$0xff]
        %v1531 = vld [vmem:[#allocation8 + $0x690] sm:$0xff]
        %v1532 = vld [vmem:[#allocation8 + $0x698] sm:$0xff]
        %v1533 = vld [vmem:[#allocation8 + $0x6a0] sm:$0xff]
        %v1534 = vld [vmem:[#allocation8 + $0x6a8] sm:$0xff]
        %v1535 = vld [vmem:[#allocation8 + $0x6b0] sm:$0xff]
        %v1536 = vld [vmem:[#allocation8 + $0x6b8] sm:$0xff]
        %v1537 = vld [vmem:[#allocation8 + $0x6c0] sm:$0xff]
        %v1538 = vld [vmem:[#allocation8 + $0x6c8] sm:$0xff]
        %v1539 = vld [vmem:[#allocation8 + $0x6d0] sm:$0xff]
        %v1540 = vld [vmem:[#allocation8 + $0x6d8] sm:$0xff]
        %v1541 = vld [vmem:[#allocation8 + $0x6e0] sm:$0xff]
        %v1542 = vld [vmem:[#allocation8 + $0x6e8] sm:$0xff]
        %v1543 = vld [vmem:[#allocation8 + $0x6f0] sm:$0xff]
        %v1544 = vld [vmem:[#allocation8 + $0x6f8] sm:$0xff]
        %v1545 = vld [vmem:[#allocation8 + $0x700] sm:$0xff]
        %v1546 = vld [vmem:[#allocation8 + $0x708] sm:$0xff]
        %v1547 = vld [vmem:[#allocation8 + $0x710] sm:$0xff]
        %v1548 = vld [vmem:[#allocation8 + $0x718] sm:$0xff]
        %v1549 = vld [vmem:[#allocation8 + $0x720] sm:$0xff]
        %v1550 = vld [vmem:[#allocation8 + $0x728] sm:$0xff]
        %v1551 = vld [vmem:[#allocation8 + $0x730] sm:$0xff]
        %v1552 = vld [vmem:[#allocation8 + $0x738] sm:$0xff]
        %v1553 = vld [vmem:[#allocation8 + $0x740] sm:$0xff]
        %v1554 = vld [vmem:[#allocation8 + $0x748] sm:$0xff]
        %v1555 = vld [vmem:[#allocation8 + $0x750] sm:$0xff]
        %v1556 = vld [vmem:[#allocation8 + $0x758] sm:$0xff]
        %v1557 = vld [vmem:[#allocation8 + $0x760] sm:$0xff]
        %v1558 = vld [vmem:[#allocation8 + $0x768] sm:$0xff]
        %v1559 = vld [vmem:[#allocation8 + $0x770] sm:$0xff]
        %v1560 = vld [vmem:[#allocation8 + $0x778] sm:$0xff]
        %v1561 = vld [vmem:[#allocation8 + $0x780] sm:$0xff]
        %v1562 = vld [vmem:[#allocation8 + $0x788] sm:$0xff]
        %v1563 = vld [vmem:[#allocation8 + $0x790] sm:$0xff]
        %v1564 = vld [vmem:[#allocation8 + $0x798] sm:$0xff]
        %v1565 = vld [vmem:[#allocation8 + $0x7a0] sm:$0xff]
        %v1566 = vld [vmem:[#allocation8 + $0x7a8] sm:$0xff]
        %v1567 = vld [vmem:[#allocation8 + $0x7b0] sm:$0xff]
        %v1568 = vld [vmem:[#allocation8 + $0x7b8] sm:$0xff]
        %v1569 = vld [vmem:[#allocation8 + $0x7c0] sm:$0xff]
        %v1570 = vld [vmem:[#allocation8 + $0x7c8] sm:$0xff]
        %v1571 = vld [vmem:[#allocation8 + $0x7d0] sm:$0xff]
        %v1572 = vld [vmem:[#allocation8 + $0x7d8] sm:$0xff]
        %v1573 = vld [vmem:[#allocation8 + $0x7e0] sm:$0xff]
        %v1574 = vld [vmem:[#allocation8 + $0x7e8] sm:$0xff]
        %v1575 = vld [vmem:[#allocation8 + $0x7f0] sm:$0xff]
        %v1576 = vld [vmem:[#allocation8 + $0x7f8] sm:$0xff]
        %v1577 = vld [vmem:[#allocation8 + $0x800] sm:$0xff]
        %v1578 = vld [vmem:[#allocation8 + $0x808] sm:$0xff]
        %v1579 = vld [vmem:[#allocation8 + $0x810] sm:$0xff]
        %v1580 = vld [vmem:[#allocation8 + $0x818] sm:$0xff]
        %v1581 = vld [vmem:[#allocation8 + $0x820] sm:$0xff]
        %v1582 = vld [vmem:[#allocation8 + $0x828] sm:$0xff]
        %v1583 = vld [vmem:[#allocation8 + $0x830] sm:$0xff]
        %v1584 = vld [vmem:[#allocation8 + $0x838] sm:$0xff]
        %v1585 = vld [vmem:[#allocation8 + $0x840] sm:$0xff]
        %v1586 = vld [vmem:[#allocation8 + $0x848] sm:$0xff]
        %v1587 = vld [vmem:[#allocation8 + $0x850] sm:$0xff]
        %v1588 = vld [vmem:[#allocation8 + $0x858] sm:$0xff]
        %v1589 = vld [vmem:[#allocation8 + $0x860] sm:$0xff]
        %v1590 = vld [vmem:[#allocation8 + $0x868] sm:$0xff]
        %v1591 = vld [vmem:[#allocation8 + $0x870] sm:$0xff]
        %v1592 = vld [vmem:[#allocation8 + $0x878] sm:$0xff]
        %v1593 = vld [vmem:[#allocation8 + $0x880] sm:$0xff]
        %v1594 = vld [vmem:[#allocation8 + $0x888] sm:$0xff]
        %v1595 = vld [vmem:[#allocation8 + $0x890] sm:$0xff]
        %v1596 = vld [vmem:[#allocation8 + $0x898] sm:$0xff]
        %v1597 = vld [vmem:[#allocation8 + $0x8a0] sm:$0xff]
        %v1598 = vld [vmem:[#allocation8 + $0x8a8] sm:$0xff]
        %v1599 = vld [vmem:[#allocation8 + $0x8b0] sm:$0xff]
        %v1600 = vld [vmem:[#allocation8 + $0x8b8] sm:$0xff]
        %v1601 = vld [vmem:[#allocation8 + $0x8c0] sm:$0xff]
        %v1602 = vld [vmem:[#allocation8 + $0x8c8] sm:$0xff]
        %v1603 = vld [vmem:[#allocation8 + $0x8d0] sm:$0xff]
        %v1604 = vld [vmem:[#allocation8 + $0x8d8] sm:$0xff]
        %v1605 = vld [vmem:[#allocation8 + $0x8e0] sm:$0xff]
        %v1606 = vld [vmem:[#allocation8 + $0x8e8] sm:$0xff]
        %v1607 = vld [vmem:[#allocation8 + $0x8f0] sm:$0xff]
        %v1608 = vld [vmem:[#allocation8 + $0x8f8] sm:$0xff]
        %v1609 = vld [vmem:[#allocation8 + $0x900] sm:$0xff]
        %v1610 = vld [vmem:[#allocation8 + $0x908] sm:$0xff]
        %v1611 = vld [vmem:[#allocation8 + $0x910] sm:$0xff]
        %v1612 = vld [vmem:[#allocation8 + $0x918] sm:$0xff]
        %v1613 = vld [vmem:[#allocation8 + $0x920] sm:$0xff]
        %v1614 = vld [vmem:[#allocation8 + $0x928] sm:$0xff]
        %v1615 = vld [vmem:[#allocation8 + $0x930] sm:$0xff]
        %v1616 = vld [vmem:[#allocation8 + $0x938] sm:$0xff]
        %v1617 = vld [vmem:[#allocation8 + $0x940] sm:$0xff]
        %v1618 = vld [vmem:[#allocation8 + $0x948] sm:$0xff]
        %v1619 = vld [vmem:[#allocation8 + $0x950] sm:$0xff]
        %v1620 = vld [vmem:[#allocation8 + $0x958] sm:$0xff]
        %v1621 = vld [vmem:[#allocation8 + $0x960] sm:$0xff]
        %v1622 = vld [vmem:[#allocation8 + $0x968] sm:$0xff]
        %v1623 = vld [vmem:[#allocation8 + $0x970] sm:$0xff]
        %v1624 = vld [vmem:[#allocation8 + $0x978] sm:$0xff]
        %v1625 = vld [vmem:[#allocation8 + $0x980] sm:$0xff]
        %v1626 = vld [vmem:[#allocation8 + $0x988] sm:$0xff]
        %v1627 = vld [vmem:[#allocation8 + $0x990] sm:$0xff]
        %v1628 = vld [vmem:[#allocation8 + $0x998] sm:$0xff]
        %v1629 = vld [vmem:[#allocation8 + $0x9a0] sm:$0xff]
        %v1630 = vld [vmem:[#allocation8 + $0x9a8] sm:$0xff]
        %v1631 = vld [vmem:[#allocation8 + $0x9b0] sm:$0xff]
        %v1632 = vld [vmem:[#allocation8 + $0x9b8] sm:$0xff]
        %v1633 = vld [vmem:[#allocation8 + $0x9c0] sm:$0xff]
        %v1634 = vld [vmem:[#allocation8 + $0x9c8] sm:$0xff]
        %v1635 = vld [vmem:[#allocation8 + $0x9d0] sm:$0xff]
        %v1636 = vld [vmem:[#allocation8 + $0x9d8] sm:$0xff]
        %v1637 = vld [vmem:[#allocation8 + $0x9e0] sm:$0xff]
        %v1638 = vld [vmem:[#allocation8 + $0x9e8] sm:$0xff]
        %v1639 = vld [vmem:[#allocation8 + $0x9f0] sm:$0xff]
        %v1640 = vld [vmem:[#allocation8 + $0x9f8] sm:$0xff]
        %v1641 = vld [vmem:[#allocation8 + $0xa00] sm:$0xff]
        %v1642 = vld [vmem:[#allocation8 + $0xa08] sm:$0xff]
        %v1643 = vld [vmem:[#allocation8 + $0xa10] sm:$0xff]
        %v1644 = vld [vmem:[#allocation8 + $0xa18] sm:$0xff]
        %v1645 = vld [vmem:[#allocation8 + $0xa20] sm:$0xff]
        %v1646 = vld [vmem:[#allocation8 + $0xa28] sm:$0xff]
        %v1647 = vld [vmem:[#allocation8 + $0xa30] sm:$0xff]
        %v1648 = vld [vmem:[#allocation8 + $0xa38] sm:$0xff]
        %v1649 = vld [vmem:[#allocation8 + $0xa40] sm:$0xff]
        %v1650 = vld [vmem:[#allocation8 + $0xa48] sm:$0xff]
        %v1651 = vld [vmem:[#allocation8 + $0xa50] sm:$0xff]
        %v1652 = vld [vmem:[#allocation8 + $0xa58] sm:$0xff]
        %v1653 = vld [vmem:[#allocation8 + $0xa60] sm:$0xff]
        %v1654 = vld [vmem:[#allocation8 + $0xa68] sm:$0xff]
        %v1655 = vld [vmem:[#allocation8 + $0xa70] sm:$0xff]
        %v1656 = vld [vmem:[#allocation8 + $0xa78] sm:$0xff]
        %v1657 = vld [vmem:[#allocation8 + $0xa80] sm:$0xff]
        %v1658 = vld [vmem:[#allocation8 + $0xa88] sm:$0xff]
        %v1659 = vld [vmem:[#allocation8 + $0xa90] sm:$0xff]
        %v1660 = vld [vmem:[#allocation8 + $0xa98] sm:$0xff]
        %v1661 = vld [vmem:[#allocation8 + $0xaa0] sm:$0xff]
        %v1662 = vld [vmem:[#allocation8 + $0xaa8] sm:$0xff]
        %v1663 = vld [vmem:[#allocation8 + $0xab0] sm:$0xff]
        %v1664 = vld [vmem:[#allocation8 + $0xab8] sm:$0xff]
        %v1665 = vld [vmem:[#allocation8 + $0xac0] sm:$0xff]
        %v1666 = vld [vmem:[#allocation8 + $0xac8] sm:$0xff]
        %v1667 = vld [vmem:[#allocation8 + $0xad0] sm:$0xff]
        %v1668 = vld [vmem:[#allocation8 + $0xad8] sm:$0xff]
        %v1669 = vld [vmem:[#allocation8 + $0xae0] sm:$0xff]
        %v1670 = vld [vmem:[#allocation8 + $0xae8] sm:$0xff]
        %v1671 = vld [vmem:[#allocation8 + $0xaf0] sm:$0xff]
        %v1672 = vld [vmem:[#allocation8 + $0xaf8] sm:$0xff]
        %v1673 = vld [vmem:[#allocation8 + $0xb00] sm:$0xff]
        %v1674 = vld [vmem:[#allocation8 + $0xb08] sm:$0xff]
        %v1675 = vld [vmem:[#allocation8 + $0xb10] sm:$0xff]
        %v1676 = vld [vmem:[#allocation8 + $0xb18] sm:$0xff]
        %v1677 = vld [vmem:[#allocation8 + $0xb20] sm:$0xff]
        %v1678 = vld [vmem:[#allocation8 + $0xb28] sm:$0xff]
        %v1679 = vld [vmem:[#allocation8 + $0xb30] sm:$0xff]
        %v1680 = vld [vmem:[#allocation8 + $0xb38] sm:$0xff]
        %v1681 = vld [vmem:[#allocation8 + $0xb40] sm:$0xff]
        %v1682 = vld [vmem:[#allocation8 + $0xb48] sm:$0xff]
        %v1683 = vld [vmem:[#allocation8 + $0xb50] sm:$0xff]
        %v1684 = vld [vmem:[#allocation8 + $0xb58] sm:$0xff]
        %v1685 = vld [vmem:[#allocation8 + $0xb60] sm:$0xff]
        %v1686 = vld [vmem:[#allocation8 + $0xb68] sm:$0xff]
        %v1687 = vld [vmem:[#allocation8 + $0xb70] sm:$0xff]
        %v1688 = vld [vmem:[#allocation8 + $0xb78] sm:$0xff]
        %v1689 = vld [vmem:[#allocation8 + $0xb80] sm:$0xff]
        %v1690 = vld [vmem:[#allocation8 + $0xb88] sm:$0xff]
        %v1691 = vld [vmem:[#allocation8 + $0xb90] sm:$0xff]
        %v1692 = vld [vmem:[#allocation8 + $0xb98] sm:$0xff]
        %v1693 = vld [vmem:[#allocation8 + $0xba0] sm:$0xff]
        %v1694 = vld [vmem:[#allocation8 + $0xba8] sm:$0xff]
        %v1695 = vld [vmem:[#allocation8 + $0xbb0] sm:$0xff]
        %v1696 = vld [vmem:[#allocation8 + $0xbb8] sm:$0xff]
        %v1697 = vld [vmem:[#allocation8 + $0xbc0] sm:$0xff]
        %v1698 = vld [vmem:[#allocation8 + $0xbc8] sm:$0xff]
        %v1699 = vld [vmem:[#allocation8 + $0xbd0] sm:$0xff]
        %v1700 = vld [vmem:[#allocation8 + $0xbd8] sm:$0xff]
        %v1701 = vld [vmem:[#allocation8 + $0xbe0] sm:$0xff]
        %v1702 = vld [vmem:[#allocation8 + $0xbe8] sm:$0xff]
        %v1703 = vld [vmem:[#allocation8 + $0xbf0] sm:$0xff]
        %v1704 = vld [vmem:[#allocation8 + $0xbf8] sm:$0xff]
        %v1705 = vld [vmem:[#allocation8 + $0xc00] sm:$0xff]
        %v1706 = vld [vmem:[#allocation8 + $0xc08] sm:$0xff]
        %v1707 = vld [vmem:[#allocation8 + $0xc10] sm:$0xff]
        %v1708 = vld [vmem:[#allocation8 + $0xc18] sm:$0xff]
        %v1709 = vld [vmem:[#allocation8 + $0xc20] sm:$0xff]
        %v1710 = vld [vmem:[#allocation8 + $0xc28] sm:$0xff]
        %v1711 = vld [vmem:[#allocation8 + $0xc30] sm:$0xff]
        %v1712 = vld [vmem:[#allocation8 + $0xc38] sm:$0xff]
        %v1713 = vld [vmem:[#allocation8 + $0xc40] sm:$0xff]
        %v1714 = vld [vmem:[#allocation8 + $0xc48] sm:$0xff]
        %v1715 = vld [vmem:[#allocation8 + $0xc50] sm:$0xff]
        %v1716 = vld [vmem:[#allocation8 + $0xc58] sm:$0xff]
        %v1717 = vld [vmem:[#allocation8 + $0xc60] sm:$0xff]
        %v1718 = vld [vmem:[#allocation8 + $0xc68] sm:$0xff]
        %v1719 = vld [vmem:[#allocation8 + $0xc70] sm:$0xff]
        %v1720 = vld [vmem:[#allocation8 + $0xc78] sm:$0xff]
        %v1721 = vld [vmem:[#allocation8 + $0xc80] sm:$0xff]
        %v1722 = vld [vmem:[#allocation8 + $0xc88] sm:$0xff]
        %v1723 = vld [vmem:[#allocation8 + $0xc90] sm:$0xff]
        %v1724 = vld [vmem:[#allocation8 + $0xc98] sm:$0xff]
        %v1725 = vld [vmem:[#allocation8 + $0xca0] sm:$0xff]
        %v1726 = vld [vmem:[#allocation8 + $0xca8] sm:$0xff]
        %v1727 = vld [vmem:[#allocation8 + $0xcb0] sm:$0xff]
        %v1728 = vld [vmem:[#allocation8 + $0xcb8] sm:$0xff]
        %v1729 = vld [vmem:[#allocation8 + $0xcc0] sm:$0xff]
        %v1730 = vld [vmem:[#allocation8 + $0xcc8] sm:$0xff]
        %v1731 = vld [vmem:[#allocation8 + $0xcd0] sm:$0xff]
        %v1732 = vld [vmem:[#allocation8 + $0xcd8] sm:$0xff]
        %v1733 = vld [vmem:[#allocation8 + $0xce0] sm:$0xff]
        %v1734 = vld [vmem:[#allocation8 + $0xce8] sm:$0xff]
        %v1735 = vld [vmem:[#allocation8 + $0xcf0] sm:$0xff]
        %v1736 = vld [vmem:[#allocation8 + $0xcf8] sm:$0xff]
        %v1737 = vld [vmem:[#allocation8 + $0xd00] sm:$0xff]
        %v1738 = vld [vmem:[#allocation8 + $0xd08] sm:$0xff]
        %v1739 = vld [vmem:[#allocation8 + $0xd10] sm:$0xff]
        %v1740 = vld [vmem:[#allocation8 + $0xd18] sm:$0xff]
        %v1741 = vld [vmem:[#allocation8 + $0xd20] sm:$0xff]
        %v1742 = vld [vmem:[#allocation8 + $0xd28] sm:$0xff]
        %v1743 = vld [vmem:[#allocation8 + $0xd30] sm:$0xff]
        %v1744 = vld [vmem:[#allocation8 + $0xd38] sm:$0xff]
        %v1745 = vld [vmem:[#allocation8 + $0xd40] sm:$0xff]
        %v1746 = vld [vmem:[#allocation8 + $0xd48] sm:$0xff]
        %v1747 = vld [vmem:[#allocation8 + $0xd50] sm:$0xff]
        %v1748 = vld [vmem:[#allocation8 + $0xd58] sm:$0xff]
        %v1749 = vld [vmem:[#allocation8 + $0xd60] sm:$0xff]
        %v1750 = vld [vmem:[#allocation8 + $0xd68] sm:$0xff]
        %v1751 = vld [vmem:[#allocation8 + $0xd70] sm:$0xff]
        %v1752 = vld [vmem:[#allocation8 + $0xd78] sm:$0xff]
        %v1753 = vld [vmem:[#allocation8 + $0xd80] sm:$0xff]
        %v1754 = vld [vmem:[#allocation8 + $0xd88] sm:$0xff]
        %v1755 = vld [vmem:[#allocation8 + $0xd90] sm:$0xff]
        %v1756 = vld [vmem:[#allocation8 + $0xd98] sm:$0xff]
        %v1757 = vld [vmem:[#allocation8 + $0xda0] sm:$0xff]
        %v1758 = vld [vmem:[#allocation8 + $0xda8] sm:$0xff]
        %v1759 = vld [vmem:[#allocation8 + $0xdb0] sm:$0xff]
        %v1760 = vld [vmem:[#allocation8 + $0xdb8] sm:$0xff]
        %v1761 = vld [vmem:[#allocation8 + $0xdc0] sm:$0xff]
        %v1762 = vld [vmem:[#allocation8 + $0xdc8] sm:$0xff]
        %v1763 = vld [vmem:[#allocation8 + $0xdd0] sm:$0xff]
        %v1764 = vld [vmem:[#allocation8 + $0xdd8] sm:$0xff]
        %v1765 = vld [vmem:[#allocation8 + $0xde0] sm:$0xff]
        %v1766 = vld [vmem:[#allocation8 + $0xde8] sm:$0xff]
        %v1767 = vld [vmem:[#allocation8 + $0xdf0] sm:$0xff]
        %v1768 = vld [vmem:[#allocation8 + $0xdf8] sm:$0xff]
        %v1769 = vld [vmem:[#allocation8 + $0xe00] sm:$0xff]
        %v1770 = vld [vmem:[#allocation8 + $0xe08] sm:$0xff]
        %v1771 = vld [vmem:[#allocation8 + $0xe10] sm:$0xff]
        %v1772 = vld [vmem:[#allocation8 + $0xe18] sm:$0xff]
        %v1773 = vld [vmem:[#allocation8 + $0xe20] sm:$0xff]
        %v1774 = vld [vmem:[#allocation8 + $0xe28] sm:$0xff]
        %v1775 = vld [vmem:[#allocation8 + $0xe30] sm:$0xff]
        %v1776 = vld [vmem:[#allocation8 + $0xe38] sm:$0xff]
        %v1777 = vld [vmem:[#allocation8 + $0xe40] sm:$0xff]
        %v1778 = vld [vmem:[#allocation8 + $0xe48] sm:$0xff]
        %v1779 = vld [vmem:[#allocation8 + $0xe50] sm:$0xff]
        %v1780 = vld [vmem:[#allocation8 + $0xe58] sm:$0xff]
        %v1781 = vld [vmem:[#allocation8 + $0xe60] sm:$0xff]
        %v1782 = vld [vmem:[#allocation8 + $0xe68] sm:$0xff]
        %v1783 = vld [vmem:[#allocation8 + $0xe70] sm:$0xff]
        %v1784 = vld [vmem:[#allocation8 + $0xe78] sm:$0xff]
        %v1785 = vld [vmem:[#allocation8 + $0xe80] sm:$0xff]
        %v1786 = vld [vmem:[#allocation8 + $0xe88] sm:$0xff]
        %v1787 = vld [vmem:[#allocation8 + $0xe90] sm:$0xff]
        %v1788 = vld [vmem:[#allocation8 + $0xe98] sm:$0xff]
        %v1789 = vld [vmem:[#allocation8 + $0xea0] sm:$0xff]
        %v1790 = vld [vmem:[#allocation8 + $0xea8] sm:$0xff]
        %v1791 = vld [vmem:[#allocation8 + $0xeb0] sm:$0xff]
        %v1792 = vld [vmem:[#allocation8 + $0xeb8] sm:$0xff]
        %v1793 = vld [vmem:[#allocation8 + $0xec0] sm:$0xff]
        %v1794 = vld [vmem:[#allocation8 + $0xec8] sm:$0xff]
        %v1795 = vld [vmem:[#allocation8 + $0xed0] sm:$0xff]
        %v1796 = vld [vmem:[#allocation8 + $0xed8] sm:$0xff]
        %v1797 = vld [vmem:[#allocation8 + $0xee0] sm:$0xff]
        %v1798 = vld [vmem:[#allocation8 + $0xee8] sm:$0xff]
        %v1799 = vld [vmem:[#allocation8 + $0xef0] sm:$0xff]
        %v1800 = vld [vmem:[#allocation8 + $0xef8] sm:$0xff]
        %v1801 = vld [vmem:[#allocation8 + $0xf00] sm:$0xff]
        %v1802 = vld [vmem:[#allocation8 + $0xf08] sm:$0xff]
        %v1803 = vld [vmem:[#allocation8 + $0xf10] sm:$0xff]
        %v1804 = vld [vmem:[#allocation8 + $0xf18] sm:$0xff]
        %v1805 = vld [vmem:[#allocation8 + $0xf20] sm:$0xff]
        %v1806 = vld [vmem:[#allocation8 + $0xf28] sm:$0xff]
        %v1807 = vld [vmem:[#allocation8 + $0xf30] sm:$0xff]
        %v1808 = vld [vmem:[#allocation8 + $0xf38] sm:$0xff]
        %v1809 = vld [vmem:[#allocation8 + $0xf40] sm:$0xff]
        %v1810 = vld [vmem:[#allocation8 + $0xf48] sm:$0xff]
        %v1811 = vld [vmem:[#allocation8 + $0xf50] sm:$0xff]
        %v1812 = vld [vmem:[#allocation8 + $0xf58] sm:$0xff]
        %v1813 = vld [vmem:[#allocation8 + $0xf60] sm:$0xff]
        %v1814 = vld [vmem:[#allocation8 + $0xf68] sm:$0xff]
        %v1815 = vld [vmem:[#allocation8 + $0xf70] sm:$0xff]
        %v1816 = vld [vmem:[#allocation8 + $0xf78] sm:$0xff]
        %v1817 = vld [vmem:[#allocation8 + $0xf80] sm:$0xff]
        %v1818 = vld [vmem:[#allocation8 + $0xf88] sm:$0xff]
        %v1819 = vld [vmem:[#allocation8 + $0xf90] sm:$0xff]
        %v1820 = vld [vmem:[#allocation8 + $0xf98] sm:$0xff]
        %v1821 = vld [vmem:[#allocation8 + $0xfa0] sm:$0xff]
        %v1822 = vld [vmem:[#allocation8 + $0xfa8] sm:$0xff]
        %v1823 = vld [vmem:[#allocation8 + $0xfb0] sm:$0xff]
        %v1824 = vld [vmem:[#allocation8 + $0xfb8] sm:$0xff]
        %v1825 = vld [vmem:[#allocation8 + $0xfc0] sm:$0xff]
        %v1826 = vld [vmem:[#allocation8 + $0xfc8] sm:$0xff]
        %v1827 = vld [vmem:[#allocation8 + $0xfd0] sm:$0xff]
        %v1828 = vld [vmem:[#allocation8 + $0xfd8] sm:$0xff]
        %v1829 = vld [vmem:[#allocation8 + $0xfe0] sm:$0xff]
        %v1830 = vld [vmem:[#allocation8 + $0xfe8] sm:$0xff]
        %v1831 = vld [vmem:[#allocation8 + $0xff0] sm:$0xff]
        %v1832 = vld [vmem:[#allocation8 + $0xff8] sm:$0xff]
        %v1833 = vld [vmem:[#allocation8 + $0x1000] sm:$0xff]
        %v1834 = vld [vmem:[#allocation8 + $0x1008] sm:$0xff]
        %v1835 = vld [vmem:[#allocation8 + $0x1010] sm:$0xff]
        %v1836 = vld [vmem:[#allocation8 + $0x1018] sm:$0xff]
        %v1837 = vld [vmem:[#allocation8 + $0x1020] sm:$0xff]
        %v1838 = vld [vmem:[#allocation8 + $0x1028] sm:$0xff]
        %v1839 = vld [vmem:[#allocation8 + $0x1030] sm:$0xff]
        %v1840 = vld [vmem:[#allocation8 + $0x1038] sm:$0xff]
        %v1841 = vld [vmem:[#allocation8 + $0x1040] sm:$0xff]
        %v1842 = vld [vmem:[#allocation8 + $0x1048] sm:$0xff]
        %v1843 = vld [vmem:[#allocation8 + $0x1050] sm:$0xff]
        %v1844 = vld [vmem:[#allocation8 + $0x1058] sm:$0xff]
        %v1845 = vld [vmem:[#allocation8 + $0x1060] sm:$0xff]
        %v1846 = vld [vmem:[#allocation8 + $0x1068] sm:$0xff]
        %v1847 = vld [vmem:[#allocation8 + $0x1070] sm:$0xff]
        %v1848 = vld [vmem:[#allocation8 + $0x1078] sm:$0xff]
        %v1849 = vld [vmem:[#allocation8 + $0x1080] sm:$0xff]
        %v1850 = vld [vmem:[#allocation8 + $0x1088] sm:$0xff]
        %v1851 = vld [vmem:[#allocation8 + $0x1090] sm:$0xff]
        %v1852 = vld [vmem:[#allocation8 + $0x1098] sm:$0xff]
        %v1853 = vld [vmem:[#allocation8 + $0x10a0] sm:$0xff]
        %v1854 = vld [vmem:[#allocation8 + $0x10a8] sm:$0xff]
        %v1855 = vld [vmem:[#allocation8 + $0x10b0] sm:$0xff]
        %v1856 = vld [vmem:[#allocation8 + $0x10b8] sm:$0xff]
        %v1857 = vld [vmem:[#allocation8 + $0x10c0] sm:$0xff]
        %v1858 = vld [vmem:[#allocation8 + $0x10c8] sm:$0xff]
        %v1859 = vld [vmem:[#allocation8 + $0x10d0] sm:$0xff]
        %v1860 = vld [vmem:[#allocation8 + $0x10d8] sm:$0xff]
        %v1861 = vld [vmem:[#allocation8 + $0x10e0] sm:$0xff]
        %v1862 = vld [vmem:[#allocation8 + $0x10e8] sm:$0xff]
        %v1863 = vld [vmem:[#allocation8 + $0x10f0] sm:$0xff]
        %v1864 = vld [vmem:[#allocation8 + $0x10f8] sm:$0xff]
        %v1865 = vld [vmem:[#allocation8 + $0x1100] sm:$0xff]
        %v1866 = vld [vmem:[#allocation8 + $0x1108] sm:$0xff]
        %v1867 = vld [vmem:[#allocation8 + $0x1110] sm:$0xff]
        %v1868 = vld [vmem:[#allocation8 + $0x1118] sm:$0xff]
        %v1869 = vld [vmem:[#allocation8 + $0x1120] sm:$0xff]
        %v1870 = vld [vmem:[#allocation8 + $0x1128] sm:$0xff]
        %v1871 = vld [vmem:[#allocation8 + $0x1130] sm:$0xff]
        %v1872 = vld [vmem:[#allocation8 + $0x1138] sm:$0xff]
        %v1873 = vld [vmem:[#allocation8 + $0x1140] sm:$0xff]
        %v1874 = vld [vmem:[#allocation8 + $0x1148] sm:$0xff]
        %v1875 = vld [vmem:[#allocation8 + $0x1150] sm:$0xff]
        %v1876 = vld [vmem:[#allocation8 + $0x1158] sm:$0xff]
        %v1877 = vld [vmem:[#allocation8 + $0x1160] sm:$0xff]
        %v1878 = vld [vmem:[#allocation8 + $0x1168] sm:$0xff]
        %v1879 = vld [vmem:[#allocation8 + $0x1170] sm:$0xff]
        %v1880 = vld [vmem:[#allocation8 + $0x1178] sm:$0xff]
        %v1881 = vld [vmem:[#allocation8 + $0x1180] sm:$0xff]
        %v1882 = vld [vmem:[#allocation8 + $0x1188] sm:$0xff]
        %v1883 = vld [vmem:[#allocation8 + $0x1190] sm:$0xff]
        %v1884 = vld [vmem:[#allocation8 + $0x1198] sm:$0xff]
        %v1885 = vld [vmem:[#allocation8 + $0x11a0] sm:$0xff]
        %v1886 = vld [vmem:[#allocation8 + $0x11a8] sm:$0xff]
        %v1887 = vld [vmem:[#allocation8 + $0x11b0] sm:$0xff]
        %v1888 = vld [vmem:[#allocation8 + $0x11b8] sm:$0xff]
        %v1889 = vld [vmem:[#allocation8 + $0x11c0] sm:$0xff]
        %v1890 = vld [vmem:[#allocation8 + $0x11c8] sm:$0xff]
        %v1891 = vld [vmem:[#allocation8 + $0x11d0] sm:$0xff]
        %v1892 = vld [vmem:[#allocation8 + $0x11d8] sm:$0xff]
        %v1893 = vld [vmem:[#allocation8 + $0x11e0] sm:$0xff]
        %v1894 = vld [vmem:[#allocation8 + $0x11e8] sm:$0xff]
        %v1895 = vld [vmem:[#allocation8 + $0x11f0] sm:$0xff]
        %v1896 = vld [vmem:[#allocation8 + $0x11f8] sm:$0xff]
        %v1897 = vld [vmem:[#allocation10] sm:$0x3f]
        %v1899 = vlaneseq
        %v1900 = vshrl.u32 %v1899, 7
        %v1901 = vsub.s32 0, %v1900
        %v1902 = vrot.slane %v1897, %v1901
        %v1903 = vlaneseq
        %v1904 = vshrl.u32 %v1903, 7
        %v1905 = vsub.s32 1, %v1904
        %v1906 = vrot.slane %v1897, %v1905
        %v1907 = vlaneseq
        %v1908 = vshrl.u32 %v1907, 7
        %v1909 = vsub.s32 2, %v1908
        %v1910 = vrot.slane %v1897, %v1909
        %v1911 = vlaneseq
        %v1912 = vshrl.u32 %v1911, 7
        %v1913 = vsub.s32 3, %v1912
        %v1914 = vrot.slane %v1897, %v1913
        %v1915 = vlaneseq
        %v1916 = vshrl.u32 %v1915, 7
        %v1917 = vsub.s32 4, %v1916
        %v1918 = vrot.slane %v1897, %v1917
        %v1919 = vlaneseq
        %v1920 = vshrl.u32 %v1919, 7
        %v1921 = vsub.s32 5, %v1920
        %v1922 = vrot.slane %v1897, %v1921
        %vm1977 = vcmask 1041409
        %v1978 = vsel %vm1977, %v1279, %v1273
        %vm1979 = vcmask 1042434
        %v1980 = vsel %vm1979, %v1285, %v1978
        %vm1981 = vcmask 1043459
        %v1982 = vsel %vm1981, %v1291, %v1980
        %vm1983 = vcmask 1044484
        %v1984 = vsel %vm1983, %v1297, %v1982
        %vm1985 = vcmask 1045509
        %v1986 = vsel %vm1985, %v1303, %v1984
        %vm1987 = vcmask 1046534
        %v1988 = vsel %vm1987, %v1309, %v1986
        %vm1989 = vcmask 1047559
        %v1990 = vsel %vm1989, %v1315, %v1988
        %v1991 = vsel %vm1977, %v1280, %v1274
        %v1992 = vsel %vm1979, %v1286, %v1991
        %v1993 = vsel %vm1981, %v1292, %v1992
        %v1994 = vsel %vm1983, %v1298, %v1993
        %v1995 = vsel %vm1985, %v1304, %v1994
        %v1996 = vsel %vm1987, %v1310, %v1995
        %v1997 = vsel %vm1989, %v1316, %v1996
        %v1998 = vsel %vm1977, %v1281, %v1275
        %v1999 = vsel %vm1979, %v1287, %v1998
        %v2000 = vsel %vm1981, %v1293, %v1999
        %v2001 = vsel %vm1983, %v1299, %v2000
        %v2002 = vsel %vm1985, %v1305, %v2001
        %v2003 = vsel %vm1987, %v1311, %v2002
        %v2004 = vsel %vm1989, %v1317, %v2003
        %v2005 = vsel %vm1977, %v1282, %v1276
        %v2006 = vsel %vm1979, %v1288, %v2005
        %v2007 = vsel %vm1981, %v1294, %v2006
        %v2008 = vsel %vm1983, %v1300, %v2007
        %v2009 = vsel %vm1985, %v1306, %v2008
        %v2010 = vsel %vm1987, %v1312, %v2009
        %v2011 = vsel %vm1989, %v1318, %v2010
        %v2012 = vsel %vm1977, %v1283, %v1277
        %v2013 = vsel %vm1979, %v1289, %v2012
        %v2014 = vsel %vm1981, %v1295, %v2013
        %v2015 = vsel %vm1983, %v1301, %v2014
        %v2016 = vsel %vm1985, %v1307, %v2015
        %v2017 = vsel %vm1987, %v1313, %v2016
        %v2018 = vsel %vm1989, %v1319, %v2017
        %v2019 = vsel %vm1977, %v1284, %v1278
        %v2020 = vsel %vm1979, %v1290, %v2019
        %v2021 = vsel %vm1981, %v1296, %v2020
        %v2022 = vsel %vm1983, %v1302, %v2021
        %v2023 = vsel %vm1985, %v1308, %v2022
        %v2024 = vsel %vm1987, %v1314, %v2023
        %v2025 = vsel %vm1989, %v1320, %v2024
        %2032 = vmatprep.subr.mxu0 %v1322
        %2033 = vmatpush1.msra.mxu0 %v1321
        %2034 = vmatprep.subr.mxu0 %v1328
        %2035 = vmatpush1.msra.mxu0 %v1327
        %2036 = vmatprep.subr.mxu0 %v1334
        %2037 = vmatpush1.msra.mxu0 %v1333
        %2038 = vmatprep.subr.mxu0 %v1340
        %2039 = vmatpush1.msra.mxu0 %v1339
        %2040 = vmatprep.subr.mxu0 %v1346
        %2041 = vmatpush1.msra.mxu0 %v1345
        %2042 = vmatprep.subr.mxu0 %v1352
        %2043 = vmatpush1.msra.mxu0 %v1351
        %2044 = vmatprep.subr.mxu0 %v1358
        %2045 = vmatpush1.msra.mxu0 %v1357
        %2046 = vmatprep.subr.mxu0 %v1364
        %2047 = vmatpush1.msra.mxu0 %v1363
        %2048 = vmatprep.subr.mxu0 %v1370
        %2049 = vmatpush1.msra.mxu0 %v1369
        %2050 = vmatprep.subr.mxu0 %v1376
        %2051 = vmatpush1.msra.mxu0 %v1375
        %2052 = vmatprep.subr.mxu0 %v1382
        %2053 = vmatpush1.msra.mxu0 %v1381
        %2054 = vmatprep.subr.mxu0 %v1388
        %2055 = vmatpush1.msra.mxu0 %v1387
        %2056 = vmatprep.subr.mxu0 %v1394
        %2057 = vmatpush1.msra.mxu0 %v1393
        %2058 = vmatprep.subr.mxu0 %v1400
        %2059 = vmatpush1.msra.mxu0 %v1399
        %2060 = vmatprep.subr.mxu0 %v1406
        %2061 = vmatpush1.msra.mxu0 %v1405
        %2062 = vmatprep.subr.mxu0 %v1412
        %2063 = vmatpush1.msra.mxu0 %v1411
        %2064 = vmatprep.subr.mxu0 %v1418
        %2065 = vmatpush1.msra.mxu0 %v1417
        %2066 = vmatprep.subr.mxu0 %v1424
        %2067 = vmatpush1.msra.mxu0 %v1423
        %2068 = vmatprep.subr.mxu0 %v1430
        %2069 = vmatpush1.msra.mxu0 %v1429
        %2070 = vmatprep.subr.mxu0 %v1436
        %2071 = vmatpush1.msra.mxu0 %v1435
        %2072 = vmatprep.subr.mxu0 %v1442
        %2073 = vmatpush1.msra.mxu0 %v1441
        %2074 = vmatprep.subr.mxu0 %v1448
        %2075 = vmatpush1.msra.mxu0 %v1447
        %2076 = vmatprep.subr.mxu0 %v1454
        %2077 = vmatpush1.msra.mxu0 %v1453
        %2078 = vmatprep.subr.mxu0 %v1460
        %2079 = vmatpush1.msra.mxu0 %v1459
        %2080 = vmatprep.subr.mxu0 %v1466
        %2081 = vmatpush1.msra.mxu0 %v1465
        %2082 = vmatprep.subr.mxu0 %v1472
        %2083 = vmatpush1.msra.mxu0 %v1471
        %2084 = vmatprep.subr.mxu0 %v1478
        %2085 = vmatpush1.msra.mxu0 %v1477
        %2086 = vmatprep.subr.mxu0 %v1484
        %2087 = vmatpush1.msra.mxu0 %v1483
        %2088 = vmatprep.subr.mxu0 %v1490
        %2089 = vmatpush1.msra.mxu0 %v1489
        %2090 = vmatprep.subr.mxu0 %v1496
        %2091 = vmatpush1.msra.mxu0 %v1495
        %2092 = vmatprep.subr.mxu0 %v1502
        %2093 = vmatpush1.msra.mxu0 %v1501
        %2094 = vmatprep.subr.mxu0 %v1508
        %2095 = vmatpush1.msra.mxu0 %v1507
        %2096 = vmatprep.mubr.f32.mxu0 %v1997
        %2097 = vmatmul.mubr.f32.gmra.mrb[0].mxu0 %v1990
        %v2098 = vpop.f32.mrb[0].mxu0
        %v2099 = vadd.f32 %v1902, %v2098
        %v2100 = vpop.f32.mrb[0].mxu0
        %v2101 = vadd.f32 %v1906, %v2100
        %2102 = vdwg.mxu0
        %2103 = vmatprep.subr.mxu0 %v1514
        %2104 = vmatpush1.msra.mxu0 %v1513
        %2105 = vmatprep.subr.mxu0 %v1520
        %2106 = vmatpush1.msra.mxu0 %v1519
        %2107 = vmatprep.subr.mxu0 %v1526
        %2108 = vmatpush1.msra.mxu0 %v1525
        %2109 = vmatprep.subr.mxu0 %v1532
        %2110 = vmatpush1.msra.mxu0 %v1531
        %2111 = vmatprep.subr.mxu0 %v1538
        %2112 = vmatpush1.msra.mxu0 %v1537
        %2113 = vmatprep.subr.mxu0 %v1544
        %2114 = vmatpush1.msra.mxu0 %v1543
        %2115 = vmatprep.subr.mxu0 %v1550
        %2116 = vmatpush1.msra.mxu0 %v1549
        %2117 = vmatprep.subr.mxu0 %v1556
        %2118 = vmatpush1.msra.mxu0 %v1555
        %2119 = vmatprep.subr.mxu0 %v1562
        %2120 = vmatpush1.msra.mxu0 %v1561
        %2121 = vmatprep.subr.mxu0 %v1568
        %2122 = vmatpush1.msra.mxu0 %v1567
        %2123 = vmatprep.subr.mxu0 %v1574
        %2124 = vmatpush1.msra.mxu0 %v1573
        %2125 = vmatprep.subr.mxu0 %v1580
        %2126 = vmatpush1.msra.mxu0 %v1579
        %2127 = vmatprep.subr.mxu0 %v1586
        %2128 = vmatpush1.msra.mxu0 %v1585
        %2129 = vmatprep.subr.mxu0 %v1592
        %2130 = vmatpush1.msra.mxu0 %v1591
        %2131 = vmatprep.subr.mxu0 %v1598
        %2132 = vmatpush1.msra.mxu0 %v1597
        %2133 = vmatprep.subr.mxu0 %v1604
        %2134 = vmatpush1.msra.mxu0 %v1603
        %2135 = vmatprep.subr.mxu0 %v1610
        %2136 = vmatpush1.msra.mxu0 %v1609
        %2137 = vmatprep.subr.mxu0 %v1616
        %2138 = vmatpush1.msra.mxu0 %v1615
        %2139 = vmatprep.subr.mxu0 %v1622
        %2140 = vmatpush1.msra.mxu0 %v1621
        %2141 = vmatprep.subr.mxu0 %v1628
        %2142 = vmatpush1.msra.mxu0 %v1627
        %2143 = vmatprep.subr.mxu0 %v1634
        %2144 = vmatpush1.msra.mxu0 %v1633
        %2145 = vmatprep.subr.mxu0 %v1640
        %2146 = vmatpush1.msra.mxu0 %v1639
        %2147 = vmatprep.subr.mxu0 %v1646
        %2148 = vmatpush1.msra.mxu0 %v1645
        %2149 = vmatprep.subr.mxu0 %v1652
        %2150 = vmatpush1.msra.mxu0 %v1651
        %2151 = vmatprep.subr.mxu0 %v1658
        %2152 = vmatpush1.msra.mxu0 %v1657
        %2153 = vmatprep.subr.mxu0 %v1664
        %2154 = vmatpush1.msra.mxu0 %v1663
        %2155 = vmatprep.subr.mxu0 %v1670
        %2156 = vmatpush1.msra.mxu0 %v1669
        %2157 = vmatprep.subr.mxu0 %v1676
        %2158 = vmatpush1.msra.mxu0 %v1675
        %2159 = vmatprep.subr.mxu0 %v1682
        %2160 = vmatpush1.msra.mxu0 %v1681
        %2161 = vmatprep.subr.mxu0 %v1688
        %2162 = vmatpush1.msra.mxu0 %v1687
        %2163 = vmatprep.subr.mxu0 %v1694
        %2164 = vmatpush1.msra.mxu0 %v1693
        %2165 = vmatprep.subr.mxu0 %v1700
        %2166 = vmatpush1.msra.mxu0 %v1699
        %2167 = vmatprep.mubr.f32.mxu0 %v2011
        %2168 = vmatmul.mubr.f32.gmra.mrb[0].mxu0 %v2004
        %v2169 = vpop.f32.mrb[0].mxu0
        %v2170 = vadd.f32 %v2099, %v2169
        %v2171 = vpop.f32.mrb[0].mxu0
        %v2172 = vadd.f32 %v2101, %v2171
        %2173 = vdwg.mxu0
        %2174 = vmatprep.subr.mxu0 %v1706
        %2175 = vmatpush1.msra.mxu0 %v1705
        %2176 = vmatprep.subr.mxu0 %v1712
        %2177 = vmatpush1.msra.mxu0 %v1711
        %2178 = vmatprep.subr.mxu0 %v1718
        %2179 = vmatpush1.msra.mxu0 %v1717
        %2180 = vmatprep.subr.mxu0 %v1724
        %2181 = vmatpush1.msra.mxu0 %v1723
        %2182 = vmatprep.subr.mxu0 %v1730
        %2183 = vmatpush1.msra.mxu0 %v1729
        %2184 = vmatprep.subr.mxu0 %v1736
        %2185 = vmatpush1.msra.mxu0 %v1735
        %2186 = vmatprep.subr.mxu0 %v1742
        %2187 = vmatpush1.msra.mxu0 %v1741
        %2188 = vmatprep.subr.mxu0 %v1748
        %2189 = vmatpush1.msra.mxu0 %v1747
        %2190 = vmatprep.subr.mxu0 %v1754
        %2191 = vmatpush1.msra.mxu0 %v1753
        %2192 = vmatprep.subr.mxu0 %v1760
        %2193 = vmatpush1.msra.mxu0 %v1759
        %2194 = vmatprep.subr.mxu0 %v1766
        %2195 = vmatpush1.msra.mxu0 %v1765
        %2196 = vmatprep.subr.mxu0 %v1772
        %2197 = vmatpush1.msra.mxu0 %v1771
        %2198 = vmatprep.subr.mxu0 %v1778
        %2199 = vmatpush1.msra.mxu0 %v1777
        %2200 = vmatprep.subr.mxu0 %v1784
        %2201 = vmatpush1.msra.mxu0 %v1783
        %2202 = vmatprep.subr.mxu0 %v1790
        %2203 = vmatpush1.msra.mxu0 %v1789
        %2204 = vmatprep.subr.mxu0 %v1796
        %2205 = vmatpush1.msra.mxu0 %v1795
        %2206 = vmatprep.subr.mxu0 %v1802
        %2207 = vmatpush1.msra.mxu0 %v1801
        %2208 = vmatprep.subr.mxu0 %v1808
        %2209 = vmatpush1.msra.mxu0 %v1807
        %2210 = vmatprep.subr.mxu0 %v1814
        %2211 = vmatpush1.msra.mxu0 %v1813
        %2212 = vmatprep.subr.mxu0 %v1820
        %2213 = vmatpush1.msra.mxu0 %v1819
        %2214 = vmatprep.subr.mxu0 %v1826
        %2215 = vmatpush1.msra.mxu0 %v1825
        %2216 = vmatprep.subr.mxu0 %v1832
        %2217 = vmatpush1.msra.mxu0 %v1831
        %2218 = vmatprep.subr.mxu0 %v1838
        %2219 = vmatpush1.msra.mxu0 %v1837
        %2220 = vmatprep.subr.mxu0 %v1844
        %2221 = vmatpush1.msra.mxu0 %v1843
        %2222 = vmatprep.subr.mxu0 %v1850
        %2223 = vmatpush1.msra.mxu0 %v1849
        %2224 = vmatprep.subr.mxu0 %v1856
        %2225 = vmatpush1.msra.mxu0 %v1855
        %2226 = vmatprep.subr.mxu0 %v1862
        %2227 = vmatpush1.msra.mxu0 %v1861
        %2228 = vmatprep.subr.mxu0 %v1868
        %2229 = vmatpush1.msra.mxu0 %v1867
        %2230 = vmatprep.subr.mxu0 %v1874
        %2231 = vmatpush1.msra.mxu0 %v1873
        %2232 = vmatprep.subr.mxu0 %v1880
        %2233 = vmatpush1.msra.mxu0 %v1879
        %2234 = vmatprep.subr.mxu0 %v1886
        %2235 = vmatpush1.msra.mxu0 %v1885
        %2236 = vmatprep.subr.mxu0 %v1892
        %2237 = vmatpush1.msra.mxu0 %v1891
        %2238 = vmatprep.mubr.f32.mxu0 %v2025
        %2239 = vmatmul.mubr.f32.gmra.mrb[0].mxu0 %v2018
        %v2240 = vpop.f32.mrb[0].mxu0
        %v2241 = vadd.f32 %v2170, %v2240
        %v2242 = vpop.f32.mrb[0].mxu0
        %v2243 = vadd.f32 %v2172, %v2242
        %2244 = vdwg.mxu0
        %2245 = vmatprep.subr.mxu0 %v1324
        %2246 = vmatpush1.msra.mxu0 %v1323
        %2247 = vmatprep.subr.mxu0 %v1330
        %2248 = vmatpush1.msra.mxu0 %v1329
        %2249 = vmatprep.subr.mxu0 %v1336
        %2250 = vmatpush1.msra.mxu0 %v1335
        %2251 = vmatprep.subr.mxu0 %v1342
        %2252 = vmatpush1.msra.mxu0 %v1341
        %2253 = vmatprep.subr.mxu0 %v1348
        %2254 = vmatpush1.msra.mxu0 %v1347
        %2255 = vmatprep.subr.mxu0 %v1354
        %2256 = vmatpush1.msra.mxu0 %v1353
        %2257 = vmatprep.subr.mxu0 %v1360
        %2258 = vmatpush1.msra.mxu0 %v1359
        %2259 = vmatprep.subr.mxu0 %v1366
        %2260 = vmatpush1.msra.mxu0 %v1365
        %2261 = vmatprep.subr.mxu0 %v1372
        %2262 = vmatpush1.msra.mxu0 %v1371
        %2263 = vmatprep.subr.mxu0 %v1378
        %2264 = vmatpush1.msra.mxu0 %v1377
        %2265 = vmatprep.subr.mxu0 %v1384
        %2266 = vmatpush1.msra.mxu0 %v1383
        %2267 = vmatprep.subr.mxu0 %v1390
        %2268 = vmatpush1.msra.mxu0 %v1389
        %2269 = vmatprep.subr.mxu0 %v1396
        %2270 = vmatpush1.msra.mxu0 %v1395
        %2271 = vmatprep.subr.mxu0 %v1402
        %2272 = vmatpush1.msra.mxu0 %v1401
        %2273 = vmatprep.subr.mxu0 %v1408
        %2274 = vmatpush1.msra.mxu0 %v1407
        %2275 = vmatprep.subr.mxu0 %v1414
        %2276 = vmatpush1.msra.mxu0 %v1413
        %2277 = vmatprep.subr.mxu0 %v1420
        %2278 = vmatpush1.msra.mxu0 %v1419
        %2279 = vmatprep.subr.mxu0 %v1426
        %2280 = vmatpush1.msra.mxu0 %v1425
        %2281 = vmatprep.subr.mxu0 %v1432
        %2282 = vmatpush1.msra.mxu0 %v1431
        %2283 = vmatprep.subr.mxu0 %v1438
        %2284 = vmatpush1.msra.mxu0 %v1437
        %2285 = vmatprep.subr.mxu0 %v1444
        %2286 = vmatpush1.msra.mxu0 %v1443
        %2287 = vmatprep.subr.mxu0 %v1450
        %2288 = vmatpush1.msra.mxu0 %v1449
        %2289 = vmatprep.subr.mxu0 %v1456
        %2290 = vmatpush1.msra.mxu0 %v1455
        %2291 = vmatprep.subr.mxu0 %v1462
        %2292 = vmatpush1.msra.mxu0 %v1461
        %2293 = vmatprep.subr.mxu0 %v1468
        %2294 = vmatpush1.msra.mxu0 %v1467
        %2295 = vmatprep.subr.mxu0 %v1474
        %2296 = vmatpush1.msra.mxu0 %v1473
        %2297 = vmatprep.subr.mxu0 %v1480
        %2298 = vmatpush1.msra.mxu0 %v1479
        %2299 = vmatprep.subr.mxu0 %v1486
        %2300 = vmatpush1.msra.mxu0 %v1485
        %2301 = vmatprep.subr.mxu0 %v1492
        %2302 = vmatpush1.msra.mxu0 %v1491
        %2303 = vmatprep.subr.mxu0 %v1498
        %2304 = vmatpush1.msra.mxu0 %v1497
        %2305 = vmatprep.subr.mxu0 %v1504
        %2306 = vmatpush1.msra.mxu0 %v1503
        %2307 = vmatprep.subr.mxu0 %v1510
        %2308 = vmatpush1.msra.mxu0 %v1509
        %2309 = vmatprep.mubr.f32.mxu0 %v1997
        %2310 = vmatmul.mubr.f32.gmra.mrb[0].mxu0 %v1990
        %v2311 = vpop.f32.mrb[0].mxu0
        %v2312 = vadd.f32 %v1910, %v2311
        %v2313 = vpop.f32.mrb[0].mxu0
        %v2314 = vadd.f32 %v1914, %v2313
        %2315 = vdwg.mxu0
        %2316 = vmatprep.subr.mxu0 %v1516
        %2317 = vmatpush1.msra.mxu0 %v1515
        %2318 = vmatprep.subr.mxu0 %v1522
        %2319 = vmatpush1.msra.mxu0 %v1521
        %2320 = vmatprep.subr.mxu0 %v1528
        %2321 = vmatpush1.msra.mxu0 %v1527
        %2322 = vmatprep.subr.mxu0 %v1534
        %2323 = vmatpush1.msra.mxu0 %v1533
        %2324 = vmatprep.subr.mxu0 %v1540
        %2325 = vmatpush1.msra.mxu0 %v1539
        %2326 = vmatprep.subr.mxu0 %v1546
        %2327 = vmatpush1.msra.mxu0 %v1545
        %2328 = vmatprep.subr.mxu0 %v1552
        %2329 = vmatpush1.msra.mxu0 %v1551
        %2330 = vmatprep.subr.mxu0 %v1558
        %2331 = vmatpush1.msra.mxu0 %v1557
        %2332 = vmatprep.subr.mxu0 %v1564
        %2333 = vmatpush1.msra.mxu0 %v1563
        %2334 = vmatprep.subr.mxu0 %v1570
        %2335 = vmatpush1.msra.mxu0 %v1569
        %2336 = vmatprep.subr.mxu0 %v1576
        %2337 = vmatpush1.msra.mxu0 %v1575
        %2338 = vmatprep.subr.mxu0 %v1582
        %2339 = vmatpush1.msra.mxu0 %v1581
        %2340 = vmatprep.subr.mxu0 %v1588
        %2341 = vmatpush1.msra.mxu0 %v1587
        %2342 = vmatprep.subr.mxu0 %v1594
        %2343 = vmatpush1.msra.mxu0 %v1593
        %2344 = vmatprep.subr.mxu0 %v1600
        %2345 = vmatpush1.msra.mxu0 %v1599
        %2346 = vmatprep.subr.mxu0 %v1606
        %2347 = vmatpush1.msra.mxu0 %v1605
        %2348 = vmatprep.subr.mxu0 %v1612
        %2349 = vmatpush1.msra.mxu0 %v1611
        %2350 = vmatprep.subr.mxu0 %v1618
        %2351 = vmatpush1.msra.mxu0 %v1617
        %2352 = vmatprep.subr.mxu0 %v1624
        %2353 = vmatpush1.msra.mxu0 %v1623
        %2354 = vmatprep.subr.mxu0 %v1630
        %2355 = vmatpush1.msra.mxu0 %v1629
        %2356 = vmatprep.subr.mxu0 %v1636
        %2357 = vmatpush1.msra.mxu0 %v1635
        %2358 = vmatprep.subr.mxu0 %v1642
        %2359 = vmatpush1.msra.mxu0 %v1641
        %2360 = vmatprep.subr.mxu0 %v1648
        %2361 = vmatpush1.msra.mxu0 %v1647
        %2362 = vmatprep.subr.mxu0 %v1654
        %2363 = vmatpush1.msra.mxu0 %v1653
        %2364 = vmatprep.subr.mxu0 %v1660
        %2365 = vmatpush1.msra.mxu0 %v1659
        %2366 = vmatprep.subr.mxu0 %v1666
        %2367 = vmatpush1.msra.mxu0 %v1665
        %2368 = vmatprep.subr.mxu0 %v1672
        %2369 = vmatpush1.msra.mxu0 %v1671
        %2370 = vmatprep.subr.mxu0 %v1678
        %2371 = vmatpush1.msra.mxu0 %v1677
        %2372 = vmatprep.subr.mxu0 %v1684
        %2373 = vmatpush1.msra.mxu0 %v1683
        %2374 = vmatprep.subr.mxu0 %v1690
        %2375 = vmatpush1.msra.mxu0 %v1689
        %2376 = vmatprep.subr.mxu0 %v1696
        %2377 = vmatpush1.msra.mxu0 %v1695
        %2378 = vmatprep.subr.mxu0 %v1702
        %2379 = vmatpush1.msra.mxu0 %v1701
        %2380 = vmatprep.mubr.f32.mxu0 %v2011
        %2381 = vmatmul.mubr.f32.gmra.mrb[0].mxu0 %v2004
        %v2382 = vpop.f32.mrb[0].mxu0
        %v2383 = vadd.f32 %v2312, %v2382
        %v2384 = vpop.f32.mrb[0].mxu0
        %v2385 = vadd.f32 %v2314, %v2384
        %2386 = vdwg.mxu0
        %2387 = vmatprep.subr.mxu0 %v1708
        %2388 = vmatpush1.msra.mxu0 %v1707
        %2389 = vmatprep.subr.mxu0 %v1714
        %2390 = vmatpush1.msra.mxu0 %v1713
        %2391 = vmatprep.subr.mxu0 %v1720
        %2392 = vmatpush1.msra.mxu0 %v1719
        %2393 = vmatprep.subr.mxu0 %v1726
        %2394 = vmatpush1.msra.mxu0 %v1725
        %2395 = vmatprep.subr.mxu0 %v1732
        %2396 = vmatpush1.msra.mxu0 %v1731
        %2397 = vmatprep.subr.mxu0 %v1738
        %2398 = vmatpush1.msra.mxu0 %v1737
        %2399 = vmatprep.subr.mxu0 %v1744
        %2400 = vmatpush1.msra.mxu0 %v1743
        %2401 = vmatprep.subr.mxu0 %v1750
        %2402 = vmatpush1.msra.mxu0 %v1749
        %2403 = vmatprep.subr.mxu0 %v1756
        %2404 = vmatpush1.msra.mxu0 %v1755
        %2405 = vmatprep.subr.mxu0 %v1762
        %2406 = vmatpush1.msra.mxu0 %v1761
        %2407 = vmatprep.subr.mxu0 %v1768
        %2408 = vmatpush1.msra.mxu0 %v1767
        %2409 = vmatprep.subr.mxu0 %v1774
        %2410 = vmatpush1.msra.mxu0 %v1773
        %2411 = vmatprep.subr.mxu0 %v1780
        %2412 = vmatpush1.msra.mxu0 %v1779
        %2413 = vmatprep.subr.mxu0 %v1786
        %2414 = vmatpush1.msra.mxu0 %v1785
        %2415 = vmatprep.subr.mxu0 %v1792
        %2416 = vmatpush1.msra.mxu0 %v1791
        %2417 = vmatprep.subr.mxu0 %v1798
        %2418 = vmatpush1.msra.mxu0 %v1797
        %2419 = vmatprep.subr.mxu0 %v1804
        %2420 = vmatpush1.msra.mxu0 %v1803
        %2421 = vmatprep.subr.mxu0 %v1810
        %2422 = vmatpush1.msra.mxu0 %v1809
        %2423 = vmatprep.subr.mxu0 %v1816
        %2424 = vmatpush1.msra.mxu0 %v1815
        %2425 = vmatprep.subr.mxu0 %v1822
        %2426 = vmatpush1.msra.mxu0 %v1821
        %2427 = vmatprep.subr.mxu0 %v1828
        %2428 = vmatpush1.msra.mxu0 %v1827
        %2429 = vmatprep.subr.mxu0 %v1834
        %2430 = vmatpush1.msra.mxu0 %v1833
        %2431 = vmatprep.subr.mxu0 %v1840
        %2432 = vmatpush1.msra.mxu0 %v1839
        %2433 = vmatprep.subr.mxu0 %v1846
        %2434 = vmatpush1.msra.mxu0 %v1845
        %2435 = vmatprep.subr.mxu0 %v1852
        %2436 = vmatpush1.msra.mxu0 %v1851
        %2437 = vmatprep.subr.mxu0 %v1858
        %2438 = vmatpush1.msra.mxu0 %v1857
        %2439 = vmatprep.subr.mxu0 %v1864
        %2440 = vmatpush1.msra.mxu0 %v1863
        %2441 = vmatprep.subr.mxu0 %v1870
        %2442 = vmatpush1.msra.mxu0 %v1869
        %2443 = vmatprep.subr.mxu0 %v1876
        %2444 = vmatpush1.msra.mxu0 %v1875
        %2445 = vmatprep.subr.mxu0 %v1882
        %2446 = vmatpush1.msra.mxu0 %v1881
        %2447 = vmatprep.subr.mxu0 %v1888
        %2448 = vmatpush1.msra.mxu0 %v1887
        %2449 = vmatprep.subr.mxu0 %v1894
        %2450 = vmatpush1.msra.mxu0 %v1893
        %2451 = vmatprep.mubr.f32.mxu0 %v2025
        %2452 = vmatmul.mubr.f32.gmra.mrb[0].mxu0 %v2018
        %v2453 = vpop.f32.mrb[0].mxu0
        %v2454 = vadd.f32 %v2383, %v2453
        %v2455 = vpop.f32.mrb[0].mxu0
        %v2456 = vadd.f32 %v2385, %v2455
        %2457 = vdwg.mxu0
        %2458 = vmatprep.subr.mxu0 %v1326
        %2459 = vmatpush1.msra.mxu0 %v1325
        %2460 = vmatprep.subr.mxu0 %v1332
        %2461 = vmatpush1.msra.mxu0 %v1331
        %2462 = vmatprep.subr.mxu0 %v1338
        %2463 = vmatpush1.msra.mxu0 %v1337
        %2464 = vmatprep.subr.mxu0 %v1344
        %2465 = vmatpush1.msra.mxu0 %v1343
        %2466 = vmatprep.subr.mxu0 %v1350
        %2467 = vmatpush1.msra.mxu0 %v1349
        %2468 = vmatprep.subr.mxu0 %v1356
        %2469 = vmatpush1.msra.mxu0 %v1355
        %2470 = vmatprep.subr.mxu0 %v1362
        %2471 = vmatpush1.msra.mxu0 %v1361
        %2472 = vmatprep.subr.mxu0 %v1368
        %2473 = vmatpush1.msra.mxu0 %v1367
        %2474 = vmatprep.subr.mxu0 %v1374
        %2475 = vmatpush1.msra.mxu0 %v1373
        %2476 = vmatprep.subr.mxu0 %v1380
        %2477 = vmatpush1.msra.mxu0 %v1379
        %2478 = vmatprep.subr.mxu0 %v1386
        %2479 = vmatpush1.msra.mxu0 %v1385
        %2480 = vmatprep.subr.mxu0 %v1392
        %2481 = vmatpush1.msra.mxu0 %v1391
        %2482 = vmatprep.subr.mxu0 %v1398
        %2483 = vmatpush1.msra.mxu0 %v1397
        %2484 = vmatprep.subr.mxu0 %v1404
        %2485 = vmatpush1.msra.mxu0 %v1403
        %2486 = vmatprep.subr.mxu0 %v1410
        %2487 = vmatpush1.msra.mxu0 %v1409
        %2488 = vmatprep.subr.mxu0 %v1416
        %2489 = vmatpush1.msra.mxu0 %v1415
        %2490 = vmatprep.subr.mxu0 %v1422
        %2491 = vmatpush1.msra.mxu0 %v1421
        %2492 = vmatprep.subr.mxu0 %v1428
        %2493 = vmatpush1.msra.mxu0 %v1427
        %2494 = vmatprep.subr.mxu0 %v1434
        %2495 = vmatpush1.msra.mxu0 %v1433
        %2496 = vmatprep.subr.mxu0 %v1440
        %2497 = vmatpush1.msra.mxu0 %v1439
        %2498 = vmatprep.subr.mxu0 %v1446
        %2499 = vmatpush1.msra.mxu0 %v1445
        %2500 = vmatprep.subr.mxu0 %v1452
        %2501 = vmatpush1.msra.mxu0 %v1451
        %2502 = vmatprep.subr.mxu0 %v1458
        %2503 = vmatpush1.msra.mxu0 %v1457
        %2504 = vmatprep.subr.mxu0 %v1464
        %2505 = vmatpush1.msra.mxu0 %v1463
        %2506 = vmatprep.subr.mxu0 %v1470
        %2507 = vmatpush1.msra.mxu0 %v1469
        %2508 = vmatprep.subr.mxu0 %v1476
        %2509 = vmatpush1.msra.mxu0 %v1475
        %2510 = vmatprep.subr.mxu0 %v1482
        %2511 = vmatpush1.msra.mxu0 %v1481
        %2512 = vmatprep.subr.mxu0 %v1488
        %2513 = vmatpush1.msra.mxu0 %v1487
        %2514 = vmatprep.subr.mxu0 %v1494
        %2515 = vmatpush1.msra.mxu0 %v1493
        %2516 = vmatprep.subr.mxu0 %v1500
        %2517 = vmatpush1.msra.mxu0 %v1499
        %2518 = vmatprep.subr.mxu0 %v1506
        %2519 = vmatpush1.msra.mxu0 %v1505
        %2520 = vmatprep.subr.mxu0 %v1512
        %2521 = vmatpush1.msra.mxu0 %v1511
        %2522 = vmatprep.mubr.f32.mxu0 %v1997
        %2523 = vmatmul.mubr.f32.gmra.mrb[0].mxu0 %v1990
        %v2524 = vpop.f32.mrb[0].mxu0
        %v2525 = vadd.f32 %v1918, %v2524
        %v2526 = vpop.f32.mrb[0].mxu0
        %v2527 = vadd.f32 %v1922, %v2526
        %2528 = vdwg.mxu0
        %2529 = vmatprep.subr.mxu0 %v1518
        %2530 = vmatpush1.msra.mxu0 %v1517
        %2531 = vmatprep.subr.mxu0 %v1524
        %2532 = vmatpush1.msra.mxu0 %v1523
        %2533 = vmatprep.subr.mxu0 %v1530
        %2534 = vmatpush1.msra.mxu0 %v1529
        %2535 = vmatprep.subr.mxu0 %v1536
        %2536 = vmatpush1.msra.mxu0 %v1535
        %2537 = vmatprep.subr.mxu0 %v1542
        %2538 = vmatpush1.msra.mxu0 %v1541
        %2539 = vmatprep.subr.mxu0 %v1548
        %2540 = vmatpush1.msra.mxu0 %v1547
        %2541 = vmatprep.subr.mxu0 %v1554
        %2542 = vmatpush1.msra.mxu0 %v1553
        %2543 = vmatprep.subr.mxu0 %v1560
        %2544 = vmatpush1.msra.mxu0 %v1559
        %2545 = vmatprep.subr.mxu0 %v1566
        %2546 = vmatpush1.msra.mxu0 %v1565
        %2547 = vmatprep.subr.mxu0 %v1572
        %2548 = vmatpush1.msra.mxu0 %v1571
        %2549 = vmatprep.subr.mxu0 %v1578
        %2550 = vmatpush1.msra.mxu0 %v1577
        %2551 = vmatprep.subr.mxu0 %v1584
        %2552 = vmatpush1.msra.mxu0 %v1583
        %2553 = vmatprep.subr.mxu0 %v1590
        %2554 = vmatpush1.msra.mxu0 %v1589
        %2555 = vmatprep.subr.mxu0 %v1596
        %2556 = vmatpush1.msra.mxu0 %v1595
        %2557 = vmatprep.subr.mxu0 %v1602
        %2558 = vmatpush1.msra.mxu0 %v1601
        %2559 = vmatprep.subr.mxu0 %v1608
        %2560 = vmatpush1.msra.mxu0 %v1607
        %2561 = vmatprep.subr.mxu0 %v1614
        %2562 = vmatpush1.msra.mxu0 %v1613
        %2563 = vmatprep.subr.mxu0 %v1620
        %2564 = vmatpush1.msra.mxu0 %v1619
        %2565 = vmatprep.subr.mxu0 %v1626
        %2566 = vmatpush1.msra.mxu0 %v1625
        %2567 = vmatprep.subr.mxu0 %v1632
        %2568 = vmatpush1.msra.mxu0 %v1631
        %2569 = vmatprep.subr.mxu0 %v1638
        %2570 = vmatpush1.msra.mxu0 %v1637
        %2571 = vmatprep.subr.mxu0 %v1644
        %2572 = vmatpush1.msra.mxu0 %v1643
        %2573 = vmatprep.subr.mxu0 %v1650
        %2574 = vmatpush1.msra.mxu0 %v1649
        %2575 = vmatprep.subr.mxu0 %v1656
        %2576 = vmatpush1.msra.mxu0 %v1655
        %2577 = vmatprep.subr.mxu0 %v1662
        %2578 = vmatpush1.msra.mxu0 %v1661
        %2579 = vmatprep.subr.mxu0 %v1668
        %2580 = vmatpush1.msra.mxu0 %v1667
        %2581 = vmatprep.subr.mxu0 %v1674
        %2582 = vmatpush1.msra.mxu0 %v1673
        %2583 = vmatprep.subr.mxu0 %v1680
        %2584 = vmatpush1.msra.mxu0 %v1679
        %2585 = vmatprep.subr.mxu0 %v1686
        %2586 = vmatpush1.msra.mxu0 %v1685
        %2587 = vmatprep.subr.mxu0 %v1692
        %2588 = vmatpush1.msra.mxu0 %v1691
        %2589 = vmatprep.subr.mxu0 %v1698
        %2590 = vmatpush1.msra.mxu0 %v1697
        %2591 = vmatprep.subr.mxu0 %v1704
        %2592 = vmatpush1.msra.mxu0 %v1703
        %2593 = vmatprep.mubr.f32.mxu0 %v2011
        %2594 = vmatmul.mubr.f32.gmra.mrb[0].mxu0 %v2004
        %v2595 = vpop.f32.mrb[0].mxu0
        %v2596 = vadd.f32 %v2525, %v2595
        %v2597 = vpop.f32.mrb[0].mxu0
        %v2598 = vadd.f32 %v2527, %v2597
        %2599 = vdwg.mxu0
        %2600 = vmatprep.subr.mxu0 %v1710
        %2601 = vmatpush1.msra.mxu0 %v1709
        %2602 = vmatprep.subr.mxu0 %v1716
        %2603 = vmatpush1.msra.mxu0 %v1715
        %2604 = vmatprep.subr.mxu0 %v1722
        %2605 = vmatpush1.msra.mxu0 %v1721
        %2606 = vmatprep.subr.mxu0 %v1728
        %2607 = vmatpush1.msra.mxu0 %v1727
        %2608 = vmatprep.subr.mxu0 %v1734
        %2609 = vmatpush1.msra.mxu0 %v1733
        %2610 = vmatprep.subr.mxu0 %v1740
        %2611 = vmatpush1.msra.mxu0 %v1739
        %2612 = vmatprep.subr.mxu0 %v1746
        %2613 = vmatpush1.msra.mxu0 %v1745
        %2614 = vmatprep.subr.mxu0 %v1752
        %2615 = vmatpush1.msra.mxu0 %v1751
        %2616 = vmatprep.subr.mxu0 %v1758
        %2617 = vmatpush1.msra.mxu0 %v1757
        %2618 = vmatprep.subr.mxu0 %v1764
        %2619 = vmatpush1.msra.mxu0 %v1763
        %2620 = vmatprep.subr.mxu0 %v1770
        %2621 = vmatpush1.msra.mxu0 %v1769
        %2622 = vmatprep.subr.mxu0 %v1776
        %2623 = vmatpush1.msra.mxu0 %v1775
        %2624 = vmatprep.subr.mxu0 %v1782
        %2625 = vmatpush1.msra.mxu0 %v1781
        %2626 = vmatprep.subr.mxu0 %v1788
        %2627 = vmatpush1.msra.mxu0 %v1787
        %2628 = vmatprep.subr.mxu0 %v1794
        %2629 = vmatpush1.msra.mxu0 %v1793
        %2630 = vmatprep.subr.mxu0 %v1800
        %2631 = vmatpush1.msra.mxu0 %v1799
        %2632 = vmatprep.subr.mxu0 %v1806
        %2633 = vmatpush1.msra.mxu0 %v1805
        %2634 = vmatprep.subr.mxu0 %v1812
        %2635 = vmatpush1.msra.mxu0 %v1811
        %2636 = vmatprep.subr.mxu0 %v1818
        %2637 = vmatpush1.msra.mxu0 %v1817
        %2638 = vmatprep.subr.mxu0 %v1824
        %2639 = vmatpush1.msra.mxu0 %v1823
        %2640 = vmatprep.subr.mxu0 %v1830
        %2641 = vmatpush1.msra.mxu0 %v1829
        %2642 = vmatprep.subr.mxu0 %v1836
        %2643 = vmatpush1.msra.mxu0 %v1835
        %2644 = vmatprep.subr.mxu0 %v1842
        %2645 = vmatpush1.msra.mxu0 %v1841
        %2646 = vmatprep.subr.mxu0 %v1848
        %2647 = vmatpush1.msra.mxu0 %v1847
        %2648 = vmatprep.subr.mxu0 %v1854
        %2649 = vmatpush1.msra.mxu0 %v1853
        %2650 = vmatprep.subr.mxu0 %v1860
        %2651 = vmatpush1.msra.mxu0 %v1859
        %2652 = vmatprep.subr.mxu0 %v1866
        %2653 = vmatpush1.msra.mxu0 %v1865
        %2654 = vmatprep.subr.mxu0 %v1872
        %2655 = vmatpush1.msra.mxu0 %v1871
        %2656 = vmatprep.subr.mxu0 %v1878
        %2657 = vmatpush1.msra.mxu0 %v1877
        %2658 = vmatprep.subr.mxu0 %v1884
        %2659 = vmatpush1.msra.mxu0 %v1883
        %2660 = vmatprep.subr.mxu0 %v1890
        %2661 = vmatpush1.msra.mxu0 %v1889
        %2662 = vmatprep.subr.mxu0 %v1896
        %2663 = vmatpush1.msra.mxu0 %v1895
        %2664 = vmatprep.mubr.f32.mxu0 %v2025
        %2665 = vmatmul.mubr.f32.gmra.mrb[0].mxu0 %v2018
        %v2666 = vpop.f32.mrb[0].mxu0
        %v2667 = vadd.f32 %v2596, %v2666
        %v2668 = vpop.f32.mrb[0].mxu0
        %v2669 = vadd.f32 %v2598, %v2668
        %2670 = vdwg.mxu0
        %2671 = vst [vmem:[%s907] sm:$0xff] %v2241
        %2672 = vst [vmem:[%s907 + $0x8] sm:$0xff] %v2243
        %2673 = vst [vmem:[%s907 + $0x10] sm:$0xff] %v2454
        %2674 = vst [vmem:[%s907 + $0x18] sm:$0xff] %v2456
        %2675 = vst [vmem:[%s907 + $0x20] sm:$0xff] %v2667
        %2676 = vst [vmem:[%s907 + $0x28] sm:$0xff] %v2669
        %v2677 = vld [vmem:[%s779] sm:$0xff]
        %v2678 = vld [vmem:[#allocation11] sm:$0xff]
        %v2679 = vld [vmem:[#allocation11 + $0x8] sm:$0xff]
        %v2680 = vld [vmem:[%s788] sm:$0xff]
        %v2681 = vld [vmem:[#allocation13] sm:$0xff]
        %v2682 = vld [vmem:[#allocation13 + $0x8] sm:$0xff]
        %vm2683 = vcmask 130048
        %v2685 = vsel %vm2683, %v2680, 0
        %2687 = vmatprep.subr.mxu0 0.0
        %2688 = vmatpush1.msra.mxu0 %v2681
        %2689 = vmatprep.subr.mxu0 0.0
        %2690 = vmatpush1.msra.mxu0 %v2682
        %2691 = vmatprep.subr.mxu0 0.0
        %2692 = vmatpush1.msra.mxu0 0.0
        %2693 = vmatprep.subr.mxu0 0.0
        %2694 = vmatpush1.msra.mxu0 0.0
        %2695 = vmatprep.subr.mxu0 0.0
        %2696 = vmatpush1.msra.mxu0 0.0
        %2697 = vmatprep.subr.mxu0 0.0
        %2698 = vmatpush1.msra.mxu0 0.0
        %2699 = vmatprep.subr.mxu0 0.0
        %2700 = vmatpush1.msra.mxu0 0.0
        %2701 = vmatprep.subr.mxu0 0.0
        %2702 = vmatpush1.msra.mxu0 0.0
        %2703 = vmatprep.subr.mxu0 0.0
        %2704 = vmatpush1.msra.mxu0 0.0
        %2705 = vmatprep.subr.mxu0 0.0
        %2706 = vmatpush1.msra.mxu0 0.0
        %2707 = vmatprep.subr.mxu0 0.0
        %2708 = vmatpush1.msra.mxu0 0.0
        %2709 = vmatprep.subr.mxu0 0.0
        %2710 = vmatpush1.msra.mxu0 0.0
        %2711 = vmatprep.subr.mxu0 0.0
        %2712 = vmatpush1.msra.mxu0 0.0
        %2713 = vmatprep.subr.mxu0 0.0
        %2714 = vmatpush1.msra.mxu0 0.0
        %2715 = vmatprep.subr.mxu0 0.0
        %2716 = vmatpush1.msra.mxu0 0.0
        %2717 = vmatprep.subr.mxu0 0.0
        %2718 = vmatpush1.msra.mxu0 0.0
        %2719 = vmatprep.subr.mxu0 0.0
        %2720 = vmatpush1.msra.mxu0 0.0
        %2721 = vmatprep.subr.mxu0 0.0
        %2722 = vmatpush1.msra.mxu0 0.0
        %2723 = vmatprep.subr.mxu0 0.0
        %2724 = vmatpush1.msra.mxu0 0.0
        %2725 = vmatprep.subr.mxu0 0.0
        %2726 = vmatpush1.msra.mxu0 0.0
        %2727 = vmatprep.subr.mxu0 0.0
        %2728 = vmatpush1.msra.mxu0 0.0
        %2729 = vmatprep.subr.mxu0 0.0
        %2730 = vmatpush1.msra.mxu0 0.0
        %2731 = vmatprep.subr.mxu0 0.0
        %2732 = vmatpush1.msra.mxu0 0.0
        %2733 = vmatprep.subr.mxu0 0.0
        %2734 = vmatpush1.msra.mxu0 0.0
        %2735 = vmatprep.subr.mxu0 0.0
        %2736 = vmatpush1.msra.mxu0 0.0
        %2737 = vmatprep.subr.mxu0 0.0
        %2738 = vmatpush1.msra.mxu0 0.0
        %2739 = vmatprep.subr.mxu0 0.0
        %2740 = vmatpush1.msra.mxu0 0.0
        %2741 = vmatprep.subr.mxu0 0.0
        %2742 = vmatpush1.msra.mxu0 0.0
        %2743 = vmatprep.subr.mxu0 0.0
        %2744 = vmatpush1.msra.mxu0 0.0
        %2745 = vmatprep.subr.mxu0 0.0
        %2746 = vmatpush1.msra.mxu0 0.0
        %2747 = vmatprep.subr.mxu0 0.0
        %2748 = vmatpush1.msra.mxu0 0.0
        %2749 = vmatprep.subr.mxu0 0.0
        %2750 = vmatpush1.msra.mxu0 0.0
        %2751 = vmatprep.mubr.f32.mxu0 0.0
        %2752 = vmatmul.mubr.f32.gmra.mrb[0].mxu0 %v2685
        %v2753 = vpop.f32.mrb[0].mxu0
        %v2754 = vadd.f32 0.0, %v2753
        %v2755 = vpop.f32.mrb[0].mxu0
        %2756 = vdwg.mxu0
        %v2758 = vsel %vm2683, %v2677, 0
        %2760 = vmatprep.subr.mxu0 0.0
        %2761 = vmatpush1.msra.mxu0 %v2678
        %2762 = vmatprep.subr.mxu0 0.0
        %2763 = vmatpush1.msra.mxu0 %v2679
        %2764 = vmatprep.subr.mxu0 0.0
        %2765 = vmatpush1.msra.mxu0 0.0
        %2766 = vmatprep.subr.mxu0 0.0
        %2767 = vmatpush1.msra.mxu0 0.0
        %2768 = vmatprep.subr.mxu0 0.0
        %2769 = vmatpush1.msra.mxu0 0.0
        %2770 = vmatprep.subr.mxu0 0.0
        %2771 = vmatpush1.msra.mxu0 0.0
        %2772 = vmatprep.subr.mxu0 0.0
        %2773 = vmatpush1.msra.mxu0 0.0
        %2774 = vmatprep.subr.mxu0 0.0
        %2775 = vmatpush1.msra.mxu0 0.0
        %2776 = vmatprep.subr.mxu0 0.0
        %2777 = vmatpush1.msra.mxu0 0.0
        %2778 = vmatprep.subr.mxu0 0.0
        %2779 = vmatpush1.msra.mxu0 0.0
        %2780 = vmatprep.subr.mxu0 0.0
        %2781 = vmatpush1.msra.mxu0 0.0
        %2782 = vmatprep.subr.mxu0 0.0
        %2783 = vmatpush1.msra.mxu0 0.0
        %2784 = vmatprep.subr.mxu0 0.0
        %2785 = vmatpush1.msra.mxu0 0.0
        %2786 = vmatprep.subr.mxu0 0.0
        %2787 = vmatpush1.msra.mxu0 0.0
        %2788 = vmatprep.subr.mxu0 0.0
        %2789 = vmatpush1.msra.mxu0 0.0
        %2790 = vmatprep.subr.mxu0 0.0
        %2791 = vmatpush1.msra.mxu0 0.0
        %2792 = vmatprep.subr.mxu0 0.0
        %2793 = vmatpush1.msra.mxu0 0.0
        %2794 = vmatprep.subr.mxu0 0.0
        %2795 = vmatpush1.msra.mxu0 0.0
        %2796 = vmatprep.subr.mxu0 0.0
        %2797 = vmatpush1.msra.mxu0 0.0
        %2798 = vmatprep.subr.mxu0 0.0
        %2799 = vmatpush1.msra.mxu0 0.0
        %2800 = vmatprep.subr.mxu0 0.0
        %2801 = vmatpush1.msra.mxu0 0.0
        %2802 = vmatprep.subr.mxu0 0.0
        %2803 = vmatpush1.msra.mxu0 0.0
        %2804 = vmatprep.subr.mxu0 0.0
        %2805 = vmatpush1.msra.mxu0 0.0
        %2806 = vmatprep.subr.mxu0 0.0
        %2807 = vmatpush1.msra.mxu0 0.0
        %2808 = vmatprep.subr.mxu0 0.0
        %2809 = vmatpush1.msra.mxu0 0.0
        %2810 = vmatprep.subr.mxu0 0.0
        %2811 = vmatpush1.msra.mxu0 0.0
        %2812 = vmatprep.subr.mxu0 0.0
        %2813 = vmatpush1.msra.mxu0 0.0
        %2814 = vmatprep.subr.mxu0 0.0
        %2815 = vmatpush1.msra.mxu0 0.0
        %2816 = vmatprep.subr.mxu0 0.0
        %2817 = vmatpush1.msra.mxu0 0.0
        %2818 = vmatprep.subr.mxu0 0.0
        %2819 = vmatpush1.msra.mxu0 0.0
        %2820 = vmatprep.subr.mxu0 0.0
        %2821 = vmatpush1.msra.mxu0 0.0
        %2822 = vmatprep.subr.mxu0 0.0
        %2823 = vmatpush1.msra.mxu0 0.0
        %2824 = vmatprep.mubr.f32.mxu0 0.0
        %2825 = vmatmul.mubr.f32.gmra.mrb[0].mxu0 %v2758
        %v2826 = vpop.f32.mrb[0].mxu0
        %v2827 = vadd.f32 %v2754, %v2826
        %v2828 = vpop.f32.mrb[0].mxu0
        %2829 = vdwg.mxu0
        %v2830 = vld [vmem:[#allocation14] sm:$0xff]
        %v2831 = vld [vmem:[#allocation14 + $0x8] sm:$0xff]
        %v2832 = vld [vmem:[#allocation14 + $0x10] sm:$0xff]
        %v2833 = vld [vmem:[#allocation14 + $0x18] sm:$0xff]
        %v2834 = vld [vmem:[#allocation14 + $0x20] sm:$0xff]
        %v2835 = vld [vmem:[#allocation14 + $0x28] sm:$0xff]
        %v2836 = vld [vmem:[#allocation14 + $0x30] sm:$0xff]
        %v2837 = vld [vmem:[#allocation14 + $0x38] sm:$0xff]
        %v2838 = vld [vmem:[#allocation14 + $0x40] sm:$0xff]
        %v2839 = vld [vmem:[#allocation14 + $0x48] sm:$0xff]
        %v2840 = vld [vmem:[#allocation14 + $0x50] sm:$0xff]
        %v2841 = vld [vmem:[#allocation14 + $0x58] sm:$0xff]
        %v2842 = vld [vmem:[#allocation14 + $0x60] sm:$0xff]
        %v2843 = vld [vmem:[#allocation14 + $0x68] sm:$0xff]
        %v2844 = vld [vmem:[#allocation14 + $0x70] sm:$0xff]
        %v2845 = vld [vmem:[#allocation14 + $0x78] sm:$0xff]
        %v2846 = vld [vmem:[#allocation14 + $0x80] sm:$0xff]
        %v2847 = vld [vmem:[#allocation14 + $0x88] sm:$0xff]
        %v2848 = vld [vmem:[#allocation14 + $0x90] sm:$0xff]
        %v2849 = vld [vmem:[#allocation14 + $0x98] sm:$0xff]
        %v2850 = vld [vmem:[#allocation14 + $0xa0] sm:$0xff]
        %v2851 = vld [vmem:[#allocation14 + $0xa8] sm:$0xff]
        %v2852 = vld [vmem:[#allocation14 + $0xb0] sm:$0xff]
        %v2853 = vld [vmem:[#allocation14 + $0xb8] sm:$0xff]
        %v2854 = vld [vmem:[#allocation14 + $0xc0] sm:$0xff]
        %v2855 = vld [vmem:[#allocation14 + $0xc8] sm:$0xff]
        %v2856 = vld [vmem:[#allocation14 + $0xd0] sm:$0xff]
        %v2857 = vld [vmem:[#allocation14 + $0xd8] sm:$0xff]
        %v2858 = vld [vmem:[#allocation14 + $0xe0] sm:$0xff]
        %v2859 = vld [vmem:[#allocation14 + $0xe8] sm:$0xff]
        %v2860 = vld [vmem:[#allocation14 + $0xf0] sm:$0xff]
        %v2861 = vld [vmem:[#allocation14 + $0xf8] sm:$0xff]
        %v2862 = vld [vmem:[#allocation14 + $0x100] sm:$0xff]
        %v2863 = vld [vmem:[#allocation14 + $0x108] sm:$0xff]
        %v2864 = vld [vmem:[#allocation14 + $0x110] sm:$0xff]
        %v2865 = vld [vmem:[#allocation14 + $0x118] sm:$0xff]
        %v2866 = vld [vmem:[#allocation14 + $0x120] sm:$0xff]
        %v2867 = vld [vmem:[#allocation14 + $0x128] sm:$0xff]
        %v2868 = vld [vmem:[#allocation14 + $0x130] sm:$0xff]
        %v2869 = vld [vmem:[#allocation14 + $0x138] sm:$0xff]
        %v2870 = vld [vmem:[#allocation14 + $0x140] sm:$0xff]
        %v2871 = vld [vmem:[#allocation14 + $0x148] sm:$0xff]
        %v2872 = vld [vmem:[#allocation14 + $0x150] sm:$0xff]
        %v2873 = vld [vmem:[#allocation14 + $0x158] sm:$0xff]
        %v2874 = vld [vmem:[#allocation14 + $0x160] sm:$0xff]
        %v2875 = vld [vmem:[#allocation14 + $0x168] sm:$0xff]
        %v2876 = vld [vmem:[#allocation14 + $0x170] sm:$0xff]
        %v2877 = vld [vmem:[#allocation14 + $0x178] sm:$0xff]
        %v2878 = vld [vmem:[#allocation14 + $0x180] sm:$0xff]
        %v2879 = vld [vmem:[#allocation14 + $0x188] sm:$0xff]
        %v2880 = vld [vmem:[#allocation14 + $0x190] sm:$0xff]
        %v2881 = vld [vmem:[#allocation14 + $0x198] sm:$0xff]
        %v2882 = vld [vmem:[#allocation14 + $0x1a0] sm:$0xff]
        %v2883 = vld [vmem:[#allocation14 + $0x1a8] sm:$0xff]
        %v2884 = vld [vmem:[#allocation14 + $0x1b0] sm:$0xff]
        %v2885 = vld [vmem:[#allocation14 + $0x1b8] sm:$0xff]
        %v2886 = vld [vmem:[#allocation14 + $0x1c0] sm:$0xff]
        %v2887 = vld [vmem:[#allocation14 + $0x1c8] sm:$0xff]
        %v2888 = vld [vmem:[#allocation14 + $0x1d0] sm:$0xff]
        %v2889 = vld [vmem:[#allocation14 + $0x1d8] sm:$0xff]
        %v2890 = vld [vmem:[#allocation14 + $0x1e0] sm:$0xff]
        %v2891 = vld [vmem:[#allocation14 + $0x1e8] sm:$0xff]
        %v2892 = vld [vmem:[#allocation14 + $0x1f0] sm:$0xff]
        %v2893 = vld [vmem:[#allocation14 + $0x1f8] sm:$0xff]
        %v2894 = vld [vmem:[#allocation14 + $0x200] sm:$0xff]
        %v2895 = vld [vmem:[#allocation14 + $0x208] sm:$0xff]
        %v2896 = vld [vmem:[#allocation14 + $0x210] sm:$0xff]
        %v2897 = vld [vmem:[#allocation14 + $0x218] sm:$0xff]
        %v2898 = vld [vmem:[#allocation14 + $0x220] sm:$0xff]
        %v2899 = vld [vmem:[#allocation14 + $0x228] sm:$0xff]
        %v2900 = vld [vmem:[#allocation14 + $0x230] sm:$0xff]
        %v2901 = vld [vmem:[#allocation14 + $0x238] sm:$0xff]
        %v2902 = vld [vmem:[#allocation14 + $0x240] sm:$0xff]
        %v2903 = vld [vmem:[#allocation14 + $0x248] sm:$0xff]
        %v2904 = vld [vmem:[#allocation14 + $0x250] sm:$0xff]
        %v2905 = vld [vmem:[#allocation14 + $0x258] sm:$0xff]
        %v2906 = vld [vmem:[#allocation14 + $0x260] sm:$0xff]
        %v2907 = vld [vmem:[#allocation14 + $0x268] sm:$0xff]
        %v2908 = vld [vmem:[#allocation14 + $0x270] sm:$0xff]
        %v2909 = vld [vmem:[#allocation14 + $0x278] sm:$0xff]
        %v2910 = vld [vmem:[#allocation14 + $0x280] sm:$0xff]
        %v2911 = vld [vmem:[#allocation14 + $0x288] sm:$0xff]
        %v2912 = vld [vmem:[#allocation14 + $0x290] sm:$0xff]
        %v2913 = vld [vmem:[#allocation14 + $0x298] sm:$0xff]
        %v2914 = vld [vmem:[#allocation14 + $0x2a0] sm:$0xff]
        %v2915 = vld [vmem:[#allocation14 + $0x2a8] sm:$0xff]
        %v2916 = vld [vmem:[#allocation14 + $0x2b0] sm:$0xff]
        %v2917 = vld [vmem:[#allocation14 + $0x2b8] sm:$0xff]
        %v2918 = vld [vmem:[#allocation14 + $0x2c0] sm:$0xff]
        %v2919 = vld [vmem:[#allocation14 + $0x2c8] sm:$0xff]
        %v2920 = vld [vmem:[#allocation14 + $0x2d0] sm:$0xff]
        %v2921 = vld [vmem:[#allocation14 + $0x2d8] sm:$0xff]
        %v2922 = vld [vmem:[#allocation14 + $0x2e0] sm:$0xff]
        %v2923 = vld [vmem:[#allocation14 + $0x2e8] sm:$0xff]
        %v2924 = vld [vmem:[#allocation14 + $0x2f0] sm:$0xff]
        %v2925 = vld [vmem:[#allocation14 + $0x2f8] sm:$0xff]
        %2926 = vmatprep.subr.mxu0 0.0
        %2927 = vmatpush1.msra.mxu0 %v2830
        %2928 = vmatprep.subr.mxu0 0.0
        %2929 = vmatpush1.msra.mxu0 %v2831
        %2930 = vmatprep.subr.mxu0 0.0
        %2931 = vmatpush1.msra.mxu0 %v2832
        %2932 = vmatprep.subr.mxu0 0.0
        %2933 = vmatpush1.msra.mxu0 %v2833
        %2934 = vmatprep.subr.mxu0 0.0
        %2935 = vmatpush1.msra.mxu0 %v2834
        %2936 = vmatprep.subr.mxu0 0.0
        %2937 = vmatpush1.msra.mxu0 %v2835
        %2938 = vmatprep.subr.mxu0 0.0
        %2939 = vmatpush1.msra.mxu0 %v2836
        %2940 = vmatprep.subr.mxu0 0.0
        %2941 = vmatpush1.msra.mxu0 %v2837
        %2942 = vmatprep.subr.mxu0 0.0
        %2943 = vmatpush1.msra.mxu0 %v2838
        %2944 = vmatprep.subr.mxu0 0.0
        %2945 = vmatpush1.msra.mxu0 %v2839
        %2946 = vmatprep.subr.mxu0 0.0
        %2947 = vmatpush1.msra.mxu0 %v2840
        %2948 = vmatprep.subr.mxu0 0.0
        %2949 = vmatpush1.msra.mxu0 %v2841
        %2950 = vmatprep.subr.mxu0 0.0
        %2951 = vmatpush1.msra.mxu0 %v2842
        %2952 = vmatprep.subr.mxu0 0.0
        %2953 = vmatpush1.msra.mxu0 %v2843
        %2954 = vmatprep.subr.mxu0 0.0
        %2955 = vmatpush1.msra.mxu0 %v2844
        %2956 = vmatprep.subr.mxu0 0.0
        %2957 = vmatpush1.msra.mxu0 %v2845
        %2958 = vmatprep.subr.mxu0 0.0
        %2959 = vmatpush1.msra.mxu0 %v2846
        %2960 = vmatprep.subr.mxu0 0.0
        %2961 = vmatpush1.msra.mxu0 %v2847
        %2962 = vmatprep.subr.mxu0 0.0
        %2963 = vmatpush1.msra.mxu0 %v2848
        %2964 = vmatprep.subr.mxu0 0.0
        %2965 = vmatpush1.msra.mxu0 %v2849
        %2966 = vmatprep.subr.mxu0 0.0
        %2967 = vmatpush1.msra.mxu0 %v2850
        %2968 = vmatprep.subr.mxu0 0.0
        %2969 = vmatpush1.msra.mxu0 %v2851
        %2970 = vmatprep.subr.mxu0 0.0
        %2971 = vmatpush1.msra.mxu0 %v2852
        %2972 = vmatprep.subr.mxu0 0.0
        %2973 = vmatpush1.msra.mxu0 %v2853
        %2974 = vmatprep.subr.mxu0 0.0
        %2975 = vmatpush1.msra.mxu0 %v2854
        %2976 = vmatprep.subr.mxu0 0.0
        %2977 = vmatpush1.msra.mxu0 %v2855
        %2978 = vmatprep.subr.mxu0 0.0
        %2979 = vmatpush1.msra.mxu0 %v2856
        %2980 = vmatprep.subr.mxu0 0.0
        %2981 = vmatpush1.msra.mxu0 %v2857
        %2982 = vmatprep.subr.mxu0 0.0
        %2983 = vmatpush1.msra.mxu0 %v2858
        %2984 = vmatprep.subr.mxu0 0.0
        %2985 = vmatpush1.msra.mxu0 %v2859
        %2986 = vmatprep.subr.mxu0 0.0
        %2987 = vmatpush1.msra.mxu0 %v2860
        %2988 = vmatprep.subr.mxu0 0.0
        %2989 = vmatpush1.msra.mxu0 %v2861
        %2990 = vmatprep.mubr.f32.mxu0 %v2243
        %2991 = vmatmul.mubr.f32.gmra.mrb[0].mxu0 %v2241
        %v2992 = vpop.f32.mrb[0].mxu0
        %v2993 = vadd.f32 0.0, %v2992
        %v2994 = vpop.f32.mrb[0].mxu0
        %2995 = vdwg.mxu0
        %2996 = vmatprep.subr.mxu0 0.0
        %2997 = vmatpush1.msra.mxu0 %v2862
        %2998 = vmatprep.subr.mxu0 0.0
        %2999 = vmatpush1.msra.mxu0 %v2863
        %3000 = vmatprep.subr.mxu0 0.0
        %3001 = vmatpush1.msra.mxu0 %v2864
        %3002 = vmatprep.subr.mxu0 0.0
        %3003 = vmatpush1.msra.mxu0 %v2865
        %3004 = vmatprep.subr.mxu0 0.0
        %3005 = vmatpush1.msra.mxu0 %v2866
        %3006 = vmatprep.subr.mxu0 0.0
        %3007 = vmatpush1.msra.mxu0 %v2867
        %3008 = vmatprep.subr.mxu0 0.0
        %3009 = vmatpush1.msra.mxu0 %v2868
        %3010 = vmatprep.subr.mxu0 0.0
        %3011 = vmatpush1.msra.mxu0 %v2869
        %3012 = vmatprep.subr.mxu0 0.0
        %3013 = vmatpush1.msra.mxu0 %v2870
        %3014 = vmatprep.subr.mxu0 0.0
        %3015 = vmatpush1.msra.mxu0 %v2871
        %3016 = vmatprep.subr.mxu0 0.0
        %3017 = vmatpush1.msra.mxu0 %v2872
        %3018 = vmatprep.subr.mxu0 0.0
        %3019 = vmatpush1.msra.mxu0 %v2873
        %3020 = vmatprep.subr.mxu0 0.0
        %3021 = vmatpush1.msra.mxu0 %v2874
        %3022 = vmatprep.subr.mxu0 0.0
        %3023 = vmatpush1.msra.mxu0 %v2875
        %3024 = vmatprep.subr.mxu0 0.0
        %3025 = vmatpush1.msra.mxu0 %v2876
        %3026 = vmatprep.subr.mxu0 0.0
        %3027 = vmatpush1.msra.mxu0 %v2877
        %3028 = vmatprep.subr.mxu0 0.0
        %3029 = vmatpush1.msra.mxu0 %v2878
        %3030 = vmatprep.subr.mxu0 0.0
        %3031 = vmatpush1.msra.mxu0 %v2879
        %3032 = vmatprep.subr.mxu0 0.0
        %3033 = vmatpush1.msra.mxu0 %v2880
        %3034 = vmatprep.subr.mxu0 0.0
        %3035 = vmatpush1.msra.mxu0 %v2881
        %3036 = vmatprep.subr.mxu0 0.0
        %3037 = vmatpush1.msra.mxu0 %v2882
        %3038 = vmatprep.subr.mxu0 0.0
        %3039 = vmatpush1.msra.mxu0 %v2883
        %3040 = vmatprep.subr.mxu0 0.0
        %3041 = vmatpush1.msra.mxu0 %v2884
        %3042 = vmatprep.subr.mxu0 0.0
        %3043 = vmatpush1.msra.mxu0 %v2885
        %3044 = vmatprep.subr.mxu0 0.0
        %3045 = vmatpush1.msra.mxu0 %v2886
        %3046 = vmatprep.subr.mxu0 0.0
        %3047 = vmatpush1.msra.mxu0 %v2887
        %3048 = vmatprep.subr.mxu0 0.0
        %3049 = vmatpush1.msra.mxu0 %v2888
        %3050 = vmatprep.subr.mxu0 0.0
        %3051 = vmatpush1.msra.mxu0 %v2889
        %3052 = vmatprep.subr.mxu0 0.0
        %3053 = vmatpush1.msra.mxu0 %v2890
        %3054 = vmatprep.subr.mxu0 0.0
        %3055 = vmatpush1.msra.mxu0 %v2891
        %3056 = vmatprep.subr.mxu0 0.0
        %3057 = vmatpush1.msra.mxu0 %v2892
        %3058 = vmatprep.subr.mxu0 0.0
        %3059 = vmatpush1.msra.mxu0 %v2893
        %3060 = vmatprep.mubr.f32.mxu0 %v2456
        %3061 = vmatmul.mubr.f32.gmra.mrb[0].mxu0 %v2454
        %v3062 = vpop.f32.mrb[0].mxu0
        %v3063 = vadd.f32 %v2993, %v3062
        %v3064 = vpop.f32.mrb[0].mxu0
        %3065 = vdwg.mxu0
        %3066 = vmatprep.subr.mxu0 0.0
        %3067 = vmatpush1.msra.mxu0 %v2894
        %3068 = vmatprep.subr.mxu0 0.0
        %3069 = vmatpush1.msra.mxu0 %v2895
        %3070 = vmatprep.subr.mxu0 0.0
        %3071 = vmatpush1.msra.mxu0 %v2896
        %3072 = vmatprep.subr.mxu0 0.0
        %3073 = vmatpush1.msra.mxu0 %v2897
        %3074 = vmatprep.subr.mxu0 0.0
        %3075 = vmatpush1.msra.mxu0 %v2898
        %3076 = vmatprep.subr.mxu0 0.0
        %3077 = vmatpush1.msra.mxu0 %v2899
        %3078 = vmatprep.subr.mxu0 0.0
        %3079 = vmatpush1.msra.mxu0 %v2900
        %3080 = vmatprep.subr.mxu0 0.0
        %3081 = vmatpush1.msra.mxu0 %v2901
        %3082 = vmatprep.subr.mxu0 0.0
        %3083 = vmatpush1.msra.mxu0 %v2902
        %3084 = vmatprep.subr.mxu0 0.0
        %3085 = vmatpush1.msra.mxu0 %v2903
        %3086 = vmatprep.subr.mxu0 0.0
        %3087 = vmatpush1.msra.mxu0 %v2904
        %3088 = vmatprep.subr.mxu0 0.0
        %3089 = vmatpush1.msra.mxu0 %v2905
        %3090 = vmatprep.subr.mxu0 0.0
        %3091 = vmatpush1.msra.mxu0 %v2906
        %3092 = vmatprep.subr.mxu0 0.0
        %3093 = vmatpush1.msra.mxu0 %v2907
        %3094 = vmatprep.subr.mxu0 0.0
        %3095 = vmatpush1.msra.mxu0 %v2908
        %3096 = vmatprep.subr.mxu0 0.0
        %3097 = vmatpush1.msra.mxu0 %v2909
        %3098 = vmatprep.subr.mxu0 0.0
        %3099 = vmatpush1.msra.mxu0 %v2910
        %3100 = vmatprep.subr.mxu0 0.0
        %3101 = vmatpush1.msra.mxu0 %v2911
        %3102 = vmatprep.subr.mxu0 0.0
        %3103 = vmatpush1.msra.mxu0 %v2912
        %3104 = vmatprep.subr.mxu0 0.0
        %3105 = vmatpush1.msra.mxu0 %v2913
        %3106 = vmatprep.subr.mxu0 0.0
        %3107 = vmatpush1.msra.mxu0 %v2914
        %3108 = vmatprep.subr.mxu0 0.0
        %3109 = vmatpush1.msra.mxu0 %v2915
        %3110 = vmatprep.subr.mxu0 0.0
        %3111 = vmatpush1.msra.mxu0 %v2916
        %3112 = vmatprep.subr.mxu0 0.0
        %3113 = vmatpush1.msra.mxu0 %v2917
        %3114 = vmatprep.subr.mxu0 0.0
        %3115 = vmatpush1.msra.mxu0 %v2918
        %3116 = vmatprep.subr.mxu0 0.0
        %3117 = vmatpush1.msra.mxu0 %v2919
        %3118 = vmatprep.subr.mxu0 0.0
        %3119 = vmatpush1.msra.mxu0 %v2920
        %3120 = vmatprep.subr.mxu0 0.0
        %3121 = vmatpush1.msra.mxu0 %v2921
        %3122 = vmatprep.subr.mxu0 0.0
        %3123 = vmatpush1.msra.mxu0 %v2922
        %3124 = vmatprep.subr.mxu0 0.0
        %3125 = vmatpush1.msra.mxu0 %v2923
        %3126 = vmatprep.subr.mxu0 0.0
        %3127 = vmatpush1.msra.mxu0 %v2924
        %3128 = vmatprep.subr.mxu0 0.0
        %3129 = vmatpush1.msra.mxu0 %v2925
        %3130 = vmatprep.mubr.f32.mxu0 %v2669
        %3131 = vmatmul.mubr.f32.gmra.mrb[0].mxu0 %v2667
        %v3132 = vpop.f32.mrb[0].mxu0
        %v3133 = vadd.f32 %v3063, %v3132
        %v3134 = vpop.f32.mrb[0].mxu0
        %3135 = vdwg.mxu0
        %v3136 = vadd.f32 %v2827, %v3133
        %v3137 = vld [vmem:[#allocation17] sm:$0x1]
        %v3139 = vlaneseq
        %v3140 = vshrl.u32 %v3139, 7
        %v3141 = vsub.s32 0, %v3140
        %v3142 = vrot.slane %v3137, %v3141
        %v3144 = vadd.f32 %v3136, %v3142
        %v3145 = vld [vmem:[%s923] sm:$0x3]
        %v3146 = vld [vmem:[%s927] sm:$0x3]
        %v3147 = vld [vmem:[#allocation16] sm:$0xff]
        %v3148 = vld [vmem:[#allocation16 + $0x8] sm:$0xff]
        %v3149 = vld [vmem:[#allocation16 + $0x10] sm:$0xff]
        %v3150 = vld [vmem:[#allocation16 + $0x18] sm:$0xff]
        %v3151 = vld [vmem:[#allocation19] sm:$0xff]
        %v3152 = vld [vmem:[#allocation19 + $0x8] sm:$0xff]
        %v3153 = vld [vmem:[#allocation19 + $0x10] sm:$0xff]
        %v3154 = vld [vmem:[#allocation19 + $0x18] sm:$0xff]
        %v3155 = vld [vmem:[#allocation20] sm:$0xff]
        %v3156 = vld [vmem:[#allocation20 + $0x8] sm:$0xff]
        %v3157 = vld [vmem:[#allocation20 + $0x10] sm:$0xff]
        %v3158 = vld [vmem:[#allocation20 + $0x18] sm:$0xff]
        %v3159 = vld [vmem:[#allocation22] sm:$0x1]
        %vm3160 = vcmask 261120
        %v3162 = vsel %vm3160, %v3145, 0
        %3164 = vmatprep.subr.mxu0 0.0
        %3165 = vmatpush1.msra.mxu0 %v3147
        %3166 = vmatprep.subr.mxu0 0.0
        %3167 = vmatpush1.msra.mxu0 %v3148
        %3168 = vmatprep.subr.mxu0 0.0
        %3169 = vmatpush1.msra.mxu0 %v3149
        %3170 = vmatprep.subr.mxu0 0.0
        %3171 = vmatpush1.msra.mxu0 %v3150
        %3172 = vmatprep.subr.mxu0 0.0
        %3173 = vmatpush1.msra.mxu0 0.0
        %3174 = vmatprep.subr.mxu0 0.0
        %3175 = vmatpush1.msra.mxu0 0.0
        %3176 = vmatprep.subr.mxu0 0.0
        %3177 = vmatpush1.msra.mxu0 0.0
        %3178 = vmatprep.subr.mxu0 0.0
        %3179 = vmatpush1.msra.mxu0 0.0
        %3180 = vmatprep.subr.mxu0 0.0
        %3181 = vmatpush1.msra.mxu0 0.0
        %3182 = vmatprep.subr.mxu0 0.0
        %3183 = vmatpush1.msra.mxu0 0.0
        %3184 = vmatprep.subr.mxu0 0.0
        %3185 = vmatpush1.msra.mxu0 0.0
        %3186 = vmatprep.subr.mxu0 0.0
        %3187 = vmatpush1.msra.mxu0 0.0
        %3188 = vmatprep.subr.mxu0 0.0
        %3189 = vmatpush1.msra.mxu0 0.0
        %3190 = vmatprep.subr.mxu0 0.0
        %3191 = vmatpush1.msra.mxu0 0.0
        %3192 = vmatprep.subr.mxu0 0.0
        %3193 = vmatpush1.msra.mxu0 0.0
        %3194 = vmatprep.subr.mxu0 0.0
        %3195 = vmatpush1.msra.mxu0 0.0
        %3196 = vmatprep.subr.mxu0 0.0
        %3197 = vmatpush1.msra.mxu0 0.0
        %3198 = vmatprep.subr.mxu0 0.0
        %3199 = vmatpush1.msra.mxu0 0.0
        %3200 = vmatprep.subr.mxu0 0.0
        %3201 = vmatpush1.msra.mxu0 0.0
        %3202 = vmatprep.subr.mxu0 0.0
        %3203 = vmatpush1.msra.mxu0 0.0
        %3204 = vmatprep.subr.mxu0 0.0
        %3205 = vmatpush1.msra.mxu0 0.0
        %3206 = vmatprep.subr.mxu0 0.0
        %3207 = vmatpush1.msra.mxu0 0.0
        %3208 = vmatprep.subr.mxu0 0.0
        %3209 = vmatpush1.msra.mxu0 0.0
        %3210 = vmatprep.subr.mxu0 0.0
        %3211 = vmatpush1.msra.mxu0 0.0
        %3212 = vmatprep.subr.mxu0 0.0
        %3213 = vmatpush1.msra.mxu0 0.0
        %3214 = vmatprep.subr.mxu0 0.0
        %3215 = vmatpush1.msra.mxu0 0.0
        %3216 = vmatprep.subr.mxu0 0.0
        %3217 = vmatpush1.msra.mxu0 0.0
        %3218 = vmatprep.subr.mxu0 0.0
        %3219 = vmatpush1.msra.mxu0 0.0
        %3220 = vmatprep.subr.mxu0 0.0
        %3221 = vmatpush1.msra.mxu0 0.0
        %3222 = vmatprep.subr.mxu0 0.0
        %3223 = vmatpush1.msra.mxu0 0.0
        %3224 = vmatprep.subr.mxu0 0.0
        %3225 = vmatpush1.msra.mxu0 0.0
        %3226 = vmatprep.subr.mxu0 0.0
        %3227 = vmatpush1.msra.mxu0 0.0
        %3228 = vmatprep.mubr.f32.mxu0 0.0
        %3229 = vmatmul.mubr.f32.gmra.mrb[0].mxu0 %v3162
        %v3230 = vpop.f32.mrb[0].mxu0
        %v3231 = vadd.f32 0.0, %v3230
        %v3232 = vpop.f32.mrb[0].mxu0
        %3233 = vdwg.mxu0
        %v3234 = vadd.f32 %v3144, %v3231
        %v3235 = vxor.u32 %v3234, 2147483648
        %v3236 = vmul.f32 %v3235, 1.442695
        %v3237 = vpow.pop %v3236
        %v3238 = vadd.f32 %v3237, 1.0
        %v3239 = vrcp.pop %v3238
        %v3240 = vmul.f32 1.0, %v3239
        %v3241 = vtanh.pop %v3234
        %3243 = vrot.lane.b32.xlu0 %v3146, 32
        %v3244 = vpop.permute.xlu0 %3243
        %v3246 = vmul.f32 %v3240, %v3244
        %3248 = vrot.lane.b32.xlu0 %v3241, 64
        %v3249 = vpop.permute.xlu0 %3248
        %v3251 = vmul.f32 %v3240, %v3249
        %3253 = vrot.lane.b32.xlu0 %v3251, 32
        %v3254 = vpop.permute.xlu0 %3253
        %v3256 = vadd.f32 %v3246, %v3254
        %v3257 = vtanh.pop %v3256
        %3259 = vrot.lane.b32.xlu0 %v3257, 64
        %v3260 = vpop.permute.xlu0 %3259
        %v3262 = vmul.f32 %v3240, %v3260
        %v3263 = vrot.slane %v3145, 1
        %v3264 = vsel %vm3160, %v3263, 0
        %3266 = vmatprep.subr.mxu0 0.0
        %3267 = vmatpush1.msra.mxu0 %v3155
        %3268 = vmatprep.subr.mxu0 0.0
        %3269 = vmatpush1.msra.mxu0 %v3156
        %3270 = vmatprep.subr.mxu0 0.0
        %3271 = vmatpush1.msra.mxu0 %v3157
        %3272 = vmatprep.subr.mxu0 0.0
        %3273 = vmatpush1.msra.mxu0 %v3158
        %3274 = vmatprep.subr.mxu0 0.0
        %3275 = vmatpush1.msra.mxu0 0.0
        %3276 = vmatprep.subr.mxu0 0.0
        %3277 = vmatpush1.msra.mxu0 0.0
        %3278 = vmatprep.subr.mxu0 0.0
        %3279 = vmatpush1.msra.mxu0 0.0
        %3280 = vmatprep.subr.mxu0 0.0
        %3281 = vmatpush1.msra.mxu0 0.0
        %3282 = vmatprep.subr.mxu0 0.0
        %3283 = vmatpush1.msra.mxu0 0.0
        %3284 = vmatprep.subr.mxu0 0.0
        %3285 = vmatpush1.msra.mxu0 0.0
        %3286 = vmatprep.subr.mxu0 0.0
        %3287 = vmatpush1.msra.mxu0 0.0
        %3288 = vmatprep.subr.mxu0 0.0
        %3289 = vmatpush1.msra.mxu0 0.0
        %3290 = vmatprep.subr.mxu0 0.0
        %3291 = vmatpush1.msra.mxu0 0.0
        %3292 = vmatprep.subr.mxu0 0.0
        %3293 = vmatpush1.msra.mxu0 0.0
        %3294 = vmatprep.subr.mxu0 0.0
        %3295 = vmatpush1.msra.mxu0 0.0
        %3296 = vmatprep.subr.mxu0 0.0
        %3297 = vmatpush1.msra.mxu0 0.0
        %3298 = vmatprep.subr.mxu0 0.0
        %3299 = vmatpush1.msra.mxu0 0.0
        %3300 = vmatprep.subr.mxu0 0.0
        %3301 = vmatpush1.msra.mxu0 0.0
        %3302 = vmatprep.subr.mxu0 0.0
        %3303 = vmatpush1.msra.mxu0 0.0
        %3304 = vmatprep.subr.mxu0 0.0
        %3305 = vmatpush1.msra.mxu0 0.0
        %3306 = vmatprep.subr.mxu0 0.0
        %3307 = vmatpush1.msra.mxu0 0.0
        %3308 = vmatprep.subr.mxu0 0.0
        %3309 = vmatpush1.msra.mxu0 0.0
        %3310 = vmatprep.subr.mxu0 0.0
        %3311 = vmatpush1.msra.mxu0 0.0
        %3312 = vmatprep.subr.mxu0 0.0
        %3313 = vmatpush1.msra.mxu0 0.0
        %3314 = vmatprep.subr.mxu0 0.0
        %3315 = vmatpush1.msra.mxu0 0.0
        %3316 = vmatprep.subr.mxu0 0.0
        %3317 = vmatpush1.msra.mxu0 0.0
        %3318 = vmatprep.subr.mxu0 0.0
        %3319 = vmatpush1.msra.mxu0 0.0
        %3320 = vmatprep.subr.mxu0 0.0
        %3321 = vmatpush1.msra.mxu0 0.0
        %3322 = vmatprep.subr.mxu0 0.0
        %3323 = vmatpush1.msra.mxu0 0.0
        %3324 = vmatprep.subr.mxu0 0.0
        %3325 = vmatpush1.msra.mxu0 0.0
        %3326 = vmatprep.subr.mxu0 0.0
        %3327 = vmatpush1.msra.mxu0 0.0
        %3328 = vmatprep.subr.mxu0 0.0
        %3329 = vmatpush1.msra.mxu0 0.0
        %3330 = vmatprep.mubr.f32.mxu0 0.0
        %3331 = vmatmul.mubr.f32.gmra.mrb[0].mxu0 %v3264
        %v3332 = vpop.f32.mrb[0].mxu0
        %v3333 = vadd.f32 0.0, %v3332
        %v3334 = vpop.f32.mrb[0].mxu0
        %3335 = vdwg.mxu0
        %3337 = vrot.lane.b32.xlu0 %v3262, 32
        %v3338 = vpop.permute.xlu0 %3337
        %v3339 = vsel %vm3160, %v3338, 0
        %3341 = vmatprep.subr.mxu0 0.0
        %3342 = vmatpush1.msra.mxu0 %v3151
        %3343 = vmatprep.subr.mxu0 0.0
        %3344 = vmatpush1.msra.mxu0 %v3152
        %3345 = vmatprep.subr.mxu0 0.0
        %3346 = vmatpush1.msra.mxu0 %v3153
        %3347 = vmatprep.subr.mxu0 0.0
        %3348 = vmatpush1.msra.mxu0 %v3154
        %3349 = vmatprep.subr.mxu0 0.0
        %3350 = vmatpush1.msra.mxu0 0.0
        %3351 = vmatprep.subr.mxu0 0.0
        %3352 = vmatpush1.msra.mxu0 0.0
        %3353 = vmatprep.subr.mxu0 0.0
        %3354 = vmatpush1.msra.mxu0 0.0
        %3355 = vmatprep.subr.mxu0 0.0
        %3356 = vmatpush1.msra.mxu0 0.0
        %3357 = vmatprep.subr.mxu0 0.0
        %3358 = vmatpush1.msra.mxu0 0.0
        %3359 = vmatprep.subr.mxu0 0.0
        %3360 = vmatpush1.msra.mxu0 0.0
        %3361 = vmatprep.subr.mxu0 0.0
        %3362 = vmatpush1.msra.mxu0 0.0
        %3363 = vmatprep.subr.mxu0 0.0
        %3364 = vmatpush1.msra.mxu0 0.0
        %3365 = vmatprep.subr.mxu0 0.0
        %3366 = vmatpush1.msra.mxu0 0.0
        %3367 = vmatprep.subr.mxu0 0.0
        %3368 = vmatpush1.msra.mxu0 0.0
        %3369 = vmatprep.subr.mxu0 0.0
        %3370 = vmatpush1.msra.mxu0 0.0
        %3371 = vmatprep.subr.mxu0 0.0
        %3372 = vmatpush1.msra.mxu0 0.0
        %3373 = vmatprep.subr.mxu0 0.0
        %3374 = vmatpush1.msra.mxu0 0.0
        %3375 = vmatprep.subr.mxu0 0.0
        %3376 = vmatpush1.msra.mxu0 0.0
        %3377 = vmatprep.subr.mxu0 0.0
        %3378 = vmatpush1.msra.mxu0 0.0
        %3379 = vmatprep.subr.mxu0 0.0
        %3380 = vmatpush1.msra.mxu0 0.0
        %3381 = vmatprep.subr.mxu0 0.0
        %3382 = vmatpush1.msra.mxu0 0.0
        %3383 = vmatprep.subr.mxu0 0.0
        %3384 = vmatpush1.msra.mxu0 0.0
        %3385 = vmatprep.subr.mxu0 0.0
        %3386 = vmatpush1.msra.mxu0 0.0
        %3387 = vmatprep.subr.mxu0 0.0
        %3388 = vmatpush1.msra.mxu0 0.0
        %3389 = vmatprep.subr.mxu0 0.0
        %3390 = vmatpush1.msra.mxu0 0.0
        %3391 = vmatprep.subr.mxu0 0.0
        %3392 = vmatpush1.msra.mxu0 0.0
        %3393 = vmatprep.subr.mxu0 0.0
        %3394 = vmatpush1.msra.mxu0 0.0
        %3395 = vmatprep.subr.mxu0 0.0
        %3396 = vmatpush1.msra.mxu0 0.0
        %3397 = vmatprep.subr.mxu0 0.0
        %3398 = vmatpush1.msra.mxu0 0.0
        %3399 = vmatprep.subr.mxu0 0.0
        %3400 = vmatpush1.msra.mxu0 0.0
        %3401 = vmatprep.subr.mxu0 0.0
        %3402 = vmatpush1.msra.mxu0 0.0
        %3403 = vmatprep.subr.mxu0 0.0
        %3404 = vmatpush1.msra.mxu0 0.0
        %3405 = vmatprep.mubr.f32.mxu0 0.0
        %3406 = vmatmul.mubr.f32.gmra.mrb[0].mxu0 %v3339
        %v3407 = vpop.f32.mrb[0].mxu0
        %v3408 = vadd.f32 %v3333, %v3407
        %v3409 = vpop.f32.mrb[0].mxu0
        %3410 = vdwg.mxu0
        %v3411 = vadd.f32 %v3408, %v3159
        %v3412 = vxor.u32 %v3411, 2147483648
        %v3413 = vmul.f32 %v3412, 1.442695
        %v3414 = vpow.pop %v3413
        %v3415 = vadd.f32 %v3414, 1.0
        %v3416 = vrcp.pop %v3415
        %v3417 = vmul.f32 1.0, %v3416
        %v3418 = vtanh.pop %v3411
        %v3419 = vrot.slane %v3146, 1
        %3420 = vrot.lane.b32.xlu0 %v3419, 32
        %v3421 = vpop.permute.xlu0 %3420
        %v3423 = vmul.f32 %v3417, %v3421
        %3425 = vrot.lane.b32.xlu0 %v3418, 64
        %v3426 = vpop.permute.xlu0 %3425
        %v3428 = vmul.f32 %v3417, %v3426
        %3430 = vrot.lane.b32.xlu0 %v3428, 32
        %v3431 = vpop.permute.xlu0 %3430
        %v3433 = vadd.f32 %v3423, %v3431
        %v3434 = vtanh.pop %v3433
        %3436 = vrot.lane.b32.xlu0 %v3434, 64
        %v3437 = vpop.permute.xlu0 %3436
        %v3439 = vmul.f32 %v3417, %v3437
        %3440 = vmatprep.subr.mxu0 0.0
        %3441 = vmatpush1.msra.mxu0 %v3147
        %3442 = vmatprep.subr.mxu0 0.0
        %3443 = vmatpush1.msra.mxu0 %v3148
        %3444 = vmatprep.subr.mxu0 0.0
        %3445 = vmatpush1.msra.mxu0 %v3149
        %3446 = vmatprep.subr.mxu0 0.0
        %3447 = vmatpush1.msra.mxu0 %v3150
        %3448 = vmatprep.subr.mxu0 0.0
        %3449 = vmatpush1.msra.mxu0 0.0
        %3450 = vmatprep.subr.mxu0 0.0
        %3451 = vmatpush1.msra.mxu0 0.0
        %3452 = vmatprep.subr.mxu0 0.0
        %3453 = vmatpush1.msra.mxu0 0.0
        %3454 = vmatprep.subr.mxu0 0.0
        %3455 = vmatpush1.msra.mxu0 0.0
        %3456 = vmatprep.subr.mxu0 0.0
        %3457 = vmatpush1.msra.mxu0 0.0
        %3458 = vmatprep.subr.mxu0 0.0
        %3459 = vmatpush1.msra.mxu0 0.0
        %3460 = vmatprep.subr.mxu0 0.0
        %3461 = vmatpush1.msra.mxu0 0.0
        %3462 = vmatprep.subr.mxu0 0.0
        %3463 = vmatpush1.msra.mxu0 0.0
        %3464 = vmatprep.subr.mxu0 0.0
        %3465 = vmatpush1.msra.mxu0 0.0
        %3466 = vmatprep.subr.mxu0 0.0
        %3467 = vmatpush1.msra.mxu0 0.0
        %3468 = vmatprep.subr.mxu0 0.0
        %3469 = vmatpush1.msra.mxu0 0.0
        %3470 = vmatprep.subr.mxu0 0.0
        %3471 = vmatpush1.msra.mxu0 0.0
        %3472 = vmatprep.subr.mxu0 0.0
        %3473 = vmatpush1.msra.mxu0 0.0
        %3474 = vmatprep.subr.mxu0 0.0
        %3475 = vmatpush1.msra.mxu0 0.0
        %3476 = vmatprep.subr.mxu0 0.0
        %3477 = vmatpush1.msra.mxu0 0.0
        %3478 = vmatprep.subr.mxu0 0.0
        %3479 = vmatpush1.msra.mxu0 0.0
        %3480 = vmatprep.subr.mxu0 0.0
        %3481 = vmatpush1.msra.mxu0 0.0
        %3482 = vmatprep.subr.mxu0 0.0
        %3483 = vmatpush1.msra.mxu0 0.0
        %3484 = vmatprep.subr.mxu0 0.0
        %3485 = vmatpush1.msra.mxu0 0.0
        %3486 = vmatprep.subr.mxu0 0.0
        %3487 = vmatpush1.msra.mxu0 0.0
        %3488 = vmatprep.subr.mxu0 0.0
        %3489 = vmatpush1.msra.mxu0 0.0
        %3490 = vmatprep.subr.mxu0 0.0
        %3491 = vmatpush1.msra.mxu0 0.0
        %3492 = vmatprep.subr.mxu0 0.0
        %3493 = vmatpush1.msra.mxu0 0.0
        %3494 = vmatprep.subr.mxu0 0.0
        %3495 = vmatpush1.msra.mxu0 0.0
        %3496 = vmatprep.subr.mxu0 0.0
        %3497 = vmatpush1.msra.mxu0 0.0
        %3498 = vmatprep.subr.mxu0 0.0
        %3499 = vmatpush1.msra.mxu0 0.0
        %3500 = vmatprep.subr.mxu0 0.0
        %3501 = vmatpush1.msra.mxu0 0.0
        %3502 = vmatprep.subr.mxu0 0.0
        %3503 = vmatpush1.msra.mxu0 0.0
        %3504 = vmatprep.mubr.f32.mxu0 0.0
        %3505 = vmatmul.mubr.f32.gmra.mrb[0].mxu0 %v3339
        %v3506 = vpop.f32.mrb[0].mxu0
        %v3507 = vadd.f32 0.0, %v3506
        %v3508 = vpop.f32.mrb[0].mxu0
        %3509 = vdwg.mxu0
        %v3511 = vrot.slane %v3507, 7
        %v3513 = vadd.f32 %v3144, %v3511
        %v3514 = vxor.u32 %v3513, 2147483648
        %v3515 = vmul.f32 %v3514, 1.442695
        %v3516 = vpow.pop %v3515
        %v3517 = vadd.f32 %v3516, 1.0
        %v3518 = vrcp.pop %v3517
        %v3519 = vmul.f32 1.0, %v3518
        %v3520 = vtanh.pop %v3513
        %v3522 = vrot.slane %v3256, 7
        %v3524 = vmul.f32 %v3519, %v3522
        %3526 = vrot.lane.b32.xlu0 %v3520, 64
        %v3527 = vpop.permute.xlu0 %3526
        %v3529 = vmul.f32 %v3519, %v3527
        %3531 = vrot.lane.b32.xlu0 %v3529, 32
        %v3532 = vpop.permute.xlu0 %3531
        %v3534 = vadd.f32 %v3524, %v3532
        %v3535 = vtanh.pop %v3534
        %3537 = vrot.lane.b32.xlu0 %v3535, 64
        %v3538 = vpop.permute.xlu0 %3537
        %v3540 = vmul.f32 %v3519, %v3538
        %3542 = vrot.lane.b32.xlu0 %v3439, 32
        %v3543 = vpop.permute.xlu0 %3542
        %v3544 = vsel %vm3160, %v3543, 0
        %3546 = vmatprep.subr.mxu0 0.0
        %3547 = vmatpush1.msra.mxu0 %v3155
        %3548 = vmatprep.subr.mxu0 0.0
        %3549 = vmatpush1.msra.mxu0 %v3156
        %3550 = vmatprep.subr.mxu0 0.0
        %3551 = vmatpush1.msra.mxu0 %v3157
        %3552 = vmatprep.subr.mxu0 0.0
        %3553 = vmatpush1.msra.mxu0 %v3158
        %3554 = vmatprep.subr.mxu0 0.0
        %3555 = vmatpush1.msra.mxu0 0.0
        %3556 = vmatprep.subr.mxu0 0.0
        %3557 = vmatpush1.msra.mxu0 0.0
        %3558 = vmatprep.subr.mxu0 0.0
        %3559 = vmatpush1.msra.mxu0 0.0
        %3560 = vmatprep.subr.mxu0 0.0
        %3561 = vmatpush1.msra.mxu0 0.0
        %3562 = vmatprep.subr.mxu0 0.0
        %3563 = vmatpush1.msra.mxu0 0.0
        %3564 = vmatprep.subr.mxu0 0.0
        %3565 = vmatpush1.msra.mxu0 0.0
        %3566 = vmatprep.subr.mxu0 0.0
        %3567 = vmatpush1.msra.mxu0 0.0
        %3568 = vmatprep.subr.mxu0 0.0
        %3569 = vmatpush1.msra.mxu0 0.0
        %3570 = vmatprep.subr.mxu0 0.0
        %3571 = vmatpush1.msra.mxu0 0.0
        %3572 = vmatprep.subr.mxu0 0.0
        %3573 = vmatpush1.msra.mxu0 0.0
        %3574 = vmatprep.subr.mxu0 0.0
        %3575 = vmatpush1.msra.mxu0 0.0
        %3576 = vmatprep.subr.mxu0 0.0
        %3577 = vmatpush1.msra.mxu0 0.0
        %3578 = vmatprep.subr.mxu0 0.0
        %3579 = vmatpush1.msra.mxu0 0.0
        %3580 = vmatprep.subr.mxu0 0.0
        %3581 = vmatpush1.msra.mxu0 0.0
        %3582 = vmatprep.subr.mxu0 0.0
        %3583 = vmatpush1.msra.mxu0 0.0
        %3584 = vmatprep.subr.mxu0 0.0
        %3585 = vmatpush1.msra.mxu0 0.0
        %3586 = vmatprep.subr.mxu0 0.0
        %3587 = vmatpush1.msra.mxu0 0.0
        %3588 = vmatprep.subr.mxu0 0.0
        %3589 = vmatpush1.msra.mxu0 0.0
        %3590 = vmatprep.subr.mxu0 0.0
        %3591 = vmatpush1.msra.mxu0 0.0
        %3592 = vmatprep.subr.mxu0 0.0
        %3593 = vmatpush1.msra.mxu0 0.0
        %3594 = vmatprep.subr.mxu0 0.0
        %3595 = vmatpush1.msra.mxu0 0.0
        %3596 = vmatprep.subr.mxu0 0.0
        %3597 = vmatpush1.msra.mxu0 0.0
        %3598 = vmatprep.subr.mxu0 0.0
        %3599 = vmatpush1.msra.mxu0 0.0
        %3600 = vmatprep.subr.mxu0 0.0
        %3601 = vmatpush1.msra.mxu0 0.0
        %3602 = vmatprep.subr.mxu0 0.0
        %3603 = vmatpush1.msra.mxu0 0.0
        %3604 = vmatprep.subr.mxu0 0.0
        %3605 = vmatpush1.msra.mxu0 0.0
        %3606 = vmatprep.subr.mxu0 0.0
        %3607 = vmatpush1.msra.mxu0 0.0
        %3608 = vmatprep.subr.mxu0 0.0
        %3609 = vmatpush1.msra.mxu0 0.0
        %3610 = vmatprep.mubr.f32.mxu0 0.0
        %3611 = vmatmul.mubr.f32.gmra.mrb[0].mxu0 %v3544
        %v3612 = vpop.f32.mrb[0].mxu0
        %v3613 = vadd.f32 0.0, %v3612
        %v3614 = vpop.f32.mrb[0].mxu0
        %3615 = vdwg.mxu0
        %v3617 = vrot.slane %v3540, 1
        %3618 = vrot.lane.b32.xlu0 %v3617, 32
        %v3619 = vpop.permute.xlu0 %3618
        %v3620 = vsel %vm3160, %v3619, 0
        %3622 = vmatprep.subr.mxu0 0.0
        %3623 = vmatpush1.msra.mxu0 %v3151
        %3624 = vmatprep.subr.mxu0 0.0
        %3625 = vmatpush1.msra.mxu0 %v3152
        %3626 = vmatprep.subr.mxu0 0.0
        %3627 = vmatpush1.msra.mxu0 %v3153
        %3628 = vmatprep.subr.mxu0 0.0
        %3629 = vmatpush1.msra.mxu0 %v3154
        %3630 = vmatprep.subr.mxu0 0.0
        %3631 = vmatpush1.msra.mxu0 0.0
        %3632 = vmatprep.subr.mxu0 0.0
        %3633 = vmatpush1.msra.mxu0 0.0
        %3634 = vmatprep.subr.mxu0 0.0
        %3635 = vmatpush1.msra.mxu0 0.0
        %3636 = vmatprep.subr.mxu0 0.0
        %3637 = vmatpush1.msra.mxu0 0.0
        %3638 = vmatprep.subr.mxu0 0.0
        %3639 = vmatpush1.msra.mxu0 0.0
        %3640 = vmatprep.subr.mxu0 0.0
        %3641 = vmatpush1.msra.mxu0 0.0
        %3642 = vmatprep.subr.mxu0 0.0
        %3643 = vmatpush1.msra.mxu0 0.0
        %3644 = vmatprep.subr.mxu0 0.0
        %3645 = vmatpush1.msra.mxu0 0.0
        %3646 = vmatprep.subr.mxu0 0.0
        %3647 = vmatpush1.msra.mxu0 0.0
        %3648 = vmatprep.subr.mxu0 0.0
        %3649 = vmatpush1.msra.mxu0 0.0
        %3650 = vmatprep.subr.mxu0 0.0
        %3651 = vmatpush1.msra.mxu0 0.0
        %3652 = vmatprep.subr.mxu0 0.0
        %3653 = vmatpush1.msra.mxu0 0.0
        %3654 = vmatprep.subr.mxu0 0.0
        %3655 = vmatpush1.msra.mxu0 0.0
        %3656 = vmatprep.subr.mxu0 0.0
        %3657 = vmatpush1.msra.mxu0 0.0
        %3658 = vmatprep.subr.mxu0 0.0
        %3659 = vmatpush1.msra.mxu0 0.0
        %3660 = vmatprep.subr.mxu0 0.0
        %3661 = vmatpush1.msra.mxu0 0.0
        %3662 = vmatprep.subr.mxu0 0.0
        %3663 = vmatpush1.msra.mxu0 0.0
        %3664 = vmatprep.subr.mxu0 0.0
        %3665 = vmatpush1.msra.mxu0 0.0
        %3666 = vmatprep.subr.mxu0 0.0
        %3667 = vmatpush1.msra.mxu0 0.0
        %3668 = vmatprep.subr.mxu0 0.0
        %3669 = vmatpush1.msra.mxu0 0.0
        %3670 = vmatprep.subr.mxu0 0.0
        %3671 = vmatpush1.msra.mxu0 0.0
        %3672 = vmatprep.subr.mxu0 0.0
        %3673 = vmatpush1.msra.mxu0 0.0
        %3674 = vmatprep.subr.mxu0 0.0
        %3675 = vmatpush1.msra.mxu0 0.0
        %3676 = vmatprep.subr.mxu0 0.0
        %3677 = vmatpush1.msra.mxu0 0.0
        %3678 = vmatprep.subr.mxu0 0.0
        %3679 = vmatpush1.msra.mxu0 0.0
        %3680 = vmatprep.subr.mxu0 0.0
        %3681 = vmatpush1.msra.mxu0 0.0
        %3682 = vmatprep.subr.mxu0 0.0
        %3683 = vmatpush1.msra.mxu0 0.0
        %3684 = vmatprep.subr.mxu0 0.0
        %3685 = vmatpush1.msra.mxu0 0.0
        %3686 = vmatprep.mubr.f32.mxu0 0.0
        %3687 = vmatmul.mubr.f32.gmra.mrb[0].mxu0 %v3620
        %v3688 = vpop.f32.mrb[0].mxu0
        %v3689 = vadd.f32 %v3613, %v3688
        %v3690 = vpop.f32.mrb[0].mxu0
        %3691 = vdwg.mxu0
        %v3692 = vadd.f32 %v3689, %v3159
        %v3693 = vxor.u32 %v3692, 2147483648
        %v3694 = vmul.f32 %v3693, 1.442695
        %v3695 = vpow.pop %v3694
        %v3696 = vadd.f32 %v3695, 1.0
        %v3697 = vrcp.pop %v3696
        %v3698 = vmul.f32 1.0, %v3697
        %v3699 = vtanh.pop %v3692
        %v3700 = vmul.f32 %v3698, %v3433
        %3702 = vrot.lane.b32.xlu0 %v3699, 64
        %v3703 = vpop.permute.xlu0 %3702
        %v3705 = vmul.f32 %v3698, %v3703
        %3707 = vrot.lane.b32.xlu0 %v3705, 32
        %v3708 = vpop.permute.xlu0 %3707
        %v3710 = vadd.f32 %v3700, %v3708
        %v3711 = vtanh.pop %v3710
        %3713 = vrot.lane.b32.xlu0 %v3711, 64
        %v3714 = vpop.permute.xlu0 %3713
        %v3716 = vmul.f32 %v3698, %v3714
        %3717 = vmatprep.subr.mxu0 0.0
        %3718 = vmatpush1.msra.mxu0 %v3147
        %3719 = vmatprep.subr.mxu0 0.0
        %3720 = vmatpush1.msra.mxu0 %v3148
        %3721 = vmatprep.subr.mxu0 0.0
        %3722 = vmatpush1.msra.mxu0 %v3149
        %3723 = vmatprep.subr.mxu0 0.0
        %3724 = vmatpush1.msra.mxu0 %v3150
        %3725 = vmatprep.subr.mxu0 0.0
        %3726 = vmatpush1.msra.mxu0 0.0
        %3727 = vmatprep.subr.mxu0 0.0
        %3728 = vmatpush1.msra.mxu0 0.0
        %3729 = vmatprep.subr.mxu0 0.0
        %3730 = vmatpush1.msra.mxu0 0.0
        %3731 = vmatprep.subr.mxu0 0.0
        %3732 = vmatpush1.msra.mxu0 0.0
        %3733 = vmatprep.subr.mxu0 0.0
        %3734 = vmatpush1.msra.mxu0 0.0
        %3735 = vmatprep.subr.mxu0 0.0
        %3736 = vmatpush1.msra.mxu0 0.0
        %3737 = vmatprep.subr.mxu0 0.0
        %3738 = vmatpush1.msra.mxu0 0.0
        %3739 = vmatprep.subr.mxu0 0.0
        %3740 = vmatpush1.msra.mxu0 0.0
        %3741 = vmatprep.subr.mxu0 0.0
        %3742 = vmatpush1.msra.mxu0 0.0
        %3743 = vmatprep.subr.mxu0 0.0
        %3744 = vmatpush1.msra.mxu0 0.0
        %3745 = vmatprep.subr.mxu0 0.0
        %3746 = vmatpush1.msra.mxu0 0.0
        %3747 = vmatprep.subr.mxu0 0.0
        %3748 = vmatpush1.msra.mxu0 0.0
        %3749 = vmatprep.subr.mxu0 0.0
        %3750 = vmatpush1.msra.mxu0 0.0
        %3751 = vmatprep.subr.mxu0 0.0
        %3752 = vmatpush1.msra.mxu0 0.0
        %3753 = vmatprep.subr.mxu0 0.0
        %3754 = vmatpush1.msra.mxu0 0.0
        %3755 = vmatprep.subr.mxu0 0.0
        %3756 = vmatpush1.msra.mxu0 0.0
        %3757 = vmatprep.subr.mxu0 0.0
        %3758 = vmatpush1.msra.mxu0 0.0
        %3759 = vmatprep.subr.mxu0 0.0
        %3760 = vmatpush1.msra.mxu0 0.0
        %3761 = vmatprep.subr.mxu0 0.0
        %3762 = vmatpush1.msra.mxu0 0.0
        %3763 = vmatprep.subr.mxu0 0.0
        %3764 = vmatpush1.msra.mxu0 0.0
        %3765 = vmatprep.subr.mxu0 0.0
        %3766 = vmatpush1.msra.mxu0 0.0
        %3767 = vmatprep.subr.mxu0 0.0
        %3768 = vmatpush1.msra.mxu0 0.0
        %3769 = vmatprep.subr.mxu0 0.0
        %3770 = vmatpush1.msra.mxu0 0.0
        %3771 = vmatprep.subr.mxu0 0.0
        %3772 = vmatpush1.msra.mxu0 0.0
        %3773 = vmatprep.subr.mxu0 0.0
        %3774 = vmatpush1.msra.mxu0 0.0
        %3775 = vmatprep.subr.mxu0 0.0
        %3776 = vmatpush1.msra.mxu0 0.0
        %3777 = vmatprep.subr.mxu0 0.0
        %3778 = vmatpush1.msra.mxu0 0.0
        %3779 = vmatprep.subr.mxu0 0.0
        %3780 = vmatpush1.msra.mxu0 0.0
        %3781 = vmatprep.mubr.f32.mxu0 0.0
        %3782 = vmatmul.mubr.f32.gmra.mrb[0].mxu0 %v3620
        %v3783 = vpop.f32.mrb[0].mxu0
        %v3784 = vadd.f32 0.0, %v3783
        %v3785 = vpop.f32.mrb[0].mxu0
        %3786 = vdwg.mxu0
        %v3788 = vrot.slane %v3784, 6
        %v3790 = vadd.f32 %v3144, %v3788
        %v3791 = vxor.u32 %v3790, 2147483648
        %v3792 = vmul.f32 %v3791, 1.442695
        %v3793 = vpow.pop %v3792
        %v3794 = vadd.f32 %v3793, 1.0
        %v3795 = vrcp.pop %v3794
        %v3796 = vmul.f32 1.0, %v3795
        %v3797 = vtanh.pop %v3790
        %v3799 = vrot.slane %v3534, 7
        %v3801 = vmul.f32 %v3796, %v3799
        %3803 = vrot.lane.b32.xlu0 %v3797, 64
        %v3804 = vpop.permute.xlu0 %3803
        %v3806 = vmul.f32 %v3796, %v3804
        %3808 = vrot.lane.b32.xlu0 %v3806, 32
        %v3809 = vpop.permute.xlu0 %3808
        %v3811 = vadd.f32 %v3801, %v3809
        %v3812 = vtanh.pop %v3811
        %3814 = vrot.lane.b32.xlu0 %v3812, 64
        %v3815 = vpop.permute.xlu0 %3814
        %v3817 = vmul.f32 %v3796, %v3815
        %3819 = vrot.lane.b32.xlu0 %v3716, 32
        %v3820 = vpop.permute.xlu0 %3819
        %v3821 = vsel %vm3160, %v3820, 0
        %3823 = vmatprep.subr.mxu0 0.0
        %3824 = vmatpush1.msra.mxu0 %v3155
        %3825 = vmatprep.subr.mxu0 0.0
        %3826 = vmatpush1.msra.mxu0 %v3156
        %3827 = vmatprep.subr.mxu0 0.0
        %3828 = vmatpush1.msra.mxu0 %v3157
        %3829 = vmatprep.subr.mxu0 0.0
        %3830 = vmatpush1.msra.mxu0 %v3158
        %3831 = vmatprep.subr.mxu0 0.0
        %3832 = vmatpush1.msra.mxu0 0.0
        %3833 = vmatprep.subr.mxu0 0.0
        %3834 = vmatpush1.msra.mxu0 0.0
        %3835 = vmatprep.subr.mxu0 0.0
        %3836 = vmatpush1.msra.mxu0 0.0
        %3837 = vmatprep.subr.mxu0 0.0
        %3838 = vmatpush1.msra.mxu0 0.0
        %3839 = vmatprep.subr.mxu0 0.0
        %3840 = vmatpush1.msra.mxu0 0.0
        %3841 = vmatprep.subr.mxu0 0.0
        %3842 = vmatpush1.msra.mxu0 0.0
        %3843 = vmatprep.subr.mxu0 0.0
        %3844 = vmatpush1.msra.mxu0 0.0
        %3845 = vmatprep.subr.mxu0 0.0
        %3846 = vmatpush1.msra.mxu0 0.0
        %3847 = vmatprep.subr.mxu0 0.0
        %3848 = vmatpush1.msra.mxu0 0.0
        %3849 = vmatprep.subr.mxu0 0.0
        %3850 = vmatpush1.msra.mxu0 0.0
        %3851 = vmatprep.subr.mxu0 0.0
        %3852 = vmatpush1.msra.mxu0 0.0
        %3853 = vmatprep.subr.mxu0 0.0
        %3854 = vmatpush1.msra.mxu0 0.0
        %3855 = vmatprep.subr.mxu0 0.0
        %3856 = vmatpush1.msra.mxu0 0.0
        %3857 = vmatprep.subr.mxu0 0.0
        %3858 = vmatpush1.msra.mxu0 0.0
        %3859 = vmatprep.subr.mxu0 0.0
        %3860 = vmatpush1.msra.mxu0 0.0
        %3861 = vmatprep.subr.mxu0 0.0
        %3862 = vmatpush1.msra.mxu0 0.0
        %3863 = vmatprep.subr.mxu0 0.0
        %3864 = vmatpush1.msra.mxu0 0.0
        %3865 = vmatprep.subr.mxu0 0.0
        %3866 = vmatpush1.msra.mxu0 0.0
        %3867 = vmatprep.subr.mxu0 0.0
        %3868 = vmatpush1.msra.mxu0 0.0
        %3869 = vmatprep.subr.mxu0 0.0
        %3870 = vmatpush1.msra.mxu0 0.0
        %3871 = vmatprep.subr.mxu0 0.0
        %3872 = vmatpush1.msra.mxu0 0.0
        %3873 = vmatprep.subr.mxu0 0.0
        %3874 = vmatpush1.msra.mxu0 0.0
        %3875 = vmatprep.subr.mxu0 0.0
        %3876 = vmatpush1.msra.mxu0 0.0
        %3877 = vmatprep.subr.mxu0 0.0
        %3878 = vmatpush1.msra.mxu0 0.0
        %3879 = vmatprep.subr.mxu0 0.0
        %3880 = vmatpush1.msra.mxu0 0.0
        %3881 = vmatprep.subr.mxu0 0.0
        %3882 = vmatpush1.msra.mxu0 0.0
        %3883 = vmatprep.subr.mxu0 0.0
        %3884 = vmatpush1.msra.mxu0 0.0
        %3885 = vmatprep.subr.mxu0 0.0
        %3886 = vmatpush1.msra.mxu0 0.0
        %3887 = vmatprep.mubr.f32.mxu0 0.0
        %3888 = vmatmul.mubr.f32.gmra.mrb[0].mxu0 %v3821
        %v3889 = vpop.f32.mrb[0].mxu0
        %v3890 = vadd.f32 0.0, %v3889
        %v3891 = vpop.f32.mrb[0].mxu0
        %3892 = vdwg.mxu0
        %v3894 = vrot.slane %v3817, 2
        %3895 = vrot.lane.b32.xlu0 %v3894, 32
        %v3896 = vpop.permute.xlu0 %3895
        %v3897 = vsel %vm3160, %v3896, 0
        %3899 = vmatprep.subr.mxu0 0.0
        %3900 = vmatpush1.msra.mxu0 %v3151
        %3901 = vmatprep.subr.mxu0 0.0
        %3902 = vmatpush1.msra.mxu0 %v3152
        %3903 = vmatprep.subr.mxu0 0.0
        %3904 = vmatpush1.msra.mxu0 %v3153
        %3905 = vmatprep.subr.mxu0 0.0
        %3906 = vmatpush1.msra.mxu0 %v3154
        %3907 = vmatprep.subr.mxu0 0.0
        %3908 = vmatpush1.msra.mxu0 0.0
        %3909 = vmatprep.subr.mxu0 0.0
        %3910 = vmatpush1.msra.mxu0 0.0
        %3911 = vmatprep.subr.mxu0 0.0
        %3912 = vmatpush1.msra.mxu0 0.0
        %3913 = vmatprep.subr.mxu0 0.0
        %3914 = vmatpush1.msra.mxu0 0.0
        %3915 = vmatprep.subr.mxu0 0.0
        %3916 = vmatpush1.msra.mxu0 0.0
        %3917 = vmatprep.subr.mxu0 0.0
        %3918 = vmatpush1.msra.mxu0 0.0
        %3919 = vmatprep.subr.mxu0 0.0
        %3920 = vmatpush1.msra.mxu0 0.0
        %3921 = vmatprep.subr.mxu0 0.0
        %3922 = vmatpush1.msra.mxu0 0.0
        %3923 = vmatprep.subr.mxu0 0.0
        %3924 = vmatpush1.msra.mxu0 0.0
        %3925 = vmatprep.subr.mxu0 0.0
        %3926 = vmatpush1.msra.mxu0 0.0
        %3927 = vmatprep.subr.mxu0 0.0
        %3928 = vmatpush1.msra.mxu0 0.0
        %3929 = vmatprep.subr.mxu0 0.0
        %3930 = vmatpush1.msra.mxu0 0.0
        %3931 = vmatprep.subr.mxu0 0.0
        %3932 = vmatpush1.msra.mxu0 0.0
        %3933 = vmatprep.subr.mxu0 0.0
        %3934 = vmatpush1.msra.mxu0 0.0
        %3935 = vmatprep.subr.mxu0 0.0
        %3936 = vmatpush1.msra.mxu0 0.0
        %3937 = vmatprep.subr.mxu0 0.0
        %3938 = vmatpush1.msra.mxu0 0.0
        %3939 = vmatprep.subr.mxu0 0.0
        %3940 = vmatpush1.msra.mxu0 0.0
        %3941 = vmatprep.subr.mxu0 0.0
        %3942 = vmatpush1.msra.mxu0 0.0
        %3943 = vmatprep.subr.mxu0 0.0
        %3944 = vmatpush1.msra.mxu0 0.0
        %3945 = vmatprep.subr.mxu0 0.0
        %3946 = vmatpush1.msra.mxu0 0.0
        %3947 = vmatprep.subr.mxu0 0.0
        %3948 = vmatpush1.msra.mxu0 0.0
        %3949 = vmatprep.subr.mxu0 0.0
        %3950 = vmatpush1.msra.mxu0 0.0
        %3951 = vmatprep.subr.mxu0 0.0
        %3952 = vmatpush1.msra.mxu0 0.0
        %3953 = vmatprep.subr.mxu0 0.0
        %3954 = vmatpush1.msra.mxu0 0.0
        %3955 = vmatprep.subr.mxu0 0.0
        %3956 = vmatpush1.msra.mxu0 0.0
        %3957 = vmatprep.subr.mxu0 0.0
        %3958 = vmatpush1.msra.mxu0 0.0
        %3959 = vmatprep.subr.mxu0 0.0
        %3960 = vmatpush1.msra.mxu0 0.0
        %3961 = vmatprep.subr.mxu0 0.0
        %3962 = vmatpush1.msra.mxu0 0.0
        %3963 = vmatprep.mubr.f32.mxu0 0.0
        %3964 = vmatmul.mubr.f32.gmra.mrb[0].mxu0 %v3897
        %v3965 = vpop.f32.mrb[0].mxu0
        %v3966 = vadd.f32 %v3890, %v3965
        %v3967 = vpop.f32.mrb[0].mxu0
        %3968 = vdwg.mxu0
        %v3969 = vadd.f32 %v3966, %v3159
        %v3970 = vxor.u32 %v3969, 2147483648
        %v3971 = vmul.f32 %v3970, 1.442695
        %v3972 = vpow.pop %v3971
        %v3973 = vadd.f32 %v3972, 1.0
        %v3974 = vrcp.pop %v3973
        %v3975 = vmul.f32 1.0, %v3974
        %v3976 = vtanh.pop %v3969
        %v3977 = vmul.f32 %v3975, %v3710
        %3979 = vrot.lane.b32.xlu0 %v3976, 64
        %v3980 = vpop.permute.xlu0 %3979
        %v3982 = vmul.f32 %v3975, %v3980
        %3984 = vrot.lane.b32.xlu0 %v3982, 32
        %v3985 = vpop.permute.xlu0 %3984
        %v3987 = vadd.f32 %v3977, %v3985
        %v3988 = vtanh.pop %v3987
        %3990 = vrot.lane.b32.xlu0 %v3988, 64
        %v3991 = vpop.permute.xlu0 %3990
        %v3993 = vmul.f32 %v3975, %v3991
        %3994 = vmatprep.subr.mxu0 0.0
        %3995 = vmatpush1.msra.mxu0 %v3147
        %3996 = vmatprep.subr.mxu0 0.0
        %3997 = vmatpush1.msra.mxu0 %v3148
        %3998 = vmatprep.subr.mxu0 0.0
        %3999 = vmatpush1.msra.mxu0 %v3149
        %4000 = vmatprep.subr.mxu0 0.0
        %4001 = vmatpush1.msra.mxu0 %v3150
        %4002 = vmatprep.subr.mxu0 0.0
        %4003 = vmatpush1.msra.mxu0 0.0
        %4004 = vmatprep.subr.mxu0 0.0
        %4005 = vmatpush1.msra.mxu0 0.0
        %4006 = vmatprep.subr.mxu0 0.0
        %4007 = vmatpush1.msra.mxu0 0.0
        %4008 = vmatprep.subr.mxu0 0.0
        %4009 = vmatpush1.msra.mxu0 0.0
        %4010 = vmatprep.subr.mxu0 0.0
        %4011 = vmatpush1.msra.mxu0 0.0
        %4012 = vmatprep.subr.mxu0 0.0
        %4013 = vmatpush1.msra.mxu0 0.0
        %4014 = vmatprep.subr.mxu0 0.0
        %4015 = vmatpush1.msra.mxu0 0.0
        %4016 = vmatprep.subr.mxu0 0.0
        %4017 = vmatpush1.msra.mxu0 0.0
        %4018 = vmatprep.subr.mxu0 0.0
        %4019 = vmatpush1.msra.mxu0 0.0
        %4020 = vmatprep.subr.mxu0 0.0
        %4021 = vmatpush1.msra.mxu0 0.0
        %4022 = vmatprep.subr.mxu0 0.0
        %4023 = vmatpush1.msra.mxu0 0.0
        %4024 = vmatprep.subr.mxu0 0.0
        %4025 = vmatpush1.msra.mxu0 0.0
        %4026 = vmatprep.subr.mxu0 0.0
        %4027 = vmatpush1.msra.mxu0 0.0
        %4028 = vmatprep.subr.mxu0 0.0
        %4029 = vmatpush1.msra.mxu0 0.0
        %4030 = vmatprep.subr.mxu0 0.0
        %4031 = vmatpush1.msra.mxu0 0.0
        %4032 = vmatprep.subr.mxu0 0.0
        %4033 = vmatpush1.msra.mxu0 0.0
        %4034 = vmatprep.subr.mxu0 0.0
        %4035 = vmatpush1.msra.mxu0 0.0
        %4036 = vmatprep.subr.mxu0 0.0
        %4037 = vmatpush1.msra.mxu0 0.0
        %4038 = vmatprep.subr.mxu0 0.0
        %4039 = vmatpush1.msra.mxu0 0.0
        %4040 = vmatprep.subr.mxu0 0.0
        %4041 = vmatpush1.msra.mxu0 0.0
        %4042 = vmatprep.subr.mxu0 0.0
        %4043 = vmatpush1.msra.mxu0 0.0
        %4044 = vmatprep.subr.mxu0 0.0
        %4045 = vmatpush1.msra.mxu0 0.0
        %4046 = vmatprep.subr.mxu0 0.0
        %4047 = vmatpush1.msra.mxu0 0.0
        %4048 = vmatprep.subr.mxu0 0.0
        %4049 = vmatpush1.msra.mxu0 0.0
        %4050 = vmatprep.subr.mxu0 0.0
        %4051 = vmatpush1.msra.mxu0 0.0
        %4052 = vmatprep.subr.mxu0 0.0
        %4053 = vmatpush1.msra.mxu0 0.0
        %4054 = vmatprep.subr.mxu0 0.0
        %4055 = vmatpush1.msra.mxu0 0.0
        %4056 = vmatprep.subr.mxu0 0.0
        %4057 = vmatpush1.msra.mxu0 0.0
        %4058 = vmatprep.mubr.f32.mxu0 0.0
        %4059 = vmatmul.mubr.f32.gmra.mrb[0].mxu0 %v3897
        %v4060 = vpop.f32.mrb[0].mxu0
        %v4061 = vadd.f32 0.0, %v4060
        %v4062 = vpop.f32.mrb[0].mxu0
        %4063 = vdwg.mxu0
        %v4065 = vrot.slane %v4061, 5
        %v4067 = vadd.f32 %v3144, %v4065
        %v4068 = vxor.u32 %v4067, 2147483648
        %v4069 = vmul.f32 %v4068, 1.442695
        %v4070 = vpow.pop %v4069
        %v4071 = vadd.f32 %v4070, 1.0
        %v4072 = vrcp.pop %v4071
        %v4073 = vmul.f32 1.0, %v4072
        %v4074 = vtanh.pop %v4067
        %v4076 = vrot.slane %v3811, 7
        %v4078 = vmul.f32 %v4073, %v4076
        %4080 = vrot.lane.b32.xlu0 %v4074, 64
        %v4081 = vpop.permute.xlu0 %4080
        %v4083 = vmul.f32 %v4073, %v4081
        %4085 = vrot.lane.b32.xlu0 %v4083, 32
        %v4086 = vpop.permute.xlu0 %4085
        %v4088 = vadd.f32 %v4078, %v4086
        %v4089 = vtanh.pop %v4088
        %4091 = vrot.lane.b32.xlu0 %v4089, 64
        %v4092 = vpop.permute.xlu0 %4091
        %v4094 = vmul.f32 %v4073, %v4092
        %4096 = vrot.lane.b32.xlu0 %v3993, 32
        %v4097 = vpop.permute.xlu0 %4096
        %v4098 = vsel %vm3160, %v4097, 0
        %4100 = vmatprep.subr.mxu0 0.0
        %4101 = vmatpush1.msra.mxu0 %v3155
        %4102 = vmatprep.subr.mxu0 0.0
        %4103 = vmatpush1.msra.mxu0 %v3156
        %4104 = vmatprep.subr.mxu0 0.0
        %4105 = vmatpush1.msra.mxu0 %v3157
        %4106 = vmatprep.subr.mxu0 0.0
        %4107 = vmatpush1.msra.mxu0 %v3158
        %4108 = vmatprep.subr.mxu0 0.0
        %4109 = vmatpush1.msra.mxu0 0.0
        %4110 = vmatprep.subr.mxu0 0.0
        %4111 = vmatpush1.msra.mxu0 0.0
        %4112 = vmatprep.subr.mxu0 0.0
        %4113 = vmatpush1.msra.mxu0 0.0
        %4114 = vmatprep.subr.mxu0 0.0
        %4115 = vmatpush1.msra.mxu0 0.0
        %4116 = vmatprep.subr.mxu0 0.0
        %4117 = vmatpush1.msra.mxu0 0.0
        %4118 = vmatprep.subr.mxu0 0.0
        %4119 = vmatpush1.msra.mxu0 0.0
        %4120 = vmatprep.subr.mxu0 0.0
        %4121 = vmatpush1.msra.mxu0 0.0
        %4122 = vmatprep.subr.mxu0 0.0
        %4123 = vmatpush1.msra.mxu0 0.0
        %4124 = vmatprep.subr.mxu0 0.0
        %4125 = vmatpush1.msra.mxu0 0.0
        %4126 = vmatprep.subr.mxu0 0.0
        %4127 = vmatpush1.msra.mxu0 0.0
        %4128 = vmatprep.subr.mxu0 0.0
        %4129 = vmatpush1.msra.mxu0 0.0
        %4130 = vmatprep.subr.mxu0 0.0
        %4131 = vmatpush1.msra.mxu0 0.0
        %4132 = vmatprep.subr.mxu0 0.0
        %4133 = vmatpush1.msra.mxu0 0.0
        %4134 = vmatprep.subr.mxu0 0.0
        %4135 = vmatpush1.msra.mxu0 0.0
        %4136 = vmatprep.subr.mxu0 0.0
        %4137 = vmatpush1.msra.mxu0 0.0
        %4138 = vmatprep.subr.mxu0 0.0
        %4139 = vmatpush1.msra.mxu0 0.0
        %4140 = vmatprep.subr.mxu0 0.0
        %4141 = vmatpush1.msra.mxu0 0.0
        %4142 = vmatprep.subr.mxu0 0.0
        %4143 = vmatpush1.msra.mxu0 0.0
        %4144 = vmatprep.subr.mxu0 0.0
        %4145 = vmatpush1.msra.mxu0 0.0
        %4146 = vmatprep.subr.mxu0 0.0
        %4147 = vmatpush1.msra.mxu0 0.0
        %4148 = vmatprep.subr.mxu0 0.0
        %4149 = vmatpush1.msra.mxu0 0.0
        %4150 = vmatprep.subr.mxu0 0.0
        %4151 = vmatpush1.msra.mxu0 0.0
        %4152 = vmatprep.subr.mxu0 0.0
        %4153 = vmatpush1.msra.mxu0 0.0
        %4154 = vmatprep.subr.mxu0 0.0
        %4155 = vmatpush1.msra.mxu0 0.0
        %4156 = vmatprep.subr.mxu0 0.0
        %4157 = vmatpush1.msra.mxu0 0.0
        %4158 = vmatprep.subr.mxu0 0.0
        %4159 = vmatpush1.msra.mxu0 0.0
        %4160 = vmatprep.subr.mxu0 0.0
        %4161 = vmatpush1.msra.mxu0 0.0
        %4162 = vmatprep.subr.mxu0 0.0
        %4163 = vmatpush1.msra.mxu0 0.0
        %4164 = vmatprep.mubr.f32.mxu0 0.0
        %4165 = vmatmul.mubr.f32.gmra.mrb[0].mxu0 %v4098
        %v4166 = vpop.f32.mrb[0].mxu0
        %v4167 = vadd.f32 0.0, %v4166
        %v4168 = vpop.f32.mrb[0].mxu0
        %4169 = vdwg.mxu0
        %v4171 = vrot.slane %v4094, 3
        %4172 = vrot.lane.b32.xlu0 %v4171, 32
        %v4173 = vpop.permute.xlu0 %4172
        %v4174 = vsel %vm3160, %v4173, 0
        %4176 = vmatprep.subr.mxu0 0.0
        %4177 = vmatpush1.msra.mxu0 %v3151
        %4178 = vmatprep.subr.mxu0 0.0
        %4179 = vmatpush1.msra.mxu0 %v3152
        %4180 = vmatprep.subr.mxu0 0.0
        %4181 = vmatpush1.msra.mxu0 %v3153
        %4182 = vmatprep.subr.mxu0 0.0
        %4183 = vmatpush1.msra.mxu0 %v3154
        %4184 = vmatprep.subr.mxu0 0.0
        %4185 = vmatpush1.msra.mxu0 0.0
        %4186 = vmatprep.subr.mxu0 0.0
        %4187 = vmatpush1.msra.mxu0 0.0
        %4188 = vmatprep.subr.mxu0 0.0
        %4189 = vmatpush1.msra.mxu0 0.0
        %4190 = vmatprep.subr.mxu0 0.0
        %4191 = vmatpush1.msra.mxu0 0.0
        %4192 = vmatprep.subr.mxu0 0.0
        %4193 = vmatpush1.msra.mxu0 0.0
        %4194 = vmatprep.subr.mxu0 0.0
        %4195 = vmatpush1.msra.mxu0 0.0
        %4196 = vmatprep.subr.mxu0 0.0
        %4197 = vmatpush1.msra.mxu0 0.0
        %4198 = vmatprep.subr.mxu0 0.0
        %4199 = vmatpush1.msra.mxu0 0.0
        %4200 = vmatprep.subr.mxu0 0.0
        %4201 = vmatpush1.msra.mxu0 0.0
        %4202 = vmatprep.subr.mxu0 0.0
        %4203 = vmatpush1.msra.mxu0 0.0
        %4204 = vmatprep.subr.mxu0 0.0
        %4205 = vmatpush1.msra.mxu0 0.0
        %4206 = vmatprep.subr.mxu0 0.0
        %4207 = vmatpush1.msra.mxu0 0.0
        %4208 = vmatprep.subr.mxu0 0.0
        %4209 = vmatpush1.msra.mxu0 0.0
        %4210 = vmatprep.subr.mxu0 0.0
        %4211 = vmatpush1.msra.mxu0 0.0
        %4212 = vmatprep.subr.mxu0 0.0
        %4213 = vmatpush1.msra.mxu0 0.0
        %4214 = vmatprep.subr.mxu0 0.0
        %4215 = vmatpush1.msra.mxu0 0.0
        %4216 = vmatprep.subr.mxu0 0.0
        %4217 = vmatpush1.msra.mxu0 0.0
        %4218 = vmatprep.subr.mxu0 0.0
        %4219 = vmatpush1.msra.mxu0 0.0
        %4220 = vmatprep.subr.mxu0 0.0
        %4221 = vmatpush1.msra.mxu0 0.0
        %4222 = vmatprep.subr.mxu0 0.0
        %4223 = vmatpush1.msra.mxu0 0.0
        %4224 = vmatprep.subr.mxu0 0.0
        %4225 = vmatpush1.msra.mxu0 0.0
        %4226 = vmatprep.subr.mxu0 0.0
        %4227 = vmatpush1.msra.mxu0 0.0
        %4228 = vmatprep.subr.mxu0 0.0
        %4229 = vmatpush1.msra.mxu0 0.0
        %4230 = vmatprep.subr.mxu0 0.0
        %4231 = vmatpush1.msra.mxu0 0.0
        %4232 = vmatprep.subr.mxu0 0.0
        %4233 = vmatpush1.msra.mxu0 0.0
        %4234 = vmatprep.subr.mxu0 0.0
        %4235 = vmatpush1.msra.mxu0 0.0
        %4236 = vmatprep.subr.mxu0 0.0
        %4237 = vmatpush1.msra.mxu0 0.0
        %4238 = vmatprep.subr.mxu0 0.0
        %4239 = vmatpush1.msra.mxu0 0.0
        %4240 = vmatprep.mubr.f32.mxu0 0.0
        %4241 = vmatmul.mubr.f32.gmra.mrb[0].mxu0 %v4174
        %v4242 = vpop.f32.mrb[0].mxu0
        %v4243 = vadd.f32 %v4167, %v4242
        %v4244 = vpop.f32.mrb[0].mxu0
        %4245 = vdwg.mxu0
        %v4246 = vadd.f32 %v4243, %v3159
        %v4247 = vxor.u32 %v4246, 2147483648
        %v4248 = vmul.f32 %v4247, 1.442695
        %v4249 = vpow.pop %v4248
        %v4250 = vadd.f32 %v4249, 1.0
        %v4251 = vrcp.pop %v4250
        %v4252 = vmul.f32 1.0, %v4251
        %v4253 = vtanh.pop %v4246
        %v4254 = vmul.f32 %v4252, %v3987
        %4256 = vrot.lane.b32.xlu0 %v4253, 64
        %v4257 = vpop.permute.xlu0 %4256
        %v4259 = vmul.f32 %v4252, %v4257
        %4261 = vrot.lane.b32.xlu0 %v4259, 32
        %v4262 = vpop.permute.xlu0 %4261
        %v4264 = vadd.f32 %v4254, %v4262
        %v4265 = vtanh.pop %v4264
        %4267 = vrot.lane.b32.xlu0 %v4265, 64
        %v4268 = vpop.permute.xlu0 %4267
        %v4270 = vmul.f32 %v4252, %v4268
        %4271 = vmatprep.subr.mxu0 0.0
        %4272 = vmatpush1.msra.mxu0 %v3147
        %4273 = vmatprep.subr.mxu0 0.0
        %4274 = vmatpush1.msra.mxu0 %v3148
        %4275 = vmatprep.subr.mxu0 0.0
        %4276 = vmatpush1.msra.mxu0 %v3149
        %4277 = vmatprep.subr.mxu0 0.0
        %4278 = vmatpush1.msra.mxu0 %v3150
        %4279 = vmatprep.subr.mxu0 0.0
        %4280 = vmatpush1.msra.mxu0 0.0
        %4281 = vmatprep.subr.mxu0 0.0
        %4282 = vmatpush1.msra.mxu0 0.0
        %4283 = vmatprep.subr.mxu0 0.0
        %4284 = vmatpush1.msra.mxu0 0.0
        %4285 = vmatprep.subr.mxu0 0.0
        %4286 = vmatpush1.msra.mxu0 0.0
        %4287 = vmatprep.subr.mxu0 0.0
        %4288 = vmatpush1.msra.mxu0 0.0
        %4289 = vmatprep.subr.mxu0 0.0
        %4290 = vmatpush1.msra.mxu0 0.0
        %4291 = vmatprep.subr.mxu0 0.0
        %4292 = vmatpush1.msra.mxu0 0.0
        %4293 = vmatprep.subr.mxu0 0.0
        %4294 = vmatpush1.msra.mxu0 0.0
        %4295 = vmatprep.subr.mxu0 0.0
        %4296 = vmatpush1.msra.mxu0 0.0
        %4297 = vmatprep.subr.mxu0 0.0
        %4298 = vmatpush1.msra.mxu0 0.0
        %4299 = vmatprep.subr.mxu0 0.0
        %4300 = vmatpush1.msra.mxu0 0.0
        %4301 = vmatprep.subr.mxu0 0.0
        %4302 = vmatpush1.msra.mxu0 0.0
        %4303 = vmatprep.subr.mxu0 0.0
        %4304 = vmatpush1.msra.mxu0 0.0
        %4305 = vmatprep.subr.mxu0 0.0
        %4306 = vmatpush1.msra.mxu0 0.0
        %4307 = vmatprep.subr.mxu0 0.0
        %4308 = vmatpush1.msra.mxu0 0.0
        %4309 = vmatprep.subr.mxu0 0.0
        %4310 = vmatpush1.msra.mxu0 0.0
        %4311 = vmatprep.subr.mxu0 0.0
        %4312 = vmatpush1.msra.mxu0 0.0
        %4313 = vmatprep.subr.mxu0 0.0
        %4314 = vmatpush1.msra.mxu0 0.0
        %4315 = vmatprep.subr.mxu0 0.0
        %4316 = vmatpush1.msra.mxu0 0.0
        %4317 = vmatprep.subr.mxu0 0.0
        %4318 = vmatpush1.msra.mxu0 0.0
        %4319 = vmatprep.subr.mxu0 0.0
        %4320 = vmatpush1.msra.mxu0 0.0
        %4321 = vmatprep.subr.mxu0 0.0
        %4322 = vmatpush1.msra.mxu0 0.0
        %4323 = vmatprep.subr.mxu0 0.0
        %4324 = vmatpush1.msra.mxu0 0.0
        %4325 = vmatprep.subr.mxu0 0.0
        %4326 = vmatpush1.msra.mxu0 0.0
        %4327 = vmatprep.subr.mxu0 0.0
        %4328 = vmatpush1.msra.mxu0 0.0
        %4329 = vmatprep.subr.mxu0 0.0
        %4330 = vmatpush1.msra.mxu0 0.0
        %4331 = vmatprep.subr.mxu0 0.0
        %4332 = vmatpush1.msra.mxu0 0.0
        %4333 = vmatprep.subr.mxu0 0.0
        %4334 = vmatpush1.msra.mxu0 0.0
        %4335 = vmatprep.mubr.f32.mxu0 0.0
        %4336 = vmatmul.mubr.f32.gmra.mrb[0].mxu0 %v4174
        %v4337 = vpop.f32.mrb[0].mxu0
        %v4338 = vadd.f32 0.0, %v4337
        %v4339 = vpop.f32.mrb[0].mxu0
        %4340 = vdwg.mxu0
        %v4342 = vrot.slane %v4338, 4
        %v4344 = vadd.f32 %v3144, %v4342
        %v4345 = vxor.u32 %v4344, 2147483648
        %v4346 = vmul.f32 %v4345, 1.442695
        %v4347 = vpow.pop %v4346
        %v4348 = vadd.f32 %v4347, 1.0
        %v4349 = vrcp.pop %v4348
        %v4350 = vmul.f32 1.0, %v4349
        %v4351 = vtanh.pop %v4344
        %v4353 = vrot.slane %v4088, 7
        %v4355 = vmul.f32 %v4350, %v4353
        %4357 = vrot.lane.b32.xlu0 %v4351, 64
        %v4358 = vpop.permute.xlu0 %4357
        %v4360 = vmul.f32 %v4350, %v4358
        %4362 = vrot.lane.b32.xlu0 %v4360, 32
        %v4363 = vpop.permute.xlu0 %4362
        %v4365 = vadd.f32 %v4355, %v4363
        %v4366 = vtanh.pop %v4365
        %4368 = vrot.lane.b32.xlu0 %v4366, 64
        %v4369 = vpop.permute.xlu0 %4368
        %v4371 = vmul.f32 %v4350, %v4369
        %4373 = vrot.lane.b32.xlu0 %v4270, 32
        %v4374 = vpop.permute.xlu0 %4373
        %v4375 = vsel %vm3160, %v4374, 0
        %4377 = vmatprep.subr.mxu0 0.0
        %4378 = vmatpush1.msra.mxu0 %v3155
        %4379 = vmatprep.subr.mxu0 0.0
        %4380 = vmatpush1.msra.mxu0 %v3156
        %4381 = vmatprep.subr.mxu0 0.0
        %4382 = vmatpush1.msra.mxu0 %v3157
        %4383 = vmatprep.subr.mxu0 0.0
        %4384 = vmatpush1.msra.mxu0 %v3158
        %4385 = vmatprep.subr.mxu0 0.0
        %4386 = vmatpush1.msra.mxu0 0.0
        %4387 = vmatprep.subr.mxu0 0.0
        %4388 = vmatpush1.msra.mxu0 0.0
        %4389 = vmatprep.subr.mxu0 0.0
        %4390 = vmatpush1.msra.mxu0 0.0
        %4391 = vmatprep.subr.mxu0 0.0
        %4392 = vmatpush1.msra.mxu0 0.0
        %4393 = vmatprep.subr.mxu0 0.0
        %4394 = vmatpush1.msra.mxu0 0.0
        %4395 = vmatprep.subr.mxu0 0.0
        %4396 = vmatpush1.msra.mxu0 0.0
        %4397 = vmatprep.subr.mxu0 0.0
        %4398 = vmatpush1.msra.mxu0 0.0
        %4399 = vmatprep.subr.mxu0 0.0
        %4400 = vmatpush1.msra.mxu0 0.0
        %4401 = vmatprep.subr.mxu0 0.0
        %4402 = vmatpush1.msra.mxu0 0.0
        %4403 = vmatprep.subr.mxu0 0.0
        %4404 = vmatpush1.msra.mxu0 0.0
        %4405 = vmatprep.subr.mxu0 0.0
        %4406 = vmatpush1.msra.mxu0 0.0
        %4407 = vmatprep.subr.mxu0 0.0
        %4408 = vmatpush1.msra.mxu0 0.0
        %4409 = vmatprep.subr.mxu0 0.0
        %4410 = vmatpush1.msra.mxu0 0.0
        %4411 = vmatprep.subr.mxu0 0.0
        %4412 = vmatpush1.msra.mxu0 0.0
        %4413 = vmatprep.subr.mxu0 0.0
        %4414 = vmatpush1.msra.mxu0 0.0
        %4415 = vmatprep.subr.mxu0 0.0
        %4416 = vmatpush1.msra.mxu0 0.0
        %4417 = vmatprep.subr.mxu0 0.0
        %4418 = vmatpush1.msra.mxu0 0.0
        %4419 = vmatprep.subr.mxu0 0.0
        %4420 = vmatpush1.msra.mxu0 0.0
        %4421 = vmatprep.subr.mxu0 0.0
        %4422 = vmatpush1.msra.mxu0 0.0
        %4423 = vmatprep.subr.mxu0 0.0
        %4424 = vmatpush1.msra.mxu0 0.0
        %4425 = vmatprep.subr.mxu0 0.0
        %4426 = vmatpush1.msra.mxu0 0.0
        %4427 = vmatprep.subr.mxu0 0.0
        %4428 = vmatpush1.msra.mxu0 0.0
        %4429 = vmatprep.subr.mxu0 0.0
        %4430 = vmatpush1.msra.mxu0 0.0
        %4431 = vmatprep.subr.mxu0 0.0
        %4432 = vmatpush1.msra.mxu0 0.0
        %4433 = vmatprep.subr.mxu0 0.0
        %4434 = vmatpush1.msra.mxu0 0.0
        %4435 = vmatprep.subr.mxu0 0.0
        %4436 = vmatpush1.msra.mxu0 0.0
        %4437 = vmatprep.subr.mxu0 0.0
        %4438 = vmatpush1.msra.mxu0 0.0
        %4439 = vmatprep.subr.mxu0 0.0
        %4440 = vmatpush1.msra.mxu0 0.0
        %4441 = vmatprep.mubr.f32.mxu0 0.0
        %4442 = vmatmul.mubr.f32.gmra.mrb[0].mxu0 %v4375
        %v4443 = vpop.f32.mrb[0].mxu0
        %v4444 = vadd.f32 0.0, %v4443
        %v4445 = vpop.f32.mrb[0].mxu0
        %4446 = vdwg.mxu0
        %v4448 = vrot.slane %v4371, 4
        %4449 = vrot.lane.b32.xlu0 %v4448, 32
        %v4450 = vpop.permute.xlu0 %4449
        %v4451 = vsel %vm3160, %v4450, 0
        %4453 = vmatprep.subr.mxu0 0.0
        %4454 = vmatpush1.msra.mxu0 %v3151
        %4455 = vmatprep.subr.mxu0 0.0
        %4456 = vmatpush1.msra.mxu0 %v3152
        %4457 = vmatprep.subr.mxu0 0.0
        %4458 = vmatpush1.msra.mxu0 %v3153
        %4459 = vmatprep.subr.mxu0 0.0
        %4460 = vmatpush1.msra.mxu0 %v3154
        %4461 = vmatprep.subr.mxu0 0.0
        %4462 = vmatpush1.msra.mxu0 0.0
        %4463 = vmatprep.subr.mxu0 0.0
        %4464 = vmatpush1.msra.mxu0 0.0
        %4465 = vmatprep.subr.mxu0 0.0
        %4466 = vmatpush1.msra.mxu0 0.0
        %4467 = vmatprep.subr.mxu0 0.0
        %4468 = vmatpush1.msra.mxu0 0.0
        %4469 = vmatprep.subr.mxu0 0.0
        %4470 = vmatpush1.msra.mxu0 0.0
        %4471 = vmatprep.subr.mxu0 0.0
        %4472 = vmatpush1.msra.mxu0 0.0
        %4473 = vmatprep.subr.mxu0 0.0
        %4474 = vmatpush1.msra.mxu0 0.0
        %4475 = vmatprep.subr.mxu0 0.0
        %4476 = vmatpush1.msra.mxu0 0.0
        %4477 = vmatprep.subr.mxu0 0.0
        %4478 = vmatpush1.msra.mxu0 0.0
        %4479 = vmatprep.subr.mxu0 0.0
        %4480 = vmatpush1.msra.mxu0 0.0
        %4481 = vmatprep.subr.mxu0 0.0
        %4482 = vmatpush1.msra.mxu0 0.0
        %4483 = vmatprep.subr.mxu0 0.0
        %4484 = vmatpush1.msra.mxu0 0.0
        %4485 = vmatprep.subr.mxu0 0.0
        %4486 = vmatpush1.msra.mxu0 0.0
        %4487 = vmatprep.subr.mxu0 0.0
        %4488 = vmatpush1.msra.mxu0 0.0
        %4489 = vmatprep.subr.mxu0 0.0
        %4490 = vmatpush1.msra.mxu0 0.0
        %4491 = vmatprep.subr.mxu0 0.0
        %4492 = vmatpush1.msra.mxu0 0.0
        %4493 = vmatprep.subr.mxu0 0.0
        %4494 = vmatpush1.msra.mxu0 0.0
        %4495 = vmatprep.subr.mxu0 0.0
        %4496 = vmatpush1.msra.mxu0 0.0
        %4497 = vmatprep.subr.mxu0 0.0
        %4498 = vmatpush1.msra.mxu0 0.0
        %4499 = vmatprep.subr.mxu0 0.0
        %4500 = vmatpush1.msra.mxu0 0.0
        %4501 = vmatprep.subr.mxu0 0.0
        %4502 = vmatpush1.msra.mxu0 0.0
        %4503 = vmatprep.subr.mxu0 0.0
        %4504 = vmatpush1.msra.mxu0 0.0
        %4505 = vmatprep.subr.mxu0 0.0
        %4506 = vmatpush1.msra.mxu0 0.0
        %4507 = vmatprep.subr.mxu0 0.0
        %4508 = vmatpush1.msra.mxu0 0.0
        %4509 = vmatprep.subr.mxu0 0.0
        %4510 = vmatpush1.msra.mxu0 0.0
        %4511 = vmatprep.subr.mxu0 0.0
        %4512 = vmatpush1.msra.mxu0 0.0
        %4513 = vmatprep.subr.mxu0 0.0
        %4514 = vmatpush1.msra.mxu0 0.0
        %4515 = vmatprep.subr.mxu0 0.0
        %4516 = vmatpush1.msra.mxu0 0.0
        %4517 = vmatprep.mubr.f32.mxu0 0.0
        %4518 = vmatmul.mubr.f32.gmra.mrb[0].mxu0 %v4451
        %v4519 = vpop.f32.mrb[0].mxu0
        %v4520 = vadd.f32 %v4444, %v4519
        %v4521 = vpop.f32.mrb[0].mxu0
        %4522 = vdwg.mxu0
        %v4523 = vadd.f32 %v4520, %v3159
        %v4524 = vxor.u32 %v4523, 2147483648
        %v4525 = vmul.f32 %v4524, 1.442695
        %v4526 = vpow.pop %v4525
        %v4527 = vadd.f32 %v4526, 1.0
        %v4528 = vrcp.pop %v4527
        %v4529 = vmul.f32 1.0, %v4528
        %v4530 = vtanh.pop %v4523
        %v4531 = vmul.f32 %v4529, %v4264
        %4533 = vrot.lane.b32.xlu0 %v4530, 64
        %v4534 = vpop.permute.xlu0 %4533
        %v4536 = vmul.f32 %v4529, %v4534
        %4538 = vrot.lane.b32.xlu0 %v4536, 32
        %v4539 = vpop.permute.xlu0 %4538
        %v4541 = vadd.f32 %v4531, %v4539
        %v4542 = vtanh.pop %v4541
        %4544 = vrot.lane.b32.xlu0 %v4542, 64
        %v4545 = vpop.permute.xlu0 %4544
        %v4547 = vmul.f32 %v4529, %v4545
        %4548 = vmatprep.subr.mxu0 0.0
        %4549 = vmatpush1.msra.mxu0 %v3147
        %4550 = vmatprep.subr.mxu0 0.0
        %4551 = vmatpush1.msra.mxu0 %v3148
        %4552 = vmatprep.subr.mxu0 0.0
        %4553 = vmatpush1.msra.mxu0 %v3149
        %4554 = vmatprep.subr.mxu0 0.0
        %4555 = vmatpush1.msra.mxu0 %v3150
        %4556 = vmatprep.subr.mxu0 0.0
        %4557 = vmatpush1.msra.mxu0 0.0
        %4558 = vmatprep.subr.mxu0 0.0
        %4559 = vmatpush1.msra.mxu0 0.0
        %4560 = vmatprep.subr.mxu0 0.0
        %4561 = vmatpush1.msra.mxu0 0.0
        %4562 = vmatprep.subr.mxu0 0.0
        %4563 = vmatpush1.msra.mxu0 0.0
        %4564 = vmatprep.subr.mxu0 0.0
        %4565 = vmatpush1.msra.mxu0 0.0
        %4566 = vmatprep.subr.mxu0 0.0
        %4567 = vmatpush1.msra.mxu0 0.0
        %4568 = vmatprep.subr.mxu0 0.0
        %4569 = vmatpush1.msra.mxu0 0.0
        %4570 = vmatprep.subr.mxu0 0.0
        %4571 = vmatpush1.msra.mxu0 0.0
        %4572 = vmatprep.subr.mxu0 0.0
        %4573 = vmatpush1.msra.mxu0 0.0
        %4574 = vmatprep.subr.mxu0 0.0
        %4575 = vmatpush1.msra.mxu0 0.0
        %4576 = vmatprep.subr.mxu0 0.0
        %4577 = vmatpush1.msra.mxu0 0.0
        %4578 = vmatprep.subr.mxu0 0.0
        %4579 = vmatpush1.msra.mxu0 0.0
        %4580 = vmatprep.subr.mxu0 0.0
        %4581 = vmatpush1.msra.mxu0 0.0
        %4582 = vmatprep.subr.mxu0 0.0
        %4583 = vmatpush1.msra.mxu0 0.0
        %4584 = vmatprep.subr.mxu0 0.0
        %4585 = vmatpush1.msra.mxu0 0.0
        %4586 = vmatprep.subr.mxu0 0.0
        %4587 = vmatpush1.msra.mxu0 0.0
        %4588 = vmatprep.subr.mxu0 0.0
        %4589 = vmatpush1.msra.mxu0 0.0
        %4590 = vmatprep.subr.mxu0 0.0
        %4591 = vmatpush1.msra.mxu0 0.0
        %4592 = vmatprep.subr.mxu0 0.0
        %4593 = vmatpush1.msra.mxu0 0.0
        %4594 = vmatprep.subr.mxu0 0.0
        %4595 = vmatpush1.msra.mxu0 0.0
        %4596 = vmatprep.subr.mxu0 0.0
        %4597 = vmatpush1.msra.mxu0 0.0
        %4598 = vmatprep.subr.mxu0 0.0
        %4599 = vmatpush1.msra.mxu0 0.0
        %4600 = vmatprep.subr.mxu0 0.0
        %4601 = vmatpush1.msra.mxu0 0.0
        %4602 = vmatprep.subr.mxu0 0.0
        %4603 = vmatpush1.msra.mxu0 0.0
        %4604 = vmatprep.subr.mxu0 0.0
        %4605 = vmatpush1.msra.mxu0 0.0
        %4606 = vmatprep.subr.mxu0 0.0
        %4607 = vmatpush1.msra.mxu0 0.0
        %4608 = vmatprep.subr.mxu0 0.0
        %4609 = vmatpush1.msra.mxu0 0.0
        %4610 = vmatprep.subr.mxu0 0.0
        %4611 = vmatpush1.msra.mxu0 0.0
        %4612 = vmatprep.mubr.f32.mxu0 0.0
        %4613 = vmatmul.mubr.f32.gmra.mrb[0].mxu0 %v4451
        %v4614 = vpop.f32.mrb[0].mxu0
        %v4615 = vadd.f32 0.0, %v4614
        %v4616 = vpop.f32.mrb[0].mxu0
        %4617 = vdwg.mxu0
        %v4619 = vrot.slane %v4615, 3
        %v4621 = vadd.f32 %v3144, %v4619
        %v4622 = vxor.u32 %v4621, 2147483648
        %v4623 = vmul.f32 %v4622, 1.442695
        %v4624 = vpow.pop %v4623
        %v4625 = vadd.f32 %v4624, 1.0
        %v4626 = vrcp.pop %v4625
        %v4627 = vmul.f32 1.0, %v4626
        %v4628 = vtanh.pop %v4621
        %v4630 = vrot.slane %v4365, 7
        %v4632 = vmul.f32 %v4627, %v4630
        %4634 = vrot.lane.b32.xlu0 %v4628, 64
        %v4635 = vpop.permute.xlu0 %4634
        %v4637 = vmul.f32 %v4627, %v4635
        %4639 = vrot.lane.b32.xlu0 %v4637, 32
        %v4640 = vpop.permute.xlu0 %4639
        %v4642 = vadd.f32 %v4632, %v4640
        %v4643 = vtanh.pop %v4642
        %4645 = vrot.lane.b32.xlu0 %v4643, 64
        %v4646 = vpop.permute.xlu0 %4645
        %v4648 = vmul.f32 %v4627, %v4646
        %4650 = vrot.lane.b32.xlu0 %v4547, 32
        %v4651 = vpop.permute.xlu0 %4650
        %v4652 = vsel %vm3160, %v4651, 0
        %4654 = vmatprep.subr.mxu0 0.0
        %4655 = vmatpush1.msra.mxu0 %v3155
        %4656 = vmatprep.subr.mxu0 0.0
        %4657 = vmatpush1.msra.mxu0 %v3156
        %4658 = vmatprep.subr.mxu0 0.0
        %4659 = vmatpush1.msra.mxu0 %v3157
        %4660 = vmatprep.subr.mxu0 0.0
        %4661 = vmatpush1.msra.mxu0 %v3158
        %4662 = vmatprep.subr.mxu0 0.0
        %4663 = vmatpush1.msra.mxu0 0.0
        %4664 = vmatprep.subr.mxu0 0.0
        %4665 = vmatpush1.msra.mxu0 0.0
        %4666 = vmatprep.subr.mxu0 0.0
        %4667 = vmatpush1.msra.mxu0 0.0
        %4668 = vmatprep.subr.mxu0 0.0
        %4669 = vmatpush1.msra.mxu0 0.0
        %4670 = vmatprep.subr.mxu0 0.0
        %4671 = vmatpush1.msra.mxu0 0.0
        %4672 = vmatprep.subr.mxu0 0.0
        %4673 = vmatpush1.msra.mxu0 0.0
        %4674 = vmatprep.subr.mxu0 0.0
        %4675 = vmatpush1.msra.mxu0 0.0
        %4676 = vmatprep.subr.mxu0 0.0
        %4677 = vmatpush1.msra.mxu0 0.0
        %4678 = vmatprep.subr.mxu0 0.0
        %4679 = vmatpush1.msra.mxu0 0.0
        %4680 = vmatprep.subr.mxu0 0.0
        %4681 = vmatpush1.msra.mxu0 0.0
        %4682 = vmatprep.subr.mxu0 0.0
        %4683 = vmatpush1.msra.mxu0 0.0
        %4684 = vmatprep.subr.mxu0 0.0
        %4685 = vmatpush1.msra.mxu0 0.0
        %4686 = vmatprep.subr.mxu0 0.0
        %4687 = vmatpush1.msra.mxu0 0.0
        %4688 = vmatprep.subr.mxu0 0.0
        %4689 = vmatpush1.msra.mxu0 0.0
        %4690 = vmatprep.subr.mxu0 0.0
        %4691 = vmatpush1.msra.mxu0 0.0
        %4692 = vmatprep.subr.mxu0 0.0
        %4693 = vmatpush1.msra.mxu0 0.0
        %4694 = vmatprep.subr.mxu0 0.0
        %4695 = vmatpush1.msra.mxu0 0.0
        %4696 = vmatprep.subr.mxu0 0.0
        %4697 = vmatpush1.msra.mxu0 0.0
        %4698 = vmatprep.subr.mxu0 0.0
        %4699 = vmatpush1.msra.mxu0 0.0
        %4700 = vmatprep.subr.mxu0 0.0
        %4701 = vmatpush1.msra.mxu0 0.0
        %4702 = vmatprep.subr.mxu0 0.0
        %4703 = vmatpush1.msra.mxu0 0.0
        %4704 = vmatprep.subr.mxu0 0.0
        %4705 = vmatpush1.msra.mxu0 0.0
        %4706 = vmatprep.subr.mxu0 0.0
        %4707 = vmatpush1.msra.mxu0 0.0
        %4708 = vmatprep.subr.mxu0 0.0
        %4709 = vmatpush1.msra.mxu0 0.0
        %4710 = vmatprep.subr.mxu0 0.0
        %4711 = vmatpush1.msra.mxu0 0.0
        %4712 = vmatprep.subr.mxu0 0.0
        %4713 = vmatpush1.msra.mxu0 0.0
        %4714 = vmatprep.subr.mxu0 0.0
        %4715 = vmatpush1.msra.mxu0 0.0
        %4716 = vmatprep.subr.mxu0 0.0
        %4717 = vmatpush1.msra.mxu0 0.0
        %4718 = vmatprep.mubr.f32.mxu0 0.0
        %4719 = vmatmul.mubr.f32.gmra.mrb[0].mxu0 %v4652
        %v4720 = vpop.f32.mrb[0].mxu0
        %v4721 = vadd.f32 0.0, %v4720
        %v4722 = vpop.f32.mrb[0].mxu0
        %4723 = vdwg.mxu0
        %v4725 = vrot.slane %v4648, 5
        %4726 = vrot.lane.b32.xlu0 %v4725, 32
        %v4727 = vpop.permute.xlu0 %4726
        %v4728 = vsel %vm3160, %v4727, 0
        %4730 = vmatprep.subr.mxu0 0.0
        %4731 = vmatpush1.msra.mxu0 %v3151
        %4732 = vmatprep.subr.mxu0 0.0
        %4733 = vmatpush1.msra.mxu0 %v3152
        %4734 = vmatprep.subr.mxu0 0.0
        %4735 = vmatpush1.msra.mxu0 %v3153
        %4736 = vmatprep.subr.mxu0 0.0
        %4737 = vmatpush1.msra.mxu0 %v3154
        %4738 = vmatprep.subr.mxu0 0.0
        %4739 = vmatpush1.msra.mxu0 0.0
        %4740 = vmatprep.subr.mxu0 0.0
        %4741 = vmatpush1.msra.mxu0 0.0
        %4742 = vmatprep.subr.mxu0 0.0
        %4743 = vmatpush1.msra.mxu0 0.0
        %4744 = vmatprep.subr.mxu0 0.0
        %4745 = vmatpush1.msra.mxu0 0.0
        %4746 = vmatprep.subr.mxu0 0.0
        %4747 = vmatpush1.msra.mxu0 0.0
        %4748 = vmatprep.subr.mxu0 0.0
        %4749 = vmatpush1.msra.mxu0 0.0
        %4750 = vmatprep.subr.mxu0 0.0
        %4751 = vmatpush1.msra.mxu0 0.0
        %4752 = vmatprep.subr.mxu0 0.0
        %4753 = vmatpush1.msra.mxu0 0.0
        %4754 = vmatprep.subr.mxu0 0.0
        %4755 = vmatpush1.msra.mxu0 0.0
        %4756 = vmatprep.subr.mxu0 0.0
        %4757 = vmatpush1.msra.mxu0 0.0
        %4758 = vmatprep.subr.mxu0 0.0
        %4759 = vmatpush1.msra.mxu0 0.0
        %4760 = vmatprep.subr.mxu0 0.0
        %4761 = vmatpush1.msra.mxu0 0.0
        %4762 = vmatprep.subr.mxu0 0.0
        %4763 = vmatpush1.msra.mxu0 0.0
        %4764 = vmatprep.subr.mxu0 0.0
        %4765 = vmatpush1.msra.mxu0 0.0
        %4766 = vmatprep.subr.mxu0 0.0
        %4767 = vmatpush1.msra.mxu0 0.0
        %4768 = vmatprep.subr.mxu0 0.0
        %4769 = vmatpush1.msra.mxu0 0.0
        %4770 = vmatprep.subr.mxu0 0.0
        %4771 = vmatpush1.msra.mxu0 0.0
        %4772 = vmatprep.subr.mxu0 0.0
        %4773 = vmatpush1.msra.mxu0 0.0
        %4774 = vmatprep.subr.mxu0 0.0
        %4775 = vmatpush1.msra.mxu0 0.0
        %4776 = vmatprep.subr.mxu0 0.0
        %4777 = vmatpush1.msra.mxu0 0.0
        %4778 = vmatprep.subr.mxu0 0.0
        %4779 = vmatpush1.msra.mxu0 0.0
        %4780 = vmatprep.subr.mxu0 0.0
        %4781 = vmatpush1.msra.mxu0 0.0
        %4782 = vmatprep.subr.mxu0 0.0
        %4783 = vmatpush1.msra.mxu0 0.0
        %4784 = vmatprep.subr.mxu0 0.0
        %4785 = vmatpush1.msra.mxu0 0.0
        %4786 = vmatprep.subr.mxu0 0.0
        %4787 = vmatpush1.msra.mxu0 0.0
        %4788 = vmatprep.subr.mxu0 0.0
        %4789 = vmatpush1.msra.mxu0 0.0
        %4790 = vmatprep.subr.mxu0 0.0
        %4791 = vmatpush1.msra.mxu0 0.0
        %4792 = vmatprep.subr.mxu0 0.0
        %4793 = vmatpush1.msra.mxu0 0.0
        %4794 = vmatprep.mubr.f32.mxu0 0.0
        %4795 = vmatmul.mubr.f32.gmra.mrb[0].mxu0 %v4728
        %v4796 = vpop.f32.mrb[0].mxu0
        %v4797 = vadd.f32 %v4721, %v4796
        %v4798 = vpop.f32.mrb[0].mxu0
        %4799 = vdwg.mxu0
        %v4800 = vadd.f32 %v4797, %v3159
        %v4801 = vxor.u32 %v4800, 2147483648
        %v4802 = vmul.f32 %v4801, 1.442695
        %v4803 = vpow.pop %v4802
        %v4804 = vadd.f32 %v4803, 1.0
        %v4805 = vrcp.pop %v4804
        %v4806 = vmul.f32 1.0, %v4805
        %v4807 = vtanh.pop %v4800
        %v4808 = vmul.f32 %v4806, %v4541
        %4810 = vrot.lane.b32.xlu0 %v4807, 64
        %v4811 = vpop.permute.xlu0 %4810
        %v4813 = vmul.f32 %v4806, %v4811
        %4815 = vrot.lane.b32.xlu0 %v4813, 32
        %v4816 = vpop.permute.xlu0 %4815
        %v4818 = vadd.f32 %v4808, %v4816
        %v4819 = vtanh.pop %v4818
        %4821 = vrot.lane.b32.xlu0 %v4819, 64
        %v4822 = vpop.permute.xlu0 %4821
        %v4824 = vmul.f32 %v4806, %v4822
        %4825 = vmatprep.subr.mxu0 0.0
        %4826 = vmatpush1.msra.mxu0 %v3147
        %4827 = vmatprep.subr.mxu0 0.0
        %4828 = vmatpush1.msra.mxu0 %v3148
        %4829 = vmatprep.subr.mxu0 0.0
        %4830 = vmatpush1.msra.mxu0 %v3149
        %4831 = vmatprep.subr.mxu0 0.0
        %4832 = vmatpush1.msra.mxu0 %v3150
        %4833 = vmatprep.subr.mxu0 0.0
        %4834 = vmatpush1.msra.mxu0 0.0
        %4835 = vmatprep.subr.mxu0 0.0
        %4836 = vmatpush1.msra.mxu0 0.0
        %4837 = vmatprep.subr.mxu0 0.0
        %4838 = vmatpush1.msra.mxu0 0.0
        %4839 = vmatprep.subr.mxu0 0.0
        %4840 = vmatpush1.msra.mxu0 0.0
        %4841 = vmatprep.subr.mxu0 0.0
        %4842 = vmatpush1.msra.mxu0 0.0
        %4843 = vmatprep.subr.mxu0 0.0
        %4844 = vmatpush1.msra.mxu0 0.0
        %4845 = vmatprep.subr.mxu0 0.0
        %4846 = vmatpush1.msra.mxu0 0.0
        %4847 = vmatprep.subr.mxu0 0.0
        %4848 = vmatpush1.msra.mxu0 0.0
        %4849 = vmatprep.subr.mxu0 0.0
        %4850 = vmatpush1.msra.mxu0 0.0
        %4851 = vmatprep.subr.mxu0 0.0
        %4852 = vmatpush1.msra.mxu0 0.0
        %4853 = vmatprep.subr.mxu0 0.0
        %4854 = vmatpush1.msra.mxu0 0.0
        %4855 = vmatprep.subr.mxu0 0.0
        %4856 = vmatpush1.msra.mxu0 0.0
        %4857 = vmatprep.subr.mxu0 0.0
        %4858 = vmatpush1.msra.mxu0 0.0
        %4859 = vmatprep.subr.mxu0 0.0
        %4860 = vmatpush1.msra.mxu0 0.0
        %4861 = vmatprep.subr.mxu0 0.0
        %4862 = vmatpush1.msra.mxu0 0.0
        %4863 = vmatprep.subr.mxu0 0.0
        %4864 = vmatpush1.msra.mxu0 0.0
        %4865 = vmatprep.subr.mxu0 0.0
        %4866 = vmatpush1.msra.mxu0 0.0
        %4867 = vmatprep.subr.mxu0 0.0
        %4868 = vmatpush1.msra.mxu0 0.0
        %4869 = vmatprep.subr.mxu0 0.0
        %4870 = vmatpush1.msra.mxu0 0.0
        %4871 = vmatprep.subr.mxu0 0.0
        %4872 = vmatpush1.msra.mxu0 0.0
        %4873 = vmatprep.subr.mxu0 0.0
        %4874 = vmatpush1.msra.mxu0 0.0
        %4875 = vmatprep.subr.mxu0 0.0
        %4876 = vmatpush1.msra.mxu0 0.0
        %4877 = vmatprep.subr.mxu0 0.0
        %4878 = vmatpush1.msra.mxu0 0.0
        %4879 = vmatprep.subr.mxu0 0.0
        %4880 = vmatpush1.msra.mxu0 0.0
        %4881 = vmatprep.subr.mxu0 0.0
        %4882 = vmatpush1.msra.mxu0 0.0
        %4883 = vmatprep.subr.mxu0 0.0
        %4884 = vmatpush1.msra.mxu0 0.0
        %4885 = vmatprep.subr.mxu0 0.0
        %4886 = vmatpush1.msra.mxu0 0.0
        %4887 = vmatprep.subr.mxu0 0.0
        %4888 = vmatpush1.msra.mxu0 0.0
        %4889 = vmatprep.mubr.f32.mxu0 0.0
        %4890 = vmatmul.mubr.f32.gmra.mrb[0].mxu0 %v4728
        %v4891 = vpop.f32.mrb[0].mxu0
        %v4892 = vadd.f32 0.0, %v4891
        %v4893 = vpop.f32.mrb[0].mxu0
        %4894 = vdwg.mxu0
        %v4896 = vrot.slane %v4892, 2
        %v4898 = vadd.f32 %v3144, %v4896
        %v4899 = vxor.u32 %v4898, 2147483648
        %v4900 = vmul.f32 %v4899, 1.442695
        %v4901 = vpow.pop %v4900
        %v4902 = vadd.f32 %v4901, 1.0
        %v4903 = vrcp.pop %v4902
        %v4904 = vmul.f32 1.0, %v4903
        %v4905 = vtanh.pop %v4898
        %v4907 = vrot.slane %v4642, 7
        %v4909 = vmul.f32 %v4904, %v4907
        %4911 = vrot.lane.b32.xlu0 %v4905, 64
        %v4912 = vpop.permute.xlu0 %4911
        %v4914 = vmul.f32 %v4904, %v4912
        %4916 = vrot.lane.b32.xlu0 %v4914, 32
        %v4917 = vpop.permute.xlu0 %4916
        %v4919 = vadd.f32 %v4909, %v4917
        %v4920 = vtanh.pop %v4919
        %4922 = vrot.lane.b32.xlu0 %v4920, 64
        %v4923 = vpop.permute.xlu0 %4922
        %v4925 = vmul.f32 %v4904, %v4923
        %4927 = vrot.lane.b32.xlu0 %v4824, 32
        %v4928 = vpop.permute.xlu0 %4927
        %v4929 = vsel %vm3160, %v4928, 0
        %4931 = vmatprep.subr.mxu0 0.0
        %4932 = vmatpush1.msra.mxu0 %v3155
        %4933 = vmatprep.subr.mxu0 0.0
        %4934 = vmatpush1.msra.mxu0 %v3156
        %4935 = vmatprep.subr.mxu0 0.0
        %4936 = vmatpush1.msra.mxu0 %v3157
        %4937 = vmatprep.subr.mxu0 0.0
        %4938 = vmatpush1.msra.mxu0 %v3158
        %4939 = vmatprep.subr.mxu0 0.0
        %4940 = vmatpush1.msra.mxu0 0.0
        %4941 = vmatprep.subr.mxu0 0.0
        %4942 = vmatpush1.msra.mxu0 0.0
        %4943 = vmatprep.subr.mxu0 0.0
        %4944 = vmatpush1.msra.mxu0 0.0
        %4945 = vmatprep.subr.mxu0 0.0
        %4946 = vmatpush1.msra.mxu0 0.0
        %4947 = vmatprep.subr.mxu0 0.0
        %4948 = vmatpush1.msra.mxu0 0.0
        %4949 = vmatprep.subr.mxu0 0.0
        %4950 = vmatpush1.msra.mxu0 0.0
        %4951 = vmatprep.subr.mxu0 0.0
        %4952 = vmatpush1.msra.mxu0 0.0
        %4953 = vmatprep.subr.mxu0 0.0
        %4954 = vmatpush1.msra.mxu0 0.0
        %4955 = vmatprep.subr.mxu0 0.0
        %4956 = vmatpush1.msra.mxu0 0.0
        %4957 = vmatprep.subr.mxu0 0.0
        %4958 = vmatpush1.msra.mxu0 0.0
        %4959 = vmatprep.subr.mxu0 0.0
        %4960 = vmatpush1.msra.mxu0 0.0
        %4961 = vmatprep.subr.mxu0 0.0
        %4962 = vmatpush1.msra.mxu0 0.0
        %4963 = vmatprep.subr.mxu0 0.0
        %4964 = vmatpush1.msra.mxu0 0.0
        %4965 = vmatprep.subr.mxu0 0.0
        %4966 = vmatpush1.msra.mxu0 0.0
        %4967 = vmatprep.subr.mxu0 0.0
        %4968 = vmatpush1.msra.mxu0 0.0
        %4969 = vmatprep.subr.mxu0 0.0
        %4970 = vmatpush1.msra.mxu0 0.0
        %4971 = vmatprep.subr.mxu0 0.0
        %4972 = vmatpush1.msra.mxu0 0.0
        %4973 = vmatprep.subr.mxu0 0.0
        %4974 = vmatpush1.msra.mxu0 0.0
        %4975 = vmatprep.subr.mxu0 0.0
        %4976 = vmatpush1.msra.mxu0 0.0
        %4977 = vmatprep.subr.mxu0 0.0
        %4978 = vmatpush1.msra.mxu0 0.0
        %4979 = vmatprep.subr.mxu0 0.0
        %4980 = vmatpush1.msra.mxu0 0.0
        %4981 = vmatprep.subr.mxu0 0.0
        %4982 = vmatpush1.msra.mxu0 0.0
        %4983 = vmatprep.subr.mxu0 0.0
        %4984 = vmatpush1.msra.mxu0 0.0
        %4985 = vmatprep.subr.mxu0 0.0
        %4986 = vmatpush1.msra.mxu0 0.0
        %4987 = vmatprep.subr.mxu0 0.0
        %4988 = vmatpush1.msra.mxu0 0.0
        %4989 = vmatprep.subr.mxu0 0.0
        %4990 = vmatpush1.msra.mxu0 0.0
        %4991 = vmatprep.subr.mxu0 0.0
        %4992 = vmatpush1.msra.mxu0 0.0
        %4993 = vmatprep.subr.mxu0 0.0
        %4994 = vmatpush1.msra.mxu0 0.0
        %4995 = vmatprep.mubr.f32.mxu0 0.0
        %4996 = vmatmul.mubr.f32.gmra.mrb[0].mxu0 %v4929
        %v4997 = vpop.f32.mrb[0].mxu0
        %v4998 = vadd.f32 0.0, %v4997
        %v4999 = vpop.f32.mrb[0].mxu0
        %5000 = vdwg.mxu0
        %v5002 = vrot.slane %v4925, 6
        %5003 = vrot.lane.b32.xlu0 %v5002, 32
        %v5004 = vpop.permute.xlu0 %5003
        %v5005 = vsel %vm3160, %v5004, 0
        %5007 = vmatprep.subr.mxu0 0.0
        %5008 = vmatpush1.msra.mxu0 %v3151
        %5009 = vmatprep.subr.mxu0 0.0
        %5010 = vmatpush1.msra.mxu0 %v3152
        %5011 = vmatprep.subr.mxu0 0.0
        %5012 = vmatpush1.msra.mxu0 %v3153
        %5013 = vmatprep.subr.mxu0 0.0
        %5014 = vmatpush1.msra.mxu0 %v3154
        %5015 = vmatprep.subr.mxu0 0.0
        %5016 = vmatpush1.msra.mxu0 0.0
        %5017 = vmatprep.subr.mxu0 0.0
        %5018 = vmatpush1.msra.mxu0 0.0
        %5019 = vmatprep.subr.mxu0 0.0
        %5020 = vmatpush1.msra.mxu0 0.0
        %5021 = vmatprep.subr.mxu0 0.0
        %5022 = vmatpush1.msra.mxu0 0.0
        %5023 = vmatprep.subr.mxu0 0.0
        %5024 = vmatpush1.msra.mxu0 0.0
        %5025 = vmatprep.subr.mxu0 0.0
        %5026 = vmatpush1.msra.mxu0 0.0
        %5027 = vmatprep.subr.mxu0 0.0
        %5028 = vmatpush1.msra.mxu0 0.0
        %5029 = vmatprep.subr.mxu0 0.0
        %5030 = vmatpush1.msra.mxu0 0.0
        %5031 = vmatprep.subr.mxu0 0.0
        %5032 = vmatpush1.msra.mxu0 0.0
        %5033 = vmatprep.subr.mxu0 0.0
        %5034 = vmatpush1.msra.mxu0 0.0
        %5035 = vmatprep.subr.mxu0 0.0
        %5036 = vmatpush1.msra.mxu0 0.0
        %5037 = vmatprep.subr.mxu0 0.0
        %5038 = vmatpush1.msra.mxu0 0.0
        %5039 = vmatprep.subr.mxu0 0.0
        %5040 = vmatpush1.msra.mxu0 0.0
        %5041 = vmatprep.subr.mxu0 0.0
        %5042 = vmatpush1.msra.mxu0 0.0
        %5043 = vmatprep.subr.mxu0 0.0
        %5044 = vmatpush1.msra.mxu0 0.0
        %5045 = vmatprep.subr.mxu0 0.0
        %5046 = vmatpush1.msra.mxu0 0.0
        %5047 = vmatprep.subr.mxu0 0.0
        %5048 = vmatpush1.msra.mxu0 0.0
        %5049 = vmatprep.subr.mxu0 0.0
        %5050 = vmatpush1.msra.mxu0 0.0
        %5051 = vmatprep.subr.mxu0 0.0
        %5052 = vmatpush1.msra.mxu0 0.0
        %5053 = vmatprep.subr.mxu0 0.0
        %5054 = vmatpush1.msra.mxu0 0.0
        %5055 = vmatprep.subr.mxu0 0.0
        %5056 = vmatpush1.msra.mxu0 0.0
        %5057 = vmatprep.subr.mxu0 0.0
        %5058 = vmatpush1.msra.mxu0 0.0
        %5059 = vmatprep.subr.mxu0 0.0
        %5060 = vmatpush1.msra.mxu0 0.0
        %5061 = vmatprep.subr.mxu0 0.0
        %5062 = vmatpush1.msra.mxu0 0.0
        %5063 = vmatprep.subr.mxu0 0.0
        %5064 = vmatpush1.msra.mxu0 0.0
        %5065 = vmatprep.subr.mxu0 0.0
        %5066 = vmatpush1.msra.mxu0 0.0
        %5067 = vmatprep.subr.mxu0 0.0
        %5068 = vmatpush1.msra.mxu0 0.0
        %5069 = vmatprep.subr.mxu0 0.0
        %5070 = vmatpush1.msra.mxu0 0.0
        %5071 = vmatprep.mubr.f32.mxu0 0.0
        %5072 = vmatmul.mubr.f32.gmra.mrb[0].mxu0 %v5005
        %v5073 = vpop.f32.mrb[0].mxu0
        %v5074 = vadd.f32 %v4998, %v5073
        %v5075 = vpop.f32.mrb[0].mxu0
        %5076 = vdwg.mxu0
        %v5077 = vadd.f32 %v5074, %v3159
        %v5078 = vxor.u32 %v5077, 2147483648
        %v5079 = vmul.f32 %v5078, 1.442695
        %v5080 = vpow.pop %v5079
        %v5081 = vadd.f32 %v5080, 1.0
        %v5082 = vrcp.pop %v5081
        %v5083 = vmul.f32 1.0, %v5082
        %v5084 = vtanh.pop %v5077
        %v5085 = vmul.f32 %v5083, %v4818
        %5087 = vrot.lane.b32.xlu0 %v5084, 64
        %v5088 = vpop.permute.xlu0 %5087
        %v5090 = vmul.f32 %v5083, %v5088
        %5092 = vrot.lane.b32.xlu0 %v5090, 32
        %v5093 = vpop.permute.xlu0 %5092
        %v5095 = vadd.f32 %v5085, %v5093
        %v5096 = vtanh.pop %v5095
        %5098 = vrot.lane.b32.xlu0 %v5096, 64
        %v5099 = vpop.permute.xlu0 %5098
        %v5101 = vmul.f32 %v5083, %v5099
        %5102 = vmatprep.subr.mxu0 0.0
        %5103 = vmatpush1.msra.mxu0 %v3147
        %5104 = vmatprep.subr.mxu0 0.0
        %5105 = vmatpush1.msra.mxu0 %v3148
        %5106 = vmatprep.subr.mxu0 0.0
        %5107 = vmatpush1.msra.mxu0 %v3149
        %5108 = vmatprep.subr.mxu0 0.0
        %5109 = vmatpush1.msra.mxu0 %v3150
        %5110 = vmatprep.subr.mxu0 0.0
        %5111 = vmatpush1.msra.mxu0 0.0
        %5112 = vmatprep.subr.mxu0 0.0
        %5113 = vmatpush1.msra.mxu0 0.0
        %5114 = vmatprep.subr.mxu0 0.0
        %5115 = vmatpush1.msra.mxu0 0.0
        %5116 = vmatprep.subr.mxu0 0.0
        %5117 = vmatpush1.msra.mxu0 0.0
        %5118 = vmatprep.subr.mxu0 0.0
        %5119 = vmatpush1.msra.mxu0 0.0
        %5120 = vmatprep.subr.mxu0 0.0
        %5121 = vmatpush1.msra.mxu0 0.0
        %5122 = vmatprep.subr.mxu0 0.0
        %5123 = vmatpush1.msra.mxu0 0.0
        %5124 = vmatprep.subr.mxu0 0.0
        %5125 = vmatpush1.msra.mxu0 0.0
        %5126 = vmatprep.subr.mxu0 0.0
        %5127 = vmatpush1.msra.mxu0 0.0
        %5128 = vmatprep.subr.mxu0 0.0
        %5129 = vmatpush1.msra.mxu0 0.0
        %5130 = vmatprep.subr.mxu0 0.0
        %5131 = vmatpush1.msra.mxu0 0.0
        %5132 = vmatprep.subr.mxu0 0.0
        %5133 = vmatpush1.msra.mxu0 0.0
        %5134 = vmatprep.subr.mxu0 0.0
        %5135 = vmatpush1.msra.mxu0 0.0
        %5136 = vmatprep.subr.mxu0 0.0
        %5137 = vmatpush1.msra.mxu0 0.0
        %5138 = vmatprep.subr.mxu0 0.0
        %5139 = vmatpush1.msra.mxu0 0.0
        %5140 = vmatprep.subr.mxu0 0.0
        %5141 = vmatpush1.msra.mxu0 0.0
        %5142 = vmatprep.subr.mxu0 0.0
        %5143 = vmatpush1.msra.mxu0 0.0
        %5144 = vmatprep.subr.mxu0 0.0
        %5145 = vmatpush1.msra.mxu0 0.0
        %5146 = vmatprep.subr.mxu0 0.0
        %5147 = vmatpush1.msra.mxu0 0.0
        %5148 = vmatprep.subr.mxu0 0.0
        %5149 = vmatpush1.msra.mxu0 0.0
        %5150 = vmatprep.subr.mxu0 0.0
        %5151 = vmatpush1.msra.mxu0 0.0
        %5152 = vmatprep.subr.mxu0 0.0
        %5153 = vmatpush1.msra.mxu0 0.0
        %5154 = vmatprep.subr.mxu0 0.0
        %5155 = vmatpush1.msra.mxu0 0.0
        %5156 = vmatprep.subr.mxu0 0.0
        %5157 = vmatpush1.msra.mxu0 0.0
        %5158 = vmatprep.subr.mxu0 0.0
        %5159 = vmatpush1.msra.mxu0 0.0
        %5160 = vmatprep.subr.mxu0 0.0
        %5161 = vmatpush1.msra.mxu0 0.0
        %5162 = vmatprep.subr.mxu0 0.0
        %5163 = vmatpush1.msra.mxu0 0.0
        %5164 = vmatprep.subr.mxu0 0.0
        %5165 = vmatpush1.msra.mxu0 0.0
        %5166 = vmatprep.mubr.f32.mxu0 0.0
        %5167 = vmatmul.mubr.f32.gmra.mrb[0].mxu0 %v5005
        %v5168 = vpop.f32.mrb[0].mxu0
        %v5169 = vadd.f32 0.0, %v5168
        %v5170 = vpop.f32.mrb[0].mxu0
        %5171 = vdwg.mxu0
        %v5173 = vrot.slane %v5169, 1
        %v5175 = vadd.f32 %v3144, %v5173
        %v5176 = vxor.u32 %v5175, 2147483648
        %v5177 = vmul.f32 %v5176, 1.442695
        %v5178 = vpow.pop %v5177
        %v5179 = vadd.f32 %v5178, 1.0
        %v5180 = vrcp.pop %v5179
        %v5181 = vmul.f32 1.0, %v5180
        %v5182 = vtanh.pop %v5175
        %v5184 = vrot.slane %v4919, 7
        %v5186 = vmul.f32 %v5181, %v5184
        %5188 = vrot.lane.b32.xlu0 %v5182, 64
        %v5189 = vpop.permute.xlu0 %5188
        %v5191 = vmul.f32 %v5181, %v5189
        %5193 = vrot.lane.b32.xlu0 %v5191, 32
        %v5194 = vpop.permute.xlu0 %5193
        %v5196 = vadd.f32 %v5186, %v5194
        %v5197 = vtanh.pop %v5196
        %5199 = vrot.lane.b32.xlu0 %v5197, 64
        %v5200 = vpop.permute.xlu0 %5199
        %v5202 = vmul.f32 %v5181, %v5200
        %5204 = vrot.lane.b32.xlu0 %v5101, 32
        %v5205 = vpop.permute.xlu0 %5204
        %v5206 = vsel %vm3160, %v5205, 0
        %5208 = vmatprep.subr.mxu0 0.0
        %5209 = vmatpush1.msra.mxu0 %v3155
        %5210 = vmatprep.subr.mxu0 0.0
        %5211 = vmatpush1.msra.mxu0 %v3156
        %5212 = vmatprep.subr.mxu0 0.0
        %5213 = vmatpush1.msra.mxu0 %v3157
        %5214 = vmatprep.subr.mxu0 0.0
        %5215 = vmatpush1.msra.mxu0 %v3158
        %5216 = vmatprep.subr.mxu0 0.0
        %5217 = vmatpush1.msra.mxu0 0.0
        %5218 = vmatprep.subr.mxu0 0.0
        %5219 = vmatpush1.msra.mxu0 0.0
        %5220 = vmatprep.subr.mxu0 0.0
        %5221 = vmatpush1.msra.mxu0 0.0
        %5222 = vmatprep.subr.mxu0 0.0
        %5223 = vmatpush1.msra.mxu0 0.0
        %5224 = vmatprep.subr.mxu0 0.0
        %5225 = vmatpush1.msra.mxu0 0.0
        %5226 = vmatprep.subr.mxu0 0.0
        %5227 = vmatpush1.msra.mxu0 0.0
        %5228 = vmatprep.subr.mxu0 0.0
        %5229 = vmatpush1.msra.mxu0 0.0
        %5230 = vmatprep.subr.mxu0 0.0
        %5231 = vmatpush1.msra.mxu0 0.0
        %5232 = vmatprep.subr.mxu0 0.0
        %5233 = vmatpush1.msra.mxu0 0.0
        %5234 = vmatprep.subr.mxu0 0.0
        %5235 = vmatpush1.msra.mxu0 0.0
        %5236 = vmatprep.subr.mxu0 0.0
        %5237 = vmatpush1.msra.mxu0 0.0
        %5238 = vmatprep.subr.mxu0 0.0
        %5239 = vmatpush1.msra.mxu0 0.0
        %5240 = vmatprep.subr.mxu0 0.0
        %5241 = vmatpush1.msra.mxu0 0.0
        %5242 = vmatprep.subr.mxu0 0.0
        %5243 = vmatpush1.msra.mxu0 0.0
        %5244 = vmatprep.subr.mxu0 0.0
        %5245 = vmatpush1.msra.mxu0 0.0
        %5246 = vmatprep.subr.mxu0 0.0
        %5247 = vmatpush1.msra.mxu0 0.0
        %5248 = vmatprep.subr.mxu0 0.0
        %5249 = vmatpush1.msra.mxu0 0.0
        %5250 = vmatprep.subr.mxu0 0.0
        %5251 = vmatpush1.msra.mxu0 0.0
        %5252 = vmatprep.subr.mxu0 0.0
        %5253 = vmatpush1.msra.mxu0 0.0
        %5254 = vmatprep.subr.mxu0 0.0
        %5255 = vmatpush1.msra.mxu0 0.0
        %5256 = vmatprep.subr.mxu0 0.0
        %5257 = vmatpush1.msra.mxu0 0.0
        %5258 = vmatprep.subr.mxu0 0.0
        %5259 = vmatpush1.msra.mxu0 0.0
        %5260 = vmatprep.subr.mxu0 0.0
        %5261 = vmatpush1.msra.mxu0 0.0
        %5262 = vmatprep.subr.mxu0 0.0
        %5263 = vmatpush1.msra.mxu0 0.0
        %5264 = vmatprep.subr.mxu0 0.0
        %5265 = vmatpush1.msra.mxu0 0.0
        %5266 = vmatprep.subr.mxu0 0.0
        %5267 = vmatpush1.msra.mxu0 0.0
        %5268 = vmatprep.subr.mxu0 0.0
        %5269 = vmatpush1.msra.mxu0 0.0
        %5270 = vmatprep.subr.mxu0 0.0
        %5271 = vmatpush1.msra.mxu0 0.0
        %5272 = vmatprep.mubr.f32.mxu0 0.0
        %5273 = vmatmul.mubr.f32.gmra.mrb[0].mxu0 %v5206
        %v5274 = vpop.f32.mrb[0].mxu0
        %v5275 = vadd.f32 0.0, %v5274
        %v5276 = vpop.f32.mrb[0].mxu0
        %5277 = vdwg.mxu0
        %v5279 = vrot.slane %v5202, 7
        %5280 = vrot.lane.b32.xlu0 %v5279, 32
        %v5281 = vpop.permute.xlu0 %5280
        %v5282 = vsel %vm3160, %v5281, 0
        %5284 = vmatprep.subr.mxu0 0.0
        %5285 = vmatpush1.msra.mxu0 %v3151
        %5286 = vmatprep.subr.mxu0 0.0
        %5287 = vmatpush1.msra.mxu0 %v3152
        %5288 = vmatprep.subr.mxu0 0.0
        %5289 = vmatpush1.msra.mxu0 %v3153
        %5290 = vmatprep.subr.mxu0 0.0
        %5291 = vmatpush1.msra.mxu0 %v3154
        %5292 = vmatprep.subr.mxu0 0.0
        %5293 = vmatpush1.msra.mxu0 0.0
        %5294 = vmatprep.subr.mxu0 0.0
        %5295 = vmatpush1.msra.mxu0 0.0
        %5296 = vmatprep.subr.mxu0 0.0
        %5297 = vmatpush1.msra.mxu0 0.0
        %5298 = vmatprep.subr.mxu0 0.0
        %5299 = vmatpush1.msra.mxu0 0.0
        %5300 = vmatprep.subr.mxu0 0.0
        %5301 = vmatpush1.msra.mxu0 0.0
        %5302 = vmatprep.subr.mxu0 0.0
        %5303 = vmatpush1.msra.mxu0 0.0
        %5304 = vmatprep.subr.mxu0 0.0
        %5305 = vmatpush1.msra.mxu0 0.0
        %5306 = vmatprep.subr.mxu0 0.0
        %5307 = vmatpush1.msra.mxu0 0.0
        %5308 = vmatprep.subr.mxu0 0.0
        %5309 = vmatpush1.msra.mxu0 0.0
        %5310 = vmatprep.subr.mxu0 0.0
        %5311 = vmatpush1.msra.mxu0 0.0
        %5312 = vmatprep.subr.mxu0 0.0
        %5313 = vmatpush1.msra.mxu0 0.0
        %5314 = vmatprep.subr.mxu0 0.0
        %5315 = vmatpush1.msra.mxu0 0.0
        %5316 = vmatprep.subr.mxu0 0.0
        %5317 = vmatpush1.msra.mxu0 0.0
        %5318 = vmatprep.subr.mxu0 0.0
        %5319 = vmatpush1.msra.mxu0 0.0
        %5320 = vmatprep.subr.mxu0 0.0
        %5321 = vmatpush1.msra.mxu0 0.0
        %5322 = vmatprep.subr.mxu0 0.0
        %5323 = vmatpush1.msra.mxu0 0.0
        %5324 = vmatprep.subr.mxu0 0.0
        %5325 = vmatpush1.msra.mxu0 0.0
        %5326 = vmatprep.subr.mxu0 0.0
        %5327 = vmatpush1.msra.mxu0 0.0
        %5328 = vmatprep.subr.mxu0 0.0
        %5329 = vmatpush1.msra.mxu0 0.0
        %5330 = vmatprep.subr.mxu0 0.0
        %5331 = vmatpush1.msra.mxu0 0.0
        %5332 = vmatprep.subr.mxu0 0.0
        %5333 = vmatpush1.msra.mxu0 0.0
        %5334 = vmatprep.subr.mxu0 0.0
        %5335 = vmatpush1.msra.mxu0 0.0
        %5336 = vmatprep.subr.mxu0 0.0
        %5337 = vmatpush1.msra.mxu0 0.0
        %5338 = vmatprep.subr.mxu0 0.0
        %5339 = vmatpush1.msra.mxu0 0.0
        %5340 = vmatprep.subr.mxu0 0.0
        %5341 = vmatpush1.msra.mxu0 0.0
        %5342 = vmatprep.subr.mxu0 0.0
        %5343 = vmatpush1.msra.mxu0 0.0
        %5344 = vmatprep.subr.mxu0 0.0
        %5345 = vmatpush1.msra.mxu0 0.0
        %5346 = vmatprep.subr.mxu0 0.0
        %5347 = vmatpush1.msra.mxu0 0.0
        %5348 = vmatprep.mubr.f32.mxu0 0.0
        %5349 = vmatmul.mubr.f32.gmra.mrb[0].mxu0 %v5282
        %v5350 = vpop.f32.mrb[0].mxu0
        %v5351 = vadd.f32 %v5275, %v5350
        %v5352 = vpop.f32.mrb[0].mxu0
        %5353 = vdwg.mxu0
        %v5354 = vadd.f32 %v5351, %v3159
        %v5355 = vxor.u32 %v5354, 2147483648
        %v5356 = vmul.f32 %v5355, 1.442695
        %v5357 = vpow.pop %v5356
        %v5358 = vadd.f32 %v5357, 1.0
        %v5359 = vrcp.pop %v5358
        %v5360 = vmul.f32 1.0, %v5359
        %v5361 = vtanh.pop %v5354
        %v5362 = vmul.f32 %v5360, %v5095
        %5364 = vrot.lane.b32.xlu0 %v5361, 64
        %v5365 = vpop.permute.xlu0 %5364
        %v5367 = vmul.f32 %v5360, %v5365
        %5369 = vrot.lane.b32.xlu0 %v5367, 32
        %v5370 = vpop.permute.xlu0 %5369
        %v5372 = vadd.f32 %v5362, %v5370
        %v5373 = vtanh.pop %v5372
        %5375 = vrot.lane.b32.xlu0 %v5373, 64
        %v5376 = vpop.permute.xlu0 %5375
        %v5378 = vmul.f32 %v5360, %v5376
        %v5379 = vrot.slane %v3716, 7
        %v5381 = vrot.slane %v3993, 6
        %v5383 = vrot.slane %v4270, 5
        %vm5385 = vcmask 1040384
        %v5386 = vsel %vm5385, %v3439, %v5379
        %vm5387 = vcmask 1041408
        %v5388 = vsel %vm5387, %v5386, %v5381
        %vm5389 = vcmask 1042432
        %v5390 = vsel %vm5389, %v5388, %v5383
        %v5391 = vld [vmem:[%s13] sm:$0xff]
        %v5392 = vld [vmem:[%s13 + $0x8] sm:$0xff]
        %v5393 = vld [vmem:[%s13 + $0x10] sm:$0xff]
        %v5394 = vld [vmem:[%s13 + $0x18] sm:$0xff]
        %v5395 = vld [vmem:[#allocation23] sm:$0x1]
        %v5397 = vlaneseq
        %v5398 = vshrl.u32 %v5397, 7
        %v5399 = vsub.s32 0, %v5398
        %v5400 = vrot.slane %v5395, %v5399
        %5403 = vrot.lane.b32.xlu0 %v5390, 32
        %v5404 = vpop.permute.xlu0 %5403
        %v5405 = vsel %vm3160, %v5404, 0
        %5407 = vmatprep.subr.mxu0 0.0
        %5408 = vmatpush1.msra.mxu0 %v5391
        %5409 = vmatprep.subr.mxu0 0.0
        %5410 = vmatpush1.msra.mxu0 %v5392
        %5411 = vmatprep.subr.mxu0 0.0
        %5412 = vmatpush1.msra.mxu0 %v5393
        %5413 = vmatprep.subr.mxu0 0.0
        %5414 = vmatpush1.msra.mxu0 %v5394
        %5415 = vmatprep.subr.mxu0 0.0
        %5416 = vmatpush1.msra.mxu0 0.0
        %5417 = vmatprep.subr.mxu0 0.0
        %5418 = vmatpush1.msra.mxu0 0.0
        %5419 = vmatprep.subr.mxu0 0.0
        %5420 = vmatpush1.msra.mxu0 0.0
        %5421 = vmatprep.subr.mxu0 0.0
        %5422 = vmatpush1.msra.mxu0 0.0
        %5423 = vmatprep.subr.mxu0 0.0
        %5424 = vmatpush1.msra.mxu0 0.0
        %5425 = vmatprep.subr.mxu0 0.0
        %5426 = vmatpush1.msra.mxu0 0.0
        %5427 = vmatprep.subr.mxu0 0.0
        %5428 = vmatpush1.msra.mxu0 0.0
        %5429 = vmatprep.subr.mxu0 0.0
        %5430 = vmatpush1.msra.mxu0 0.0
        %5431 = vmatprep.subr.mxu0 0.0
        %5432 = vmatpush1.msra.mxu0 0.0
        %5433 = vmatprep.subr.mxu0 0.0
        %5434 = vmatpush1.msra.mxu0 0.0
        %5435 = vmatprep.subr.mxu0 0.0
        %5436 = vmatpush1.msra.mxu0 0.0
        %5437 = vmatprep.subr.mxu0 0.0
        %5438 = vmatpush1.msra.mxu0 0.0
        %5439 = vmatprep.subr.mxu0 0.0
        %5440 = vmatpush1.msra.mxu0 0.0
        %5441 = vmatprep.subr.mxu0 0.0
        %5442 = vmatpush1.msra.mxu0 0.0
        %5443 = vmatprep.subr.mxu0 0.0
        %5444 = vmatpush1.msra.mxu0 0.0
        %5445 = vmatprep.subr.mxu0 0.0
        %5446 = vmatpush1.msra.mxu0 0.0
        %5447 = vmatprep.subr.mxu0 0.0
        %5448 = vmatpush1.msra.mxu0 0.0
        %5449 = vmatprep.subr.mxu0 0.0
        %5450 = vmatpush1.msra.mxu0 0.0
        %5451 = vmatprep.subr.mxu0 0.0
        %5452 = vmatpush1.msra.mxu0 0.0
        %5453 = vmatprep.subr.mxu0 0.0
        %5454 = vmatpush1.msra.mxu0 0.0
        %5455 = vmatprep.subr.mxu0 0.0
        %5456 = vmatpush1.msra.mxu0 0.0
        %5457 = vmatprep.subr.mxu0 0.0
        %5458 = vmatpush1.msra.mxu0 0.0
        %5459 = vmatprep.subr.mxu0 0.0
        %5460 = vmatpush1.msra.mxu0 0.0
        %5461 = vmatprep.subr.mxu0 0.0
        %5462 = vmatpush1.msra.mxu0 0.0
        %5463 = vmatprep.subr.mxu0 0.0
        %5464 = vmatpush1.msra.mxu0 0.0
        %5465 = vmatprep.subr.mxu0 0.0
        %5466 = vmatpush1.msra.mxu0 0.0
        %5467 = vmatprep.subr.mxu0 0.0
        %5468 = vmatpush1.msra.mxu0 0.0
        %5469 = vmatprep.subr.mxu0 0.0
        %5470 = vmatpush1.msra.mxu0 0.0
        %5471 = vmatprep.mubr.f32.mxu0 0.0
        %5472 = vmatmul.mubr.f32.gmra.mrb[0].mxu0 %v5405
        %v5473 = vpop.f32.mrb[0].mxu0
        %v5474 = vadd.f32 %v5400, %v5473
        %v5475 = vpop.f32.mrb[0].mxu0
        %5476 = vdwg.mxu0
        %vm5477 = vcmask 60416
        %5478 = vst.msk [vmem:[%s900] sm:$0xf] %vm5477, %v5474
        %v5481 = vrot.slane %v5378, 7
        %v5483 = vsel %vm5385, %v5279, %v5481
        %5485 = vrot.lane.b32.xlu0 %v5483, 32
        %v5486 = vpop.permute.xlu0 %5485
        %vm5488 = vcmask 254976
        %5489 = vst.msk [vmem:[%s931] sm:$0x3] %vm5488, %v5486
        %v5491 = vrot.slane %v5196, 7
        %v5494 = vrot.slane %v5372, 7
        %v5496 = vsel %vm5385, %v5491, %v5494
        %5498 = vrot.lane.b32.xlu0 %v5496, 96
        %v5499 = vpop.permute.xlu0 %5498
        %5501 = vst.msk [vmem:[%s935] sm:$0x3] %vm5488, %v5499
        %s5502 = sand.u32 %s440, 1
        %s5503 = scalar_lea.sflag [#allocation4], %s5502
        %s5504 = sand.u32 %s440, 1
        %s5505 = smul.addr %s5504, 4
        %s5506 = scalar_lea.vmem [#allocation25], %s5505
        %s5507 = sand.u32 %s466, 1
        %s5508 = scalar_lea.sflag [#allocation27], %s5507
        %s5509 = sand.u32 %s466, 1
        %s5510 = smul.addr %s5509, 48
        %s5511 = scalar_lea.vmem [#allocation26], %s5510
        %p5512 = scmp.lt.s32.totalorder %s50, 1
        %s5513 = scalar_select %p5512, %s50, 1
        %s5514 = smul.addr %s5513, 2
        %s5515 = scalar_lea.vmem %s19, %s5514
        %p5516 = scmp.lt.s32.totalorder %s50, 1
        %s5517 = scalar_select %p5516, %s50, 1
        %s5518 = smul.addr %s5517, 2
        %s5519 = scalar_lea.vmem %s20, %s5518
        // Predicated region
        $region145: #{lstm_generator_forward.1} parent=87 // pred_check
          %p5520 = pneg %p450
        $region146: #{lstm_generator_forward.1} parent=87 // pred_check_branch
          %5522 = sbr.rel (%p5520) target = $region148
        $region147: #{lstm_generator_forward.1} parent=87 // pred_region
          %s5524 = ssub.s32 64, 64
          %5525 = vsyncadd %s5503, %s5524
          %s5526 = smul.addr %s50, 64
          %s5527 = scalar_lea.hbm %s17, %s5526
          %s5529 = sshll.u32 %s5506, 4
          %s5530 = int_to_ptr.vmem [resolvable:$true] %s5529
          %5532 = dma.vmem_to_hbm [thread:$0]  %s5530, 64, %s5527, %s5503
        $region148: #{lstm_generator_forward.1} parent=87 // pred_fallthru
          _
        // Predicated region
        $region149: #{lstm_generator_forward.1} parent=87 // pred_check
          %p5533 = pneg %p476
        $region150: #{lstm_generator_forward.1} parent=87 // pred_check_branch
          %5535 = sbr.rel (%p5533) target = $region152
        $region151: #{lstm_generator_forward.1} parent=87 // pred_region
          %s5537 = ssub.s32 768, 768
          %5538 = vsyncadd %s5508, %s5537
          %s5539 = smul.addr %s50, 6
          %s5540 = smul.addr %s5539, 128
          %s5541 = scalar_lea.hbm %s18, %s5540
          %s5543 = sshll.u32 %s5511, 4
          %s5544 = int_to_ptr.vmem [resolvable:$true] %s5543
          %5546 = dma.vmem_to_hbm [thread:$0]  %s5544, 768, %s5541, %s5508
        $region152: #{lstm_generator_forward.1} parent=87 // pred_fallthru
          _
        // Predicated region
        $region153: #{lstm_generator_forward.1} parent=87 // pred_check
          %p5547 = pneg %p502
        $region154: #{lstm_generator_forward.1} parent=87 // pred_check_branch
          %5549 = sbr.rel (%p5547) target = $region156
        $region155: #{lstm_generator_forward.1} parent=87 // pred_region
          _
        $region156: #{lstm_generator_forward.1} parent=87 // pred_fallthru
          _
        // Predicated region
        $region157: #{lstm_generator_forward.1} parent=87 // pred_check
          %p5550 = pneg %p528
        $region158: #{lstm_generator_forward.1} parent=87 // pred_check_branch
          %5552 = sbr.rel (%p5550) target = $region160
        $region159: #{lstm_generator_forward.1} parent=87 // pred_region
          _
        $region160: #{lstm_generator_forward.1} parent=87 // pred_fallthru
          _
      $region88: #{lstm_generator_forward.1} parent=5 // pred_fallthru
        _
      %p5553 = scmp.le.s32.totalorder 2, %s45
      // Predicated region
      $region161: #{lstm_generator_forward.1} parent=5 // pred_check
        %p5554 = pneg %p5553
      $region162: #{lstm_generator_forward.1} parent=5 // pred_check_branch
        %5556 = sbr.rel (%p5554) target = $region164
      $region163: #{lstm_generator_forward.1} parent=5 // pred_region
        %s5557 = ssub.s32 %s45, 2
        // Predicated region
        $region165: #{lstm_generator_forward.1} parent=163 // pred_check
          %p5558 = pneg %p456
        $region166: #{lstm_generator_forward.1} parent=163 // pred_check_branch
          %5560 = sbr.rel (%p5558) target = $region168
        $region167: #{lstm_generator_forward.1} parent=163 // pred_region
          %s5561 = sand.u32 %s441, 1
          %s5562 = scalar_lea.sflag [#allocation4], %s5561
          %s5563 = sand.u32 %s441, 1
          %s5564 = smul.addr %s5563, 4
          %s5565 = scalar_lea.vmem [#allocation25], %s5564
          %5566 = dma.done %s5562, 64
        $region168: #{lstm_generator_forward.1} parent=163 // pred_fallthru
          _
        // Predicated region
        $region169: #{lstm_generator_forward.1} parent=163 // pred_check
          %p5567 = pneg %p482
        $region170: #{lstm_generator_forward.1} parent=163 // pred_check_branch
          %5569 = sbr.rel (%p5567) target = $region172
        $region171: #{lstm_generator_forward.1} parent=163 // pred_region
          %s5570 = sand.u32 %s467, 1
          %s5571 = scalar_lea.sflag [#allocation27], %s5570
          %s5572 = sand.u32 %s467, 1
          %s5573 = smul.addr %s5572, 48
          %s5574 = scalar_lea.vmem [#allocation26], %s5573
          %5575 = dma.done %s5571, 768
        $region172: #{lstm_generator_forward.1} parent=163 // pred_fallthru
          _
        // Predicated region
        $region173: #{lstm_generator_forward.1} parent=163 // pred_check
          %p5576 = pneg %p508
        $region174: #{lstm_generator_forward.1} parent=163 // pred_check_branch
          %5578 = sbr.rel (%p5576) target = $region176
        $region175: #{lstm_generator_forward.1} parent=163 // pred_region
          %p5579 = scmp.lt.s32.totalorder %s51, 1
          %s5580 = scalar_select %p5579, %s51, 1
          %s5581 = smul.addr %s5580, 2
          %s5582 = scalar_lea.vmem %s19, %s5581
        $region176: #{lstm_generator_forward.1} parent=163 // pred_fallthru
          _
        // Predicated region
        $region177: #{lstm_generator_forward.1} parent=163 // pred_check
          %p5583 = pneg %p534
        $region178: #{lstm_generator_forward.1} parent=163 // pred_check_branch
          %5585 = sbr.rel (%p5583) target = $region180
        $region179: #{lstm_generator_forward.1} parent=163 // pred_region
          %p5586 = scmp.lt.s32.totalorder %s51, 1
          %s5587 = scalar_select %p5586, %s51, 1
          %s5588 = smul.addr %s5587, 2
          %s5589 = scalar_lea.vmem %s20, %s5588
        $region180: #{lstm_generator_forward.1} parent=163 // pred_fallthru
          _
      $region164: #{lstm_generator_forward.1} parent=5 // pred_fallthru
        _
    $region6: #{lstm_generator_forward.1} parent=1 // loop_footer
      %s49 = sadd.s32 1, %s45
    $region7: #{lstm_generator_forward.1} parent=1 // loop_footer_branch
      %44 = sbr.rel target = $region3
    $region8: #{lstm_generator_forward.1} parent=1 // loop_exit
      _
    %5590 = vsyncpa [#allocation3], 1
    %s5591 = scalar_lea.sflag [#allocation3], 1
    %5592 = vsyncpa %s5591, 1
    %5593 = vsyncpa [#allocation6], 1
    %s5594 = scalar_lea.sflag [#allocation6], 1
    %5595 = vsyncpa %s5594, 1
    %5596 = vsyncpa [#allocation9], 1
    %5597 = vsyncpa [#allocation12], 1
    %5598 = vsyncpa [#allocation15], 1
    %5599 = vsyncpa [#allocation18], 1
    %5600 = vsyncpa [#allocation21], 1
    %5601 = vsyncpa [#allocation24], 1
    %5602 = vsyncpa [#allocation4], 1
    %s5603 = scalar_lea.sflag [#allocation4], 1
    %5604 = vsyncpa %s5603, 1
    %5605 = vsyncpa [#allocation27], 1
    %s5606 = scalar_lea.sflag [#allocation27], 1
    %5607 = vsyncpa %s5606, 1

</llo_original>
